<compile_context>
chip_gen: v6e
topology: v6e:2x2x1
jax: 0.10.0
libtpu: 0.0.40
codegen_flags: <defaults>
</compile_context>

<pallas_src>
import jax
import jax.numpy as jnp
from jax.experimental import pallas as pl
from jax.experimental.pallas import tpu as pltpu

EPS = 1e-5


def _basic_block_kernel(x_ref, w1_ref, g1_ref, b1_ref, w2_ref, g2_ref, b2_ref,
                        out_ref, pad_ref, col_ref):
    N, H, W, C = x_ref.shape
    M = N * H * W
    inv_cnt = 1.0 / float(M)

    # ---- zero ONLY the 1-pixel halo ring of the shared padded scratch -------
    pad_ref[:, 0:1, :, :] = jnp.zeros((N, 1, W + 2, C), jnp.float32)
    pad_ref[:, H + 1:H + 2, :, :] = jnp.zeros((N, 1, W + 2, C), jnp.float32)
    pad_ref[:, :, 0:1, :] = jnp.zeros((N, H + 2, 1, C), jnp.float32)
    pad_ref[:, :, W + 1:W + 2, :] = jnp.zeros((N, H + 2, 1, C), jnp.float32)

    def conv3x3(w_ref):
        # im2col: gather the 9 shifted windows into one (M, 9C) bf16 slab,
        # then a single MXU matmul with contraction K = 9C (f32 accumulate).
        for k in range(9):
            dy, dx = k // 3, k % 3
            col_ref[:, k * C:(k + 1) * C] = (
                pad_ref[:, dy:dy + H, dx:dx + W, :]
                .reshape(M, C).astype(jnp.bfloat16))
        return jnp.dot(col_ref[...], w_ref[...],
                       preferred_element_type=jnp.float32)        # (M, C) f32

    def batchnorm(acc, g_ref, b_ref):
        # one-pass training-mode batch stats (biased variance over N,H,W),
        # folded into per-channel scale/shift (single FMA on the big tensor).
        mean = jnp.sum(acc, axis=0, keepdims=True) * inv_cnt
        msq = jnp.sum(acc * acc, axis=0, keepdims=True) * inv_cnt
        var = jnp.maximum(msq - mean * mean, 0.0)
        scale = g_ref[...] * jax.lax.rsqrt(var + EPS)
        shift = b_ref[...] - mean * scale
        return acc * scale + shift

    # ---------------- conv1 -> BN1 -> relu -----------------------------------
    pad_ref[:, 1:H + 1, 1:W + 1, :] = x_ref[...]
    y1 = jnp.maximum(batchnorm(conv3x3(w1_ref), g1_ref, b1_ref), 0.0)

    # -------- conv2 -> BN2 (reuse the same padded scratch, in place) ---------
    pad_ref[:, 1:H + 1, 1:W + 1, :] = y1.reshape(N, H, W, C)
    y2 = batchnorm(conv3x3(w2_ref), g2_ref, b2_ref)

    # ---- shortcut1 / shortcut2: identity (_MatchableShorcut, is_client) -----
    # TODO(synk): the non-client permutation-averaging / index_add_ remap path
    # of _ShortcutNonExpanding and the strided 1x1-conv projection shortcut
    # variant (stride != 1 or in_planes != planes) are not implemented -- they
    # need runtime root_module permutation state.
    out = jnp.maximum(y2 + x_ref[...].reshape(M, C), 0.0)
    out_ref[...] = out.reshape(N, H, W, C).astype(out_ref.dtype)


def unordered_basic_block(x_nhwc, params):
    """x_nhwc: (N, H, W, C) float32 (NHWC -- no layout transposes needed).
    params: (w1, g1, b1, w2, g2, b2), conv weights in HWIO layout (3,3,C,C)."""
    w1, g1, b1, w2, g2, b2 = params
    x = x_nhwc.astype(jnp.float32)
    N, H, W, C = x.shape
    M = N * H * W

    # flatten HWIO -> (9C, C) for the im2col matmul; bf16 operands, f32 accum.
    w1f = w1.reshape(9 * C, C).astype(jnp.bfloat16)
    w2f = w2.reshape(9 * C, C).astype(jnp.bfloat16)
    g1r = g1.reshape(1, C).astype(jnp.float32)
    b1r = b1.reshape(1, C).astype(jnp.float32)
    g2r = g2.reshape(1, C).astype(jnp.float32)
    b2r = b2.reshape(1, C).astype(jnp.float32)

    def full(shape):
        n = len(shape)
        return pl.BlockSpec(shape, lambda i: (0,) * n)

    out = pl.pallas_call(
        _basic_block_kernel,
        out_shape=jax.ShapeDtypeStruct((N, H, W, C), jnp.float32),
        grid=(1,),
        in_specs=[full((N, H, W, C)),
                  full((9 * C, C)), full((1, C)), full((1, C)),
                  full((9 * C, C)), full((1, C)), full((1, C))],
        out_specs=full((N, H, W, C)),
        scratch_shapes=[pltpu.VMEM((N, H + 2, W + 2, C), jnp.float32),
                        pltpu.VMEM((M, 9 * C), jnp.bfloat16)],
        compiler_params=pltpu.CompilerParams(
            dimension_semantics=("arbitrary",),
            vmem_limit_bytes=48 * 1024 * 1024),
    )(x, w1f, g1r, b1r, w2f, g2r, b2r)
    return out


# ----------------------- pure-JAX reference (NHWC) ---------------------------
def _ref_block_nhwc(x, params, *, bf16_matmul_inputs=False):
    w1, g1, b1, w2, g2, b2 = params

    def conv3x3(v, w):
        if bf16_matmul_inputs:   # mirror the kernel's bf16 MXU operands
            v = v.astype(jnp.bfloat16).astype(jnp.float32)
            w = w.astype(jnp.bfloat16).astype(jnp.float32)
        return jax.lax.conv_general_dilated(
            v, w, window_strides=(1, 1), padding="SAME",
            dimension_numbers=("NHWC", "HWIO", "NHWC"))

    def bn(v, g, b):
        mean = jnp.mean(v, axis=(0, 1, 2), keepdims=True)
        var = jnp.mean((v - mean) ** 2, axis=(0, 1, 2), keepdims=True)
        return (v - mean) * jax.lax.rsqrt(var + EPS) * g + b

    y = jax.nn.relu(bn(conv3x3(x, w1), g1, b1))
    y = bn(conv3x3(y, w2), g2, b2)
    return jax.nn.relu(y + x)   # identity shortcuts


if __name__ == "__main__":
    N, H, W, C = 2, 16, 16, 8       # in_planes == planes, stride == 1
    key = jax.random.PRNGKey(0)
    k1, k2, k3, k4, k5, k6, k7 = jax.random.split(key, 7)

    x = jax.random.normal(k1, (N, H, W, C), jnp.float32)          # NHWC
    w1 = jax.random.normal(k2, (3, 3, C, C), jnp.float32) * 0.2   # HWIO
    w2 = jax.random.normal(k3, (3, 3, C, C), jnp.float32) * 0.2
    g1 = 1.0 + 0.1 * jax.random.normal(k4, (C,), jnp.float32)
    b1 = 0.1 * jax.random.normal(k5, (C,), jnp.float32)
    g2 = 1.0 + 0.1 * jax.random.normal(k6, (C,), jnp.float32)
    b2 = 0.1 * jax.random.normal(k7, (C,), jnp.float32)
    params = (w1, g1, b1, w2, g2, b2)

    out = jax.block_until_ready(unordered_basic_block(x, params))
    assert out.shape == (N, H, W, C) and out.dtype == jnp.float32

    # tight check vs a reference whose conv operands are bf16-quantized like
    # the kernel's MXU inputs (accumulation-order noise only)
    ref_bf16 = _ref_block_nhwc(x, params, bf16_matmul_inputs=True)
    err = float(jnp.max(jnp.abs(out - ref_bf16)))
    assert err < 5e-3, f"max abs error vs bf16-matched reference: {err}"

    # loose sanity check vs exact f32 module semantics (bound accounts for the
    # deliberate bf16 conv-input rounding)
    ref_f32 = _ref_block_nhwc(x, params, bf16_matmul_inputs=False)
    err_f32 = float(jnp.max(jnp.abs(out - ref_f32)))
    assert err_f32 < 0.3, f"max abs error vs f32 reference: {err_f32}"

    print("KERNEL_OK")
</pallas_src>

<mosaic_0001>
module attributes {stable_mosaic.version = 11 : i64} {
  func.func @_basic_block_kernel(%arg0: i32, %arg1: memref<2x16x16x8xf32, #tpu.memory_space<vmem>>, %arg2: memref<72x8xbf16, #tpu.memory_space<vmem>>, %arg3: memref<1x8xf32, #tpu.memory_space<vmem>>, %arg4: memref<1x8xf32, #tpu.memory_space<vmem>>, %arg5: memref<72x8xbf16, #tpu.memory_space<vmem>>, %arg6: memref<1x8xf32, #tpu.memory_space<vmem>>, %arg7: memref<1x8xf32, #tpu.memory_space<vmem>>, %arg8: memref<2x16x16x8xf32, #tpu.memory_space<vmem>>, %arg9: memref<2x18x18x8xf32, #tpu.memory_space<vmem>>, %arg10: memref<512x72xbf16, #tpu.memory_space<vmem>>) attributes {dimension_semantics = [#tpu.dimension_semantics<arbitrary>], iteration_bounds = array<i64: 1>, scalar_prefetch = 0 : i64, scratch_operands = 2 : i64, tpu.core_type = #tpu.core_type<tc>, window_params = [{pipeline_mode = #tpu.pipeline_mode<synchronous>, transform_indices = @transform_0, window_bounds = array<i64: 2, 16, 16, 8>}, {pipeline_mode = #tpu.pipeline_mode<synchronous>, transform_indices = @transform_1, window_bounds = array<i64: 72, 8>}, {pipeline_mode = #tpu.pipeline_mode<synchronous>, transform_indices = @transform_2, window_bounds = array<i64: 1, 8>}, {pipeline_mode = #tpu.pipeline_mode<synchronous>, transform_indices = @transform_3, window_bounds = array<i64: 1, 8>}, {pipeline_mode = #tpu.pipeline_mode<synchronous>, transform_indices = @transform_4, window_bounds = array<i64: 72, 8>}, {pipeline_mode = #tpu.pipeline_mode<synchronous>, transform_indices = @transform_5, window_bounds = array<i64: 1, 8>}, {pipeline_mode = #tpu.pipeline_mode<synchronous>, transform_indices = @transform_6, window_bounds = array<i64: 1, 8>}, {pipeline_mode = #tpu.pipeline_mode<synchronous>, transform_indices = @transform_7, window_bounds = array<i64: 2, 16, 16, 8>}]} {
    %cst = arith.constant 0.000000e+00 : f32
    %0 = vector.broadcast %cst : f32 to vector<2x1x18x8xf32>
    %c0 = arith.constant 0 : index
    %c0_0 = arith.constant 0 : index
    %c0_1 = arith.constant 0 : index
    %c0_2 = arith.constant 0 : index
    %1 = vector.load %arg9[%c0, %c0_0, %c0_1, %c0_2] : memref<2x18x18x8xf32, #tpu.memory_space<vmem>>, vector<2x1x18x8xf32>
    tpu.vector_store %arg9[%c0, %c0_0, %c0_1, %c0_2], %0 {strides = array<i32>} : memref<2x18x18x8xf32, #tpu.memory_space<vmem>>, vector<2x1x18x8xf32>,
    %cst_3 = arith.constant 0.000000e+00 : f32
    %2 = vector.broadcast %cst_3 : f32 to vector<2x1x18x8xf32>
    %c0_4 = arith.constant 0 : index
    %c17 = arith.constant 17 : index
    %c0_5 = arith.constant 0 : index
    %c0_6 = arith.constant 0 : index
    %3 = vector.load %arg9[%c0_4, %c17, %c0_5, %c0_6] : memref<2x18x18x8xf32, #tpu.memory_space<vmem>>, vector<2x1x18x8xf32>
    tpu.vector_store %arg9[%c0_4, %c17, %c0_5, %c0_6], %2 {strides = array<i32>} : memref<2x18x18x8xf32, #tpu.memory_space<vmem>>, vector<2x1x18x8xf32>,
    %cst_7 = arith.constant 0.000000e+00 : f32
    %4 = vector.broadcast %cst_7 : f32 to vector<2x18x1x8xf32>
    %c0_8 = arith.constant 0 : index
    %c0_9 = arith.constant 0 : index
    %c0_10 = arith.constant 0 : index
    %c0_11 = arith.constant 0 : index
    %5 = vector.load %arg9[%c0_8, %c0_9, %c0_10, %c0_11] : memref<2x18x18x8xf32, #tpu.memory_space<vmem>>, vector<2x18x1x8xf32>
    tpu.vector_store %arg9[%c0_8, %c0_9, %c0_10, %c0_11], %4 {strides = array<i32>} : memref<2x18x18x8xf32, #tpu.memory_space<vmem>>, vector<2x18x1x8xf32>,
    %cst_12 = arith.constant 0.000000e+00 : f32
    %6 = vector.broadcast %cst_12 : f32 to vector<2x18x1x8xf32>
    %c0_13 = arith.constant 0 : index
    %c0_14 = arith.constant 0 : index
    %c17_15 = arith.constant 17 : index
    %c0_16 = arith.constant 0 : index
    %7 = vector.load %arg9[%c0_13, %c0_14, %c17_15, %c0_16] : memref<2x18x18x8xf32, #tpu.memory_space<vmem>>, vector<2x18x1x8xf32>
    tpu.vector_store %arg9[%c0_13, %c0_14, %c17_15, %c0_16], %6 {strides = array<i32>} : memref<2x18x18x8xf32, #tpu.memory_space<vmem>>, vector<2x18x1x8xf32>,
    %c0_17 = arith.constant 0 : index
    %c0_18 = arith.constant 0 : index
    %c0_19 = arith.constant 0 : index
    %c0_20 = arith.constant 0 : index
    %8 = vector.load %arg1[%c0_17, %c0_18, %c0_19, %c0_20] : memref<2x16x16x8xf32, #tpu.memory_space<vmem>>, vector<2x16x16x8xf32>
    %c0_21 = arith.constant 0 : index
    %c1 = arith.constant 1 : index
    %c1_22 = arith.constant 1 : index
    %c0_23 = arith.constant 0 : index
    %9 = vector.load %arg9[%c0_21, %c1, %c1_22, %c0_23] : memref<2x18x18x8xf32, #tpu.memory_space<vmem>>, vector<2x16x16x8xf32>
    tpu.vector_store %arg9[%c0_21, %c1, %c1_22, %c0_23], %8 {strides = array<i32>} : memref<2x18x18x8xf32, #tpu.memory_space<vmem>>, vector<2x16x16x8xf32>,
    %c0_24 = arith.constant 0 : index
    %c0_25 = arith.constant 0 : index
    %c0_26 = arith.constant 0 : index
    %c0_27 = arith.constant 0 : index
    %10 = vector.load %arg9[%c0_24, %c0_25, %c0_26, %c0_27] : memref<2x18x18x8xf32, #tpu.memory_space<vmem>>, vector<2x16x16x8xf32>
    %11 = vector.shape_cast %10 : vector<2x16x16x8xf32> to vector<512x8xf32>
    %12 = arith.truncf %11 : vector<512x8xf32> to vector<512x8xbf16>
    %c0_28 = arith.constant 0 : index
    %c0_29 = arith.constant 0 : index
    %13 = vector.load %arg10[%c0_28, %c0_29] : memref<512x72xbf16, #tpu.memory_space<vmem>>, vector<512x8xbf16>
    tpu.vector_store %arg10[%c0_28, %c0_29], %12 {strides = array<i32>} : memref<512x72xbf16, #tpu.memory_space<vmem>>, vector<512x8xbf16>,
    %c0_30 = arith.constant 0 : index
    %c0_31 = arith.constant 0 : index
    %c1_32 = arith.constant 1 : index
    %c0_33 = arith.constant 0 : index
    %14 = vector.load %arg9[%c0_30, %c0_31, %c1_32, %c0_33] : memref<2x18x18x8xf32, #tpu.memory_space<vmem>>, vector<2x16x16x8xf32>
    %15 = vector.shape_cast %14 : vector<2x16x16x8xf32> to vector<512x8xf32>
    %16 = arith.truncf %15 : vector<512x8xf32> to vector<512x8xbf16>
    %c0_34 = arith.constant 0 : index
    %c8 = arith.constant 8 : index
    %17 = vector.load %arg10[%c0_34, %c8] : memref<512x72xbf16, #tpu.memory_space<vmem>>, vector<512x8xbf16>
    tpu.vector_store %arg10[%c0_34, %c8], %16 {strides = array<i32>} : memref<512x72xbf16, #tpu.memory_space<vmem>>, vector<512x8xbf16>,
    %c0_35 = arith.constant 0 : index
    %c0_36 = arith.constant 0 : index
    %c2 = arith.constant 2 : index
    %c0_37 = arith.constant 0 : index
    %18 = vector.load %arg9[%c0_35, %c0_36, %c2, %c0_37] : memref<2x18x18x8xf32, #tpu.memory_space<vmem>>, vector<2x16x16x8xf32>
    %19 = vector.shape_cast %18 : vector<2x16x16x8xf32> to vector<512x8xf32>
    %20 = arith.truncf %19 : vector<512x8xf32> to vector<512x8xbf16>
    %c0_38 = arith.constant 0 : index
    %c16 = arith.constant 16 : index
    %21 = vector.load %arg10[%c0_38, %c16] : memref<512x72xbf16, #tpu.memory_space<vmem>>, vector<512x8xbf16>
    tpu.vector_store %arg10[%c0_38, %c16], %20 {strides = array<i32>} : memref<512x72xbf16, #tpu.memory_space<vmem>>, vector<512x8xbf16>,
    %c0_39 = arith.constant 0 : index
    %c1_40 = arith.constant 1 : index
    %c0_41 = arith.constant 0 : index
    %c0_42 = arith.constant 0 : index
    %22 = vector.load %arg9[%c0_39, %c1_40, %c0_41, %c0_42] : memref<2x18x18x8xf32, #tpu.memory_space<vmem>>, vector<2x16x16x8xf32>
    %23 = vector.shape_cast %22 : vector<2x16x16x8xf32> to vector<512x8xf32>
    %24 = arith.truncf %23 : vector<512x8xf32> to vector<512x8xbf16>
    %c0_43 = arith.constant 0 : index
    %c24 = arith.constant 24 : index
    %25 = vector.load %arg10[%c0_43, %c24] : memref<512x72xbf16, #tpu.memory_space<vmem>>, vector<512x8xbf16>
    tpu.vector_store %arg10[%c0_43, %c24], %24 {strides = array<i32>} : memref<512x72xbf16, #tpu.memory_space<vmem>>, vector<512x8xbf16>,
    %c0_44 = arith.constant 0 : index
    %c1_45 = arith.constant 1 : index
    %c1_46 = arith.constant 1 : index
    %c0_47 = arith.constant 0 : index
    %26 = vector.load %arg9[%c0_44, %c1_45, %c1_46, %c0_47] : memref<2x18x18x8xf32, #tpu.memory_space<vmem>>, vector<2x16x16x8xf32>
    %27 = vector.shape_cast %26 : vector<2x16x16x8xf32> to vector<512x8xf32>
    %28 = arith.truncf %27 : vector<512x8xf32> to vector<512x8xbf16>
    %c0_48 = arith.constant 0 : index
    %c32 = arith.constant 32 : index
    %29 = vector.load %arg10[%c0_48, %c32] : memref<512x72xbf16, #tpu.memory_space<vmem>>, vector<512x8xbf16>
    tpu.vector_store %arg10[%c0_48, %c32], %28 {strides = array<i32>} : memref<512x72xbf16, #tpu.memory_space<vmem>>, vector<512x8xbf16>,
    %c0_49 = arith.constant 0 : index
    %c1_50 = arith.constant 1 : index
    %c2_51 = arith.constant 2 : index
    %c0_52 = arith.constant 0 : index
    %30 = vector.load %arg9[%c0_49, %c1_50, %c2_51, %c0_52] : memref<2x18x18x8xf32, #tpu.memory_space<vmem>>, vector<2x16x16x8xf32>
    %31 = vector.shape_cast %30 : vector<2x16x16x8xf32> to vector<512x8xf32>
    %32 = arith.truncf %31 : vector<512x8xf32> to vector<512x8xbf16>
    %c0_53 = arith.constant 0 : index
    %c40 = arith.constant 40 : index
    %33 = vector.load %arg10[%c0_53, %c40] : memref<512x72xbf16, #tpu.memory_space<vmem>>, vector<512x8xbf16>
    tpu.vector_store %arg10[%c0_53, %c40], %32 {strides = array<i32>} : memref<512x72xbf16, #tpu.memory_space<vmem>>, vector<512x8xbf16>,
    %c0_54 = arith.constant 0 : index
    %c2_55 = arith.constant 2 : index
    %c0_56 = arith.constant 0 : index
    %c0_57 = arith.constant 0 : index
    %34 = vector.load %arg9[%c0_54, %c2_55, %c0_56, %c0_57] : memref<2x18x18x8xf32, #tpu.memory_space<vmem>>, vector<2x16x16x8xf32>
    %35 = vector.shape_cast %34 : vector<2x16x16x8xf32> to vector<512x8xf32>
    %36 = arith.truncf %35 : vector<512x8xf32> to vector<512x8xbf16>
    %c0_58 = arith.constant 0 : index
    %c48 = arith.constant 48 : index
    %37 = vector.load %arg10[%c0_58, %c48] : memref<512x72xbf16, #tpu.memory_space<vmem>>, vector<512x8xbf16>
    tpu.vector_store %arg10[%c0_58, %c48], %36 {strides = array<i32>} : memref<512x72xbf16, #tpu.memory_space<vmem>>, vector<512x8xbf16>,
    %c0_59 = arith.constant 0 : index
    %c2_60 = arith.constant 2 : index
    %c1_61 = arith.constant 1 : index
    %c0_62 = arith.constant 0 : index
    %38 = vector.load %arg9[%c0_59, %c2_60, %c1_61, %c0_62] : memref<2x18x18x8xf32, #tpu.memory_space<vmem>>, vector<2x16x16x8xf32>
    %39 = vector.shape_cast %38 : vector<2x16x16x8xf32> to vector<512x8xf32>
    %40 = arith.truncf %39 : vector<512x8xf32> to vector<512x8xbf16>
    %c0_63 = arith.constant 0 : index
    %c56 = arith.constant 56 : index
    %41 = vector.load %arg10[%c0_63, %c56] : memref<512x72xbf16, #tpu.memory_space<vmem>>, vector<512x8xbf16>
    tpu.vector_store %arg10[%c0_63, %c56], %40 {strides = array<i32>} : memref<512x72xbf16, #tpu.memory_space<vmem>>, vector<512x8xbf16>,
    %c0_64 = arith.constant 0 : index
    %c2_65 = arith.constant 2 : index
    %c2_66 = arith.constant 2 : index
    %c0_67 = arith.constant 0 : index
    %42 = vector.load %arg9[%c0_64, %c2_65, %c2_66, %c0_67] : memref<2x18x18x8xf32, #tpu.memory_space<vmem>>, vector<2x16x16x8xf32>
    %43 = vector.shape_cast %42 : vector<2x16x16x8xf32> to vector<512x8xf32>
    %44 = arith.truncf %43 : vector<512x8xf32> to vector<512x8xbf16>
    %c0_68 = arith.constant 0 : index
    %c64 = arith.constant 64 : index
    %45 = vector.load %arg10[%c0_68, %c64] : memref<512x72xbf16, #tpu.memory_space<vmem>>, vector<512x8xbf16>
    tpu.vector_store %arg10[%c0_68, %c64], %44 {strides = array<i32>} : memref<512x72xbf16, #tpu.memory_space<vmem>>, vector<512x8xbf16>,
    %c0_69 = arith.constant 0 : index
    %c0_70 = arith.constant 0 : index
    %46 = vector.load %arg10[%c0_69, %c0_70] : memref<512x72xbf16, #tpu.memory_space<vmem>>, vector<512x72xbf16>
    %c0_71 = arith.constant 0 : index
    %c0_72 = arith.constant 0 : index
    %47 = vector.load %arg2[%c0_71, %c0_72] : memref<72x8xbf16, #tpu.memory_space<vmem>>, vector<72x8xbf16>
    %cst_73 = arith.constant dense<0.000000e+00> : vector<512x8xf32>
    %48 = tpu.matmul %46, %47, %cst_73 {dimension_numbers = #tpu.dot_dimension_numbers<[1], [0], [0], [1], [0, 0, 1, 1], [], []>} : vector<512x72xbf16>, vector<72x8xbf16>, vector<512x8xf32> -> vector<512x8xf32>
    %cst_74 = arith.constant dense<0.000000e+00> : vector<8xf32>
    %49 = vector.multi_reduction <add>, %48, %cst_74 [0] : vector<512x8xf32> to vector<8xf32>
    %50 = vector.shape_cast %49 : vector<8xf32> to vector<1x8xf32>
    %cst_75 = arith.constant 0.001953125 : f32
    %51 = vector.broadcast %cst_75 : f32 to vector<1x8xf32>
    %52 = arith.mulf %50, %51 : vector<1x8xf32>
    %53 = arith.mulf %48, %48 : vector<512x8xf32>
    %cst_76 = arith.constant dense<0.000000e+00> : vector<8xf32>
    %54 = vector.multi_reduction <add>, %53, %cst_76 [0] : vector<512x8xf32> to vector<8xf32>
    %55 = vector.shape_cast %54 : vector<8xf32> to vector<1x8xf32>
    %cst_77 = arith.constant 0.001953125 : f32
    %56 = vector.broadcast %cst_77 : f32 to vector<1x8xf32>
    %57 = arith.mulf %55, %56 : vector<1x8xf32>
    %58 = arith.mulf %52, %52 : vector<1x8xf32>
    %59 = arith.subf %57, %58 : vector<1x8xf32>
    %cst_78 = arith.constant 0.000000e+00 : f32
    %60 = vector.broadcast %cst_78 : f32 to vector<1x8xf32>
    %61 = arith.maximumf %59, %60 : vector<1x8xf32>
    %c0_79 = arith.constant 0 : index
    %c0_80 = arith.constant 0 : index
    %62 = vector.load %arg3[%c0_79, %c0_80] : memref<1x8xf32, #tpu.memory_space<vmem>>, vector<1x8xf32>
    %cst_81 = arith.constant 9.99999974E-6 : f32
    %63 = vector.broadcast %cst_81 : f32 to vector<1x8xf32>
    %64 = arith.addf %61, %63 : vector<1x8xf32>
    %65 = math.rsqrt %64 : vector<1x8xf32>
    %66 = arith.mulf %62, %65 : vector<1x8xf32>
    %c0_82 = arith.constant 0 : index
    %c0_83 = arith.constant 0 : index
    %67 = vector.load %arg4[%c0_82, %c0_83] : memref<1x8xf32, #tpu.memory_space<vmem>>, vector<1x8xf32>
    %68 = arith.mulf %52, %66 : vector<1x8xf32>
    %69 = arith.subf %67, %68 : vector<1x8xf32>
    %70 = vector.broadcast %66 : vector<1x8xf32> to vector<512x8xf32>
    %71 = arith.mulf %48, %70 : vector<512x8xf32>
    %72 = vector.broadcast %69 : vector<1x8xf32> to vector<512x8xf32>
    %73 = arith.addf %71, %72 : vector<512x8xf32>
    %cst_84 = arith.constant 0.000000e+00 : f32
    %74 = vector.broadcast %cst_84 : f32 to vector<512x8xf32>
    %75 = arith.maximumf %73, %74 : vector<512x8xf32>
    %76 = vector.shape_cast %75 : vector<512x8xf32> to vector<2x16x16x8xf32>
    %c0_85 = arith.constant 0 : index
    %c1_86 = arith.constant 1 : index
    %c1_87 = arith.constant 1 : index
    %c0_88 = arith.constant 0 : index
    %77 = vector.load %arg9[%c0_85, %c1_86, %c1_87, %c0_88] : memref<2x18x18x8xf32, #tpu.memory_space<vmem>>, vector<2x16x16x8xf32>
    tpu.vector_store %arg9[%c0_85, %c1_86, %c1_87, %c0_88], %76 {strides = array<i32>} : memref<2x18x18x8xf32, #tpu.memory_space<vmem>>, vector<2x16x16x8xf32>,
    %c0_89 = arith.constant 0 : index
    %c0_90 = arith.constant 0 : index
    %c0_91 = arith.constant 0 : index
    %c0_92 = arith.constant 0 : index
    %78 = vector.load %arg9[%c0_89, %c0_90, %c0_91, %c0_92] : memref<2x18x18x8xf32, #tpu.memory_space<vmem>>, vector<2x16x16x8xf32>
    %79 = vector.shape_cast %78 : vector<2x16x16x8xf32> to vector<512x8xf32>
    %80 = arith.truncf %79 : vector<512x8xf32> to vector<512x8xbf16>
    %c0_93 = arith.constant 0 : index
    %c0_94 = arith.constant 0 : index
    %81 = vector.load %arg10[%c0_93, %c0_94] : memref<512x72xbf16, #tpu.memory_space<vmem>>, vector<512x8xbf16>
    tpu.vector_store %arg10[%c0_93, %c0_94], %80 {strides = array<i32>} : memref<512x72xbf16, #tpu.memory_space<vmem>>, vector<512x8xbf16>,
    %c0_95 = arith.constant 0 : index
    %c0_96 = arith.constant 0 : index
    %c1_97 = arith.constant 1 : index
    %c0_98 = arith.constant 0 : index
    %82 = vector.load %arg9[%c0_95, %c0_96, %c1_97, %c0_98] : memref<2x18x18x8xf32, #tpu.memory_space<vmem>>, vector<2x16x16x8xf32>
    %83 = vector.shape_cast %82 : vector<2x16x16x8xf32> to vector<512x8xf32>
    %84 = arith.truncf %83 : vector<512x8xf32> to vector<512x8xbf16>
    %c0_99 = arith.constant 0 : index
    %c8_100 = arith.constant 8 : index
    %85 = vector.load %arg10[%c0_99, %c8_100] : memref<512x72xbf16, #tpu.memory_space<vmem>>, vector<512x8xbf16>
    tpu.vector_store %arg10[%c0_99, %c8_100], %84 {strides = array<i32>} : memref<512x72xbf16, #tpu.memory_space<vmem>>, vector<512x8xbf16>,
    %c0_101 = arith.constant 0 : index
    %c0_102 = arith.constant 0 : index
    %c2_103 = arith.constant 2 : index
    %c0_104 = arith.constant 0 : index
    %86 = vector.load %arg9[%c0_101, %c0_102, %c2_103, %c0_104] : memref<2x18x18x8xf32, #tpu.memory_space<vmem>>, vector<2x16x16x8xf32>
    %87 = vector.shape_cast %86 : vector<2x16x16x8xf32> to vector<512x8xf32>
    %88 = arith.truncf %87 : vector<512x8xf32> to vector<512x8xbf16>
    %c0_105 = arith.constant 0 : index
    %c16_106 = arith.constant 16 : index
    %89 = vector.load %arg10[%c0_105, %c16_106] : memref<512x72xbf16, #tpu.memory_space<vmem>>, vector<512x8xbf16>
    tpu.vector_store %arg10[%c0_105, %c16_106], %88 {strides = array<i32>} : memref<512x72xbf16, #tpu.memory_space<vmem>>, vector<512x8xbf16>,
    %c0_107 = arith.constant 0 : index
    %c1_108 = arith.constant 1 : index
    %c0_109 = arith.constant 0 : index
    %c0_110 = arith.constant 0 : index
    %90 = vector.load %arg9[%c0_107, %c1_108, %c0_109, %c0_110] : memref<2x18x18x8xf32, #tpu.memory_space<vmem>>, vector<2x16x16x8xf32>
    %91 = vector.shape_cast %90 : vector<2x16x16x8xf32> to vector<512x8xf32>
    %92 = arith.truncf %91 : vector<512x8xf32> to vector<512x8xbf16>
    %c0_111 = arith.constant 0 : index
    %c24_112 = arith.constant 24 : index
    %93 = vector.load %arg10[%c0_111, %c24_112] : memref<512x72xbf16, #tpu.memory_space<vmem>>, vector<512x8xbf16>
    tpu.vector_store %arg10[%c0_111, %c24_112], %92 {strides = array<i32>} : memref<512x72xbf16, #tpu.memory_space<vmem>>, vector<512x8xbf16>,
    %c0_113 = arith.constant 0 : index
    %c1_114 = arith.constant 1 : index
    %c1_115 = arith.constant 1 : index
    %c0_116 = arith.constant 0 : index
    %94 = vector.load %arg9[%c0_113, %c1_114, %c1_115, %c0_116] : memref<2x18x18x8xf32, #tpu.memory_space<vmem>>, vector<2x16x16x8xf32>
    %95 = vector.shape_cast %94 : vector<2x16x16x8xf32> to vector<512x8xf32>
    %96 = arith.truncf %95 : vector<512x8xf32> to vector<512x8xbf16>
    %c0_117 = arith.constant 0 : index
    %c32_118 = arith.constant 32 : index
    %97 = vector.load %arg10[%c0_117, %c32_118] : memref<512x72xbf16, #tpu.memory_space<vmem>>, vector<512x8xbf16>
    tpu.vector_store %arg10[%c0_117, %c32_118], %96 {strides = array<i32>} : memref<512x72xbf16, #tpu.memory_space<vmem>>, vector<512x8xbf16>,
    %c0_119 = arith.constant 0 : index
    %c1_120 = arith.constant 1 : index
    %c2_121 = arith.constant 2 : index
    %c0_122 = arith.constant 0 : index
    %98 = vector.load %arg9[%c0_119, %c1_120, %c2_121, %c0_122] : memref<2x18x18x8xf32, #tpu.memory_space<vmem>>, vector<2x16x16x8xf32>
    %99 = vector.shape_cast %98 : vector<2x16x16x8xf32> to vector<512x8xf32>
    %100 = arith.truncf %99 : vector<512x8xf32> to vector<512x8xbf16>
    %c0_123 = arith.constant 0 : index
    %c40_124 = arith.constant 40 : index
    %101 = vector.load %arg10[%c0_123, %c40_124] : memref<512x72xbf16, #tpu.memory_space<vmem>>, vector<512x8xbf16>
    tpu.vector_store %arg10[%c0_123, %c40_124], %100 {strides = array<i32>} : memref<512x72xbf16, #tpu.memory_space<vmem>>, vector<512x8xbf16>,
    %c0_125 = arith.constant 0 : index
    %c2_126 = arith.constant 2 : index
    %c0_127 = arith.constant 0 : index
    %c0_128 = arith.constant 0 : index
    %102 = vector.load %arg9[%c0_125, %c2_126, %c0_127, %c0_128] : memref<2x18x18x8xf32, #tpu.memory_space<vmem>>, vector<2x16x16x8xf32>
    %103 = vector.shape_cast %102 : vector<2x16x16x8xf32> to vector<512x8xf32>
    %104 = arith.truncf %103 : vector<512x8xf32> to vector<512x8xbf16>
    %c0_129 = arith.constant 0 : index
    %c48_130 = arith.constant 48 : index
    %105 = vector.load %arg10[%c0_129, %c48_130] : memref<512x72xbf16, #tpu.memory_space<vmem>>, vector<512x8xbf16>
    tpu.vector_store %arg10[%c0_129, %c48_130], %104 {strides = array<i32>} : memref<512x72xbf16, #tpu.memory_space<vmem>>, vector<512x8xbf16>,
    %c0_131 = arith.constant 0 : index
    %c2_132 = arith.constant 2 : index
    %c1_133 = arith.constant 1 : index
    %c0_134 = arith.constant 0 : index
    %106 = vector.load %arg9[%c0_131, %c2_132, %c1_133, %c0_134] : memref<2x18x18x8xf32, #tpu.memory_space<vmem>>, vector<2x16x16x8xf32>
    %107 = vector.shape_cast %106 : vector<2x16x16x8xf32> to vector<512x8xf32>
    %108 = arith.truncf %107 : vector<512x8xf32> to vector<512x8xbf16>
    %c0_135 = arith.constant 0 : index
    %c56_136 = arith.constant 56 : index
    %109 = vector.load %arg10[%c0_135, %c56_136] : memref<512x72xbf16, #tpu.memory_space<vmem>>, vector<512x8xbf16>
    tpu.vector_store %arg10[%c0_135, %c56_136], %108 {strides = array<i32>} : memref<512x72xbf16, #tpu.memory_space<vmem>>, vector<512x8xbf16>,
    %c0_137 = arith.constant 0 : index
    %c2_138 = arith.constant 2 : index
    %c2_139 = arith.constant 2 : index
    %c0_140 = arith.constant 0 : index
    %110 = vector.load %arg9[%c0_137, %c2_138, %c2_139, %c0_140] : memref<2x18x18x8xf32, #tpu.memory_space<vmem>>, vector<2x16x16x8xf32>
    %111 = vector.shape_cast %110 : vector<2x16x16x8xf32> to vector<512x8xf32>
    %112 = arith.truncf %111 : vector<512x8xf32> to vector<512x8xbf16>
    %c0_141 = arith.constant 0 : index
    %c64_142 = arith.constant 64 : index
    %113 = vector.load %arg10[%c0_141, %c64_142] : memref<512x72xbf16, #tpu.memory_space<vmem>>, vector<512x8xbf16>
    tpu.vector_store %arg10[%c0_141, %c64_142], %112 {strides = array<i32>} : memref<512x72xbf16, #tpu.memory_space<vmem>>, vector<512x8xbf16>,
    %c0_143 = arith.constant 0 : index
    %c0_144 = arith.constant 0 : index
    %114 = vector.load %arg10[%c0_143, %c0_144] : memref<512x72xbf16, #tpu.memory_space<vmem>>, vector<512x72xbf16>
    %c0_145 = arith.constant 0 : index
    %c0_146 = arith.constant 0 : index
    %115 = vector.load %arg5[%c0_145, %c0_146] : memref<72x8xbf16, #tpu.memory_space<vmem>>, vector<72x8xbf16>
    %cst_147 = arith.constant dense<0.000000e+00> : vector<512x8xf32>
    %116 = tpu.matmul %114, %115, %cst_147 {dimension_numbers = #tpu.dot_dimension_numbers<[1], [0], [0], [1], [0, 0, 1, 1], [], []>} : vector<512x72xbf16>, vector<72x8xbf16>, vector<512x8xf32> -> vector<512x8xf32>
    %cst_148 = arith.constant dense<0.000000e+00> : vector<8xf32>
    %117 = vector.multi_reduction <add>, %116, %cst_148 [0] : vector<512x8xf32> to vector<8xf32>
    %118 = vector.shape_cast %117 : vector<8xf32> to vector<1x8xf32>
    %cst_149 = arith.constant 0.001953125 : f32
    %119 = vector.broadcast %cst_149 : f32 to vector<1x8xf32>
    %120 = arith.mulf %118, %119 : vector<1x8xf32>
    %121 = arith.mulf %116, %116 : vector<512x8xf32>
    %cst_150 = arith.constant dense<0.000000e+00> : vector<8xf32>
    %122 = vector.multi_reduction <add>, %121, %cst_150 [0] : vector<512x8xf32> to vector<8xf32>
    %123 = vector.shape_cast %122 : vector<8xf32> to vector<1x8xf32>
    %cst_151 = arith.constant 0.001953125 : f32
    %124 = vector.broadcast %cst_151 : f32 to vector<1x8xf32>
    %125 = arith.mulf %123, %124 : vector<1x8xf32>
    %126 = arith.mulf %120, %120 : vector<1x8xf32>
    %127 = arith.subf %125, %126 : vector<1x8xf32>
    %cst_152 = arith.constant 0.000000e+00 : f32
    %128 = vector.broadcast %cst_152 : f32 to vector<1x8xf32>
    %129 = arith.maximumf %127, %128 : vector<1x8xf32>
    %c0_153 = arith.constant 0 : index
    %c0_154 = arith.constant 0 : index
    %130 = vector.load %arg6[%c0_153, %c0_154] : memref<1x8xf32, #tpu.memory_space<vmem>>, vector<1x8xf32>
    %cst_155 = arith.constant 9.99999974E-6 : f32
    %131 = vector.broadcast %cst_155 : f32 to vector<1x8xf32>
    %132 = arith.addf %129, %131 : vector<1x8xf32>
    %133 = math.rsqrt %132 : vector<1x8xf32>
    %134 = arith.mulf %130, %133 : vector<1x8xf32>
    %c0_156 = arith.constant 0 : index
    %c0_157 = arith.constant 0 : index
    %135 = vector.load %arg7[%c0_156, %c0_157] : memref<1x8xf32, #tpu.memory_space<vmem>>, vector<1x8xf32>
    %136 = arith.mulf %120, %134 : vector<1x8xf32>
    %137 = arith.subf %135, %136 : vector<1x8xf32>
    %138 = vector.broadcast %134 : vector<1x8xf32> to vector<512x8xf32>
    %139 = arith.mulf %116, %138 : vector<512x8xf32>
    %140 = vector.broadcast %137 : vector<1x8xf32> to vector<512x8xf32>
    %141 = arith.addf %139, %140 : vector<512x8xf32>
    %c0_158 = arith.constant 0 : index
    %c0_159 = arith.constant 0 : index
    %c0_160 = arith.constant 0 : index
    %c0_161 = arith.constant 0 : index
    %142 = vector.load %arg1[%c0_158, %c0_159, %c0_160, %c0_161] : memref<2x16x16x8xf32, #tpu.memory_space<vmem>>, vector<2x16x16x8xf32>
    %143 = vector.shape_cast %142 : vector<2x16x16x8xf32> to vector<512x8xf32>
    %144 = arith.addf %141, %143 : vector<512x8xf32>
    %cst_162 = arith.constant 0.000000e+00 : f32
    %145 = vector.broadcast %cst_162 : f32 to vector<512x8xf32>
    %146 = arith.maximumf %144, %145 : vector<512x8xf32>
    %147 = vector.shape_cast %146 : vector<512x8xf32> to vector<2x16x16x8xf32>
    %c0_163 = arith.constant 0 : index
    %c0_164 = arith.constant 0 : index
    %c0_165 = arith.constant 0 : index
    %c0_166 = arith.constant 0 : index
    %148 = vector.load %arg8[%c0_163, %c0_164, %c0_165, %c0_166] : memref<2x16x16x8xf32, #tpu.memory_space<vmem>>, vector<2x16x16x8xf32>
    tpu.vector_store %arg8[%c0_163, %c0_164, %c0_165, %c0_166], %147 {strides = array<i32>} : memref<2x16x16x8xf32, #tpu.memory_space<vmem>>, vector<2x16x16x8xf32>,
    return
  }
  func.func @transform_0(%arg0: i32) -> (i32, i32, i32, i32) {
    %c0_i32 = arith.constant 0 : i32
    %c0_i32_0 = arith.constant 0 : i32
    %c0_i32_1 = arith.constant 0 : i32
    %c0_i32_2 = arith.constant 0 : i32
    %c0_i32_3 = arith.constant 0 : i32
    return %c0_i32, %c0_i32_0, %c0_i32_1, %c0_i32_2 : i32, i32, i32, i32
  }
  func.func @transform_1(%arg0: i32) -> (i32, i32) {
    %c0_i32 = arith.constant 0 : i32
    %c0_i32_0 = arith.constant 0 : i32
    %c0_i32_1 = arith.constant 0 : i32
    return %c0_i32, %c0_i32_0 : i32, i32
  }
  func.func @transform_2(%arg0: i32) -> (i32, i32) {
    %c0_i32 = arith.constant 0 : i32
    %c0_i32_0 = arith.constant 0 : i32
    %c0_i32_1 = arith.constant 0 : i32
    return %c0_i32, %c0_i32_0 : i32, i32
  }
  func.func @transform_3(%arg0: i32) -> (i32, i32) {
    %c0_i32 = arith.constant 0 : i32
    %c0_i32_0 = arith.constant 0 : i32
    %c0_i32_1 = arith.constant 0 : i32
    return %c0_i32, %c0_i32_0 : i32, i32
  }
  func.func @transform_4(%arg0: i32) -> (i32, i32) {
    %c0_i32 = arith.constant 0 : i32
    %c0_i32_0 = arith.constant 0 : i32
    %c0_i32_1 = arith.constant 0 : i32
    return %c0_i32, %c0_i32_0 : i32, i32
  }
  func.func @transform_5(%arg0: i32) -> (i32, i32) {
    %c0_i32 = arith.constant 0 : i32
    %c0_i32_0 = arith.constant 0 : i32
    %c0_i32_1 = arith.constant 0 : i32
    return %c0_i32, %c0_i32_0 : i32, i32
  }
  func.func @transform_6(%arg0: i32) -> (i32, i32) {
    %c0_i32 = arith.constant 0 : i32
    %c0_i32_0 = arith.constant 0 : i32
    %c0_i32_1 = arith.constant 0 : i32
    return %c0_i32, %c0_i32_0 : i32, i32
  }
  func.func @transform_7(%arg0: i32) -> (i32, i32, i32, i32) {
    %c0_i32 = arith.constant 0 : i32
    %c0_i32_0 = arith.constant 0 : i32
    %c0_i32_1 = arith.constant 0 : i32
    %c0_i32_2 = arith.constant 0 : i32
    %c0_i32_3 = arith.constant 0 : i32
    return %c0_i32, %c0_i32_0, %c0_i32_1, %c0_i32_2 : i32, i32, i32, i32
  }
}

</mosaic_0001>

<llo_original>
// kernel: tpu_custom_call.1
$region0: #{tpu_custom_call.1}
  #allocation0 [shape = 'u32[]', space=smem, size = 0x4, offset = 0x4, fixed_abs, tag = 'smem constant byte address 0x4 - core index']
  #allocation1 [shape = 'u32[144,128]{1,0:T(1,128)}', space=vmem, size = 0x12000, scoped, tag = 'internal scratch']
  #allocation2 [shape = 'f32[2,18,18,8]{3,2,1,0:T(8,128)}', space=vmem, size = 0x6c000, scoped, tag = 'scratch operand']
  #allocation3 [shape = 'bf16[512,72]{1,0:T(8,128)(2,1)}', space=vmem, size = 0x20000, scoped, tag = 'scratch operand']
  %s0 = inlined_call_operand.vmem [shape: f32[2,16,16,8], index: 0, kind: input, shape index: {}]
  %s1 = inlined_call_operand.vmem [shape: bf16[72,8], index: 1, kind: input, shape index: {}]
  %s2 = inlined_call_operand.vmem [shape: f32[1,8], index: 2, kind: input, shape index: {}]
  %s3 = inlined_call_operand.vmem [shape: f32[1,8], index: 3, kind: input, shape index: {}]
  %s4 = inlined_call_operand.vmem [shape: bf16[72,8], index: 4, kind: input, shape index: {}]
  %s5 = inlined_call_operand.vmem [shape: f32[1,8], index: 5, kind: input, shape index: {}]
  %s6 = inlined_call_operand.vmem [shape: f32[1,8], index: 6, kind: input, shape index: {}]
  %s7 = inlined_call_operand.vmem [shape: f32[2,16,16,8], index: 7, kind: output, shape index: {}]
  %s8 = sld [smem:[#allocation0]]
  $region38: #{tpu_custom_call.1} parent=0
    _
  %s10 = ssub.s32 1, %s8
  %s11 = scalar_select 0, %s10, %s8
  // Predicated region
  $region2: #{tpu_custom_call.1} parent=0 // pred_check
    _
  $region3: #{tpu_custom_call.1} parent=0 // pred_check_branch
    %13 = sbr.rel (0) target = $region5
  $region4: #{tpu_custom_call.1} parent=0 // pred_region
    _
  $region5: #{tpu_custom_call.1} parent=0 // pred_fallthru
    _
  // Predicated region
  $region6: #{tpu_custom_call.1} parent=0 // pred_check
    _
  $region7: #{tpu_custom_call.1} parent=0 // pred_check_branch
    %15 = sbr.rel (0) target = $region9
  $region8: #{tpu_custom_call.1} parent=0 // pred_region
    _
  $region9: #{tpu_custom_call.1} parent=0 // pred_fallthru
    _
  // Predicated region
  $region10: #{tpu_custom_call.1} parent=0 // pred_check
    _
  $region11: #{tpu_custom_call.1} parent=0 // pred_check_branch
    %17 = sbr.rel (0) target = $region13
  $region12: #{tpu_custom_call.1} parent=0 // pred_region
    _
  $region13: #{tpu_custom_call.1} parent=0 // pred_fallthru
    _
  // Predicated region
  $region14: #{tpu_custom_call.1} parent=0 // pred_check
    _
  $region15: #{tpu_custom_call.1} parent=0 // pred_check_branch
    %19 = sbr.rel (0) target = $region17
  $region16: #{tpu_custom_call.1} parent=0 // pred_region
    _
  $region17: #{tpu_custom_call.1} parent=0 // pred_fallthru
    _
  // Predicated region
  $region18: #{tpu_custom_call.1} parent=0 // pred_check
    _
  $region19: #{tpu_custom_call.1} parent=0 // pred_check_branch
    %21 = sbr.rel (0) target = $region21
  $region20: #{tpu_custom_call.1} parent=0 // pred_region
    _
  $region21: #{tpu_custom_call.1} parent=0 // pred_fallthru
    _
  // Predicated region
  $region22: #{tpu_custom_call.1} parent=0 // pred_check
    _
  $region23: #{tpu_custom_call.1} parent=0 // pred_check_branch
    %23 = sbr.rel (0) target = $region25
  $region24: #{tpu_custom_call.1} parent=0 // pred_region
    _
  $region25: #{tpu_custom_call.1} parent=0 // pred_fallthru
    _
  // Predicated region
  $region26: #{tpu_custom_call.1} parent=0 // pred_check
    _
  $region27: #{tpu_custom_call.1} parent=0 // pred_check_branch
    %25 = sbr.rel (0) target = $region29
  $region28: #{tpu_custom_call.1} parent=0 // pred_region
    _
  $region29: #{tpu_custom_call.1} parent=0 // pred_fallthru
    _
  %vm27 = vcmask 64512
  %28 = vst.msk [vmem:[#allocation2] sm:$0xff] %vm27, 0.0
  %29 = vst.msk [vmem:[#allocation2 + $0x8] sm:$0xff] %vm27, 0.0
  %vm30 = vcmask 58368
  %31 = vst.msk [vmem:[#allocation2 + $0x10] sm:$0x3] %vm30, 0.0
  %32 = vst.msk [vmem:[#allocation2 + $0x1b0] sm:$0xff] %vm27, 0.0
  %33 = vst.msk [vmem:[#allocation2 + $0x1b8] sm:$0xff] %vm27, 0.0
  %34 = vst.msk [vmem:[#allocation2 + $0x1c0] sm:$0x3] %vm30, 0.0
  %s35 = scalar_lea.vmem [#allocation2], 408
  %36 = vst.msk [vmem:[%s35] sm:$0xff] %vm27, 0.0
  %37 = vst.msk [vmem:[%s35 + $0x8] sm:$0xff] %vm27, 0.0
  %38 = vst.msk [vmem:[%s35 + $0x10] sm:$0x3] %vm30, 0.0
  %39 = vst.msk [vmem:[%s35 + $0x1b0] sm:$0xff] %vm27, 0.0
  %40 = vst.msk [vmem:[%s35 + $0x1b8] sm:$0xff] %vm27, 0.0
  %41 = vst.msk [vmem:[%s35 + $0x1c0] sm:$0x3] %vm30, 0.0
  %vm42 = vcmask 57344
  %43 = vst.msk [vmem:[#allocation2] sm:$0x1] %vm42, 0.0
  %44 = vst.msk [vmem:[#allocation2 + $0x18] sm:$0x1] %vm42, 0.0
  %45 = vst.msk [vmem:[#allocation2 + $0x30] sm:$0x1] %vm42, 0.0
  %46 = vst.msk [vmem:[#allocation2 + $0x48] sm:$0x1] %vm42, 0.0
  %47 = vst.msk [vmem:[#allocation2 + $0x60] sm:$0x1] %vm42, 0.0
  %48 = vst.msk [vmem:[#allocation2 + $0x78] sm:$0x1] %vm42, 0.0
  %49 = vst.msk [vmem:[#allocation2 + $0x90] sm:$0x1] %vm42, 0.0
  %50 = vst.msk [vmem:[#allocation2 + $0xa8] sm:$0x1] %vm42, 0.0
  %51 = vst.msk [vmem:[#allocation2 + $0xc0] sm:$0x1] %vm42, 0.0
  %52 = vst.msk [vmem:[#allocation2 + $0xd8] sm:$0x1] %vm42, 0.0
  %53 = vst.msk [vmem:[#allocation2 + $0xf0] sm:$0x1] %vm42, 0.0
  %54 = vst.msk [vmem:[#allocation2 + $0x108] sm:$0x1] %vm42, 0.0
  %55 = vst.msk [vmem:[#allocation2 + $0x120] sm:$0x1] %vm42, 0.0
  %56 = vst.msk [vmem:[#allocation2 + $0x138] sm:$0x1] %vm42, 0.0
  %57 = vst.msk [vmem:[#allocation2 + $0x150] sm:$0x1] %vm42, 0.0
  %58 = vst.msk [vmem:[#allocation2 + $0x168] sm:$0x1] %vm42, 0.0
  %59 = vst.msk [vmem:[#allocation2 + $0x180] sm:$0x1] %vm42, 0.0
  %60 = vst.msk [vmem:[#allocation2 + $0x198] sm:$0x1] %vm42, 0.0
  %61 = vst.msk [vmem:[#allocation2 + $0x1b0] sm:$0x1] %vm42, 0.0
  %62 = vst.msk [vmem:[#allocation2 + $0x1c8] sm:$0x1] %vm42, 0.0
  %63 = vst.msk [vmem:[#allocation2 + $0x1e0] sm:$0x1] %vm42, 0.0
  %64 = vst.msk [vmem:[#allocation2 + $0x1f8] sm:$0x1] %vm42, 0.0
  %65 = vst.msk [vmem:[#allocation2 + $0x210] sm:$0x1] %vm42, 0.0
  %66 = vst.msk [vmem:[#allocation2 + $0x228] sm:$0x1] %vm42, 0.0
  %67 = vst.msk [vmem:[#allocation2 + $0x240] sm:$0x1] %vm42, 0.0
  %68 = vst.msk [vmem:[#allocation2 + $0x258] sm:$0x1] %vm42, 0.0
  %69 = vst.msk [vmem:[#allocation2 + $0x270] sm:$0x1] %vm42, 0.0
  %70 = vst.msk [vmem:[#allocation2 + $0x288] sm:$0x1] %vm42, 0.0
  %71 = vst.msk [vmem:[#allocation2 + $0x2a0] sm:$0x1] %vm42, 0.0
  %72 = vst.msk [vmem:[#allocation2 + $0x2b8] sm:$0x1] %vm42, 0.0
  %73 = vst.msk [vmem:[#allocation2 + $0x2d0] sm:$0x1] %vm42, 0.0
  %74 = vst.msk [vmem:[#allocation2 + $0x2e8] sm:$0x1] %vm42, 0.0
  %75 = vst.msk [vmem:[#allocation2 + $0x300] sm:$0x1] %vm42, 0.0
  %76 = vst.msk [vmem:[#allocation2 + $0x318] sm:$0x1] %vm42, 0.0
  %77 = vst.msk [vmem:[#allocation2 + $0x330] sm:$0x1] %vm42, 0.0
  %78 = vst.msk [vmem:[#allocation2 + $0x348] sm:$0x1] %vm42, 0.0
  %79 = vst.msk [vmem:[#allocation2 + $0x11] sm:$0x1] %vm42, 0.0
  %80 = vst.msk [vmem:[#allocation2 + $0x29] sm:$0x1] %vm42, 0.0
  %81 = vst.msk [vmem:[#allocation2 + $0x41] sm:$0x1] %vm42, 0.0
  %82 = vst.msk [vmem:[#allocation2 + $0x59] sm:$0x1] %vm42, 0.0
  %83 = vst.msk [vmem:[#allocation2 + $0x71] sm:$0x1] %vm42, 0.0
  %84 = vst.msk [vmem:[#allocation2 + $0x89] sm:$0x1] %vm42, 0.0
  %85 = vst.msk [vmem:[#allocation2 + $0xa1] sm:$0x1] %vm42, 0.0
  %86 = vst.msk [vmem:[#allocation2 + $0xb9] sm:$0x1] %vm42, 0.0
  %87 = vst.msk [vmem:[#allocation2 + $0xd1] sm:$0x1] %vm42, 0.0
  %88 = vst.msk [vmem:[#allocation2 + $0xe9] sm:$0x1] %vm42, 0.0
  %89 = vst.msk [vmem:[#allocation2 + $0x101] sm:$0x1] %vm42, 0.0
  %90 = vst.msk [vmem:[#allocation2 + $0x119] sm:$0x1] %vm42, 0.0
  %91 = vst.msk [vmem:[#allocation2 + $0x131] sm:$0x1] %vm42, 0.0
  %92 = vst.msk [vmem:[#allocation2 + $0x149] sm:$0x1] %vm42, 0.0
  %93 = vst.msk [vmem:[#allocation2 + $0x161] sm:$0x1] %vm42, 0.0
  %94 = vst.msk [vmem:[#allocation2 + $0x179] sm:$0x1] %vm42, 0.0
  %95 = vst.msk [vmem:[#allocation2 + $0x191] sm:$0x1] %vm42, 0.0
  %96 = vst.msk [vmem:[#allocation2 + $0x1a9] sm:$0x1] %vm42, 0.0
  %97 = vst.msk [vmem:[#allocation2 + $0x1c1] sm:$0x1] %vm42, 0.0
  %98 = vst.msk [vmem:[#allocation2 + $0x1d9] sm:$0x1] %vm42, 0.0
  %99 = vst.msk [vmem:[#allocation2 + $0x1f1] sm:$0x1] %vm42, 0.0
  %100 = vst.msk [vmem:[#allocation2 + $0x209] sm:$0x1] %vm42, 0.0
  %101 = vst.msk [vmem:[#allocation2 + $0x221] sm:$0x1] %vm42, 0.0
  %102 = vst.msk [vmem:[#allocation2 + $0x239] sm:$0x1] %vm42, 0.0
  %103 = vst.msk [vmem:[#allocation2 + $0x251] sm:$0x1] %vm42, 0.0
  %104 = vst.msk [vmem:[#allocation2 + $0x269] sm:$0x1] %vm42, 0.0
  %105 = vst.msk [vmem:[#allocation2 + $0x281] sm:$0x1] %vm42, 0.0
  %106 = vst.msk [vmem:[#allocation2 + $0x299] sm:$0x1] %vm42, 0.0
  %107 = vst.msk [vmem:[#allocation2 + $0x2b1] sm:$0x1] %vm42, 0.0
  %108 = vst.msk [vmem:[#allocation2 + $0x2c9] sm:$0x1] %vm42, 0.0
  %109 = vst.msk [vmem:[#allocation2 + $0x2e1] sm:$0x1] %vm42, 0.0
  %110 = vst.msk [vmem:[#allocation2 + $0x2f9] sm:$0x1] %vm42, 0.0
  %111 = vst.msk [vmem:[#allocation2 + $0x311] sm:$0x1] %vm42, 0.0
  %112 = vst.msk [vmem:[#allocation2 + $0x329] sm:$0x1] %vm42, 0.0
  %113 = vst.msk [vmem:[#allocation2 + $0x341] sm:$0x1] %vm42, 0.0
  %114 = vst.msk [vmem:[#allocation2 + $0x359] sm:$0x1] %vm42, 0.0
  %v115 = vld [vmem:[%s0] sm:$0xff]
  %v116 = vld [vmem:[%s0 + $0x8] sm:$0xff]
  %v117 = vld [vmem:[%s0 + $0x10] sm:$0xff]
  %v118 = vld [vmem:[%s0 + $0x18] sm:$0xff]
  %v119 = vld [vmem:[%s0 + $0x20] sm:$0xff]
  %v120 = vld [vmem:[%s0 + $0x28] sm:$0xff]
  %v121 = vld [vmem:[%s0 + $0x30] sm:$0xff]
  %v122 = vld [vmem:[%s0 + $0x38] sm:$0xff]
  %v123 = vld [vmem:[%s0 + $0x40] sm:$0xff]
  %v124 = vld [vmem:[%s0 + $0x48] sm:$0xff]
  %v125 = vld [vmem:[%s0 + $0x50] sm:$0xff]
  %v126 = vld [vmem:[%s0 + $0x58] sm:$0xff]
  %v127 = vld [vmem:[%s0 + $0x60] sm:$0xff]
  %v128 = vld [vmem:[%s0 + $0x68] sm:$0xff]
  %v129 = vld [vmem:[%s0 + $0x70] sm:$0xff]
  %v130 = vld [vmem:[%s0 + $0x78] sm:$0xff]
  %v131 = vld [vmem:[%s0 + $0x80] sm:$0xff]
  %v132 = vld [vmem:[%s0 + $0x88] sm:$0xff]
  %v133 = vld [vmem:[%s0 + $0x90] sm:$0xff]
  %v134 = vld [vmem:[%s0 + $0x98] sm:$0xff]
  %v135 = vld [vmem:[%s0 + $0xa0] sm:$0xff]
  %v136 = vld [vmem:[%s0 + $0xa8] sm:$0xff]
  %v137 = vld [vmem:[%s0 + $0xb0] sm:$0xff]
  %v138 = vld [vmem:[%s0 + $0xb8] sm:$0xff]
  %v139 = vld [vmem:[%s0 + $0xc0] sm:$0xff]
  %v140 = vld [vmem:[%s0 + $0xc8] sm:$0xff]
  %v141 = vld [vmem:[%s0 + $0xd0] sm:$0xff]
  %v142 = vld [vmem:[%s0 + $0xd8] sm:$0xff]
  %v143 = vld [vmem:[%s0 + $0xe0] sm:$0xff]
  %v144 = vld [vmem:[%s0 + $0xe8] sm:$0xff]
  %v145 = vld [vmem:[%s0 + $0xf0] sm:$0xff]
  %v146 = vld [vmem:[%s0 + $0xf8] sm:$0xff]
  %v147 = vld [vmem:[%s0 + $0x100] sm:$0xff]
  %v148 = vld [vmem:[%s0 + $0x108] sm:$0xff]
  %v149 = vld [vmem:[%s0 + $0x110] sm:$0xff]
  %v150 = vld [vmem:[%s0 + $0x118] sm:$0xff]
  %v151 = vld [vmem:[%s0 + $0x120] sm:$0xff]
  %v152 = vld [vmem:[%s0 + $0x128] sm:$0xff]
  %v153 = vld [vmem:[%s0 + $0x130] sm:$0xff]
  %v154 = vld [vmem:[%s0 + $0x138] sm:$0xff]
  %v155 = vld [vmem:[%s0 + $0x140] sm:$0xff]
  %v156 = vld [vmem:[%s0 + $0x148] sm:$0xff]
  %v157 = vld [vmem:[%s0 + $0x150] sm:$0xff]
  %v158 = vld [vmem:[%s0 + $0x158] sm:$0xff]
  %v159 = vld [vmem:[%s0 + $0x160] sm:$0xff]
  %v160 = vld [vmem:[%s0 + $0x168] sm:$0xff]
  %v161 = vld [vmem:[%s0 + $0x170] sm:$0xff]
  %v162 = vld [vmem:[%s0 + $0x178] sm:$0xff]
  %v163 = vld [vmem:[%s0 + $0x180] sm:$0xff]
  %v164 = vld [vmem:[%s0 + $0x188] sm:$0xff]
  %v165 = vld [vmem:[%s0 + $0x190] sm:$0xff]
  %v166 = vld [vmem:[%s0 + $0x198] sm:$0xff]
  %v167 = vld [vmem:[%s0 + $0x1a0] sm:$0xff]
  %v168 = vld [vmem:[%s0 + $0x1a8] sm:$0xff]
  %v169 = vld [vmem:[%s0 + $0x1b0] sm:$0xff]
  %v170 = vld [vmem:[%s0 + $0x1b8] sm:$0xff]
  %v171 = vld [vmem:[%s0 + $0x1c0] sm:$0xff]
  %v172 = vld [vmem:[%s0 + $0x1c8] sm:$0xff]
  %v173 = vld [vmem:[%s0 + $0x1d0] sm:$0xff]
  %v174 = vld [vmem:[%s0 + $0x1d8] sm:$0xff]
  %v175 = vld [vmem:[%s0 + $0x1e0] sm:$0xff]
  %v176 = vld [vmem:[%s0 + $0x1e8] sm:$0xff]
  %v177 = vld [vmem:[%s0 + $0x1f0] sm:$0xff]
  %v178 = vld [vmem:[%s0 + $0x1f8] sm:$0xff]
  %s179 = scalar_lea.vmem [#allocation2], 24
  %180 = vst.msk [vmem:[%s179 + $0x1] sm:$0xff] %vm27, %v115
  %181 = vst.msk [vmem:[%s179 + $0x9] sm:$0xff] %vm27, %v116
  %182 = vst.msk [vmem:[%s179 + $0x19] sm:$0xff] %vm27, %v117
  %183 = vst.msk [vmem:[%s179 + $0x21] sm:$0xff] %vm27, %v118
  %184 = vst.msk [vmem:[%s179 + $0x31] sm:$0xff] %vm27, %v119
  %185 = vst.msk [vmem:[%s179 + $0x39] sm:$0xff] %vm27, %v120
  %186 = vst.msk [vmem:[%s179 + $0x49] sm:$0xff] %vm27, %v121
  %187 = vst.msk [vmem:[%s179 + $0x51] sm:$0xff] %vm27, %v122
  %188 = vst.msk [vmem:[%s179 + $0x61] sm:$0xff] %vm27, %v123
  %189 = vst.msk [vmem:[%s179 + $0x69] sm:$0xff] %vm27, %v124
  %190 = vst.msk [vmem:[%s179 + $0x79] sm:$0xff] %vm27, %v125
  %191 = vst.msk [vmem:[%s179 + $0x81] sm:$0xff] %vm27, %v126
  %192 = vst.msk [vmem:[%s179 + $0x91] sm:$0xff] %vm27, %v127
  %193 = vst.msk [vmem:[%s179 + $0x99] sm:$0xff] %vm27, %v128
  %194 = vst.msk [vmem:[%s179 + $0xa9] sm:$0xff] %vm27, %v129
  %195 = vst.msk [vmem:[%s179 + $0xb1] sm:$0xff] %vm27, %v130
  %196 = vst.msk [vmem:[%s179 + $0xc1] sm:$0xff] %vm27, %v131
  %197 = vst.msk [vmem:[%s179 + $0xc9] sm:$0xff] %vm27, %v132
  %198 = vst.msk [vmem:[%s179 + $0xd9] sm:$0xff] %vm27, %v133
  %199 = vst.msk [vmem:[%s179 + $0xe1] sm:$0xff] %vm27, %v134
  %200 = vst.msk [vmem:[%s179 + $0xf1] sm:$0xff] %vm27, %v135
  %201 = vst.msk [vmem:[%s179 + $0xf9] sm:$0xff] %vm27, %v136
  %202 = vst.msk [vmem:[%s179 + $0x109] sm:$0xff] %vm27, %v137
  %203 = vst.msk [vmem:[%s179 + $0x111] sm:$0xff] %vm27, %v138
  %204 = vst.msk [vmem:[%s179 + $0x121] sm:$0xff] %vm27, %v139
  %205 = vst.msk [vmem:[%s179 + $0x129] sm:$0xff] %vm27, %v140
  %206 = vst.msk [vmem:[%s179 + $0x139] sm:$0xff] %vm27, %v141
  %207 = vst.msk [vmem:[%s179 + $0x141] sm:$0xff] %vm27, %v142
  %208 = vst.msk [vmem:[%s179 + $0x151] sm:$0xff] %vm27, %v143
  %209 = vst.msk [vmem:[%s179 + $0x159] sm:$0xff] %vm27, %v144
  %210 = vst.msk [vmem:[%s179 + $0x169] sm:$0xff] %vm27, %v145
  %211 = vst.msk [vmem:[%s179 + $0x171] sm:$0xff] %vm27, %v146
  %212 = vst.msk [vmem:[%s179 + $0x1b1] sm:$0xff] %vm27, %v147
  %213 = vst.msk [vmem:[%s179 + $0x1b9] sm:$0xff] %vm27, %v148
  %214 = vst.msk [vmem:[%s179 + $0x1c9] sm:$0xff] %vm27, %v149
  %215 = vst.msk [vmem:[%s179 + $0x1d1] sm:$0xff] %vm27, %v150
  %216 = vst.msk [vmem:[%s179 + $0x1e1] sm:$0xff] %vm27, %v151
  %217 = vst.msk [vmem:[%s179 + $0x1e9] sm:$0xff] %vm27, %v152
  %218 = vst.msk [vmem:[%s179 + $0x1f9] sm:$0xff] %vm27, %v153
  %219 = vst.msk [vmem:[%s179 + $0x201] sm:$0xff] %vm27, %v154
  %220 = vst.msk [vmem:[%s179 + $0x211] sm:$0xff] %vm27, %v155
  %221 = vst.msk [vmem:[%s179 + $0x219] sm:$0xff] %vm27, %v156
  %222 = vst.msk [vmem:[%s179 + $0x229] sm:$0xff] %vm27, %v157
  %223 = vst.msk [vmem:[%s179 + $0x231] sm:$0xff] %vm27, %v158
  %224 = vst.msk [vmem:[%s179 + $0x241] sm:$0xff] %vm27, %v159
  %225 = vst.msk [vmem:[%s179 + $0x249] sm:$0xff] %vm27, %v160
  %226 = vst.msk [vmem:[%s179 + $0x259] sm:$0xff] %vm27, %v161
  %227 = vst.msk [vmem:[%s179 + $0x261] sm:$0xff] %vm27, %v162
  %228 = vst.msk [vmem:[%s179 + $0x271] sm:$0xff] %vm27, %v163
  %229 = vst.msk [vmem:[%s179 + $0x279] sm:$0xff] %vm27, %v164
  %230 = vst.msk [vmem:[%s179 + $0x289] sm:$0xff] %vm27, %v165
  %231 = vst.msk [vmem:[%s179 + $0x291] sm:$0xff] %vm27, %v166
  %232 = vst.msk [vmem:[%s179 + $0x2a1] sm:$0xff] %vm27, %v167
  %233 = vst.msk [vmem:[%s179 + $0x2a9] sm:$0xff] %vm27, %v168
  %234 = vst.msk [vmem:[%s179 + $0x2b9] sm:$0xff] %vm27, %v169
  %235 = vst.msk [vmem:[%s179 + $0x2c1] sm:$0xff] %vm27, %v170
  %236 = vst.msk [vmem:[%s179 + $0x2d1] sm:$0xff] %vm27, %v171
  %237 = vst.msk [vmem:[%s179 + $0x2d9] sm:$0xff] %vm27, %v172
  %238 = vst.msk [vmem:[%s179 + $0x2e9] sm:$0xff] %vm27, %v173
  %239 = vst.msk [vmem:[%s179 + $0x2f1] sm:$0xff] %vm27, %v174
  %240 = vst.msk [vmem:[%s179 + $0x301] sm:$0xff] %vm27, %v175
  %241 = vst.msk [vmem:[%s179 + $0x309] sm:$0xff] %vm27, %v176
  %242 = vst.msk [vmem:[%s179 + $0x319] sm:$0xff] %vm27, %v177
  %243 = vst.msk [vmem:[%s179 + $0x321] sm:$0xff] %vm27, %v178
  %v244 = vld [vmem:[#allocation2] sm:$0xff]
  %v245 = vld [vmem:[#allocation2 + $0x8] sm:$0xff]
  %v246 = vld [vmem:[#allocation2 + $0x18] sm:$0xff]
  %v247 = vld [vmem:[#allocation2 + $0x20] sm:$0xff]
  %v248 = vld [vmem:[#allocation2 + $0x30] sm:$0xff]
  %v249 = vld [vmem:[#allocation2 + $0x38] sm:$0xff]
  %v250 = vld [vmem:[#allocation2 + $0x48] sm:$0xff]
  %v251 = vld [vmem:[#allocation2 + $0x50] sm:$0xff]
  %v252 = vld [vmem:[#allocation2 + $0x60] sm:$0xff]
  %v253 = vld [vmem:[#allocation2 + $0x68] sm:$0xff]
  %v254 = vld [vmem:[#allocation2 + $0x78] sm:$0xff]
  %v255 = vld [vmem:[#allocation2 + $0x80] sm:$0xff]
  %v256 = vld [vmem:[#allocation2 + $0x90] sm:$0xff]
  %v257 = vld [vmem:[#allocation2 + $0x98] sm:$0xff]
  %v258 = vld [vmem:[#allocation2 + $0xa8] sm:$0xff]
  %v259 = vld [vmem:[#allocation2 + $0xb0] sm:$0xff]
  %v260 = vld [vmem:[#allocation2 + $0xc0] sm:$0xff]
  %v261 = vld [vmem:[#allocation2 + $0xc8] sm:$0xff]
  %v262 = vld [vmem:[#allocation2 + $0xd8] sm:$0xff]
  %v263 = vld [vmem:[#allocation2 + $0xe0] sm:$0xff]
  %v264 = vld [vmem:[#allocation2 + $0xf0] sm:$0xff]
  %v265 = vld [vmem:[#allocation2 + $0xf8] sm:$0xff]
  %v266 = vld [vmem:[#allocation2 + $0x108] sm:$0xff]
  %v267 = vld [vmem:[#allocation2 + $0x110] sm:$0xff]
  %v268 = vld [vmem:[#allocation2 + $0x120] sm:$0xff]
  %v269 = vld [vmem:[#allocation2 + $0x128] sm:$0xff]
  %v270 = vld [vmem:[#allocation2 + $0x138] sm:$0xff]
  %v271 = vld [vmem:[#allocation2 + $0x140] sm:$0xff]
  %v272 = vld [vmem:[#allocation2 + $0x150] sm:$0xff]
  %v273 = vld [vmem:[#allocation2 + $0x158] sm:$0xff]
  %v274 = vld [vmem:[#allocation2 + $0x168] sm:$0xff]
  %v275 = vld [vmem:[#allocation2 + $0x170] sm:$0xff]
  %v276 = vld [vmem:[#allocation2 + $0x1b0] sm:$0xff]
  %v277 = vld [vmem:[#allocation2 + $0x1b8] sm:$0xff]
  %v278 = vld [vmem:[#allocation2 + $0x1c8] sm:$0xff]
  %v279 = vld [vmem:[#allocation2 + $0x1d0] sm:$0xff]
  %v280 = vld [vmem:[#allocation2 + $0x1e0] sm:$0xff]
  %v281 = vld [vmem:[#allocation2 + $0x1e8] sm:$0xff]
  %v282 = vld [vmem:[#allocation2 + $0x1f8] sm:$0xff]
  %v283 = vld [vmem:[#allocation2 + $0x200] sm:$0xff]
  %v284 = vld [vmem:[#allocation2 + $0x210] sm:$0xff]
  %v285 = vld [vmem:[#allocation2 + $0x218] sm:$0xff]
  %v286 = vld [vmem:[#allocation2 + $0x228] sm:$0xff]
  %v287 = vld [vmem:[#allocation2 + $0x230] sm:$0xff]
  %v288 = vld [vmem:[#allocation2 + $0x240] sm:$0xff]
  %v289 = vld [vmem:[#allocation2 + $0x248] sm:$0xff]
  %v290 = vld [vmem:[#allocation2 + $0x258] sm:$0xff]
  %v291 = vld [vmem:[#allocation2 + $0x260] sm:$0xff]
  %v292 = vld [vmem:[#allocation2 + $0x270] sm:$0xff]
  %v293 = vld [vmem:[#allocation2 + $0x278] sm:$0xff]
  %v294 = vld [vmem:[#allocation2 + $0x288] sm:$0xff]
  %v295 = vld [vmem:[#allocation2 + $0x290] sm:$0xff]
  %v296 = vld [vmem:[#allocation2 + $0x2a0] sm:$0xff]
  %v297 = vld [vmem:[#allocation2 + $0x2a8] sm:$0xff]
  %v298 = vld [vmem:[#allocation2 + $0x2b8] sm:$0xff]
  %v299 = vld [vmem:[#allocation2 + $0x2c0] sm:$0xff]
  %v300 = vld [vmem:[#allocation2 + $0x2d0] sm:$0xff]
  %v301 = vld [vmem:[#allocation2 + $0x2d8] sm:$0xff]
  %v302 = vld [vmem:[#allocation2 + $0x2e8] sm:$0xff]
  %v303 = vld [vmem:[#allocation2 + $0x2f0] sm:$0xff]
  %v304 = vld [vmem:[#allocation2 + $0x300] sm:$0xff]
  %v305 = vld [vmem:[#allocation2 + $0x308] sm:$0xff]
  %v306 = vld [vmem:[#allocation2 + $0x318] sm:$0xff]
  %v307 = vld [vmem:[#allocation2 + $0x320] sm:$0xff]
  %v308 = vpack.c.bf16 %v245, %v244
  %v309 = vpack.c.bf16 %v247, %v246
  %v310 = vpack.c.bf16 %v249, %v248
  %v311 = vpack.c.bf16 %v251, %v250
  %v312 = vpack.c.bf16 %v253, %v252
  %v313 = vpack.c.bf16 %v255, %v254
  %v314 = vpack.c.bf16 %v257, %v256
  %v315 = vpack.c.bf16 %v259, %v258
  %v316 = vpack.c.bf16 %v261, %v260
  %v317 = vpack.c.bf16 %v263, %v262
  %v318 = vpack.c.bf16 %v265, %v264
  %v319 = vpack.c.bf16 %v267, %v266
  %v320 = vpack.c.bf16 %v269, %v268
  %v321 = vpack.c.bf16 %v271, %v270
  %v322 = vpack.c.bf16 %v273, %v272
  %v323 = vpack.c.bf16 %v275, %v274
  %v324 = vpack.c.bf16 %v277, %v276
  %v325 = vpack.c.bf16 %v279, %v278
  %v326 = vpack.c.bf16 %v281, %v280
  %v327 = vpack.c.bf16 %v283, %v282
  %v328 = vpack.c.bf16 %v285, %v284
  %v329 = vpack.c.bf16 %v287, %v286
  %v330 = vpack.c.bf16 %v289, %v288
  %v331 = vpack.c.bf16 %v291, %v290
  %v332 = vpack.c.bf16 %v293, %v292
  %v333 = vpack.c.bf16 %v295, %v294
  %v334 = vpack.c.bf16 %v297, %v296
  %v335 = vpack.c.bf16 %v299, %v298
  %v336 = vpack.c.bf16 %v301, %v300
  %v337 = vpack.c.bf16 %v303, %v302
  %v338 = vpack.c.bf16 %v305, %v304
  %v339 = vpack.c.bf16 %v307, %v306
  %v372 = vunpack.c.l.b16 %v308
  %v373 = vunpack.c.h.b16 %v308
  %v374 = vunpack.c.l.b16 %v309
  %v375 = vunpack.c.h.b16 %v309
  %v376 = vunpack.c.l.b16 %v310
  %v377 = vunpack.c.h.b16 %v310
  %v378 = vunpack.c.l.b16 %v311
  %v379 = vunpack.c.h.b16 %v311
  %v380 = vunpack.c.l.b16 %v312
  %v381 = vunpack.c.h.b16 %v312
  %v382 = vunpack.c.l.b16 %v313
  %v383 = vunpack.c.h.b16 %v313
  %v384 = vunpack.c.l.b16 %v314
  %v385 = vunpack.c.h.b16 %v314
  %v386 = vunpack.c.l.b16 %v315
  %v387 = vunpack.c.h.b16 %v315
  %v388 = vunpack.c.l.b16 %v316
  %v389 = vunpack.c.h.b16 %v316
  %v390 = vunpack.c.l.b16 %v317
  %v391 = vunpack.c.h.b16 %v317
  %v392 = vunpack.c.l.b16 %v318
  %v393 = vunpack.c.h.b16 %v318
  %v394 = vunpack.c.l.b16 %v319
  %v395 = vunpack.c.h.b16 %v319
  %v396 = vunpack.c.l.b16 %v320
  %v397 = vunpack.c.h.b16 %v320
  %v398 = vunpack.c.l.b16 %v321
  %v399 = vunpack.c.h.b16 %v321
  %v400 = vunpack.c.l.b16 %v322
  %v401 = vunpack.c.h.b16 %v322
  %v402 = vunpack.c.l.b16 %v323
  %v403 = vunpack.c.h.b16 %v323
  %v404 = vunpack.c.l.b16 %v324
  %v405 = vunpack.c.h.b16 %v324
  %v406 = vunpack.c.l.b16 %v325
  %v407 = vunpack.c.h.b16 %v325
  %v408 = vunpack.c.l.b16 %v326
  %v409 = vunpack.c.h.b16 %v326
  %v410 = vunpack.c.l.b16 %v327
  %v411 = vunpack.c.h.b16 %v327
  %v412 = vunpack.c.l.b16 %v328
  %v413 = vunpack.c.h.b16 %v328
  %v414 = vunpack.c.l.b16 %v329
  %v415 = vunpack.c.h.b16 %v329
  %v416 = vunpack.c.l.b16 %v330
  %v417 = vunpack.c.h.b16 %v330
  %v418 = vunpack.c.l.b16 %v331
  %v419 = vunpack.c.h.b16 %v331
  %v420 = vunpack.c.l.b16 %v332
  %v421 = vunpack.c.h.b16 %v332
  %v422 = vunpack.c.l.b16 %v333
  %v423 = vunpack.c.h.b16 %v333
  %v424 = vunpack.c.l.b16 %v334
  %v425 = vunpack.c.h.b16 %v334
  %v426 = vunpack.c.l.b16 %v335
  %v427 = vunpack.c.h.b16 %v335
  %v428 = vunpack.c.l.b16 %v336
  %v429 = vunpack.c.h.b16 %v336
  %v430 = vunpack.c.l.b16 %v337
  %v431 = vunpack.c.h.b16 %v337
  %v432 = vunpack.c.l.b16 %v338
  %v433 = vunpack.c.h.b16 %v338
  %v434 = vunpack.c.l.b16 %v339
  %v435 = vunpack.c.h.b16 %v339
  %v436 = vpack.c.b16 %v372, %v372
  %v437 = vpack.c.b16 %v373, %v373
  %v438 = vpack.c.b16 %v374, %v374
  %v439 = vpack.c.b16 %v375, %v375
  %v440 = vpack.c.b16 %v376, %v376
  %v441 = vpack.c.b16 %v377, %v377
  %v442 = vpack.c.b16 %v378, %v378
  %v443 = vpack.c.b16 %v379, %v379
  %v444 = vpack.c.b16 %v380, %v380
  %v445 = vpack.c.b16 %v381, %v381
  %v446 = vpack.c.b16 %v382, %v382
  %v447 = vpack.c.b16 %v383, %v383
  %v448 = vpack.c.b16 %v384, %v384
  %v449 = vpack.c.b16 %v385, %v385
  %v450 = vpack.c.b16 %v386, %v386
  %v451 = vpack.c.b16 %v387, %v387
  %v452 = vpack.c.b16 %v388, %v388
  %v453 = vpack.c.b16 %v389, %v389
  %v454 = vpack.c.b16 %v390, %v390
  %v455 = vpack.c.b16 %v391, %v391
  %v456 = vpack.c.b16 %v392, %v392
  %v457 = vpack.c.b16 %v393, %v393
  %v458 = vpack.c.b16 %v394, %v394
  %v459 = vpack.c.b16 %v395, %v395
  %v460 = vpack.c.b16 %v396, %v396
  %v461 = vpack.c.b16 %v397, %v397
  %v462 = vpack.c.b16 %v398, %v398
  %v463 = vpack.c.b16 %v399, %v399
  %v464 = vpack.c.b16 %v400, %v400
  %v465 = vpack.c.b16 %v401, %v401
  %v466 = vpack.c.b16 %v402, %v402
  %v467 = vpack.c.b16 %v403, %v403
  %v468 = vpack.c.b16 %v404, %v404
  %v469 = vpack.c.b16 %v405, %v405
  %v470 = vpack.c.b16 %v406, %v406
  %v471 = vpack.c.b16 %v407, %v407
  %v472 = vpack.c.b16 %v408, %v408
  %v473 = vpack.c.b16 %v409, %v409
  %v474 = vpack.c.b16 %v410, %v410
  %v475 = vpack.c.b16 %v411, %v411
  %v476 = vpack.c.b16 %v412, %v412
  %v477 = vpack.c.b16 %v413, %v413
  %v478 = vpack.c.b16 %v414, %v414
  %v479 = vpack.c.b16 %v415, %v415
  %v480 = vpack.c.b16 %v416, %v416
  %v481 = vpack.c.b16 %v417, %v417
  %v482 = vpack.c.b16 %v418, %v418
  %v483 = vpack.c.b16 %v419, %v419
  %v484 = vpack.c.b16 %v420, %v420
  %v485 = vpack.c.b16 %v421, %v421
  %v486 = vpack.c.b16 %v422, %v422
  %v487 = vpack.c.b16 %v423, %v423
  %v488 = vpack.c.b16 %v424, %v424
  %v489 = vpack.c.b16 %v425, %v425
  %v490 = vpack.c.b16 %v426, %v426
  %v491 = vpack.c.b16 %v427, %v427
  %v492 = vpack.c.b16 %v428, %v428
  %v493 = vpack.c.b16 %v429, %v429
  %v494 = vpack.c.b16 %v430, %v430
  %v495 = vpack.c.b16 %v431, %v431
  %v496 = vpack.c.b16 %v432, %v432
  %v497 = vpack.c.b16 %v433, %v433
  %v498 = vpack.c.b16 %v434, %v434
  %v499 = vpack.c.b16 %v435, %v435
  %vm564 = vcmask 60416
  %565 = vst.msk [vmem:[#allocation3] sm:$0xf] %vm564, %v436
  %566 = vst.msk [vmem:[#allocation3 + $0x4] sm:$0xf] %vm564, %v437
  %567 = vst.msk [vmem:[#allocation3 + $0x8] sm:$0xf] %vm564, %v438
  %568 = vst.msk [vmem:[#allocation3 + $0xc] sm:$0xf] %vm564, %v439
  %569 = vst.msk [vmem:[#allocation3 + $0x10] sm:$0xf] %vm564, %v440
  %570 = vst.msk [vmem:[#allocation3 + $0x14] sm:$0xf] %vm564, %v441
  %571 = vst.msk [vmem:[#allocation3 + $0x18] sm:$0xf] %vm564, %v442
  %572 = vst.msk [vmem:[#allocation3 + $0x1c] sm:$0xf] %vm564, %v443
  %573 = vst.msk [vmem:[#allocation3 + $0x20] sm:$0xf] %vm564, %v444
  %574 = vst.msk [vmem:[#allocation3 + $0x24] sm:$0xf] %vm564, %v445
  %575 = vst.msk [vmem:[#allocation3 + $0x28] sm:$0xf] %vm564, %v446
  %576 = vst.msk [vmem:[#allocation3 + $0x2c] sm:$0xf] %vm564, %v447
  %577 = vst.msk [vmem:[#allocation3 + $0x30] sm:$0xf] %vm564, %v448
  %578 = vst.msk [vmem:[#allocation3 + $0x34] sm:$0xf] %vm564, %v449
  %579 = vst.msk [vmem:[#allocation3 + $0x38] sm:$0xf] %vm564, %v450
  %580 = vst.msk [vmem:[#allocation3 + $0x3c] sm:$0xf] %vm564, %v451
  %581 = vst.msk [vmem:[#allocation3 + $0x40] sm:$0xf] %vm564, %v452
  %582 = vst.msk [vmem:[#allocation3 + $0x44] sm:$0xf] %vm564, %v453
  %583 = vst.msk [vmem:[#allocation3 + $0x48] sm:$0xf] %vm564, %v454
  %584 = vst.msk [vmem:[#allocation3 + $0x4c] sm:$0xf] %vm564, %v455
  %585 = vst.msk [vmem:[#allocation3 + $0x50] sm:$0xf] %vm564, %v456
  %586 = vst.msk [vmem:[#allocation3 + $0x54] sm:$0xf] %vm564, %v457
  %587 = vst.msk [vmem:[#allocation3 + $0x58] sm:$0xf] %vm564, %v458
  %588 = vst.msk [vmem:[#allocation3 + $0x5c] sm:$0xf] %vm564, %v459
  %589 = vst.msk [vmem:[#allocation3 + $0x60] sm:$0xf] %vm564, %v460
  %590 = vst.msk [vmem:[#allocation3 + $0x64] sm:$0xf] %vm564, %v461
  %591 = vst.msk [vmem:[#allocation3 + $0x68] sm:$0xf] %vm564, %v462
  %592 = vst.msk [vmem:[#allocation3 + $0x6c] sm:$0xf] %vm564, %v463
  %593 = vst.msk [vmem:[#allocation3 + $0x70] sm:$0xf] %vm564, %v464
  %594 = vst.msk [vmem:[#allocation3 + $0x74] sm:$0xf] %vm564, %v465
  %595 = vst.msk [vmem:[#allocation3 + $0x78] sm:$0xf] %vm564, %v466
  %596 = vst.msk [vmem:[#allocation3 + $0x7c] sm:$0xf] %vm564, %v467
  %597 = vst.msk [vmem:[#allocation3 + $0x80] sm:$0xf] %vm564, %v468
  %598 = vst.msk [vmem:[#allocation3 + $0x84] sm:$0xf] %vm564, %v469
  %599 = vst.msk [vmem:[#allocation3 + $0x88] sm:$0xf] %vm564, %v470
  %600 = vst.msk [vmem:[#allocation3 + $0x8c] sm:$0xf] %vm564, %v471
  %601 = vst.msk [vmem:[#allocation3 + $0x90] sm:$0xf] %vm564, %v472
  %602 = vst.msk [vmem:[#allocation3 + $0x94] sm:$0xf] %vm564, %v473
  %603 = vst.msk [vmem:[#allocation3 + $0x98] sm:$0xf] %vm564, %v474
  %604 = vst.msk [vmem:[#allocation3 + $0x9c] sm:$0xf] %vm564, %v475
  %605 = vst.msk [vmem:[#allocation3 + $0xa0] sm:$0xf] %vm564, %v476
  %606 = vst.msk [vmem:[#allocation3 + $0xa4] sm:$0xf] %vm564, %v477
  %607 = vst.msk [vmem:[#allocation3 + $0xa8] sm:$0xf] %vm564, %v478
  %608 = vst.msk [vmem:[#allocation3 + $0xac] sm:$0xf] %vm564, %v479
  %609 = vst.msk [vmem:[#allocation3 + $0xb0] sm:$0xf] %vm564, %v480
  %610 = vst.msk [vmem:[#allocation3 + $0xb4] sm:$0xf] %vm564, %v481
  %611 = vst.msk [vmem:[#allocation3 + $0xb8] sm:$0xf] %vm564, %v482
  %612 = vst.msk [vmem:[#allocation3 + $0xbc] sm:$0xf] %vm564, %v483
  %613 = vst.msk [vmem:[#allocation3 + $0xc0] sm:$0xf] %vm564, %v484
  %614 = vst.msk [vmem:[#allocation3 + $0xc4] sm:$0xf] %vm564, %v485
  %615 = vst.msk [vmem:[#allocation3 + $0xc8] sm:$0xf] %vm564, %v486
  %616 = vst.msk [vmem:[#allocation3 + $0xcc] sm:$0xf] %vm564, %v487
  %617 = vst.msk [vmem:[#allocation3 + $0xd0] sm:$0xf] %vm564, %v488
  %618 = vst.msk [vmem:[#allocation3 + $0xd4] sm:$0xf] %vm564, %v489
  %619 = vst.msk [vmem:[#allocation3 + $0xd8] sm:$0xf] %vm564, %v490
  %620 = vst.msk [vmem:[#allocation3 + $0xdc] sm:$0xf] %vm564, %v491
  %621 = vst.msk [vmem:[#allocation3 + $0xe0] sm:$0xf] %vm564, %v492
  %622 = vst.msk [vmem:[#allocation3 + $0xe4] sm:$0xf] %vm564, %v493
  %623 = vst.msk [vmem:[#allocation3 + $0xe8] sm:$0xf] %vm564, %v494
  %624 = vst.msk [vmem:[#allocation3 + $0xec] sm:$0xf] %vm564, %v495
  %625 = vst.msk [vmem:[#allocation3 + $0xf0] sm:$0xf] %vm564, %v496
  %626 = vst.msk [vmem:[#allocation3 + $0xf4] sm:$0xf] %vm564, %v497
  %627 = vst.msk [vmem:[#allocation3 + $0xf8] sm:$0xf] %vm564, %v498
  %628 = vst.msk [vmem:[#allocation3 + $0xfc] sm:$0xf] %vm564, %v499
  %v629 = vld [vmem:[#allocation2 + $0x1] sm:$0xff]
  %v630 = vld [vmem:[#allocation2 + $0x9] sm:$0xff]
  %v631 = vld [vmem:[#allocation2 + $0x19] sm:$0xff]
  %v632 = vld [vmem:[#allocation2 + $0x21] sm:$0xff]
  %v633 = vld [vmem:[#allocation2 + $0x31] sm:$0xff]
  %v634 = vld [vmem:[#allocation2 + $0x39] sm:$0xff]
  %v635 = vld [vmem:[#allocation2 + $0x49] sm:$0xff]
  %v636 = vld [vmem:[#allocation2 + $0x51] sm:$0xff]
  %v637 = vld [vmem:[#allocation2 + $0x61] sm:$0xff]
  %v638 = vld [vmem:[#allocation2 + $0x69] sm:$0xff]
  %v639 = vld [vmem:[#allocation2 + $0x79] sm:$0xff]
  %v640 = vld [vmem:[#allocation2 + $0x81] sm:$0xff]
  %v641 = vld [vmem:[#allocation2 + $0x91] sm:$0xff]
  %v642 = vld [vmem:[#allocation2 + $0x99] sm:$0xff]
  %v643 = vld [vmem:[#allocation2 + $0xa9] sm:$0xff]
  %v644 = vld [vmem:[#allocation2 + $0xb1] sm:$0xff]
  %v645 = vld [vmem:[#allocation2 + $0xc1] sm:$0xff]
  %v646 = vld [vmem:[#allocation2 + $0xc9] sm:$0xff]
  %v647 = vld [vmem:[#allocation2 + $0xd9] sm:$0xff]
  %v648 = vld [vmem:[#allocation2 + $0xe1] sm:$0xff]
  %v649 = vld [vmem:[#allocation2 + $0xf1] sm:$0xff]
  %v650 = vld [vmem:[#allocation2 + $0xf9] sm:$0xff]
  %v651 = vld [vmem:[#allocation2 + $0x109] sm:$0xff]
  %v652 = vld [vmem:[#allocation2 + $0x111] sm:$0xff]
  %v653 = vld [vmem:[#allocation2 + $0x121] sm:$0xff]
  %v654 = vld [vmem:[#allocation2 + $0x129] sm:$0xff]
  %v655 = vld [vmem:[#allocation2 + $0x139] sm:$0xff]
  %v656 = vld [vmem:[#allocation2 + $0x141] sm:$0xff]
  %v657 = vld [vmem:[#allocation2 + $0x151] sm:$0xff]
  %v658 = vld [vmem:[#allocation2 + $0x159] sm:$0xff]
  %v659 = vld [vmem:[#allocation2 + $0x169] sm:$0xff]
  %v660 = vld [vmem:[#allocation2 + $0x171] sm:$0xff]
  %v661 = vld [vmem:[#allocation2 + $0x1b1] sm:$0xff]
  %v662 = vld [vmem:[#allocation2 + $0x1b9] sm:$0xff]
  %v663 = vld [vmem:[#allocation2 + $0x1c9] sm:$0xff]
  %v664 = vld [vmem:[#allocation2 + $0x1d1] sm:$0xff]
  %v665 = vld [vmem:[#allocation2 + $0x1e1] sm:$0xff]
  %v666 = vld [vmem:[#allocation2 + $0x1e9] sm:$0xff]
  %v667 = vld [vmem:[#allocation2 + $0x1f9] sm:$0xff]
  %v668 = vld [vmem:[#allocation2 + $0x201] sm:$0xff]
  %v669 = vld [vmem:[#allocation2 + $0x211] sm:$0xff]
  %v670 = vld [vmem:[#allocation2 + $0x219] sm:$0xff]
  %v671 = vld [vmem:[#allocation2 + $0x229] sm:$0xff]
  %v672 = vld [vmem:[#allocation2 + $0x231] sm:$0xff]
  %v673 = vld [vmem:[#allocation2 + $0x241] sm:$0xff]
  %v674 = vld [vmem:[#allocation2 + $0x249] sm:$0xff]
  %v675 = vld [vmem:[#allocation2 + $0x259] sm:$0xff]
  %v676 = vld [vmem:[#allocation2 + $0x261] sm:$0xff]
  %v677 = vld [vmem:[#allocation2 + $0x271] sm:$0xff]
  %v678 = vld [vmem:[#allocation2 + $0x279] sm:$0xff]
  %v679 = vld [vmem:[#allocation2 + $0x289] sm:$0xff]
  %v680 = vld [vmem:[#allocation2 + $0x291] sm:$0xff]
  %v681 = vld [vmem:[#allocation2 + $0x2a1] sm:$0xff]
  %v682 = vld [vmem:[#allocation2 + $0x2a9] sm:$0xff]
  %v683 = vld [vmem:[#allocation2 + $0x2b9] sm:$0xff]
  %v684 = vld [vmem:[#allocation2 + $0x2c1] sm:$0xff]
  %v685 = vld [vmem:[#allocation2 + $0x2d1] sm:$0xff]
  %v686 = vld [vmem:[#allocation2 + $0x2d9] sm:$0xff]
  %v687 = vld [vmem:[#allocation2 + $0x2e9] sm:$0xff]
  %v688 = vld [vmem:[#allocation2 + $0x2f1] sm:$0xff]
  %v689 = vld [vmem:[#allocation2 + $0x301] sm:$0xff]
  %v690 = vld [vmem:[#allocation2 + $0x309] sm:$0xff]
  %v691 = vld [vmem:[#allocation2 + $0x319] sm:$0xff]
  %v692 = vld [vmem:[#allocation2 + $0x321] sm:$0xff]
  %v693 = vpack.c.bf16 %v630, %v629
  %v694 = vpack.c.bf16 %v632, %v631
  %v695 = vpack.c.bf16 %v634, %v633
  %v696 = vpack.c.bf16 %v636, %v635
  %v697 = vpack.c.bf16 %v638, %v637
  %v698 = vpack.c.bf16 %v640, %v639
  %v699 = vpack.c.bf16 %v642, %v641
  %v700 = vpack.c.bf16 %v644, %v643
  %v701 = vpack.c.bf16 %v646, %v645
  %v702 = vpack.c.bf16 %v648, %v647
  %v703 = vpack.c.bf16 %v650, %v649
  %v704 = vpack.c.bf16 %v652, %v651
  %v705 = vpack.c.bf16 %v654, %v653
  %v706 = vpack.c.bf16 %v656, %v655
  %v707 = vpack.c.bf16 %v658, %v657
  %v708 = vpack.c.bf16 %v660, %v659
  %v709 = vpack.c.bf16 %v662, %v661
  %v710 = vpack.c.bf16 %v664, %v663
  %v711 = vpack.c.bf16 %v666, %v665
  %v712 = vpack.c.bf16 %v668, %v667
  %v713 = vpack.c.bf16 %v670, %v669
  %v714 = vpack.c.bf16 %v672, %v671
  %v715 = vpack.c.bf16 %v674, %v673
  %v716 = vpack.c.bf16 %v676, %v675
  %v717 = vpack.c.bf16 %v678, %v677
  %v718 = vpack.c.bf16 %v680, %v679
  %v719 = vpack.c.bf16 %v682, %v681
  %v720 = vpack.c.bf16 %v684, %v683
  %v721 = vpack.c.bf16 %v686, %v685
  %v722 = vpack.c.bf16 %v688, %v687
  %v723 = vpack.c.bf16 %v690, %v689
  %v724 = vpack.c.bf16 %v692, %v691
  %v757 = vunpack.c.l.b16 %v693
  %v758 = vunpack.c.h.b16 %v693
  %v759 = vunpack.c.l.b16 %v694
  %v760 = vunpack.c.h.b16 %v694
  %v761 = vunpack.c.l.b16 %v695
  %v762 = vunpack.c.h.b16 %v695
  %v763 = vunpack.c.l.b16 %v696
  %v764 = vunpack.c.h.b16 %v696
  %v765 = vunpack.c.l.b16 %v697
  %v766 = vunpack.c.h.b16 %v697
  %v767 = vunpack.c.l.b16 %v698
  %v768 = vunpack.c.h.b16 %v698
  %v769 = vunpack.c.l.b16 %v699
  %v770 = vunpack.c.h.b16 %v699
  %v771 = vunpack.c.l.b16 %v700
  %v772 = vunpack.c.h.b16 %v700
  %v773 = vunpack.c.l.b16 %v701
  %v774 = vunpack.c.h.b16 %v701
  %v775 = vunpack.c.l.b16 %v702
  %v776 = vunpack.c.h.b16 %v702
  %v777 = vunpack.c.l.b16 %v703
  %v778 = vunpack.c.h.b16 %v703
  %v779 = vunpack.c.l.b16 %v704
  %v780 = vunpack.c.h.b16 %v704
  %v781 = vunpack.c.l.b16 %v705
  %v782 = vunpack.c.h.b16 %v705
  %v783 = vunpack.c.l.b16 %v706
  %v784 = vunpack.c.h.b16 %v706
  %v785 = vunpack.c.l.b16 %v707
  %v786 = vunpack.c.h.b16 %v707
  %v787 = vunpack.c.l.b16 %v708
  %v788 = vunpack.c.h.b16 %v708
  %v789 = vunpack.c.l.b16 %v709
  %v790 = vunpack.c.h.b16 %v709
  %v791 = vunpack.c.l.b16 %v710
  %v792 = vunpack.c.h.b16 %v710
  %v793 = vunpack.c.l.b16 %v711
  %v794 = vunpack.c.h.b16 %v711
  %v795 = vunpack.c.l.b16 %v712
  %v796 = vunpack.c.h.b16 %v712
  %v797 = vunpack.c.l.b16 %v713
  %v798 = vunpack.c.h.b16 %v713
  %v799 = vunpack.c.l.b16 %v714
  %v800 = vunpack.c.h.b16 %v714
  %v801 = vunpack.c.l.b16 %v715
  %v802 = vunpack.c.h.b16 %v715
  %v803 = vunpack.c.l.b16 %v716
  %v804 = vunpack.c.h.b16 %v716
  %v805 = vunpack.c.l.b16 %v717
  %v806 = vunpack.c.h.b16 %v717
  %v807 = vunpack.c.l.b16 %v718
  %v808 = vunpack.c.h.b16 %v718
  %v809 = vunpack.c.l.b16 %v719
  %v810 = vunpack.c.h.b16 %v719
  %v811 = vunpack.c.l.b16 %v720
  %v812 = vunpack.c.h.b16 %v720
  %v813 = vunpack.c.l.b16 %v721
  %v814 = vunpack.c.h.b16 %v721
  %v815 = vunpack.c.l.b16 %v722
  %v816 = vunpack.c.h.b16 %v722
  %v817 = vunpack.c.l.b16 %v723
  %v818 = vunpack.c.h.b16 %v723
  %v819 = vunpack.c.l.b16 %v724
  %v820 = vunpack.c.h.b16 %v724
  %v821 = vpack.c.b16 %v757, %v757
  %v822 = vpack.c.b16 %v758, %v758
  %v823 = vpack.c.b16 %v759, %v759
  %v824 = vpack.c.b16 %v760, %v760
  %v825 = vpack.c.b16 %v761, %v761
  %v826 = vpack.c.b16 %v762, %v762
  %v827 = vpack.c.b16 %v763, %v763
  %v828 = vpack.c.b16 %v764, %v764
  %v829 = vpack.c.b16 %v765, %v765
  %v830 = vpack.c.b16 %v766, %v766
  %v831 = vpack.c.b16 %v767, %v767
  %v832 = vpack.c.b16 %v768, %v768
  %v833 = vpack.c.b16 %v769, %v769
  %v834 = vpack.c.b16 %v770, %v770
  %v835 = vpack.c.b16 %v771, %v771
  %v836 = vpack.c.b16 %v772, %v772
  %v837 = vpack.c.b16 %v773, %v773
  %v838 = vpack.c.b16 %v774, %v774
  %v839 = vpack.c.b16 %v775, %v775
  %v840 = vpack.c.b16 %v776, %v776
  %v841 = vpack.c.b16 %v777, %v777
  %v842 = vpack.c.b16 %v778, %v778
  %v843 = vpack.c.b16 %v779, %v779
  %v844 = vpack.c.b16 %v780, %v780
  %v845 = vpack.c.b16 %v781, %v781
  %v846 = vpack.c.b16 %v782, %v782
  %v847 = vpack.c.b16 %v783, %v783
  %v848 = vpack.c.b16 %v784, %v784
  %v849 = vpack.c.b16 %v785, %v785
  %v850 = vpack.c.b16 %v786, %v786
  %v851 = vpack.c.b16 %v787, %v787
  %v852 = vpack.c.b16 %v788, %v788
  %v853 = vpack.c.b16 %v789, %v789
  %v854 = vpack.c.b16 %v790, %v790
  %v855 = vpack.c.b16 %v791, %v791
  %v856 = vpack.c.b16 %v792, %v792
  %v857 = vpack.c.b16 %v793, %v793
  %v858 = vpack.c.b16 %v794, %v794
  %v859 = vpack.c.b16 %v795, %v795
  %v860 = vpack.c.b16 %v796, %v796
  %v861 = vpack.c.b16 %v797, %v797
  %v862 = vpack.c.b16 %v798, %v798
  %v863 = vpack.c.b16 %v799, %v799
  %v864 = vpack.c.b16 %v800, %v800
  %v865 = vpack.c.b16 %v801, %v801
  %v866 = vpack.c.b16 %v802, %v802
  %v867 = vpack.c.b16 %v803, %v803
  %v868 = vpack.c.b16 %v804, %v804
  %v869 = vpack.c.b16 %v805, %v805
  %v870 = vpack.c.b16 %v806, %v806
  %v871 = vpack.c.b16 %v807, %v807
  %v872 = vpack.c.b16 %v808, %v808
  %v873 = vpack.c.b16 %v809, %v809
  %v874 = vpack.c.b16 %v810, %v810
  %v875 = vpack.c.b16 %v811, %v811
  %v876 = vpack.c.b16 %v812, %v812
  %v877 = vpack.c.b16 %v813, %v813
  %v878 = vpack.c.b16 %v814, %v814
  %v879 = vpack.c.b16 %v815, %v815
  %v880 = vpack.c.b16 %v816, %v816
  %v881 = vpack.c.b16 %v817, %v817
  %v882 = vpack.c.b16 %v818, %v818
  %v883 = vpack.c.b16 %v819, %v819
  %v884 = vpack.c.b16 %v820, %v820
  %885 = vrot.lane.b32.xlu0 %v821, 8
  %v886 = vpop.permute.xlu0 %885
  %887 = vrot.lane.b32.xlu0 %v822, 8
  %v888 = vpop.permute.xlu0 %887
  %889 = vrot.lane.b32.xlu0 %v823, 8
  %v890 = vpop.permute.xlu0 %889
  %891 = vrot.lane.b32.xlu0 %v824, 8
  %v892 = vpop.permute.xlu0 %891
  %893 = vrot.lane.b32.xlu0 %v825, 8
  %v894 = vpop.permute.xlu0 %893
  %895 = vrot.lane.b32.xlu0 %v826, 8
  %v896 = vpop.permute.xlu0 %895
  %897 = vrot.lane.b32.xlu0 %v827, 8
  %v898 = vpop.permute.xlu0 %897
  %899 = vrot.lane.b32.xlu0 %v828, 8
  %v900 = vpop.permute.xlu0 %899
  %901 = vrot.lane.b32.xlu0 %v829, 8
  %v902 = vpop.permute.xlu0 %901
  %903 = vrot.lane.b32.xlu0 %v830, 8
  %v904 = vpop.permute.xlu0 %903
  %905 = vrot.lane.b32.xlu0 %v831, 8
  %v906 = vpop.permute.xlu0 %905
  %907 = vrot.lane.b32.xlu0 %v832, 8
  %v908 = vpop.permute.xlu0 %907
  %909 = vrot.lane.b32.xlu0 %v833, 8
  %v910 = vpop.permute.xlu0 %909
  %911 = vrot.lane.b32.xlu0 %v834, 8
  %v912 = vpop.permute.xlu0 %911
  %913 = vrot.lane.b32.xlu0 %v835, 8
  %v914 = vpop.permute.xlu0 %913
  %915 = vrot.lane.b32.xlu0 %v836, 8
  %v916 = vpop.permute.xlu0 %915
  %917 = vrot.lane.b32.xlu0 %v837, 8
  %v918 = vpop.permute.xlu0 %917
  %919 = vrot.lane.b32.xlu0 %v838, 8
  %v920 = vpop.permute.xlu0 %919
  %921 = vrot.lane.b32.xlu0 %v839, 8
  %v922 = vpop.permute.xlu0 %921
  %923 = vrot.lane.b32.xlu0 %v840, 8
  %v924 = vpop.permute.xlu0 %923
  %925 = vrot.lane.b32.xlu0 %v841, 8
  %v926 = vpop.permute.xlu0 %925
  %927 = vrot.lane.b32.xlu0 %v842, 8
  %v928 = vpop.permute.xlu0 %927
  %929 = vrot.lane.b32.xlu0 %v843, 8
  %v930 = vpop.permute.xlu0 %929
  %931 = vrot.lane.b32.xlu0 %v844, 8
  %v932 = vpop.permute.xlu0 %931
  %933 = vrot.lane.b32.xlu0 %v845, 8
  %v934 = vpop.permute.xlu0 %933
  %935 = vrot.lane.b32.xlu0 %v846, 8
  %v936 = vpop.permute.xlu0 %935
  %937 = vrot.lane.b32.xlu0 %v847, 8
  %v938 = vpop.permute.xlu0 %937
  %939 = vrot.lane.b32.xlu0 %v848, 8
  %v940 = vpop.permute.xlu0 %939
  %941 = vrot.lane.b32.xlu0 %v849, 8
  %v942 = vpop.permute.xlu0 %941
  %943 = vrot.lane.b32.xlu0 %v850, 8
  %v944 = vpop.permute.xlu0 %943
  %945 = vrot.lane.b32.xlu0 %v851, 8
  %v946 = vpop.permute.xlu0 %945
  %947 = vrot.lane.b32.xlu0 %v852, 8
  %v948 = vpop.permute.xlu0 %947
  %949 = vrot.lane.b32.xlu0 %v853, 8
  %v950 = vpop.permute.xlu0 %949
  %951 = vrot.lane.b32.xlu0 %v854, 8
  %v952 = vpop.permute.xlu0 %951
  %953 = vrot.lane.b32.xlu0 %v855, 8
  %v954 = vpop.permute.xlu0 %953
  %955 = vrot.lane.b32.xlu0 %v856, 8
  %v956 = vpop.permute.xlu0 %955
  %957 = vrot.lane.b32.xlu0 %v857, 8
  %v958 = vpop.permute.xlu0 %957
  %959 = vrot.lane.b32.xlu0 %v858, 8
  %v960 = vpop.permute.xlu0 %959
  %961 = vrot.lane.b32.xlu0 %v859, 8
  %v962 = vpop.permute.xlu0 %961
  %963 = vrot.lane.b32.xlu0 %v860, 8
  %v964 = vpop.permute.xlu0 %963
  %965 = vrot.lane.b32.xlu0 %v861, 8
  %v966 = vpop.permute.xlu0 %965
  %967 = vrot.lane.b32.xlu0 %v862, 8
  %v968 = vpop.permute.xlu0 %967
  %969 = vrot.lane.b32.xlu0 %v863, 8
  %v970 = vpop.permute.xlu0 %969
  %971 = vrot.lane.b32.xlu0 %v864, 8
  %v972 = vpop.permute.xlu0 %971
  %973 = vrot.lane.b32.xlu0 %v865, 8
  %v974 = vpop.permute.xlu0 %973
  %975 = vrot.lane.b32.xlu0 %v866, 8
  %v976 = vpop.permute.xlu0 %975
  %977 = vrot.lane.b32.xlu0 %v867, 8
  %v978 = vpop.permute.xlu0 %977
  %979 = vrot.lane.b32.xlu0 %v868, 8
  %v980 = vpop.permute.xlu0 %979
  %981 = vrot.lane.b32.xlu0 %v869, 8
  %v982 = vpop.permute.xlu0 %981
  %983 = vrot.lane.b32.xlu0 %v870, 8
  %v984 = vpop.permute.xlu0 %983
  %985 = vrot.lane.b32.xlu0 %v871, 8
  %v986 = vpop.permute.xlu0 %985
  %987 = vrot.lane.b32.xlu0 %v872, 8
  %v988 = vpop.permute.xlu0 %987
  %989 = vrot.lane.b32.xlu0 %v873, 8
  %v990 = vpop.permute.xlu0 %989
  %991 = vrot.lane.b32.xlu0 %v874, 8
  %v992 = vpop.permute.xlu0 %991
  %993 = vrot.lane.b32.xlu0 %v875, 8
  %v994 = vpop.permute.xlu0 %993
  %995 = vrot.lane.b32.xlu0 %v876, 8
  %v996 = vpop.permute.xlu0 %995
  %997 = vrot.lane.b32.xlu0 %v877, 8
  %v998 = vpop.permute.xlu0 %997
  %999 = vrot.lane.b32.xlu0 %v878, 8
  %v1000 = vpop.permute.xlu0 %999
  %1001 = vrot.lane.b32.xlu0 %v879, 8
  %v1002 = vpop.permute.xlu0 %1001
  %1003 = vrot.lane.b32.xlu0 %v880, 8
  %v1004 = vpop.permute.xlu0 %1003
  %1005 = vrot.lane.b32.xlu0 %v881, 8
  %v1006 = vpop.permute.xlu0 %1005
  %1007 = vrot.lane.b32.xlu0 %v882, 8
  %v1008 = vpop.permute.xlu0 %1007
  %1009 = vrot.lane.b32.xlu0 %v883, 8
  %v1010 = vpop.permute.xlu0 %1009
  %1011 = vrot.lane.b32.xlu0 %v884, 8
  %v1012 = vpop.permute.xlu0 %1011
  %vm1077 = vcmask 126016
  %1078 = vst.msk [vmem:[#allocation3] sm:$0xf] %vm1077, %v886
  %1079 = vst.msk [vmem:[#allocation3 + $0x4] sm:$0xf] %vm1077, %v888
  %1080 = vst.msk [vmem:[#allocation3 + $0x8] sm:$0xf] %vm1077, %v890
  %1081 = vst.msk [vmem:[#allocation3 + $0xc] sm:$0xf] %vm1077, %v892
  %1082 = vst.msk [vmem:[#allocation3 + $0x10] sm:$0xf] %vm1077, %v894
  %1083 = vst.msk [vmem:[#allocation3 + $0x14] sm:$0xf] %vm1077, %v896
  %1084 = vst.msk [vmem:[#allocation3 + $0x18] sm:$0xf] %vm1077, %v898
  %1085 = vst.msk [vmem:[#allocation3 + $0x1c] sm:$0xf] %vm1077, %v900
  %1086 = vst.msk [vmem:[#allocation3 + $0x20] sm:$0xf] %vm1077, %v902
  %1087 = vst.msk [vmem:[#allocation3 + $0x24] sm:$0xf] %vm1077, %v904
  %1088 = vst.msk [vmem:[#allocation3 + $0x28] sm:$0xf] %vm1077, %v906
  %1089 = vst.msk [vmem:[#allocation3 + $0x2c] sm:$0xf] %vm1077, %v908
  %1090 = vst.msk [vmem:[#allocation3 + $0x30] sm:$0xf] %vm1077, %v910
  %1091 = vst.msk [vmem:[#allocation3 + $0x34] sm:$0xf] %vm1077, %v912
  %1092 = vst.msk [vmem:[#allocation3 + $0x38] sm:$0xf] %vm1077, %v914
  %1093 = vst.msk [vmem:[#allocation3 + $0x3c] sm:$0xf] %vm1077, %v916
  %1094 = vst.msk [vmem:[#allocation3 + $0x40] sm:$0xf] %vm1077, %v918
  %1095 = vst.msk [vmem:[#allocation3 + $0x44] sm:$0xf] %vm1077, %v920
  %1096 = vst.msk [vmem:[#allocation3 + $0x48] sm:$0xf] %vm1077, %v922
  %1097 = vst.msk [vmem:[#allocation3 + $0x4c] sm:$0xf] %vm1077, %v924
  %1098 = vst.msk [vmem:[#allocation3 + $0x50] sm:$0xf] %vm1077, %v926
  %1099 = vst.msk [vmem:[#allocation3 + $0x54] sm:$0xf] %vm1077, %v928
  %1100 = vst.msk [vmem:[#allocation3 + $0x58] sm:$0xf] %vm1077, %v930
  %1101 = vst.msk [vmem:[#allocation3 + $0x5c] sm:$0xf] %vm1077, %v932
  %1102 = vst.msk [vmem:[#allocation3 + $0x60] sm:$0xf] %vm1077, %v934
  %1103 = vst.msk [vmem:[#allocation3 + $0x64] sm:$0xf] %vm1077, %v936
  %1104 = vst.msk [vmem:[#allocation3 + $0x68] sm:$0xf] %vm1077, %v938
  %1105 = vst.msk [vmem:[#allocation3 + $0x6c] sm:$0xf] %vm1077, %v940
  %1106 = vst.msk [vmem:[#allocation3 + $0x70] sm:$0xf] %vm1077, %v942
  %1107 = vst.msk [vmem:[#allocation3 + $0x74] sm:$0xf] %vm1077, %v944
  %1108 = vst.msk [vmem:[#allocation3 + $0x78] sm:$0xf] %vm1077, %v946
  %1109 = vst.msk [vmem:[#allocation3 + $0x7c] sm:$0xf] %vm1077, %v948
  %1110 = vst.msk [vmem:[#allocation3 + $0x80] sm:$0xf] %vm1077, %v950
  %1111 = vst.msk [vmem:[#allocation3 + $0x84] sm:$0xf] %vm1077, %v952
  %1112 = vst.msk [vmem:[#allocation3 + $0x88] sm:$0xf] %vm1077, %v954
  %1113 = vst.msk [vmem:[#allocation3 + $0x8c] sm:$0xf] %vm1077, %v956
  %1114 = vst.msk [vmem:[#allocation3 + $0x90] sm:$0xf] %vm1077, %v958
  %1115 = vst.msk [vmem:[#allocation3 + $0x94] sm:$0xf] %vm1077, %v960
  %1116 = vst.msk [vmem:[#allocation3 + $0x98] sm:$0xf] %vm1077, %v962
  %1117 = vst.msk [vmem:[#allocation3 + $0x9c] sm:$0xf] %vm1077, %v964
  %1118 = vst.msk [vmem:[#allocation3 + $0xa0] sm:$0xf] %vm1077, %v966
  %1119 = vst.msk [vmem:[#allocation3 + $0xa4] sm:$0xf] %vm1077, %v968
  %1120 = vst.msk [vmem:[#allocation3 + $0xa8] sm:$0xf] %vm1077, %v970
  %1121 = vst.msk [vmem:[#allocation3 + $0xac] sm:$0xf] %vm1077, %v972
  %1122 = vst.msk [vmem:[#allocation3 + $0xb0] sm:$0xf] %vm1077, %v974
  %1123 = vst.msk [vmem:[#allocation3 + $0xb4] sm:$0xf] %vm1077, %v976
  %1124 = vst.msk [vmem:[#allocation3 + $0xb8] sm:$0xf] %vm1077, %v978
  %1125 = vst.msk [vmem:[#allocation3 + $0xbc] sm:$0xf] %vm1077, %v980
  %1126 = vst.msk [vmem:[#allocation3 + $0xc0] sm:$0xf] %vm1077, %v982
  %1127 = vst.msk [vmem:[#allocation3 + $0xc4] sm:$0xf] %vm1077, %v984
  %1128 = vst.msk [vmem:[#allocation3 + $0xc8] sm:$0xf] %vm1077, %v986
  %1129 = vst.msk [vmem:[#allocation3 + $0xcc] sm:$0xf] %vm1077, %v988
  %1130 = vst.msk [vmem:[#allocation3 + $0xd0] sm:$0xf] %vm1077, %v990
  %1131 = vst.msk [vmem:[#allocation3 + $0xd4] sm:$0xf] %vm1077, %v992
  %1132 = vst.msk [vmem:[#allocation3 + $0xd8] sm:$0xf] %vm1077, %v994
  %1133 = vst.msk [vmem:[#allocation3 + $0xdc] sm:$0xf] %vm1077, %v996
  %1134 = vst.msk [vmem:[#allocation3 + $0xe0] sm:$0xf] %vm1077, %v998
  %1135 = vst.msk [vmem:[#allocation3 + $0xe4] sm:$0xf] %vm1077, %v1000
  %1136 = vst.msk [vmem:[#allocation3 + $0xe8] sm:$0xf] %vm1077, %v1002
  %1137 = vst.msk [vmem:[#allocation3 + $0xec] sm:$0xf] %vm1077, %v1004
  %1138 = vst.msk [vmem:[#allocation3 + $0xf0] sm:$0xf] %vm1077, %v1006
  %1139 = vst.msk [vmem:[#allocation3 + $0xf4] sm:$0xf] %vm1077, %v1008
  %1140 = vst.msk [vmem:[#allocation3 + $0xf8] sm:$0xf] %vm1077, %v1010
  %1141 = vst.msk [vmem:[#allocation3 + $0xfc] sm:$0xf] %vm1077, %v1012
  %v1142 = vld [vmem:[#allocation2 + $0x2] sm:$0xff]
  %v1143 = vld [vmem:[#allocation2 + $0xa] sm:$0xff]
  %v1144 = vld [vmem:[#allocation2 + $0x1a] sm:$0xff]
  %v1145 = vld [vmem:[#allocation2 + $0x22] sm:$0xff]
  %v1146 = vld [vmem:[#allocation2 + $0x32] sm:$0xff]
  %v1147 = vld [vmem:[#allocation2 + $0x3a] sm:$0xff]
  %v1148 = vld [vmem:[#allocation2 + $0x4a] sm:$0xff]
  %v1149 = vld [vmem:[#allocation2 + $0x52] sm:$0xff]
  %v1150 = vld [vmem:[#allocation2 + $0x62] sm:$0xff]
  %v1151 = vld [vmem:[#allocation2 + $0x6a] sm:$0xff]
  %v1152 = vld [vmem:[#allocation2 + $0x7a] sm:$0xff]
  %v1153 = vld [vmem:[#allocation2 + $0x82] sm:$0xff]
  %v1154 = vld [vmem:[#allocation2 + $0x92] sm:$0xff]
  %v1155 = vld [vmem:[#allocation2 + $0x9a] sm:$0xff]
  %v1156 = vld [vmem:[#allocation2 + $0xaa] sm:$0xff]
  %v1157 = vld [vmem:[#allocation2 + $0xb2] sm:$0xff]
  %v1158 = vld [vmem:[#allocation2 + $0xc2] sm:$0xff]
  %v1159 = vld [vmem:[#allocation2 + $0xca] sm:$0xff]
  %v1160 = vld [vmem:[#allocation2 + $0xda] sm:$0xff]
  %v1161 = vld [vmem:[#allocation2 + $0xe2] sm:$0xff]
  %v1162 = vld [vmem:[#allocation2 + $0xf2] sm:$0xff]
  %v1163 = vld [vmem:[#allocation2 + $0xfa] sm:$0xff]
  %v1164 = vld [vmem:[#allocation2 + $0x10a] sm:$0xff]
  %v1165 = vld [vmem:[#allocation2 + $0x112] sm:$0xff]
  %v1166 = vld [vmem:[#allocation2 + $0x122] sm:$0xff]
  %v1167 = vld [vmem:[#allocation2 + $0x12a] sm:$0xff]
  %v1168 = vld [vmem:[#allocation2 + $0x13a] sm:$0xff]
  %v1169 = vld [vmem:[#allocation2 + $0x142] sm:$0xff]
  %v1170 = vld [vmem:[#allocation2 + $0x152] sm:$0xff]
  %v1171 = vld [vmem:[#allocation2 + $0x15a] sm:$0xff]
  %v1172 = vld [vmem:[#allocation2 + $0x16a] sm:$0xff]
  %v1173 = vld [vmem:[#allocation2 + $0x172] sm:$0xff]
  %v1174 = vld [vmem:[#allocation2 + $0x1b2] sm:$0xff]
  %v1175 = vld [vmem:[#allocation2 + $0x1ba] sm:$0xff]
  %v1176 = vld [vmem:[#allocation2 + $0x1ca] sm:$0xff]
  %v1177 = vld [vmem:[#allocation2 + $0x1d2] sm:$0xff]
  %v1178 = vld [vmem:[#allocation2 + $0x1e2] sm:$0xff]
  %v1179 = vld [vmem:[#allocation2 + $0x1ea] sm:$0xff]
  %v1180 = vld [vmem:[#allocation2 + $0x1fa] sm:$0xff]
  %v1181 = vld [vmem:[#allocation2 + $0x202] sm:$0xff]
  %v1182 = vld [vmem:[#allocation2 + $0x212] sm:$0xff]
  %v1183 = vld [vmem:[#allocation2 + $0x21a] sm:$0xff]
  %v1184 = vld [vmem:[#allocation2 + $0x22a] sm:$0xff]
  %v1185 = vld [vmem:[#allocation2 + $0x232] sm:$0xff]
  %v1186 = vld [vmem:[#allocation2 + $0x242] sm:$0xff]
  %v1187 = vld [vmem:[#allocation2 + $0x24a] sm:$0xff]
  %v1188 = vld [vmem:[#allocation2 + $0x25a] sm:$0xff]
  %v1189 = vld [vmem:[#allocation2 + $0x262] sm:$0xff]
  %v1190 = vld [vmem:[#allocation2 + $0x272] sm:$0xff]
  %v1191 = vld [vmem:[#allocation2 + $0x27a] sm:$0xff]
  %v1192 = vld [vmem:[#allocation2 + $0x28a] sm:$0xff]
  %v1193 = vld [vmem:[#allocation2 + $0x292] sm:$0xff]
  %v1194 = vld [vmem:[#allocation2 + $0x2a2] sm:$0xff]
  %v1195 = vld [vmem:[#allocation2 + $0x2aa] sm:$0xff]
  %v1196 = vld [vmem:[#allocation2 + $0x2ba] sm:$0xff]
  %v1197 = vld [vmem:[#allocation2 + $0x2c2] sm:$0xff]
  %v1198 = vld [vmem:[#allocation2 + $0x2d2] sm:$0xff]
  %v1199 = vld [vmem:[#allocation2 + $0x2da] sm:$0xff]
  %v1200 = vld [vmem:[#allocation2 + $0x2ea] sm:$0xff]
  %v1201 = vld [vmem:[#allocation2 + $0x2f2] sm:$0xff]
  %v1202 = vld [vmem:[#allocation2 + $0x302] sm:$0xff]
  %v1203 = vld [vmem:[#allocation2 + $0x30a] sm:$0xff]
  %v1204 = vld [vmem:[#allocation2 + $0x31a] sm:$0xff]
  %v1205 = vld [vmem:[#allocation2 + $0x322] sm:$0xff]
  %v1206 = vpack.c.bf16 %v1143, %v1142
  %v1207 = vpack.c.bf16 %v1145, %v1144
  %v1208 = vpack.c.bf16 %v1147, %v1146
  %v1209 = vpack.c.bf16 %v1149, %v1148
  %v1210 = vpack.c.bf16 %v1151, %v1150
  %v1211 = vpack.c.bf16 %v1153, %v1152
  %v1212 = vpack.c.bf16 %v1155, %v1154
  %v1213 = vpack.c.bf16 %v1157, %v1156
  %v1214 = vpack.c.bf16 %v1159, %v1158
  %v1215 = vpack.c.bf16 %v1161, %v1160
  %v1216 = vpack.c.bf16 %v1163, %v1162
  %v1217 = vpack.c.bf16 %v1165, %v1164
  %v1218 = vpack.c.bf16 %v1167, %v1166
  %v1219 = vpack.c.bf16 %v1169, %v1168
  %v1220 = vpack.c.bf16 %v1171, %v1170
  %v1221 = vpack.c.bf16 %v1173, %v1172
  %v1222 = vpack.c.bf16 %v1175, %v1174
  %v1223 = vpack.c.bf16 %v1177, %v1176
  %v1224 = vpack.c.bf16 %v1179, %v1178
  %v1225 = vpack.c.bf16 %v1181, %v1180
  %v1226 = vpack.c.bf16 %v1183, %v1182
  %v1227 = vpack.c.bf16 %v1185, %v1184
  %v1228 = vpack.c.bf16 %v1187, %v1186
  %v1229 = vpack.c.bf16 %v1189, %v1188
  %v1230 = vpack.c.bf16 %v1191, %v1190
  %v1231 = vpack.c.bf16 %v1193, %v1192
  %v1232 = vpack.c.bf16 %v1195, %v1194
  %v1233 = vpack.c.bf16 %v1197, %v1196
  %v1234 = vpack.c.bf16 %v1199, %v1198
  %v1235 = vpack.c.bf16 %v1201, %v1200
  %v1236 = vpack.c.bf16 %v1203, %v1202
  %v1237 = vpack.c.bf16 %v1205, %v1204
  %v1270 = vunpack.c.l.b16 %v1206
  %v1271 = vunpack.c.h.b16 %v1206
  %v1272 = vunpack.c.l.b16 %v1207
  %v1273 = vunpack.c.h.b16 %v1207
  %v1274 = vunpack.c.l.b16 %v1208
  %v1275 = vunpack.c.h.b16 %v1208
  %v1276 = vunpack.c.l.b16 %v1209
  %v1277 = vunpack.c.h.b16 %v1209
  %v1278 = vunpack.c.l.b16 %v1210
  %v1279 = vunpack.c.h.b16 %v1210
  %v1280 = vunpack.c.l.b16 %v1211
  %v1281 = vunpack.c.h.b16 %v1211
  %v1282 = vunpack.c.l.b16 %v1212
  %v1283 = vunpack.c.h.b16 %v1212
  %v1284 = vunpack.c.l.b16 %v1213
  %v1285 = vunpack.c.h.b16 %v1213
  %v1286 = vunpack.c.l.b16 %v1214
  %v1287 = vunpack.c.h.b16 %v1214
  %v1288 = vunpack.c.l.b16 %v1215
  %v1289 = vunpack.c.h.b16 %v1215
  %v1290 = vunpack.c.l.b16 %v1216
  %v1291 = vunpack.c.h.b16 %v1216
  %v1292 = vunpack.c.l.b16 %v1217
  %v1293 = vunpack.c.h.b16 %v1217
  %v1294 = vunpack.c.l.b16 %v1218
  %v1295 = vunpack.c.h.b16 %v1218
  %v1296 = vunpack.c.l.b16 %v1219
  %v1297 = vunpack.c.h.b16 %v1219
  %v1298 = vunpack.c.l.b16 %v1220
  %v1299 = vunpack.c.h.b16 %v1220
  %v1300 = vunpack.c.l.b16 %v1221
  %v1301 = vunpack.c.h.b16 %v1221
  %v1302 = vunpack.c.l.b16 %v1222
  %v1303 = vunpack.c.h.b16 %v1222
  %v1304 = vunpack.c.l.b16 %v1223
  %v1305 = vunpack.c.h.b16 %v1223
  %v1306 = vunpack.c.l.b16 %v1224
  %v1307 = vunpack.c.h.b16 %v1224
  %v1308 = vunpack.c.l.b16 %v1225
  %v1309 = vunpack.c.h.b16 %v1225
  %v1310 = vunpack.c.l.b16 %v1226
  %v1311 = vunpack.c.h.b16 %v1226
  %v1312 = vunpack.c.l.b16 %v1227
  %v1313 = vunpack.c.h.b16 %v1227
  %v1314 = vunpack.c.l.b16 %v1228
  %v1315 = vunpack.c.h.b16 %v1228
  %v1316 = vunpack.c.l.b16 %v1229
  %v1317 = vunpack.c.h.b16 %v1229
  %v1318 = vunpack.c.l.b16 %v1230
  %v1319 = vunpack.c.h.b16 %v1230
  %v1320 = vunpack.c.l.b16 %v1231
  %v1321 = vunpack.c.h.b16 %v1231
  %v1322 = vunpack.c.l.b16 %v1232
  %v1323 = vunpack.c.h.b16 %v1232
  %v1324 = vunpack.c.l.b16 %v1233
  %v1325 = vunpack.c.h.b16 %v1233
  %v1326 = vunpack.c.l.b16 %v1234
  %v1327 = vunpack.c.h.b16 %v1234
  %v1328 = vunpack.c.l.b16 %v1235
  %v1329 = vunpack.c.h.b16 %v1235
  %v1330 = vunpack.c.l.b16 %v1236
  %v1331 = vunpack.c.h.b16 %v1236
  %v1332 = vunpack.c.l.b16 %v1237
  %v1333 = vunpack.c.h.b16 %v1237
  %v1334 = vpack.c.b16 %v1270, %v1270
  %v1335 = vpack.c.b16 %v1271, %v1271
  %v1336 = vpack.c.b16 %v1272, %v1272
  %v1337 = vpack.c.b16 %v1273, %v1273
  %v1338 = vpack.c.b16 %v1274, %v1274
  %v1339 = vpack.c.b16 %v1275, %v1275
  %v1340 = vpack.c.b16 %v1276, %v1276
  %v1341 = vpack.c.b16 %v1277, %v1277
  %v1342 = vpack.c.b16 %v1278, %v1278
  %v1343 = vpack.c.b16 %v1279, %v1279
  %v1344 = vpack.c.b16 %v1280, %v1280
  %v1345 = vpack.c.b16 %v1281, %v1281
  %v1346 = vpack.c.b16 %v1282, %v1282
  %v1347 = vpack.c.b16 %v1283, %v1283
  %v1348 = vpack.c.b16 %v1284, %v1284
  %v1349 = vpack.c.b16 %v1285, %v1285
  %v1350 = vpack.c.b16 %v1286, %v1286
  %v1351 = vpack.c.b16 %v1287, %v1287
  %v1352 = vpack.c.b16 %v1288, %v1288
  %v1353 = vpack.c.b16 %v1289, %v1289
  %v1354 = vpack.c.b16 %v1290, %v1290
  %v1355 = vpack.c.b16 %v1291, %v1291
  %v1356 = vpack.c.b16 %v1292, %v1292
  %v1357 = vpack.c.b16 %v1293, %v1293
  %v1358 = vpack.c.b16 %v1294, %v1294
  %v1359 = vpack.c.b16 %v1295, %v1295
  %v1360 = vpack.c.b16 %v1296, %v1296
  %v1361 = vpack.c.b16 %v1297, %v1297
  %v1362 = vpack.c.b16 %v1298, %v1298
  %v1363 = vpack.c.b16 %v1299, %v1299
  %v1364 = vpack.c.b16 %v1300, %v1300
  %v1365 = vpack.c.b16 %v1301, %v1301
  %v1366 = vpack.c.b16 %v1302, %v1302
  %v1367 = vpack.c.b16 %v1303, %v1303
  %v1368 = vpack.c.b16 %v1304, %v1304
  %v1369 = vpack.c.b16 %v1305, %v1305
  %v1370 = vpack.c.b16 %v1306, %v1306
  %v1371 = vpack.c.b16 %v1307, %v1307
  %v1372 = vpack.c.b16 %v1308, %v1308
  %v1373 = vpack.c.b16 %v1309, %v1309
  %v1374 = vpack.c.b16 %v1310, %v1310
  %v1375 = vpack.c.b16 %v1311, %v1311
  %v1376 = vpack.c.b16 %v1312, %v1312
  %v1377 = vpack.c.b16 %v1313, %v1313
  %v1378 = vpack.c.b16 %v1314, %v1314
  %v1379 = vpack.c.b16 %v1315, %v1315
  %v1380 = vpack.c.b16 %v1316, %v1316
  %v1381 = vpack.c.b16 %v1317, %v1317
  %v1382 = vpack.c.b16 %v1318, %v1318
  %v1383 = vpack.c.b16 %v1319, %v1319
  %v1384 = vpack.c.b16 %v1320, %v1320
  %v1385 = vpack.c.b16 %v1321, %v1321
  %v1386 = vpack.c.b16 %v1322, %v1322
  %v1387 = vpack.c.b16 %v1323, %v1323
  %v1388 = vpack.c.b16 %v1324, %v1324
  %v1389 = vpack.c.b16 %v1325, %v1325
  %v1390 = vpack.c.b16 %v1326, %v1326
  %v1391 = vpack.c.b16 %v1327, %v1327
  %v1392 = vpack.c.b16 %v1328, %v1328
  %v1393 = vpack.c.b16 %v1329, %v1329
  %v1394 = vpack.c.b16 %v1330, %v1330
  %v1395 = vpack.c.b16 %v1331, %v1331
  %v1396 = vpack.c.b16 %v1332, %v1332
  %v1397 = vpack.c.b16 %v1333, %v1333
  %1398 = vrot.lane.b32.xlu0 %v1334, 16
  %v1399 = vpop.permute.xlu0 %1398
  %1400 = vrot.lane.b32.xlu0 %v1335, 16
  %v1401 = vpop.permute.xlu0 %1400
  %1402 = vrot.lane.b32.xlu0 %v1336, 16
  %v1403 = vpop.permute.xlu0 %1402
  %1404 = vrot.lane.b32.xlu0 %v1337, 16
  %v1405 = vpop.permute.xlu0 %1404
  %1406 = vrot.lane.b32.xlu0 %v1338, 16
  %v1407 = vpop.permute.xlu0 %1406
  %1408 = vrot.lane.b32.xlu0 %v1339, 16
  %v1409 = vpop.permute.xlu0 %1408
  %1410 = vrot.lane.b32.xlu0 %v1340, 16
  %v1411 = vpop.permute.xlu0 %1410
  %1412 = vrot.lane.b32.xlu0 %v1341, 16
  %v1413 = vpop.permute.xlu0 %1412
  %1414 = vrot.lane.b32.xlu0 %v1342, 16
  %v1415 = vpop.permute.xlu0 %1414
  %1416 = vrot.lane.b32.xlu0 %v1343, 16
  %v1417 = vpop.permute.xlu0 %1416
  %1418 = vrot.lane.b32.xlu0 %v1344, 16
  %v1419 = vpop.permute.xlu0 %1418
  %1420 = vrot.lane.b32.xlu0 %v1345, 16
  %v1421 = vpop.permute.xlu0 %1420
  %1422 = vrot.lane.b32.xlu0 %v1346, 16
  %v1423 = vpop.permute.xlu0 %1422
  %1424 = vrot.lane.b32.xlu0 %v1347, 16
  %v1425 = vpop.permute.xlu0 %1424
  %1426 = vrot.lane.b32.xlu0 %v1348, 16
  %v1427 = vpop.permute.xlu0 %1426
  %1428 = vrot.lane.b32.xlu0 %v1349, 16
  %v1429 = vpop.permute.xlu0 %1428
  %1430 = vrot.lane.b32.xlu0 %v1350, 16
  %v1431 = vpop.permute.xlu0 %1430
  %1432 = vrot.lane.b32.xlu0 %v1351, 16
  %v1433 = vpop.permute.xlu0 %1432
  %1434 = vrot.lane.b32.xlu0 %v1352, 16
  %v1435 = vpop.permute.xlu0 %1434
  %1436 = vrot.lane.b32.xlu0 %v1353, 16
  %v1437 = vpop.permute.xlu0 %1436
  %1438 = vrot.lane.b32.xlu0 %v1354, 16
  %v1439 = vpop.permute.xlu0 %1438
  %1440 = vrot.lane.b32.xlu0 %v1355, 16
  %v1441 = vpop.permute.xlu0 %1440
  %1442 = vrot.lane.b32.xlu0 %v1356, 16
  %v1443 = vpop.permute.xlu0 %1442
  %1444 = vrot.lane.b32.xlu0 %v1357, 16
  %v1445 = vpop.permute.xlu0 %1444
  %1446 = vrot.lane.b32.xlu0 %v1358, 16
  %v1447 = vpop.permute.xlu0 %1446
  %1448 = vrot.lane.b32.xlu0 %v1359, 16
  %v1449 = vpop.permute.xlu0 %1448
  %1450 = vrot.lane.b32.xlu0 %v1360, 16
  %v1451 = vpop.permute.xlu0 %1450
  %1452 = vrot.lane.b32.xlu0 %v1361, 16
  %v1453 = vpop.permute.xlu0 %1452
  %1454 = vrot.lane.b32.xlu0 %v1362, 16
  %v1455 = vpop.permute.xlu0 %1454
  %1456 = vrot.lane.b32.xlu0 %v1363, 16
  %v1457 = vpop.permute.xlu0 %1456
  %1458 = vrot.lane.b32.xlu0 %v1364, 16
  %v1459 = vpop.permute.xlu0 %1458
  %1460 = vrot.lane.b32.xlu0 %v1365, 16
  %v1461 = vpop.permute.xlu0 %1460
  %1462 = vrot.lane.b32.xlu0 %v1366, 16
  %v1463 = vpop.permute.xlu0 %1462
  %1464 = vrot.lane.b32.xlu0 %v1367, 16
  %v1465 = vpop.permute.xlu0 %1464
  %1466 = vrot.lane.b32.xlu0 %v1368, 16
  %v1467 = vpop.permute.xlu0 %1466
  %1468 = vrot.lane.b32.xlu0 %v1369, 16
  %v1469 = vpop.permute.xlu0 %1468
  %1470 = vrot.lane.b32.xlu0 %v1370, 16
  %v1471 = vpop.permute.xlu0 %1470
  %1472 = vrot.lane.b32.xlu0 %v1371, 16
  %v1473 = vpop.permute.xlu0 %1472
  %1474 = vrot.lane.b32.xlu0 %v1372, 16
  %v1475 = vpop.permute.xlu0 %1474
  %1476 = vrot.lane.b32.xlu0 %v1373, 16
  %v1477 = vpop.permute.xlu0 %1476
  %1478 = vrot.lane.b32.xlu0 %v1374, 16
  %v1479 = vpop.permute.xlu0 %1478
  %1480 = vrot.lane.b32.xlu0 %v1375, 16
  %v1481 = vpop.permute.xlu0 %1480
  %1482 = vrot.lane.b32.xlu0 %v1376, 16
  %v1483 = vpop.permute.xlu0 %1482
  %1484 = vrot.lane.b32.xlu0 %v1377, 16
  %v1485 = vpop.permute.xlu0 %1484
  %1486 = vrot.lane.b32.xlu0 %v1378, 16
  %v1487 = vpop.permute.xlu0 %1486
  %1488 = vrot.lane.b32.xlu0 %v1379, 16
  %v1489 = vpop.permute.xlu0 %1488
  %1490 = vrot.lane.b32.xlu0 %v1380, 16
  %v1491 = vpop.permute.xlu0 %1490
  %1492 = vrot.lane.b32.xlu0 %v1381, 16
  %v1493 = vpop.permute.xlu0 %1492
  %1494 = vrot.lane.b32.xlu0 %v1382, 16
  %v1495 = vpop.permute.xlu0 %1494
  %1496 = vrot.lane.b32.xlu0 %v1383, 16
  %v1497 = vpop.permute.xlu0 %1496
  %1498 = vrot.lane.b32.xlu0 %v1384, 16
  %v1499 = vpop.permute.xlu0 %1498
  %1500 = vrot.lane.b32.xlu0 %v1385, 16
  %v1501 = vpop.permute.xlu0 %1500
  %1502 = vrot.lane.b32.xlu0 %v1386, 16
  %v1503 = vpop.permute.xlu0 %1502
  %1504 = vrot.lane.b32.xlu0 %v1387, 16
  %v1505 = vpop.permute.xlu0 %1504
  %1506 = vrot.lane.b32.xlu0 %v1388, 16
  %v1507 = vpop.permute.xlu0 %1506
  %1508 = vrot.lane.b32.xlu0 %v1389, 16
  %v1509 = vpop.permute.xlu0 %1508
  %1510 = vrot.lane.b32.xlu0 %v1390, 16
  %v1511 = vpop.permute.xlu0 %1510
  %1512 = vrot.lane.b32.xlu0 %v1391, 16
  %v1513 = vpop.permute.xlu0 %1512
  %1514 = vrot.lane.b32.xlu0 %v1392, 16
  %v1515 = vpop.permute.xlu0 %1514
  %1516 = vrot.lane.b32.xlu0 %v1393, 16
  %v1517 = vpop.permute.xlu0 %1516
  %1518 = vrot.lane.b32.xlu0 %v1394, 16
  %v1519 = vpop.permute.xlu0 %1518
  %1520 = vrot.lane.b32.xlu0 %v1395, 16
  %v1521 = vpop.permute.xlu0 %1520
  %1522 = vrot.lane.b32.xlu0 %v1396, 16
  %v1523 = vpop.permute.xlu0 %1522
  %1524 = vrot.lane.b32.xlu0 %v1397, 16
  %v1525 = vpop.permute.xlu0 %1524
  %vm1590 = vcmask 191616
  %1591 = vst.msk [vmem:[#allocation3] sm:$0xf] %vm1590, %v1399
  %1592 = vst.msk [vmem:[#allocation3 + $0x4] sm:$0xf] %vm1590, %v1401
  %1593 = vst.msk [vmem:[#allocation3 + $0x8] sm:$0xf] %vm1590, %v1403
  %1594 = vst.msk [vmem:[#allocation3 + $0xc] sm:$0xf] %vm1590, %v1405
  %1595 = vst.msk [vmem:[#allocation3 + $0x10] sm:$0xf] %vm1590, %v1407
  %1596 = vst.msk [vmem:[#allocation3 + $0x14] sm:$0xf] %vm1590, %v1409
  %1597 = vst.msk [vmem:[#allocation3 + $0x18] sm:$0xf] %vm1590, %v1411
  %1598 = vst.msk [vmem:[#allocation3 + $0x1c] sm:$0xf] %vm1590, %v1413
  %1599 = vst.msk [vmem:[#allocation3 + $0x20] sm:$0xf] %vm1590, %v1415
  %1600 = vst.msk [vmem:[#allocation3 + $0x24] sm:$0xf] %vm1590, %v1417
  %1601 = vst.msk [vmem:[#allocation3 + $0x28] sm:$0xf] %vm1590, %v1419
  %1602 = vst.msk [vmem:[#allocation3 + $0x2c] sm:$0xf] %vm1590, %v1421
  %1603 = vst.msk [vmem:[#allocation3 + $0x30] sm:$0xf] %vm1590, %v1423
  %1604 = vst.msk [vmem:[#allocation3 + $0x34] sm:$0xf] %vm1590, %v1425
  %1605 = vst.msk [vmem:[#allocation3 + $0x38] sm:$0xf] %vm1590, %v1427
  %1606 = vst.msk [vmem:[#allocation3 + $0x3c] sm:$0xf] %vm1590, %v1429
  %1607 = vst.msk [vmem:[#allocation3 + $0x40] sm:$0xf] %vm1590, %v1431
  %1608 = vst.msk [vmem:[#allocation3 + $0x44] sm:$0xf] %vm1590, %v1433
  %1609 = vst.msk [vmem:[#allocation3 + $0x48] sm:$0xf] %vm1590, %v1435
  %1610 = vst.msk [vmem:[#allocation3 + $0x4c] sm:$0xf] %vm1590, %v1437
  %1611 = vst.msk [vmem:[#allocation3 + $0x50] sm:$0xf] %vm1590, %v1439
  %1612 = vst.msk [vmem:[#allocation3 + $0x54] sm:$0xf] %vm1590, %v1441
  %1613 = vst.msk [vmem:[#allocation3 + $0x58] sm:$0xf] %vm1590, %v1443
  %1614 = vst.msk [vmem:[#allocation3 + $0x5c] sm:$0xf] %vm1590, %v1445
  %1615 = vst.msk [vmem:[#allocation3 + $0x60] sm:$0xf] %vm1590, %v1447
  %1616 = vst.msk [vmem:[#allocation3 + $0x64] sm:$0xf] %vm1590, %v1449
  %1617 = vst.msk [vmem:[#allocation3 + $0x68] sm:$0xf] %vm1590, %v1451
  %1618 = vst.msk [vmem:[#allocation3 + $0x6c] sm:$0xf] %vm1590, %v1453
  %1619 = vst.msk [vmem:[#allocation3 + $0x70] sm:$0xf] %vm1590, %v1455
  %1620 = vst.msk [vmem:[#allocation3 + $0x74] sm:$0xf] %vm1590, %v1457
  %1621 = vst.msk [vmem:[#allocation3 + $0x78] sm:$0xf] %vm1590, %v1459
  %1622 = vst.msk [vmem:[#allocation3 + $0x7c] sm:$0xf] %vm1590, %v1461
  %1623 = vst.msk [vmem:[#allocation3 + $0x80] sm:$0xf] %vm1590, %v1463
  %1624 = vst.msk [vmem:[#allocation3 + $0x84] sm:$0xf] %vm1590, %v1465
  %1625 = vst.msk [vmem:[#allocation3 + $0x88] sm:$0xf] %vm1590, %v1467
  %1626 = vst.msk [vmem:[#allocation3 + $0x8c] sm:$0xf] %vm1590, %v1469
  %1627 = vst.msk [vmem:[#allocation3 + $0x90] sm:$0xf] %vm1590, %v1471
  %1628 = vst.msk [vmem:[#allocation3 + $0x94] sm:$0xf] %vm1590, %v1473
  %1629 = vst.msk [vmem:[#allocation3 + $0x98] sm:$0xf] %vm1590, %v1475
  %1630 = vst.msk [vmem:[#allocation3 + $0x9c] sm:$0xf] %vm1590, %v1477
  %1631 = vst.msk [vmem:[#allocation3 + $0xa0] sm:$0xf] %vm1590, %v1479
  %1632 = vst.msk [vmem:[#allocation3 + $0xa4] sm:$0xf] %vm1590, %v1481
  %1633 = vst.msk [vmem:[#allocation3 + $0xa8] sm:$0xf] %vm1590, %v1483
  %1634 = vst.msk [vmem:[#allocation3 + $0xac] sm:$0xf] %vm1590, %v1485
  %1635 = vst.msk [vmem:[#allocation3 + $0xb0] sm:$0xf] %vm1590, %v1487
  %1636 = vst.msk [vmem:[#allocation3 + $0xb4] sm:$0xf] %vm1590, %v1489
  %1637 = vst.msk [vmem:[#allocation3 + $0xb8] sm:$0xf] %vm1590, %v1491
  %1638 = vst.msk [vmem:[#allocation3 + $0xbc] sm:$0xf] %vm1590, %v1493
  %1639 = vst.msk [vmem:[#allocation3 + $0xc0] sm:$0xf] %vm1590, %v1495
  %1640 = vst.msk [vmem:[#allocation3 + $0xc4] sm:$0xf] %vm1590, %v1497
  %1641 = vst.msk [vmem:[#allocation3 + $0xc8] sm:$0xf] %vm1590, %v1499
  %1642 = vst.msk [vmem:[#allocation3 + $0xcc] sm:$0xf] %vm1590, %v1501
  %1643 = vst.msk [vmem:[#allocation3 + $0xd0] sm:$0xf] %vm1590, %v1503
  %1644 = vst.msk [vmem:[#allocation3 + $0xd4] sm:$0xf] %vm1590, %v1505
  %1645 = vst.msk [vmem:[#allocation3 + $0xd8] sm:$0xf] %vm1590, %v1507
  %1646 = vst.msk [vmem:[#allocation3 + $0xdc] sm:$0xf] %vm1590, %v1509
  %1647 = vst.msk [vmem:[#allocation3 + $0xe0] sm:$0xf] %vm1590, %v1511
  %1648 = vst.msk [vmem:[#allocation3 + $0xe4] sm:$0xf] %vm1590, %v1513
  %1649 = vst.msk [vmem:[#allocation3 + $0xe8] sm:$0xf] %vm1590, %v1515
  %1650 = vst.msk [vmem:[#allocation3 + $0xec] sm:$0xf] %vm1590, %v1517
  %1651 = vst.msk [vmem:[#allocation3 + $0xf0] sm:$0xf] %vm1590, %v1519
  %1652 = vst.msk [vmem:[#allocation3 + $0xf4] sm:$0xf] %vm1590, %v1521
  %1653 = vst.msk [vmem:[#allocation3 + $0xf8] sm:$0xf] %vm1590, %v1523
  %1654 = vst.msk [vmem:[#allocation3 + $0xfc] sm:$0xf] %vm1590, %v1525
  %v1655 = vld [vmem:[%s179] sm:$0xff]
  %v1656 = vld [vmem:[%s179 + $0x8] sm:$0xff]
  %v1657 = vld [vmem:[%s179 + $0x18] sm:$0xff]
  %v1658 = vld [vmem:[%s179 + $0x20] sm:$0xff]
  %v1659 = vld [vmem:[%s179 + $0x30] sm:$0xff]
  %v1660 = vld [vmem:[%s179 + $0x38] sm:$0xff]
  %v1661 = vld [vmem:[%s179 + $0x48] sm:$0xff]
  %v1662 = vld [vmem:[%s179 + $0x50] sm:$0xff]
  %v1663 = vld [vmem:[%s179 + $0x60] sm:$0xff]
  %v1664 = vld [vmem:[%s179 + $0x68] sm:$0xff]
  %v1665 = vld [vmem:[%s179 + $0x78] sm:$0xff]
  %v1666 = vld [vmem:[%s179 + $0x80] sm:$0xff]
  %v1667 = vld [vmem:[%s179 + $0x90] sm:$0xff]
  %v1668 = vld [vmem:[%s179 + $0x98] sm:$0xff]
  %v1669 = vld [vmem:[%s179 + $0xa8] sm:$0xff]
  %v1670 = vld [vmem:[%s179 + $0xb0] sm:$0xff]
  %v1671 = vld [vmem:[%s179 + $0xc0] sm:$0xff]
  %v1672 = vld [vmem:[%s179 + $0xc8] sm:$0xff]
  %v1673 = vld [vmem:[%s179 + $0xd8] sm:$0xff]
  %v1674 = vld [vmem:[%s179 + $0xe0] sm:$0xff]
  %v1675 = vld [vmem:[%s179 + $0xf0] sm:$0xff]
  %v1676 = vld [vmem:[%s179 + $0xf8] sm:$0xff]
  %v1677 = vld [vmem:[%s179 + $0x108] sm:$0xff]
  %v1678 = vld [vmem:[%s179 + $0x110] sm:$0xff]
  %v1679 = vld [vmem:[%s179 + $0x120] sm:$0xff]
  %v1680 = vld [vmem:[%s179 + $0x128] sm:$0xff]
  %v1681 = vld [vmem:[%s179 + $0x138] sm:$0xff]
  %v1682 = vld [vmem:[%s179 + $0x140] sm:$0xff]
  %v1683 = vld [vmem:[%s179 + $0x150] sm:$0xff]
  %v1684 = vld [vmem:[%s179 + $0x158] sm:$0xff]
  %v1685 = vld [vmem:[%s179 + $0x168] sm:$0xff]
  %v1686 = vld [vmem:[%s179 + $0x170] sm:$0xff]
  %v1687 = vld [vmem:[%s179 + $0x1b0] sm:$0xff]
  %v1688 = vld [vmem:[%s179 + $0x1b8] sm:$0xff]
  %v1689 = vld [vmem:[%s179 + $0x1c8] sm:$0xff]
  %v1690 = vld [vmem:[%s179 + $0x1d0] sm:$0xff]
  %v1691 = vld [vmem:[%s179 + $0x1e0] sm:$0xff]
  %v1692 = vld [vmem:[%s179 + $0x1e8] sm:$0xff]
  %v1693 = vld [vmem:[%s179 + $0x1f8] sm:$0xff]
  %v1694 = vld [vmem:[%s179 + $0x200] sm:$0xff]
  %v1695 = vld [vmem:[%s179 + $0x210] sm:$0xff]
  %v1696 = vld [vmem:[%s179 + $0x218] sm:$0xff]
  %v1697 = vld [vmem:[%s179 + $0x228] sm:$0xff]
  %v1698 = vld [vmem:[%s179 + $0x230] sm:$0xff]
  %v1699 = vld [vmem:[%s179 + $0x240] sm:$0xff]
  %v1700 = vld [vmem:[%s179 + $0x248] sm:$0xff]
  %v1701 = vld [vmem:[%s179 + $0x258] sm:$0xff]
  %v1702 = vld [vmem:[%s179 + $0x260] sm:$0xff]
  %v1703 = vld [vmem:[%s179 + $0x270] sm:$0xff]
  %v1704 = vld [vmem:[%s179 + $0x278] sm:$0xff]
  %v1705 = vld [vmem:[%s179 + $0x288] sm:$0xff]
  %v1706 = vld [vmem:[%s179 + $0x290] sm:$0xff]
  %v1707 = vld [vmem:[%s179 + $0x2a0] sm:$0xff]
  %v1708 = vld [vmem:[%s179 + $0x2a8] sm:$0xff]
  %v1709 = vld [vmem:[%s179 + $0x2b8] sm:$0xff]
  %v1710 = vld [vmem:[%s179 + $0x2c0] sm:$0xff]
  %v1711 = vld [vmem:[%s179 + $0x2d0] sm:$0xff]
  %v1712 = vld [vmem:[%s179 + $0x2d8] sm:$0xff]
  %v1713 = vld [vmem:[%s179 + $0x2e8] sm:$0xff]
  %v1714 = vld [vmem:[%s179 + $0x2f0] sm:$0xff]
  %v1715 = vld [vmem:[%s179 + $0x300] sm:$0xff]
  %v1716 = vld [vmem:[%s179 + $0x308] sm:$0xff]
  %v1717 = vld [vmem:[%s179 + $0x318] sm:$0xff]
  %v1718 = vld [vmem:[%s179 + $0x320] sm:$0xff]
  %v1719 = vpack.c.bf16 %v1656, %v1655
  %v1720 = vpack.c.bf16 %v1658, %v1657
  %v1721 = vpack.c.bf16 %v1660, %v1659
  %v1722 = vpack.c.bf16 %v1662, %v1661
  %v1723 = vpack.c.bf16 %v1664, %v1663
  %v1724 = vpack.c.bf16 %v1666, %v1665
  %v1725 = vpack.c.bf16 %v1668, %v1667
  %v1726 = vpack.c.bf16 %v1670, %v1669
  %v1727 = vpack.c.bf16 %v1672, %v1671
  %v1728 = vpack.c.bf16 %v1674, %v1673
  %v1729 = vpack.c.bf16 %v1676, %v1675
  %v1730 = vpack.c.bf16 %v1678, %v1677
  %v1731 = vpack.c.bf16 %v1680, %v1679
  %v1732 = vpack.c.bf16 %v1682, %v1681
  %v1733 = vpack.c.bf16 %v1684, %v1683
  %v1734 = vpack.c.bf16 %v1686, %v1685
  %v1735 = vpack.c.bf16 %v1688, %v1687
  %v1736 = vpack.c.bf16 %v1690, %v1689
  %v1737 = vpack.c.bf16 %v1692, %v1691
  %v1738 = vpack.c.bf16 %v1694, %v1693
  %v1739 = vpack.c.bf16 %v1696, %v1695
  %v1740 = vpack.c.bf16 %v1698, %v1697
  %v1741 = vpack.c.bf16 %v1700, %v1699
  %v1742 = vpack.c.bf16 %v1702, %v1701
  %v1743 = vpack.c.bf16 %v1704, %v1703
  %v1744 = vpack.c.bf16 %v1706, %v1705
  %v1745 = vpack.c.bf16 %v1708, %v1707
  %v1746 = vpack.c.bf16 %v1710, %v1709
  %v1747 = vpack.c.bf16 %v1712, %v1711
  %v1748 = vpack.c.bf16 %v1714, %v1713
  %v1749 = vpack.c.bf16 %v1716, %v1715
  %v1750 = vpack.c.bf16 %v1718, %v1717
  %v1783 = vunpack.c.l.b16 %v1719
  %v1784 = vunpack.c.h.b16 %v1719
  %v1785 = vunpack.c.l.b16 %v1720
  %v1786 = vunpack.c.h.b16 %v1720
  %v1787 = vunpack.c.l.b16 %v1721
  %v1788 = vunpack.c.h.b16 %v1721
  %v1789 = vunpack.c.l.b16 %v1722
  %v1790 = vunpack.c.h.b16 %v1722
  %v1791 = vunpack.c.l.b16 %v1723
  %v1792 = vunpack.c.h.b16 %v1723
  %v1793 = vunpack.c.l.b16 %v1724
  %v1794 = vunpack.c.h.b16 %v1724
  %v1795 = vunpack.c.l.b16 %v1725
  %v1796 = vunpack.c.h.b16 %v1725
  %v1797 = vunpack.c.l.b16 %v1726
  %v1798 = vunpack.c.h.b16 %v1726
  %v1799 = vunpack.c.l.b16 %v1727
  %v1800 = vunpack.c.h.b16 %v1727
  %v1801 = vunpack.c.l.b16 %v1728
  %v1802 = vunpack.c.h.b16 %v1728
  %v1803 = vunpack.c.l.b16 %v1729
  %v1804 = vunpack.c.h.b16 %v1729
  %v1805 = vunpack.c.l.b16 %v1730
  %v1806 = vunpack.c.h.b16 %v1730
  %v1807 = vunpack.c.l.b16 %v1731
  %v1808 = vunpack.c.h.b16 %v1731
  %v1809 = vunpack.c.l.b16 %v1732
  %v1810 = vunpack.c.h.b16 %v1732
  %v1811 = vunpack.c.l.b16 %v1733
  %v1812 = vunpack.c.h.b16 %v1733
  %v1813 = vunpack.c.l.b16 %v1734
  %v1814 = vunpack.c.h.b16 %v1734
  %v1815 = vunpack.c.l.b16 %v1735
  %v1816 = vunpack.c.h.b16 %v1735
  %v1817 = vunpack.c.l.b16 %v1736
  %v1818 = vunpack.c.h.b16 %v1736
  %v1819 = vunpack.c.l.b16 %v1737
  %v1820 = vunpack.c.h.b16 %v1737
  %v1821 = vunpack.c.l.b16 %v1738
  %v1822 = vunpack.c.h.b16 %v1738
  %v1823 = vunpack.c.l.b16 %v1739
  %v1824 = vunpack.c.h.b16 %v1739
  %v1825 = vunpack.c.l.b16 %v1740
  %v1826 = vunpack.c.h.b16 %v1740
  %v1827 = vunpack.c.l.b16 %v1741
  %v1828 = vunpack.c.h.b16 %v1741
  %v1829 = vunpack.c.l.b16 %v1742
  %v1830 = vunpack.c.h.b16 %v1742
  %v1831 = vunpack.c.l.b16 %v1743
  %v1832 = vunpack.c.h.b16 %v1743
  %v1833 = vunpack.c.l.b16 %v1744
  %v1834 = vunpack.c.h.b16 %v1744
  %v1835 = vunpack.c.l.b16 %v1745
  %v1836 = vunpack.c.h.b16 %v1745
  %v1837 = vunpack.c.l.b16 %v1746
  %v1838 = vunpack.c.h.b16 %v1746
  %v1839 = vunpack.c.l.b16 %v1747
  %v1840 = vunpack.c.h.b16 %v1747
  %v1841 = vunpack.c.l.b16 %v1748
  %v1842 = vunpack.c.h.b16 %v1748
  %v1843 = vunpack.c.l.b16 %v1749
  %v1844 = vunpack.c.h.b16 %v1749
  %v1845 = vunpack.c.l.b16 %v1750
  %v1846 = vunpack.c.h.b16 %v1750
  %v1847 = vpack.c.b16 %v1783, %v1783
  %v1848 = vpack.c.b16 %v1784, %v1784
  %v1849 = vpack.c.b16 %v1785, %v1785
  %v1850 = vpack.c.b16 %v1786, %v1786
  %v1851 = vpack.c.b16 %v1787, %v1787
  %v1852 = vpack.c.b16 %v1788, %v1788
  %v1853 = vpack.c.b16 %v1789, %v1789
  %v1854 = vpack.c.b16 %v1790, %v1790
  %v1855 = vpack.c.b16 %v1791, %v1791
  %v1856 = vpack.c.b16 %v1792, %v1792
  %v1857 = vpack.c.b16 %v1793, %v1793
  %v1858 = vpack.c.b16 %v1794, %v1794
  %v1859 = vpack.c.b16 %v1795, %v1795
  %v1860 = vpack.c.b16 %v1796, %v1796
  %v1861 = vpack.c.b16 %v1797, %v1797
  %v1862 = vpack.c.b16 %v1798, %v1798
  %v1863 = vpack.c.b16 %v1799, %v1799
  %v1864 = vpack.c.b16 %v1800, %v1800
  %v1865 = vpack.c.b16 %v1801, %v1801
  %v1866 = vpack.c.b16 %v1802, %v1802
  %v1867 = vpack.c.b16 %v1803, %v1803
  %v1868 = vpack.c.b16 %v1804, %v1804
  %v1869 = vpack.c.b16 %v1805, %v1805
  %v1870 = vpack.c.b16 %v1806, %v1806
  %v1871 = vpack.c.b16 %v1807, %v1807
  %v1872 = vpack.c.b16 %v1808, %v1808
  %v1873 = vpack.c.b16 %v1809, %v1809
  %v1874 = vpack.c.b16 %v1810, %v1810
  %v1875 = vpack.c.b16 %v1811, %v1811
  %v1876 = vpack.c.b16 %v1812, %v1812
  %v1877 = vpack.c.b16 %v1813, %v1813
  %v1878 = vpack.c.b16 %v1814, %v1814
  %v1879 = vpack.c.b16 %v1815, %v1815
  %v1880 = vpack.c.b16 %v1816, %v1816
  %v1881 = vpack.c.b16 %v1817, %v1817
  %v1882 = vpack.c.b16 %v1818, %v1818
  %v1883 = vpack.c.b16 %v1819, %v1819
  %v1884 = vpack.c.b16 %v1820, %v1820
  %v1885 = vpack.c.b16 %v1821, %v1821
  %v1886 = vpack.c.b16 %v1822, %v1822
  %v1887 = vpack.c.b16 %v1823, %v1823
  %v1888 = vpack.c.b16 %v1824, %v1824
  %v1889 = vpack.c.b16 %v1825, %v1825
  %v1890 = vpack.c.b16 %v1826, %v1826
  %v1891 = vpack.c.b16 %v1827, %v1827
  %v1892 = vpack.c.b16 %v1828, %v1828
  %v1893 = vpack.c.b16 %v1829, %v1829
  %v1894 = vpack.c.b16 %v1830, %v1830
  %v1895 = vpack.c.b16 %v1831, %v1831
  %v1896 = vpack.c.b16 %v1832, %v1832
  %v1897 = vpack.c.b16 %v1833, %v1833
  %v1898 = vpack.c.b16 %v1834, %v1834
  %v1899 = vpack.c.b16 %v1835, %v1835
  %v1900 = vpack.c.b16 %v1836, %v1836
  %v1901 = vpack.c.b16 %v1837, %v1837
  %v1902 = vpack.c.b16 %v1838, %v1838
  %v1903 = vpack.c.b16 %v1839, %v1839
  %v1904 = vpack.c.b16 %v1840, %v1840
  %v1905 = vpack.c.b16 %v1841, %v1841
  %v1906 = vpack.c.b16 %v1842, %v1842
  %v1907 = vpack.c.b16 %v1843, %v1843
  %v1908 = vpack.c.b16 %v1844, %v1844
  %v1909 = vpack.c.b16 %v1845, %v1845
  %v1910 = vpack.c.b16 %v1846, %v1846
  %1911 = vrot.lane.b32.xlu0 %v1847, 24
  %v1912 = vpop.permute.xlu0 %1911
  %1913 = vrot.lane.b32.xlu0 %v1848, 24
  %v1914 = vpop.permute.xlu0 %1913
  %1915 = vrot.lane.b32.xlu0 %v1849, 24
  %v1916 = vpop.permute.xlu0 %1915
  %1917 = vrot.lane.b32.xlu0 %v1850, 24
  %v1918 = vpop.permute.xlu0 %1917
  %1919 = vrot.lane.b32.xlu0 %v1851, 24
  %v1920 = vpop.permute.xlu0 %1919
  %1921 = vrot.lane.b32.xlu0 %v1852, 24
  %v1922 = vpop.permute.xlu0 %1921
  %1923 = vrot.lane.b32.xlu0 %v1853, 24
  %v1924 = vpop.permute.xlu0 %1923
  %1925 = vrot.lane.b32.xlu0 %v1854, 24
  %v1926 = vpop.permute.xlu0 %1925
  %1927 = vrot.lane.b32.xlu0 %v1855, 24
  %v1928 = vpop.permute.xlu0 %1927
  %1929 = vrot.lane.b32.xlu0 %v1856, 24
  %v1930 = vpop.permute.xlu0 %1929
  %1931 = vrot.lane.b32.xlu0 %v1857, 24
  %v1932 = vpop.permute.xlu0 %1931
  %1933 = vrot.lane.b32.xlu0 %v1858, 24
  %v1934 = vpop.permute.xlu0 %1933
  %1935 = vrot.lane.b32.xlu0 %v1859, 24
  %v1936 = vpop.permute.xlu0 %1935
  %1937 = vrot.lane.b32.xlu0 %v1860, 24
  %v1938 = vpop.permute.xlu0 %1937
  %1939 = vrot.lane.b32.xlu0 %v1861, 24
  %v1940 = vpop.permute.xlu0 %1939
  %1941 = vrot.lane.b32.xlu0 %v1862, 24
  %v1942 = vpop.permute.xlu0 %1941
  %1943 = vrot.lane.b32.xlu0 %v1863, 24
  %v1944 = vpop.permute.xlu0 %1943
  %1945 = vrot.lane.b32.xlu0 %v1864, 24
  %v1946 = vpop.permute.xlu0 %1945
  %1947 = vrot.lane.b32.xlu0 %v1865, 24
  %v1948 = vpop.permute.xlu0 %1947
  %1949 = vrot.lane.b32.xlu0 %v1866, 24
  %v1950 = vpop.permute.xlu0 %1949
  %1951 = vrot.lane.b32.xlu0 %v1867, 24
  %v1952 = vpop.permute.xlu0 %1951
  %1953 = vrot.lane.b32.xlu0 %v1868, 24
  %v1954 = vpop.permute.xlu0 %1953
  %1955 = vrot.lane.b32.xlu0 %v1869, 24
  %v1956 = vpop.permute.xlu0 %1955
  %1957 = vrot.lane.b32.xlu0 %v1870, 24
  %v1958 = vpop.permute.xlu0 %1957
  %1959 = vrot.lane.b32.xlu0 %v1871, 24
  %v1960 = vpop.permute.xlu0 %1959
  %1961 = vrot.lane.b32.xlu0 %v1872, 24
  %v1962 = vpop.permute.xlu0 %1961
  %1963 = vrot.lane.b32.xlu0 %v1873, 24
  %v1964 = vpop.permute.xlu0 %1963
  %1965 = vrot.lane.b32.xlu0 %v1874, 24
  %v1966 = vpop.permute.xlu0 %1965
  %1967 = vrot.lane.b32.xlu0 %v1875, 24
  %v1968 = vpop.permute.xlu0 %1967
  %1969 = vrot.lane.b32.xlu0 %v1876, 24
  %v1970 = vpop.permute.xlu0 %1969
  %1971 = vrot.lane.b32.xlu0 %v1877, 24
  %v1972 = vpop.permute.xlu0 %1971
  %1973 = vrot.lane.b32.xlu0 %v1878, 24
  %v1974 = vpop.permute.xlu0 %1973
  %1975 = vrot.lane.b32.xlu0 %v1879, 24
  %v1976 = vpop.permute.xlu0 %1975
  %1977 = vrot.lane.b32.xlu0 %v1880, 24
  %v1978 = vpop.permute.xlu0 %1977
  %1979 = vrot.lane.b32.xlu0 %v1881, 24
  %v1980 = vpop.permute.xlu0 %1979
  %1981 = vrot.lane.b32.xlu0 %v1882, 24
  %v1982 = vpop.permute.xlu0 %1981
  %1983 = vrot.lane.b32.xlu0 %v1883, 24
  %v1984 = vpop.permute.xlu0 %1983
  %1985 = vrot.lane.b32.xlu0 %v1884, 24
  %v1986 = vpop.permute.xlu0 %1985
  %1987 = vrot.lane.b32.xlu0 %v1885, 24
  %v1988 = vpop.permute.xlu0 %1987
  %1989 = vrot.lane.b32.xlu0 %v1886, 24
  %v1990 = vpop.permute.xlu0 %1989
  %1991 = vrot.lane.b32.xlu0 %v1887, 24
  %v1992 = vpop.permute.xlu0 %1991
  %1993 = vrot.lane.b32.xlu0 %v1888, 24
  %v1994 = vpop.permute.xlu0 %1993
  %1995 = vrot.lane.b32.xlu0 %v1889, 24
  %v1996 = vpop.permute.xlu0 %1995
  %1997 = vrot.lane.b32.xlu0 %v1890, 24
  %v1998 = vpop.permute.xlu0 %1997
  %1999 = vrot.lane.b32.xlu0 %v1891, 24
  %v2000 = vpop.permute.xlu0 %1999
  %2001 = vrot.lane.b32.xlu0 %v1892, 24
  %v2002 = vpop.permute.xlu0 %2001
  %2003 = vrot.lane.b32.xlu0 %v1893, 24
  %v2004 = vpop.permute.xlu0 %2003
  %2005 = vrot.lane.b32.xlu0 %v1894, 24
  %v2006 = vpop.permute.xlu0 %2005
  %2007 = vrot.lane.b32.xlu0 %v1895, 24
  %v2008 = vpop.permute.xlu0 %2007
  %2009 = vrot.lane.b32.xlu0 %v1896, 24
  %v2010 = vpop.permute.xlu0 %2009
  %2011 = vrot.lane.b32.xlu0 %v1897, 24
  %v2012 = vpop.permute.xlu0 %2011
  %2013 = vrot.lane.b32.xlu0 %v1898, 24
  %v2014 = vpop.permute.xlu0 %2013
  %2015 = vrot.lane.b32.xlu0 %v1899, 24
  %v2016 = vpop.permute.xlu0 %2015
  %2017 = vrot.lane.b32.xlu0 %v1900, 24
  %v2018 = vpop.permute.xlu0 %2017
  %2019 = vrot.lane.b32.xlu0 %v1901, 24
  %v2020 = vpop.permute.xlu0 %2019
  %2021 = vrot.lane.b32.xlu0 %v1902, 24
  %v2022 = vpop.permute.xlu0 %2021
  %2023 = vrot.lane.b32.xlu0 %v1903, 24
  %v2024 = vpop.permute.xlu0 %2023
  %2025 = vrot.lane.b32.xlu0 %v1904, 24
  %v2026 = vpop.permute.xlu0 %2025
  %2027 = vrot.lane.b32.xlu0 %v1905, 24
  %v2028 = vpop.permute.xlu0 %2027
  %2029 = vrot.lane.b32.xlu0 %v1906, 24
  %v2030 = vpop.permute.xlu0 %2029
  %2031 = vrot.lane.b32.xlu0 %v1907, 24
  %v2032 = vpop.permute.xlu0 %2031
  %2033 = vrot.lane.b32.xlu0 %v1908, 24
  %v2034 = vpop.permute.xlu0 %2033
  %2035 = vrot.lane.b32.xlu0 %v1909, 24
  %v2036 = vpop.permute.xlu0 %2035
  %2037 = vrot.lane.b32.xlu0 %v1910, 24
  %v2038 = vpop.permute.xlu0 %2037
  %vm2103 = vcmask 257216
  %2104 = vst.msk [vmem:[#allocation3] sm:$0xf] %vm2103, %v1912
  %2105 = vst.msk [vmem:[#allocation3 + $0x4] sm:$0xf] %vm2103, %v1914
  %2106 = vst.msk [vmem:[#allocation3 + $0x8] sm:$0xf] %vm2103, %v1916
  %2107 = vst.msk [vmem:[#allocation3 + $0xc] sm:$0xf] %vm2103, %v1918
  %2108 = vst.msk [vmem:[#allocation3 + $0x10] sm:$0xf] %vm2103, %v1920
  %2109 = vst.msk [vmem:[#allocation3 + $0x14] sm:$0xf] %vm2103, %v1922
  %2110 = vst.msk [vmem:[#allocation3 + $0x18] sm:$0xf] %vm2103, %v1924
  %2111 = vst.msk [vmem:[#allocation3 + $0x1c] sm:$0xf] %vm2103, %v1926
  %2112 = vst.msk [vmem:[#allocation3 + $0x20] sm:$0xf] %vm2103, %v1928
  %2113 = vst.msk [vmem:[#allocation3 + $0x24] sm:$0xf] %vm2103, %v1930
  %2114 = vst.msk [vmem:[#allocation3 + $0x28] sm:$0xf] %vm2103, %v1932
  %2115 = vst.msk [vmem:[#allocation3 + $0x2c] sm:$0xf] %vm2103, %v1934
  %2116 = vst.msk [vmem:[#allocation3 + $0x30] sm:$0xf] %vm2103, %v1936
  %2117 = vst.msk [vmem:[#allocation3 + $0x34] sm:$0xf] %vm2103, %v1938
  %2118 = vst.msk [vmem:[#allocation3 + $0x38] sm:$0xf] %vm2103, %v1940
  %2119 = vst.msk [vmem:[#allocation3 + $0x3c] sm:$0xf] %vm2103, %v1942
  %2120 = vst.msk [vmem:[#allocation3 + $0x40] sm:$0xf] %vm2103, %v1944
  %2121 = vst.msk [vmem:[#allocation3 + $0x44] sm:$0xf] %vm2103, %v1946
  %2122 = vst.msk [vmem:[#allocation3 + $0x48] sm:$0xf] %vm2103, %v1948
  %2123 = vst.msk [vmem:[#allocation3 + $0x4c] sm:$0xf] %vm2103, %v1950
  %2124 = vst.msk [vmem:[#allocation3 + $0x50] sm:$0xf] %vm2103, %v1952
  %2125 = vst.msk [vmem:[#allocation3 + $0x54] sm:$0xf] %vm2103, %v1954
  %2126 = vst.msk [vmem:[#allocation3 + $0x58] sm:$0xf] %vm2103, %v1956
  %2127 = vst.msk [vmem:[#allocation3 + $0x5c] sm:$0xf] %vm2103, %v1958
  %2128 = vst.msk [vmem:[#allocation3 + $0x60] sm:$0xf] %vm2103, %v1960
  %2129 = vst.msk [vmem:[#allocation3 + $0x64] sm:$0xf] %vm2103, %v1962
  %2130 = vst.msk [vmem:[#allocation3 + $0x68] sm:$0xf] %vm2103, %v1964
  %2131 = vst.msk [vmem:[#allocation3 + $0x6c] sm:$0xf] %vm2103, %v1966
  %2132 = vst.msk [vmem:[#allocation3 + $0x70] sm:$0xf] %vm2103, %v1968
  %2133 = vst.msk [vmem:[#allocation3 + $0x74] sm:$0xf] %vm2103, %v1970
  %2134 = vst.msk [vmem:[#allocation3 + $0x78] sm:$0xf] %vm2103, %v1972
  %2135 = vst.msk [vmem:[#allocation3 + $0x7c] sm:$0xf] %vm2103, %v1974
  %2136 = vst.msk [vmem:[#allocation3 + $0x80] sm:$0xf] %vm2103, %v1976
  %2137 = vst.msk [vmem:[#allocation3 + $0x84] sm:$0xf] %vm2103, %v1978
  %2138 = vst.msk [vmem:[#allocation3 + $0x88] sm:$0xf] %vm2103, %v1980
  %2139 = vst.msk [vmem:[#allocation3 + $0x8c] sm:$0xf] %vm2103, %v1982
  %2140 = vst.msk [vmem:[#allocation3 + $0x90] sm:$0xf] %vm2103, %v1984
  %2141 = vst.msk [vmem:[#allocation3 + $0x94] sm:$0xf] %vm2103, %v1986
  %2142 = vst.msk [vmem:[#allocation3 + $0x98] sm:$0xf] %vm2103, %v1988
  %2143 = vst.msk [vmem:[#allocation3 + $0x9c] sm:$0xf] %vm2103, %v1990
  %2144 = vst.msk [vmem:[#allocation3 + $0xa0] sm:$0xf] %vm2103, %v1992
  %2145 = vst.msk [vmem:[#allocation3 + $0xa4] sm:$0xf] %vm2103, %v1994
  %2146 = vst.msk [vmem:[#allocation3 + $0xa8] sm:$0xf] %vm2103, %v1996
  %2147 = vst.msk [vmem:[#allocation3 + $0xac] sm:$0xf] %vm2103, %v1998
  %2148 = vst.msk [vmem:[#allocation3 + $0xb0] sm:$0xf] %vm2103, %v2000
  %2149 = vst.msk [vmem:[#allocation3 + $0xb4] sm:$0xf] %vm2103, %v2002
  %2150 = vst.msk [vmem:[#allocation3 + $0xb8] sm:$0xf] %vm2103, %v2004
  %2151 = vst.msk [vmem:[#allocation3 + $0xbc] sm:$0xf] %vm2103, %v2006
  %2152 = vst.msk [vmem:[#allocation3 + $0xc0] sm:$0xf] %vm2103, %v2008
  %2153 = vst.msk [vmem:[#allocation3 + $0xc4] sm:$0xf] %vm2103, %v2010
  %2154 = vst.msk [vmem:[#allocation3 + $0xc8] sm:$0xf] %vm2103, %v2012
  %2155 = vst.msk [vmem:[#allocation3 + $0xcc] sm:$0xf] %vm2103, %v2014
  %2156 = vst.msk [vmem:[#allocation3 + $0xd0] sm:$0xf] %vm2103, %v2016
  %2157 = vst.msk [vmem:[#allocation3 + $0xd4] sm:$0xf] %vm2103, %v2018
  %2158 = vst.msk [vmem:[#allocation3 + $0xd8] sm:$0xf] %vm2103, %v2020
  %2159 = vst.msk [vmem:[#allocation3 + $0xdc] sm:$0xf] %vm2103, %v2022
  %2160 = vst.msk [vmem:[#allocation3 + $0xe0] sm:$0xf] %vm2103, %v2024
  %2161 = vst.msk [vmem:[#allocation3 + $0xe4] sm:$0xf] %vm2103, %v2026
  %2162 = vst.msk [vmem:[#allocation3 + $0xe8] sm:$0xf] %vm2103, %v2028
  %2163 = vst.msk [vmem:[#allocation3 + $0xec] sm:$0xf] %vm2103, %v2030
  %2164 = vst.msk [vmem:[#allocation3 + $0xf0] sm:$0xf] %vm2103, %v2032
  %2165 = vst.msk [vmem:[#allocation3 + $0xf4] sm:$0xf] %vm2103, %v2034
  %2166 = vst.msk [vmem:[#allocation3 + $0xf8] sm:$0xf] %vm2103, %v2036
  %2167 = vst.msk [vmem:[#allocation3 + $0xfc] sm:$0xf] %vm2103, %v2038
  %v2168 = vld [vmem:[%s179 + $0x1] sm:$0xff]
  %v2169 = vld [vmem:[%s179 + $0x9] sm:$0xff]
  %v2170 = vld [vmem:[%s179 + $0x19] sm:$0xff]
  %v2171 = vld [vmem:[%s179 + $0x21] sm:$0xff]
  %v2172 = vld [vmem:[%s179 + $0x31] sm:$0xff]
  %v2173 = vld [vmem:[%s179 + $0x39] sm:$0xff]
  %v2174 = vld [vmem:[%s179 + $0x49] sm:$0xff]
  %v2175 = vld [vmem:[%s179 + $0x51] sm:$0xff]
  %v2176 = vld [vmem:[%s179 + $0x61] sm:$0xff]
  %v2177 = vld [vmem:[%s179 + $0x69] sm:$0xff]
  %v2178 = vld [vmem:[%s179 + $0x79] sm:$0xff]
  %v2179 = vld [vmem:[%s179 + $0x81] sm:$0xff]
  %v2180 = vld [vmem:[%s179 + $0x91] sm:$0xff]
  %v2181 = vld [vmem:[%s179 + $0x99] sm:$0xff]
  %v2182 = vld [vmem:[%s179 + $0xa9] sm:$0xff]
  %v2183 = vld [vmem:[%s179 + $0xb1] sm:$0xff]
  %v2184 = vld [vmem:[%s179 + $0xc1] sm:$0xff]
  %v2185 = vld [vmem:[%s179 + $0xc9] sm:$0xff]
  %v2186 = vld [vmem:[%s179 + $0xd9] sm:$0xff]
  %v2187 = vld [vmem:[%s179 + $0xe1] sm:$0xff]
  %v2188 = vld [vmem:[%s179 + $0xf1] sm:$0xff]
  %v2189 = vld [vmem:[%s179 + $0xf9] sm:$0xff]
  %v2190 = vld [vmem:[%s179 + $0x109] sm:$0xff]
  %v2191 = vld [vmem:[%s179 + $0x111] sm:$0xff]
  %v2192 = vld [vmem:[%s179 + $0x121] sm:$0xff]
  %v2193 = vld [vmem:[%s179 + $0x129] sm:$0xff]
  %v2194 = vld [vmem:[%s179 + $0x139] sm:$0xff]
  %v2195 = vld [vmem:[%s179 + $0x141] sm:$0xff]
  %v2196 = vld [vmem:[%s179 + $0x151] sm:$0xff]
  %v2197 = vld [vmem:[%s179 + $0x159] sm:$0xff]
  %v2198 = vld [vmem:[%s179 + $0x169] sm:$0xff]
  %v2199 = vld [vmem:[%s179 + $0x171] sm:$0xff]
  %v2200 = vld [vmem:[%s179 + $0x1b1] sm:$0xff]
  %v2201 = vld [vmem:[%s179 + $0x1b9] sm:$0xff]
  %v2202 = vld [vmem:[%s179 + $0x1c9] sm:$0xff]
  %v2203 = vld [vmem:[%s179 + $0x1d1] sm:$0xff]
  %v2204 = vld [vmem:[%s179 + $0x1e1] sm:$0xff]
  %v2205 = vld [vmem:[%s179 + $0x1e9] sm:$0xff]
  %v2206 = vld [vmem:[%s179 + $0x1f9] sm:$0xff]
  %v2207 = vld [vmem:[%s179 + $0x201] sm:$0xff]
  %v2208 = vld [vmem:[%s179 + $0x211] sm:$0xff]
  %v2209 = vld [vmem:[%s179 + $0x219] sm:$0xff]
  %v2210 = vld [vmem:[%s179 + $0x229] sm:$0xff]
  %v2211 = vld [vmem:[%s179 + $0x231] sm:$0xff]
  %v2212 = vld [vmem:[%s179 + $0x241] sm:$0xff]
  %v2213 = vld [vmem:[%s179 + $0x249] sm:$0xff]
  %v2214 = vld [vmem:[%s179 + $0x259] sm:$0xff]
  %v2215 = vld [vmem:[%s179 + $0x261] sm:$0xff]
  %v2216 = vld [vmem:[%s179 + $0x271] sm:$0xff]
  %v2217 = vld [vmem:[%s179 + $0x279] sm:$0xff]
  %v2218 = vld [vmem:[%s179 + $0x289] sm:$0xff]
  %v2219 = vld [vmem:[%s179 + $0x291] sm:$0xff]
  %v2220 = vld [vmem:[%s179 + $0x2a1] sm:$0xff]
  %v2221 = vld [vmem:[%s179 + $0x2a9] sm:$0xff]
  %v2222 = vld [vmem:[%s179 + $0x2b9] sm:$0xff]
  %v2223 = vld [vmem:[%s179 + $0x2c1] sm:$0xff]
  %v2224 = vld [vmem:[%s179 + $0x2d1] sm:$0xff]
  %v2225 = vld [vmem:[%s179 + $0x2d9] sm:$0xff]
  %v2226 = vld [vmem:[%s179 + $0x2e9] sm:$0xff]
  %v2227 = vld [vmem:[%s179 + $0x2f1] sm:$0xff]
  %v2228 = vld [vmem:[%s179 + $0x301] sm:$0xff]
  %v2229 = vld [vmem:[%s179 + $0x309] sm:$0xff]
  %v2230 = vld [vmem:[%s179 + $0x319] sm:$0xff]
  %v2231 = vld [vmem:[%s179 + $0x321] sm:$0xff]
  %v2232 = vpack.c.bf16 %v2169, %v2168
  %v2233 = vpack.c.bf16 %v2171, %v2170
  %v2234 = vpack.c.bf16 %v2173, %v2172
  %v2235 = vpack.c.bf16 %v2175, %v2174
  %v2236 = vpack.c.bf16 %v2177, %v2176
  %v2237 = vpack.c.bf16 %v2179, %v2178
  %v2238 = vpack.c.bf16 %v2181, %v2180
  %v2239 = vpack.c.bf16 %v2183, %v2182
  %v2240 = vpack.c.bf16 %v2185, %v2184
  %v2241 = vpack.c.bf16 %v2187, %v2186
  %v2242 = vpack.c.bf16 %v2189, %v2188
  %v2243 = vpack.c.bf16 %v2191, %v2190
  %v2244 = vpack.c.bf16 %v2193, %v2192
  %v2245 = vpack.c.bf16 %v2195, %v2194
  %v2246 = vpack.c.bf16 %v2197, %v2196
  %v2247 = vpack.c.bf16 %v2199, %v2198
  %v2248 = vpack.c.bf16 %v2201, %v2200
  %v2249 = vpack.c.bf16 %v2203, %v2202
  %v2250 = vpack.c.bf16 %v2205, %v2204
  %v2251 = vpack.c.bf16 %v2207, %v2206
  %v2252 = vpack.c.bf16 %v2209, %v2208
  %v2253 = vpack.c.bf16 %v2211, %v2210
  %v2254 = vpack.c.bf16 %v2213, %v2212
  %v2255 = vpack.c.bf16 %v2215, %v2214
  %v2256 = vpack.c.bf16 %v2217, %v2216
  %v2257 = vpack.c.bf16 %v2219, %v2218
  %v2258 = vpack.c.bf16 %v2221, %v2220
  %v2259 = vpack.c.bf16 %v2223, %v2222
  %v2260 = vpack.c.bf16 %v2225, %v2224
  %v2261 = vpack.c.bf16 %v2227, %v2226
  %v2262 = vpack.c.bf16 %v2229, %v2228
  %v2263 = vpack.c.bf16 %v2231, %v2230
  %v2296 = vunpack.c.l.b16 %v2232
  %v2297 = vunpack.c.h.b16 %v2232
  %v2298 = vunpack.c.l.b16 %v2233
  %v2299 = vunpack.c.h.b16 %v2233
  %v2300 = vunpack.c.l.b16 %v2234
  %v2301 = vunpack.c.h.b16 %v2234
  %v2302 = vunpack.c.l.b16 %v2235
  %v2303 = vunpack.c.h.b16 %v2235
  %v2304 = vunpack.c.l.b16 %v2236
  %v2305 = vunpack.c.h.b16 %v2236
  %v2306 = vunpack.c.l.b16 %v2237
  %v2307 = vunpack.c.h.b16 %v2237
  %v2308 = vunpack.c.l.b16 %v2238
  %v2309 = vunpack.c.h.b16 %v2238
  %v2310 = vunpack.c.l.b16 %v2239
  %v2311 = vunpack.c.h.b16 %v2239
  %v2312 = vunpack.c.l.b16 %v2240
  %v2313 = vunpack.c.h.b16 %v2240
  %v2314 = vunpack.c.l.b16 %v2241
  %v2315 = vunpack.c.h.b16 %v2241
  %v2316 = vunpack.c.l.b16 %v2242
  %v2317 = vunpack.c.h.b16 %v2242
  %v2318 = vunpack.c.l.b16 %v2243
  %v2319 = vunpack.c.h.b16 %v2243
  %v2320 = vunpack.c.l.b16 %v2244
  %v2321 = vunpack.c.h.b16 %v2244
  %v2322 = vunpack.c.l.b16 %v2245
  %v2323 = vunpack.c.h.b16 %v2245
  %v2324 = vunpack.c.l.b16 %v2246
  %v2325 = vunpack.c.h.b16 %v2246
  %v2326 = vunpack.c.l.b16 %v2247
  %v2327 = vunpack.c.h.b16 %v2247
  %v2328 = vunpack.c.l.b16 %v2248
  %v2329 = vunpack.c.h.b16 %v2248
  %v2330 = vunpack.c.l.b16 %v2249
  %v2331 = vunpack.c.h.b16 %v2249
  %v2332 = vunpack.c.l.b16 %v2250
  %v2333 = vunpack.c.h.b16 %v2250
  %v2334 = vunpack.c.l.b16 %v2251
  %v2335 = vunpack.c.h.b16 %v2251
  %v2336 = vunpack.c.l.b16 %v2252
  %v2337 = vunpack.c.h.b16 %v2252
  %v2338 = vunpack.c.l.b16 %v2253
  %v2339 = vunpack.c.h.b16 %v2253
  %v2340 = vunpack.c.l.b16 %v2254
  %v2341 = vunpack.c.h.b16 %v2254
  %v2342 = vunpack.c.l.b16 %v2255
  %v2343 = vunpack.c.h.b16 %v2255
  %v2344 = vunpack.c.l.b16 %v2256
  %v2345 = vunpack.c.h.b16 %v2256
  %v2346 = vunpack.c.l.b16 %v2257
  %v2347 = vunpack.c.h.b16 %v2257
  %v2348 = vunpack.c.l.b16 %v2258
  %v2349 = vunpack.c.h.b16 %v2258
  %v2350 = vunpack.c.l.b16 %v2259
  %v2351 = vunpack.c.h.b16 %v2259
  %v2352 = vunpack.c.l.b16 %v2260
  %v2353 = vunpack.c.h.b16 %v2260
  %v2354 = vunpack.c.l.b16 %v2261
  %v2355 = vunpack.c.h.b16 %v2261
  %v2356 = vunpack.c.l.b16 %v2262
  %v2357 = vunpack.c.h.b16 %v2262
  %v2358 = vunpack.c.l.b16 %v2263
  %v2359 = vunpack.c.h.b16 %v2263
  %v2360 = vpack.c.b16 %v2296, %v2296
  %v2361 = vpack.c.b16 %v2297, %v2297
  %v2362 = vpack.c.b16 %v2298, %v2298
  %v2363 = vpack.c.b16 %v2299, %v2299
  %v2364 = vpack.c.b16 %v2300, %v2300
  %v2365 = vpack.c.b16 %v2301, %v2301
  %v2366 = vpack.c.b16 %v2302, %v2302
  %v2367 = vpack.c.b16 %v2303, %v2303
  %v2368 = vpack.c.b16 %v2304, %v2304
  %v2369 = vpack.c.b16 %v2305, %v2305
  %v2370 = vpack.c.b16 %v2306, %v2306
  %v2371 = vpack.c.b16 %v2307, %v2307
  %v2372 = vpack.c.b16 %v2308, %v2308
  %v2373 = vpack.c.b16 %v2309, %v2309
  %v2374 = vpack.c.b16 %v2310, %v2310
  %v2375 = vpack.c.b16 %v2311, %v2311
  %v2376 = vpack.c.b16 %v2312, %v2312
  %v2377 = vpack.c.b16 %v2313, %v2313
  %v2378 = vpack.c.b16 %v2314, %v2314
  %v2379 = vpack.c.b16 %v2315, %v2315
  %v2380 = vpack.c.b16 %v2316, %v2316
  %v2381 = vpack.c.b16 %v2317, %v2317
  %v2382 = vpack.c.b16 %v2318, %v2318
  %v2383 = vpack.c.b16 %v2319, %v2319
  %v2384 = vpack.c.b16 %v2320, %v2320
  %v2385 = vpack.c.b16 %v2321, %v2321
  %v2386 = vpack.c.b16 %v2322, %v2322
  %v2387 = vpack.c.b16 %v2323, %v2323
  %v2388 = vpack.c.b16 %v2324, %v2324
  %v2389 = vpack.c.b16 %v2325, %v2325
  %v2390 = vpack.c.b16 %v2326, %v2326
  %v2391 = vpack.c.b16 %v2327, %v2327
  %v2392 = vpack.c.b16 %v2328, %v2328
  %v2393 = vpack.c.b16 %v2329, %v2329
  %v2394 = vpack.c.b16 %v2330, %v2330
  %v2395 = vpack.c.b16 %v2331, %v2331
  %v2396 = vpack.c.b16 %v2332, %v2332
  %v2397 = vpack.c.b16 %v2333, %v2333
  %v2398 = vpack.c.b16 %v2334, %v2334
  %v2399 = vpack.c.b16 %v2335, %v2335
  %v2400 = vpack.c.b16 %v2336, %v2336
  %v2401 = vpack.c.b16 %v2337, %v2337
  %v2402 = vpack.c.b16 %v2338, %v2338
  %v2403 = vpack.c.b16 %v2339, %v2339
  %v2404 = vpack.c.b16 %v2340, %v2340
  %v2405 = vpack.c.b16 %v2341, %v2341
  %v2406 = vpack.c.b16 %v2342, %v2342
  %v2407 = vpack.c.b16 %v2343, %v2343
  %v2408 = vpack.c.b16 %v2344, %v2344
  %v2409 = vpack.c.b16 %v2345, %v2345
  %v2410 = vpack.c.b16 %v2346, %v2346
  %v2411 = vpack.c.b16 %v2347, %v2347
  %v2412 = vpack.c.b16 %v2348, %v2348
  %v2413 = vpack.c.b16 %v2349, %v2349
  %v2414 = vpack.c.b16 %v2350, %v2350
  %v2415 = vpack.c.b16 %v2351, %v2351
  %v2416 = vpack.c.b16 %v2352, %v2352
  %v2417 = vpack.c.b16 %v2353, %v2353
  %v2418 = vpack.c.b16 %v2354, %v2354
  %v2419 = vpack.c.b16 %v2355, %v2355
  %v2420 = vpack.c.b16 %v2356, %v2356
  %v2421 = vpack.c.b16 %v2357, %v2357
  %v2422 = vpack.c.b16 %v2358, %v2358
  %v2423 = vpack.c.b16 %v2359, %v2359
  %2424 = vrot.lane.b32.xlu0 %v2360, 32
  %v2425 = vpop.permute.xlu0 %2424
  %2426 = vrot.lane.b32.xlu0 %v2361, 32
  %v2427 = vpop.permute.xlu0 %2426
  %2428 = vrot.lane.b32.xlu0 %v2362, 32
  %v2429 = vpop.permute.xlu0 %2428
  %2430 = vrot.lane.b32.xlu0 %v2363, 32
  %v2431 = vpop.permute.xlu0 %2430
  %2432 = vrot.lane.b32.xlu0 %v2364, 32
  %v2433 = vpop.permute.xlu0 %2432
  %2434 = vrot.lane.b32.xlu0 %v2365, 32
  %v2435 = vpop.permute.xlu0 %2434
  %2436 = vrot.lane.b32.xlu0 %v2366, 32
  %v2437 = vpop.permute.xlu0 %2436
  %2438 = vrot.lane.b32.xlu0 %v2367, 32
  %v2439 = vpop.permute.xlu0 %2438
  %2440 = vrot.lane.b32.xlu0 %v2368, 32
  %v2441 = vpop.permute.xlu0 %2440
  %2442 = vrot.lane.b32.xlu0 %v2369, 32
  %v2443 = vpop.permute.xlu0 %2442
  %2444 = vrot.lane.b32.xlu0 %v2370, 32
  %v2445 = vpop.permute.xlu0 %2444
  %2446 = vrot.lane.b32.xlu0 %v2371, 32
  %v2447 = vpop.permute.xlu0 %2446
  %2448 = vrot.lane.b32.xlu0 %v2372, 32
  %v2449 = vpop.permute.xlu0 %2448
  %2450 = vrot.lane.b32.xlu0 %v2373, 32
  %v2451 = vpop.permute.xlu0 %2450
  %2452 = vrot.lane.b32.xlu0 %v2374, 32
  %v2453 = vpop.permute.xlu0 %2452
  %2454 = vrot.lane.b32.xlu0 %v2375, 32
  %v2455 = vpop.permute.xlu0 %2454
  %2456 = vrot.lane.b32.xlu0 %v2376, 32
  %v2457 = vpop.permute.xlu0 %2456
  %2458 = vrot.lane.b32.xlu0 %v2377, 32
  %v2459 = vpop.permute.xlu0 %2458
  %2460 = vrot.lane.b32.xlu0 %v2378, 32
  %v2461 = vpop.permute.xlu0 %2460
  %2462 = vrot.lane.b32.xlu0 %v2379, 32
  %v2463 = vpop.permute.xlu0 %2462
  %2464 = vrot.lane.b32.xlu0 %v2380, 32
  %v2465 = vpop.permute.xlu0 %2464
  %2466 = vrot.lane.b32.xlu0 %v2381, 32
  %v2467 = vpop.permute.xlu0 %2466
  %2468 = vrot.lane.b32.xlu0 %v2382, 32
  %v2469 = vpop.permute.xlu0 %2468
  %2470 = vrot.lane.b32.xlu0 %v2383, 32
  %v2471 = vpop.permute.xlu0 %2470
  %2472 = vrot.lane.b32.xlu0 %v2384, 32
  %v2473 = vpop.permute.xlu0 %2472
  %2474 = vrot.lane.b32.xlu0 %v2385, 32
  %v2475 = vpop.permute.xlu0 %2474
  %2476 = vrot.lane.b32.xlu0 %v2386, 32
  %v2477 = vpop.permute.xlu0 %2476
  %2478 = vrot.lane.b32.xlu0 %v2387, 32
  %v2479 = vpop.permute.xlu0 %2478
  %2480 = vrot.lane.b32.xlu0 %v2388, 32
  %v2481 = vpop.permute.xlu0 %2480
  %2482 = vrot.lane.b32.xlu0 %v2389, 32
  %v2483 = vpop.permute.xlu0 %2482
  %2484 = vrot.lane.b32.xlu0 %v2390, 32
  %v2485 = vpop.permute.xlu0 %2484
  %2486 = vrot.lane.b32.xlu0 %v2391, 32
  %v2487 = vpop.permute.xlu0 %2486
  %2488 = vrot.lane.b32.xlu0 %v2392, 32
  %v2489 = vpop.permute.xlu0 %2488
  %2490 = vrot.lane.b32.xlu0 %v2393, 32
  %v2491 = vpop.permute.xlu0 %2490
  %2492 = vrot.lane.b32.xlu0 %v2394, 32
  %v2493 = vpop.permute.xlu0 %2492
  %2494 = vrot.lane.b32.xlu0 %v2395, 32
  %v2495 = vpop.permute.xlu0 %2494
  %2496 = vrot.lane.b32.xlu0 %v2396, 32
  %v2497 = vpop.permute.xlu0 %2496
  %2498 = vrot.lane.b32.xlu0 %v2397, 32
  %v2499 = vpop.permute.xlu0 %2498
  %2500 = vrot.lane.b32.xlu0 %v2398, 32
  %v2501 = vpop.permute.xlu0 %2500
  %2502 = vrot.lane.b32.xlu0 %v2399, 32
  %v2503 = vpop.permute.xlu0 %2502
  %2504 = vrot.lane.b32.xlu0 %v2400, 32
  %v2505 = vpop.permute.xlu0 %2504
  %2506 = vrot.lane.b32.xlu0 %v2401, 32
  %v2507 = vpop.permute.xlu0 %2506
  %2508 = vrot.lane.b32.xlu0 %v2402, 32
  %v2509 = vpop.permute.xlu0 %2508
  %2510 = vrot.lane.b32.xlu0 %v2403, 32
  %v2511 = vpop.permute.xlu0 %2510
  %2512 = vrot.lane.b32.xlu0 %v2404, 32
  %v2513 = vpop.permute.xlu0 %2512
  %2514 = vrot.lane.b32.xlu0 %v2405, 32
  %v2515 = vpop.permute.xlu0 %2514
  %2516 = vrot.lane.b32.xlu0 %v2406, 32
  %v2517 = vpop.permute.xlu0 %2516
  %2518 = vrot.lane.b32.xlu0 %v2407, 32
  %v2519 = vpop.permute.xlu0 %2518
  %2520 = vrot.lane.b32.xlu0 %v2408, 32
  %v2521 = vpop.permute.xlu0 %2520
  %2522 = vrot.lane.b32.xlu0 %v2409, 32
  %v2523 = vpop.permute.xlu0 %2522
  %2524 = vrot.lane.b32.xlu0 %v2410, 32
  %v2525 = vpop.permute.xlu0 %2524
  %2526 = vrot.lane.b32.xlu0 %v2411, 32
  %v2527 = vpop.permute.xlu0 %2526
  %2528 = vrot.lane.b32.xlu0 %v2412, 32
  %v2529 = vpop.permute.xlu0 %2528
  %2530 = vrot.lane.b32.xlu0 %v2413, 32
  %v2531 = vpop.permute.xlu0 %2530
  %2532 = vrot.lane.b32.xlu0 %v2414, 32
  %v2533 = vpop.permute.xlu0 %2532
  %2534 = vrot.lane.b32.xlu0 %v2415, 32
  %v2535 = vpop.permute.xlu0 %2534
  %2536 = vrot.lane.b32.xlu0 %v2416, 32
  %v2537 = vpop.permute.xlu0 %2536
  %2538 = vrot.lane.b32.xlu0 %v2417, 32
  %v2539 = vpop.permute.xlu0 %2538
  %2540 = vrot.lane.b32.xlu0 %v2418, 32
  %v2541 = vpop.permute.xlu0 %2540
  %2542 = vrot.lane.b32.xlu0 %v2419, 32
  %v2543 = vpop.permute.xlu0 %2542
  %2544 = vrot.lane.b32.xlu0 %v2420, 32
  %v2545 = vpop.permute.xlu0 %2544
  %2546 = vrot.lane.b32.xlu0 %v2421, 32
  %v2547 = vpop.permute.xlu0 %2546
  %2548 = vrot.lane.b32.xlu0 %v2422, 32
  %v2549 = vpop.permute.xlu0 %2548
  %2550 = vrot.lane.b32.xlu0 %v2423, 32
  %v2551 = vpop.permute.xlu0 %2550
  %vm2616 = vcmask 322816
  %2617 = vst.msk [vmem:[#allocation3] sm:$0xf] %vm2616, %v2425
  %2618 = vst.msk [vmem:[#allocation3 + $0x4] sm:$0xf] %vm2616, %v2427
  %2619 = vst.msk [vmem:[#allocation3 + $0x8] sm:$0xf] %vm2616, %v2429
  %2620 = vst.msk [vmem:[#allocation3 + $0xc] sm:$0xf] %vm2616, %v2431
  %2621 = vst.msk [vmem:[#allocation3 + $0x10] sm:$0xf] %vm2616, %v2433
  %2622 = vst.msk [vmem:[#allocation3 + $0x14] sm:$0xf] %vm2616, %v2435
  %2623 = vst.msk [vmem:[#allocation3 + $0x18] sm:$0xf] %vm2616, %v2437
  %2624 = vst.msk [vmem:[#allocation3 + $0x1c] sm:$0xf] %vm2616, %v2439
  %2625 = vst.msk [vmem:[#allocation3 + $0x20] sm:$0xf] %vm2616, %v2441
  %2626 = vst.msk [vmem:[#allocation3 + $0x24] sm:$0xf] %vm2616, %v2443
  %2627 = vst.msk [vmem:[#allocation3 + $0x28] sm:$0xf] %vm2616, %v2445
  %2628 = vst.msk [vmem:[#allocation3 + $0x2c] sm:$0xf] %vm2616, %v2447
  %2629 = vst.msk [vmem:[#allocation3 + $0x30] sm:$0xf] %vm2616, %v2449
  %2630 = vst.msk [vmem:[#allocation3 + $0x34] sm:$0xf] %vm2616, %v2451
  %2631 = vst.msk [vmem:[#allocation3 + $0x38] sm:$0xf] %vm2616, %v2453
  %2632 = vst.msk [vmem:[#allocation3 + $0x3c] sm:$0xf] %vm2616, %v2455
  %2633 = vst.msk [vmem:[#allocation3 + $0x40] sm:$0xf] %vm2616, %v2457
  %2634 = vst.msk [vmem:[#allocation3 + $0x44] sm:$0xf] %vm2616, %v2459
  %2635 = vst.msk [vmem:[#allocation3 + $0x48] sm:$0xf] %vm2616, %v2461
  %2636 = vst.msk [vmem:[#allocation3 + $0x4c] sm:$0xf] %vm2616, %v2463
  %2637 = vst.msk [vmem:[#allocation3 + $0x50] sm:$0xf] %vm2616, %v2465
  %2638 = vst.msk [vmem:[#allocation3 + $0x54] sm:$0xf] %vm2616, %v2467
  %2639 = vst.msk [vmem:[#allocation3 + $0x58] sm:$0xf] %vm2616, %v2469
  %2640 = vst.msk [vmem:[#allocation3 + $0x5c] sm:$0xf] %vm2616, %v2471
  %2641 = vst.msk [vmem:[#allocation3 + $0x60] sm:$0xf] %vm2616, %v2473
  %2642 = vst.msk [vmem:[#allocation3 + $0x64] sm:$0xf] %vm2616, %v2475
  %2643 = vst.msk [vmem:[#allocation3 + $0x68] sm:$0xf] %vm2616, %v2477
  %2644 = vst.msk [vmem:[#allocation3 + $0x6c] sm:$0xf] %vm2616, %v2479
  %2645 = vst.msk [vmem:[#allocation3 + $0x70] sm:$0xf] %vm2616, %v2481
  %2646 = vst.msk [vmem:[#allocation3 + $0x74] sm:$0xf] %vm2616, %v2483
  %2647 = vst.msk [vmem:[#allocation3 + $0x78] sm:$0xf] %vm2616, %v2485
  %2648 = vst.msk [vmem:[#allocation3 + $0x7c] sm:$0xf] %vm2616, %v2487
  %2649 = vst.msk [vmem:[#allocation3 + $0x80] sm:$0xf] %vm2616, %v2489
  %2650 = vst.msk [vmem:[#allocation3 + $0x84] sm:$0xf] %vm2616, %v2491
  %2651 = vst.msk [vmem:[#allocation3 + $0x88] sm:$0xf] %vm2616, %v2493
  %2652 = vst.msk [vmem:[#allocation3 + $0x8c] sm:$0xf] %vm2616, %v2495
  %2653 = vst.msk [vmem:[#allocation3 + $0x90] sm:$0xf] %vm2616, %v2497
  %2654 = vst.msk [vmem:[#allocation3 + $0x94] sm:$0xf] %vm2616, %v2499
  %2655 = vst.msk [vmem:[#allocation3 + $0x98] sm:$0xf] %vm2616, %v2501
  %2656 = vst.msk [vmem:[#allocation3 + $0x9c] sm:$0xf] %vm2616, %v2503
  %2657 = vst.msk [vmem:[#allocation3 + $0xa0] sm:$0xf] %vm2616, %v2505
  %2658 = vst.msk [vmem:[#allocation3 + $0xa4] sm:$0xf] %vm2616, %v2507
  %2659 = vst.msk [vmem:[#allocation3 + $0xa8] sm:$0xf] %vm2616, %v2509
  %2660 = vst.msk [vmem:[#allocation3 + $0xac] sm:$0xf] %vm2616, %v2511
  %2661 = vst.msk [vmem:[#allocation3 + $0xb0] sm:$0xf] %vm2616, %v2513
  %2662 = vst.msk [vmem:[#allocation3 + $0xb4] sm:$0xf] %vm2616, %v2515
  %2663 = vst.msk [vmem:[#allocation3 + $0xb8] sm:$0xf] %vm2616, %v2517
  %2664 = vst.msk [vmem:[#allocation3 + $0xbc] sm:$0xf] %vm2616, %v2519
  %2665 = vst.msk [vmem:[#allocation3 + $0xc0] sm:$0xf] %vm2616, %v2521
  %2666 = vst.msk [vmem:[#allocation3 + $0xc4] sm:$0xf] %vm2616, %v2523
  %2667 = vst.msk [vmem:[#allocation3 + $0xc8] sm:$0xf] %vm2616, %v2525
  %2668 = vst.msk [vmem:[#allocation3 + $0xcc] sm:$0xf] %vm2616, %v2527
  %2669 = vst.msk [vmem:[#allocation3 + $0xd0] sm:$0xf] %vm2616, %v2529
  %2670 = vst.msk [vmem:[#allocation3 + $0xd4] sm:$0xf] %vm2616, %v2531
  %2671 = vst.msk [vmem:[#allocation3 + $0xd8] sm:$0xf] %vm2616, %v2533
  %2672 = vst.msk [vmem:[#allocation3 + $0xdc] sm:$0xf] %vm2616, %v2535
  %2673 = vst.msk [vmem:[#allocation3 + $0xe0] sm:$0xf] %vm2616, %v2537
  %2674 = vst.msk [vmem:[#allocation3 + $0xe4] sm:$0xf] %vm2616, %v2539
  %2675 = vst.msk [vmem:[#allocation3 + $0xe8] sm:$0xf] %vm2616, %v2541
  %2676 = vst.msk [vmem:[#allocation3 + $0xec] sm:$0xf] %vm2616, %v2543
  %2677 = vst.msk [vmem:[#allocation3 + $0xf0] sm:$0xf] %vm2616, %v2545
  %2678 = vst.msk [vmem:[#allocation3 + $0xf4] sm:$0xf] %vm2616, %v2547
  %2679 = vst.msk [vmem:[#allocation3 + $0xf8] sm:$0xf] %vm2616, %v2549
  %2680 = vst.msk [vmem:[#allocation3 + $0xfc] sm:$0xf] %vm2616, %v2551
  %v2681 = vld [vmem:[%s179 + $0x2] sm:$0xff]
  %v2682 = vld [vmem:[%s179 + $0xa] sm:$0xff]
  %v2683 = vld [vmem:[%s179 + $0x1a] sm:$0xff]
  %v2684 = vld [vmem:[%s179 + $0x22] sm:$0xff]
  %v2685 = vld [vmem:[%s179 + $0x32] sm:$0xff]
  %v2686 = vld [vmem:[%s179 + $0x3a] sm:$0xff]
  %v2687 = vld [vmem:[%s179 + $0x4a] sm:$0xff]
  %v2688 = vld [vmem:[%s179 + $0x52] sm:$0xff]
  %v2689 = vld [vmem:[%s179 + $0x62] sm:$0xff]
  %v2690 = vld [vmem:[%s179 + $0x6a] sm:$0xff]
  %v2691 = vld [vmem:[%s179 + $0x7a] sm:$0xff]
  %v2692 = vld [vmem:[%s179 + $0x82] sm:$0xff]
  %v2693 = vld [vmem:[%s179 + $0x92] sm:$0xff]
  %v2694 = vld [vmem:[%s179 + $0x9a] sm:$0xff]
  %v2695 = vld [vmem:[%s179 + $0xaa] sm:$0xff]
  %v2696 = vld [vmem:[%s179 + $0xb2] sm:$0xff]
  %v2697 = vld [vmem:[%s179 + $0xc2] sm:$0xff]
  %v2698 = vld [vmem:[%s179 + $0xca] sm:$0xff]
  %v2699 = vld [vmem:[%s179 + $0xda] sm:$0xff]
  %v2700 = vld [vmem:[%s179 + $0xe2] sm:$0xff]
  %v2701 = vld [vmem:[%s179 + $0xf2] sm:$0xff]
  %v2702 = vld [vmem:[%s179 + $0xfa] sm:$0xff]
  %v2703 = vld [vmem:[%s179 + $0x10a] sm:$0xff]
  %v2704 = vld [vmem:[%s179 + $0x112] sm:$0xff]
  %v2705 = vld [vmem:[%s179 + $0x122] sm:$0xff]
  %v2706 = vld [vmem:[%s179 + $0x12a] sm:$0xff]
  %v2707 = vld [vmem:[%s179 + $0x13a] sm:$0xff]
  %v2708 = vld [vmem:[%s179 + $0x142] sm:$0xff]
  %v2709 = vld [vmem:[%s179 + $0x152] sm:$0xff]
  %v2710 = vld [vmem:[%s179 + $0x15a] sm:$0xff]
  %v2711 = vld [vmem:[%s179 + $0x16a] sm:$0xff]
  %v2712 = vld [vmem:[%s179 + $0x172] sm:$0xff]
  %v2713 = vld [vmem:[%s179 + $0x1b2] sm:$0xff]
  %v2714 = vld [vmem:[%s179 + $0x1ba] sm:$0xff]
  %v2715 = vld [vmem:[%s179 + $0x1ca] sm:$0xff]
  %v2716 = vld [vmem:[%s179 + $0x1d2] sm:$0xff]
  %v2717 = vld [vmem:[%s179 + $0x1e2] sm:$0xff]
  %v2718 = vld [vmem:[%s179 + $0x1ea] sm:$0xff]
  %v2719 = vld [vmem:[%s179 + $0x1fa] sm:$0xff]
  %v2720 = vld [vmem:[%s179 + $0x202] sm:$0xff]
  %v2721 = vld [vmem:[%s179 + $0x212] sm:$0xff]
  %v2722 = vld [vmem:[%s179 + $0x21a] sm:$0xff]
  %v2723 = vld [vmem:[%s179 + $0x22a] sm:$0xff]
  %v2724 = vld [vmem:[%s179 + $0x232] sm:$0xff]
  %v2725 = vld [vmem:[%s179 + $0x242] sm:$0xff]
  %v2726 = vld [vmem:[%s179 + $0x24a] sm:$0xff]
  %v2727 = vld [vmem:[%s179 + $0x25a] sm:$0xff]
  %v2728 = vld [vmem:[%s179 + $0x262] sm:$0xff]
  %v2729 = vld [vmem:[%s179 + $0x272] sm:$0xff]
  %v2730 = vld [vmem:[%s179 + $0x27a] sm:$0xff]
  %v2731 = vld [vmem:[%s179 + $0x28a] sm:$0xff]
  %v2732 = vld [vmem:[%s179 + $0x292] sm:$0xff]
  %v2733 = vld [vmem:[%s179 + $0x2a2] sm:$0xff]
  %v2734 = vld [vmem:[%s179 + $0x2aa] sm:$0xff]
  %v2735 = vld [vmem:[%s179 + $0x2ba] sm:$0xff]
  %v2736 = vld [vmem:[%s179 + $0x2c2] sm:$0xff]
  %v2737 = vld [vmem:[%s179 + $0x2d2] sm:$0xff]
  %v2738 = vld [vmem:[%s179 + $0x2da] sm:$0xff]
  %v2739 = vld [vmem:[%s179 + $0x2ea] sm:$0xff]
  %v2740 = vld [vmem:[%s179 + $0x2f2] sm:$0xff]
  %v2741 = vld [vmem:[%s179 + $0x302] sm:$0xff]
  %v2742 = vld [vmem:[%s179 + $0x30a] sm:$0xff]
  %v2743 = vld [vmem:[%s179 + $0x31a] sm:$0xff]
  %v2744 = vld [vmem:[%s179 + $0x322] sm:$0xff]
  %v2745 = vpack.c.bf16 %v2682, %v2681
  %v2746 = vpack.c.bf16 %v2684, %v2683
  %v2747 = vpack.c.bf16 %v2686, %v2685
  %v2748 = vpack.c.bf16 %v2688, %v2687
  %v2749 = vpack.c.bf16 %v2690, %v2689
  %v2750 = vpack.c.bf16 %v2692, %v2691
  %v2751 = vpack.c.bf16 %v2694, %v2693
  %v2752 = vpack.c.bf16 %v2696, %v2695
  %v2753 = vpack.c.bf16 %v2698, %v2697
  %v2754 = vpack.c.bf16 %v2700, %v2699
  %v2755 = vpack.c.bf16 %v2702, %v2701
  %v2756 = vpack.c.bf16 %v2704, %v2703
  %v2757 = vpack.c.bf16 %v2706, %v2705
  %v2758 = vpack.c.bf16 %v2708, %v2707
  %v2759 = vpack.c.bf16 %v2710, %v2709
  %v2760 = vpack.c.bf16 %v2712, %v2711
  %v2761 = vpack.c.bf16 %v2714, %v2713
  %v2762 = vpack.c.bf16 %v2716, %v2715
  %v2763 = vpack.c.bf16 %v2718, %v2717
  %v2764 = vpack.c.bf16 %v2720, %v2719
  %v2765 = vpack.c.bf16 %v2722, %v2721
  %v2766 = vpack.c.bf16 %v2724, %v2723
  %v2767 = vpack.c.bf16 %v2726, %v2725
  %v2768 = vpack.c.bf16 %v2728, %v2727
  %v2769 = vpack.c.bf16 %v2730, %v2729
  %v2770 = vpack.c.bf16 %v2732, %v2731
  %v2771 = vpack.c.bf16 %v2734, %v2733
  %v2772 = vpack.c.bf16 %v2736, %v2735
  %v2773 = vpack.c.bf16 %v2738, %v2737
  %v2774 = vpack.c.bf16 %v2740, %v2739
  %v2775 = vpack.c.bf16 %v2742, %v2741
  %v2776 = vpack.c.bf16 %v2744, %v2743
  %v2809 = vunpack.c.l.b16 %v2745
  %v2810 = vunpack.c.h.b16 %v2745
  %v2811 = vunpack.c.l.b16 %v2746
  %v2812 = vunpack.c.h.b16 %v2746
  %v2813 = vunpack.c.l.b16 %v2747
  %v2814 = vunpack.c.h.b16 %v2747
  %v2815 = vunpack.c.l.b16 %v2748
  %v2816 = vunpack.c.h.b16 %v2748
  %v2817 = vunpack.c.l.b16 %v2749
  %v2818 = vunpack.c.h.b16 %v2749
  %v2819 = vunpack.c.l.b16 %v2750
  %v2820 = vunpack.c.h.b16 %v2750
  %v2821 = vunpack.c.l.b16 %v2751
  %v2822 = vunpack.c.h.b16 %v2751
  %v2823 = vunpack.c.l.b16 %v2752
  %v2824 = vunpack.c.h.b16 %v2752
  %v2825 = vunpack.c.l.b16 %v2753
  %v2826 = vunpack.c.h.b16 %v2753
  %v2827 = vunpack.c.l.b16 %v2754
  %v2828 = vunpack.c.h.b16 %v2754
  %v2829 = vunpack.c.l.b16 %v2755
  %v2830 = vunpack.c.h.b16 %v2755
  %v2831 = vunpack.c.l.b16 %v2756
  %v2832 = vunpack.c.h.b16 %v2756
  %v2833 = vunpack.c.l.b16 %v2757
  %v2834 = vunpack.c.h.b16 %v2757
  %v2835 = vunpack.c.l.b16 %v2758
  %v2836 = vunpack.c.h.b16 %v2758
  %v2837 = vunpack.c.l.b16 %v2759
  %v2838 = vunpack.c.h.b16 %v2759
  %v2839 = vunpack.c.l.b16 %v2760
  %v2840 = vunpack.c.h.b16 %v2760
  %v2841 = vunpack.c.l.b16 %v2761
  %v2842 = vunpack.c.h.b16 %v2761
  %v2843 = vunpack.c.l.b16 %v2762
  %v2844 = vunpack.c.h.b16 %v2762
  %v2845 = vunpack.c.l.b16 %v2763
  %v2846 = vunpack.c.h.b16 %v2763
  %v2847 = vunpack.c.l.b16 %v2764
  %v2848 = vunpack.c.h.b16 %v2764
  %v2849 = vunpack.c.l.b16 %v2765
  %v2850 = vunpack.c.h.b16 %v2765
  %v2851 = vunpack.c.l.b16 %v2766
  %v2852 = vunpack.c.h.b16 %v2766
  %v2853 = vunpack.c.l.b16 %v2767
  %v2854 = vunpack.c.h.b16 %v2767
  %v2855 = vunpack.c.l.b16 %v2768
  %v2856 = vunpack.c.h.b16 %v2768
  %v2857 = vunpack.c.l.b16 %v2769
  %v2858 = vunpack.c.h.b16 %v2769
  %v2859 = vunpack.c.l.b16 %v2770
  %v2860 = vunpack.c.h.b16 %v2770
  %v2861 = vunpack.c.l.b16 %v2771
  %v2862 = vunpack.c.h.b16 %v2771
  %v2863 = vunpack.c.l.b16 %v2772
  %v2864 = vunpack.c.h.b16 %v2772
  %v2865 = vunpack.c.l.b16 %v2773
  %v2866 = vunpack.c.h.b16 %v2773
  %v2867 = vunpack.c.l.b16 %v2774
  %v2868 = vunpack.c.h.b16 %v2774
  %v2869 = vunpack.c.l.b16 %v2775
  %v2870 = vunpack.c.h.b16 %v2775
  %v2871 = vunpack.c.l.b16 %v2776
  %v2872 = vunpack.c.h.b16 %v2776
  %v2873 = vpack.c.b16 %v2809, %v2809
  %v2874 = vpack.c.b16 %v2810, %v2810
  %v2875 = vpack.c.b16 %v2811, %v2811
  %v2876 = vpack.c.b16 %v2812, %v2812
  %v2877 = vpack.c.b16 %v2813, %v2813
  %v2878 = vpack.c.b16 %v2814, %v2814
  %v2879 = vpack.c.b16 %v2815, %v2815
  %v2880 = vpack.c.b16 %v2816, %v2816
  %v2881 = vpack.c.b16 %v2817, %v2817
  %v2882 = vpack.c.b16 %v2818, %v2818
  %v2883 = vpack.c.b16 %v2819, %v2819
  %v2884 = vpack.c.b16 %v2820, %v2820
  %v2885 = vpack.c.b16 %v2821, %v2821
  %v2886 = vpack.c.b16 %v2822, %v2822
  %v2887 = vpack.c.b16 %v2823, %v2823
  %v2888 = vpack.c.b16 %v2824, %v2824
  %v2889 = vpack.c.b16 %v2825, %v2825
  %v2890 = vpack.c.b16 %v2826, %v2826
  %v2891 = vpack.c.b16 %v2827, %v2827
  %v2892 = vpack.c.b16 %v2828, %v2828
  %v2893 = vpack.c.b16 %v2829, %v2829
  %v2894 = vpack.c.b16 %v2830, %v2830
  %v2895 = vpack.c.b16 %v2831, %v2831
  %v2896 = vpack.c.b16 %v2832, %v2832
  %v2897 = vpack.c.b16 %v2833, %v2833
  %v2898 = vpack.c.b16 %v2834, %v2834
  %v2899 = vpack.c.b16 %v2835, %v2835
  %v2900 = vpack.c.b16 %v2836, %v2836
  %v2901 = vpack.c.b16 %v2837, %v2837
  %v2902 = vpack.c.b16 %v2838, %v2838
  %v2903 = vpack.c.b16 %v2839, %v2839
  %v2904 = vpack.c.b16 %v2840, %v2840
  %v2905 = vpack.c.b16 %v2841, %v2841
  %v2906 = vpack.c.b16 %v2842, %v2842
  %v2907 = vpack.c.b16 %v2843, %v2843
  %v2908 = vpack.c.b16 %v2844, %v2844
  %v2909 = vpack.c.b16 %v2845, %v2845
  %v2910 = vpack.c.b16 %v2846, %v2846
  %v2911 = vpack.c.b16 %v2847, %v2847
  %v2912 = vpack.c.b16 %v2848, %v2848
  %v2913 = vpack.c.b16 %v2849, %v2849
  %v2914 = vpack.c.b16 %v2850, %v2850
  %v2915 = vpack.c.b16 %v2851, %v2851
  %v2916 = vpack.c.b16 %v2852, %v2852
  %v2917 = vpack.c.b16 %v2853, %v2853
  %v2918 = vpack.c.b16 %v2854, %v2854
  %v2919 = vpack.c.b16 %v2855, %v2855
  %v2920 = vpack.c.b16 %v2856, %v2856
  %v2921 = vpack.c.b16 %v2857, %v2857
  %v2922 = vpack.c.b16 %v2858, %v2858
  %v2923 = vpack.c.b16 %v2859, %v2859
  %v2924 = vpack.c.b16 %v2860, %v2860
  %v2925 = vpack.c.b16 %v2861, %v2861
  %v2926 = vpack.c.b16 %v2862, %v2862
  %v2927 = vpack.c.b16 %v2863, %v2863
  %v2928 = vpack.c.b16 %v2864, %v2864
  %v2929 = vpack.c.b16 %v2865, %v2865
  %v2930 = vpack.c.b16 %v2866, %v2866
  %v2931 = vpack.c.b16 %v2867, %v2867
  %v2932 = vpack.c.b16 %v2868, %v2868
  %v2933 = vpack.c.b16 %v2869, %v2869
  %v2934 = vpack.c.b16 %v2870, %v2870
  %v2935 = vpack.c.b16 %v2871, %v2871
  %v2936 = vpack.c.b16 %v2872, %v2872
  %2937 = vrot.lane.b32.xlu0 %v2873, 40
  %v2938 = vpop.permute.xlu0 %2937
  %2939 = vrot.lane.b32.xlu0 %v2874, 40
  %v2940 = vpop.permute.xlu0 %2939
  %2941 = vrot.lane.b32.xlu0 %v2875, 40
  %v2942 = vpop.permute.xlu0 %2941
  %2943 = vrot.lane.b32.xlu0 %v2876, 40
  %v2944 = vpop.permute.xlu0 %2943
  %2945 = vrot.lane.b32.xlu0 %v2877, 40
  %v2946 = vpop.permute.xlu0 %2945
  %2947 = vrot.lane.b32.xlu0 %v2878, 40
  %v2948 = vpop.permute.xlu0 %2947
  %2949 = vrot.lane.b32.xlu0 %v2879, 40
  %v2950 = vpop.permute.xlu0 %2949
  %2951 = vrot.lane.b32.xlu0 %v2880, 40
  %v2952 = vpop.permute.xlu0 %2951
  %2953 = vrot.lane.b32.xlu0 %v2881, 40
  %v2954 = vpop.permute.xlu0 %2953
  %2955 = vrot.lane.b32.xlu0 %v2882, 40
  %v2956 = vpop.permute.xlu0 %2955
  %2957 = vrot.lane.b32.xlu0 %v2883, 40
  %v2958 = vpop.permute.xlu0 %2957
  %2959 = vrot.lane.b32.xlu0 %v2884, 40
  %v2960 = vpop.permute.xlu0 %2959
  %2961 = vrot.lane.b32.xlu0 %v2885, 40
  %v2962 = vpop.permute.xlu0 %2961
  %2963 = vrot.lane.b32.xlu0 %v2886, 40
  %v2964 = vpop.permute.xlu0 %2963
  %2965 = vrot.lane.b32.xlu0 %v2887, 40
  %v2966 = vpop.permute.xlu0 %2965
  %2967 = vrot.lane.b32.xlu0 %v2888, 40
  %v2968 = vpop.permute.xlu0 %2967
  %2969 = vrot.lane.b32.xlu0 %v2889, 40
  %v2970 = vpop.permute.xlu0 %2969
  %2971 = vrot.lane.b32.xlu0 %v2890, 40
  %v2972 = vpop.permute.xlu0 %2971
  %2973 = vrot.lane.b32.xlu0 %v2891, 40
  %v2974 = vpop.permute.xlu0 %2973
  %2975 = vrot.lane.b32.xlu0 %v2892, 40
  %v2976 = vpop.permute.xlu0 %2975
  %2977 = vrot.lane.b32.xlu0 %v2893, 40
  %v2978 = vpop.permute.xlu0 %2977
  %2979 = vrot.lane.b32.xlu0 %v2894, 40
  %v2980 = vpop.permute.xlu0 %2979
  %2981 = vrot.lane.b32.xlu0 %v2895, 40
  %v2982 = vpop.permute.xlu0 %2981
  %2983 = vrot.lane.b32.xlu0 %v2896, 40
  %v2984 = vpop.permute.xlu0 %2983
  %2985 = vrot.lane.b32.xlu0 %v2897, 40
  %v2986 = vpop.permute.xlu0 %2985
  %2987 = vrot.lane.b32.xlu0 %v2898, 40
  %v2988 = vpop.permute.xlu0 %2987
  %2989 = vrot.lane.b32.xlu0 %v2899, 40
  %v2990 = vpop.permute.xlu0 %2989
  %2991 = vrot.lane.b32.xlu0 %v2900, 40
  %v2992 = vpop.permute.xlu0 %2991
  %2993 = vrot.lane.b32.xlu0 %v2901, 40
  %v2994 = vpop.permute.xlu0 %2993
  %2995 = vrot.lane.b32.xlu0 %v2902, 40
  %v2996 = vpop.permute.xlu0 %2995
  %2997 = vrot.lane.b32.xlu0 %v2903, 40
  %v2998 = vpop.permute.xlu0 %2997
  %2999 = vrot.lane.b32.xlu0 %v2904, 40
  %v3000 = vpop.permute.xlu0 %2999
  %3001 = vrot.lane.b32.xlu0 %v2905, 40
  %v3002 = vpop.permute.xlu0 %3001
  %3003 = vrot.lane.b32.xlu0 %v2906, 40
  %v3004 = vpop.permute.xlu0 %3003
  %3005 = vrot.lane.b32.xlu0 %v2907, 40
  %v3006 = vpop.permute.xlu0 %3005
  %3007 = vrot.lane.b32.xlu0 %v2908, 40
  %v3008 = vpop.permute.xlu0 %3007
  %3009 = vrot.lane.b32.xlu0 %v2909, 40
  %v3010 = vpop.permute.xlu0 %3009
  %3011 = vrot.lane.b32.xlu0 %v2910, 40
  %v3012 = vpop.permute.xlu0 %3011
  %3013 = vrot.lane.b32.xlu0 %v2911, 40
  %v3014 = vpop.permute.xlu0 %3013
  %3015 = vrot.lane.b32.xlu0 %v2912, 40
  %v3016 = vpop.permute.xlu0 %3015
  %3017 = vrot.lane.b32.xlu0 %v2913, 40
  %v3018 = vpop.permute.xlu0 %3017
  %3019 = vrot.lane.b32.xlu0 %v2914, 40
  %v3020 = vpop.permute.xlu0 %3019
  %3021 = vrot.lane.b32.xlu0 %v2915, 40
  %v3022 = vpop.permute.xlu0 %3021
  %3023 = vrot.lane.b32.xlu0 %v2916, 40
  %v3024 = vpop.permute.xlu0 %3023
  %3025 = vrot.lane.b32.xlu0 %v2917, 40
  %v3026 = vpop.permute.xlu0 %3025
  %3027 = vrot.lane.b32.xlu0 %v2918, 40
  %v3028 = vpop.permute.xlu0 %3027
  %3029 = vrot.lane.b32.xlu0 %v2919, 40
  %v3030 = vpop.permute.xlu0 %3029
  %3031 = vrot.lane.b32.xlu0 %v2920, 40
  %v3032 = vpop.permute.xlu0 %3031
  %3033 = vrot.lane.b32.xlu0 %v2921, 40
  %v3034 = vpop.permute.xlu0 %3033
  %3035 = vrot.lane.b32.xlu0 %v2922, 40
  %v3036 = vpop.permute.xlu0 %3035
  %3037 = vrot.lane.b32.xlu0 %v2923, 40
  %v3038 = vpop.permute.xlu0 %3037
  %3039 = vrot.lane.b32.xlu0 %v2924, 40
  %v3040 = vpop.permute.xlu0 %3039
  %3041 = vrot.lane.b32.xlu0 %v2925, 40
  %v3042 = vpop.permute.xlu0 %3041
  %3043 = vrot.lane.b32.xlu0 %v2926, 40
  %v3044 = vpop.permute.xlu0 %3043
  %3045 = vrot.lane.b32.xlu0 %v2927, 40
  %v3046 = vpop.permute.xlu0 %3045
  %3047 = vrot.lane.b32.xlu0 %v2928, 40
  %v3048 = vpop.permute.xlu0 %3047
  %3049 = vrot.lane.b32.xlu0 %v2929, 40
  %v3050 = vpop.permute.xlu0 %3049
  %3051 = vrot.lane.b32.xlu0 %v2930, 40
  %v3052 = vpop.permute.xlu0 %3051
  %3053 = vrot.lane.b32.xlu0 %v2931, 40
  %v3054 = vpop.permute.xlu0 %3053
  %3055 = vrot.lane.b32.xlu0 %v2932, 40
  %v3056 = vpop.permute.xlu0 %3055
  %3057 = vrot.lane.b32.xlu0 %v2933, 40
  %v3058 = vpop.permute.xlu0 %3057
  %3059 = vrot.lane.b32.xlu0 %v2934, 40
  %v3060 = vpop.permute.xlu0 %3059
  %3061 = vrot.lane.b32.xlu0 %v2935, 40
  %v3062 = vpop.permute.xlu0 %3061
  %3063 = vrot.lane.b32.xlu0 %v2936, 40
  %v3064 = vpop.permute.xlu0 %3063
  %vm3129 = vcmask 388416
  %3130 = vst.msk [vmem:[#allocation3] sm:$0xf] %vm3129, %v2938
  %3131 = vst.msk [vmem:[#allocation3 + $0x4] sm:$0xf] %vm3129, %v2940
  %3132 = vst.msk [vmem:[#allocation3 + $0x8] sm:$0xf] %vm3129, %v2942
  %3133 = vst.msk [vmem:[#allocation3 + $0xc] sm:$0xf] %vm3129, %v2944
  %3134 = vst.msk [vmem:[#allocation3 + $0x10] sm:$0xf] %vm3129, %v2946
  %3135 = vst.msk [vmem:[#allocation3 + $0x14] sm:$0xf] %vm3129, %v2948
  %3136 = vst.msk [vmem:[#allocation3 + $0x18] sm:$0xf] %vm3129, %v2950
  %3137 = vst.msk [vmem:[#allocation3 + $0x1c] sm:$0xf] %vm3129, %v2952
  %3138 = vst.msk [vmem:[#allocation3 + $0x20] sm:$0xf] %vm3129, %v2954
  %3139 = vst.msk [vmem:[#allocation3 + $0x24] sm:$0xf] %vm3129, %v2956
  %3140 = vst.msk [vmem:[#allocation3 + $0x28] sm:$0xf] %vm3129, %v2958
  %3141 = vst.msk [vmem:[#allocation3 + $0x2c] sm:$0xf] %vm3129, %v2960
  %3142 = vst.msk [vmem:[#allocation3 + $0x30] sm:$0xf] %vm3129, %v2962
  %3143 = vst.msk [vmem:[#allocation3 + $0x34] sm:$0xf] %vm3129, %v2964
  %3144 = vst.msk [vmem:[#allocation3 + $0x38] sm:$0xf] %vm3129, %v2966
  %3145 = vst.msk [vmem:[#allocation3 + $0x3c] sm:$0xf] %vm3129, %v2968
  %3146 = vst.msk [vmem:[#allocation3 + $0x40] sm:$0xf] %vm3129, %v2970
  %3147 = vst.msk [vmem:[#allocation3 + $0x44] sm:$0xf] %vm3129, %v2972
  %3148 = vst.msk [vmem:[#allocation3 + $0x48] sm:$0xf] %vm3129, %v2974
  %3149 = vst.msk [vmem:[#allocation3 + $0x4c] sm:$0xf] %vm3129, %v2976
  %3150 = vst.msk [vmem:[#allocation3 + $0x50] sm:$0xf] %vm3129, %v2978
  %3151 = vst.msk [vmem:[#allocation3 + $0x54] sm:$0xf] %vm3129, %v2980
  %3152 = vst.msk [vmem:[#allocation3 + $0x58] sm:$0xf] %vm3129, %v2982
  %3153 = vst.msk [vmem:[#allocation3 + $0x5c] sm:$0xf] %vm3129, %v2984
  %3154 = vst.msk [vmem:[#allocation3 + $0x60] sm:$0xf] %vm3129, %v2986
  %3155 = vst.msk [vmem:[#allocation3 + $0x64] sm:$0xf] %vm3129, %v2988
  %3156 = vst.msk [vmem:[#allocation3 + $0x68] sm:$0xf] %vm3129, %v2990
  %3157 = vst.msk [vmem:[#allocation3 + $0x6c] sm:$0xf] %vm3129, %v2992
  %3158 = vst.msk [vmem:[#allocation3 + $0x70] sm:$0xf] %vm3129, %v2994
  %3159 = vst.msk [vmem:[#allocation3 + $0x74] sm:$0xf] %vm3129, %v2996
  %3160 = vst.msk [vmem:[#allocation3 + $0x78] sm:$0xf] %vm3129, %v2998
  %3161 = vst.msk [vmem:[#allocation3 + $0x7c] sm:$0xf] %vm3129, %v3000
  %3162 = vst.msk [vmem:[#allocation3 + $0x80] sm:$0xf] %vm3129, %v3002
  %3163 = vst.msk [vmem:[#allocation3 + $0x84] sm:$0xf] %vm3129, %v3004
  %3164 = vst.msk [vmem:[#allocation3 + $0x88] sm:$0xf] %vm3129, %v3006
  %3165 = vst.msk [vmem:[#allocation3 + $0x8c] sm:$0xf] %vm3129, %v3008
  %3166 = vst.msk [vmem:[#allocation3 + $0x90] sm:$0xf] %vm3129, %v3010
  %3167 = vst.msk [vmem:[#allocation3 + $0x94] sm:$0xf] %vm3129, %v3012
  %3168 = vst.msk [vmem:[#allocation3 + $0x98] sm:$0xf] %vm3129, %v3014
  %3169 = vst.msk [vmem:[#allocation3 + $0x9c] sm:$0xf] %vm3129, %v3016
  %3170 = vst.msk [vmem:[#allocation3 + $0xa0] sm:$0xf] %vm3129, %v3018
  %3171 = vst.msk [vmem:[#allocation3 + $0xa4] sm:$0xf] %vm3129, %v3020
  %3172 = vst.msk [vmem:[#allocation3 + $0xa8] sm:$0xf] %vm3129, %v3022
  %3173 = vst.msk [vmem:[#allocation3 + $0xac] sm:$0xf] %vm3129, %v3024
  %3174 = vst.msk [vmem:[#allocation3 + $0xb0] sm:$0xf] %vm3129, %v3026
  %3175 = vst.msk [vmem:[#allocation3 + $0xb4] sm:$0xf] %vm3129, %v3028
  %3176 = vst.msk [vmem:[#allocation3 + $0xb8] sm:$0xf] %vm3129, %v3030
  %3177 = vst.msk [vmem:[#allocation3 + $0xbc] sm:$0xf] %vm3129, %v3032
  %3178 = vst.msk [vmem:[#allocation3 + $0xc0] sm:$0xf] %vm3129, %v3034
  %3179 = vst.msk [vmem:[#allocation3 + $0xc4] sm:$0xf] %vm3129, %v3036
  %3180 = vst.msk [vmem:[#allocation3 + $0xc8] sm:$0xf] %vm3129, %v3038
  %3181 = vst.msk [vmem:[#allocation3 + $0xcc] sm:$0xf] %vm3129, %v3040
  %3182 = vst.msk [vmem:[#allocation3 + $0xd0] sm:$0xf] %vm3129, %v3042
  %3183 = vst.msk [vmem:[#allocation3 + $0xd4] sm:$0xf] %vm3129, %v3044
  %3184 = vst.msk [vmem:[#allocation3 + $0xd8] sm:$0xf] %vm3129, %v3046
  %3185 = vst.msk [vmem:[#allocation3 + $0xdc] sm:$0xf] %vm3129, %v3048
  %3186 = vst.msk [vmem:[#allocation3 + $0xe0] sm:$0xf] %vm3129, %v3050
  %3187 = vst.msk [vmem:[#allocation3 + $0xe4] sm:$0xf] %vm3129, %v3052
  %3188 = vst.msk [vmem:[#allocation3 + $0xe8] sm:$0xf] %vm3129, %v3054
  %3189 = vst.msk [vmem:[#allocation3 + $0xec] sm:$0xf] %vm3129, %v3056
  %3190 = vst.msk [vmem:[#allocation3 + $0xf0] sm:$0xf] %vm3129, %v3058
  %3191 = vst.msk [vmem:[#allocation3 + $0xf4] sm:$0xf] %vm3129, %v3060
  %3192 = vst.msk [vmem:[#allocation3 + $0xf8] sm:$0xf] %vm3129, %v3062
  %3193 = vst.msk [vmem:[#allocation3 + $0xfc] sm:$0xf] %vm3129, %v3064
  %s3194 = scalar_lea.vmem [#allocation2], 48
  %v3195 = vld [vmem:[%s3194] sm:$0xff]
  %v3196 = vld [vmem:[%s3194 + $0x8] sm:$0xff]
  %v3197 = vld [vmem:[%s3194 + $0x18] sm:$0xff]
  %v3198 = vld [vmem:[%s3194 + $0x20] sm:$0xff]
  %v3199 = vld [vmem:[%s3194 + $0x30] sm:$0xff]
  %v3200 = vld [vmem:[%s3194 + $0x38] sm:$0xff]
  %v3201 = vld [vmem:[%s3194 + $0x48] sm:$0xff]
  %v3202 = vld [vmem:[%s3194 + $0x50] sm:$0xff]
  %v3203 = vld [vmem:[%s3194 + $0x60] sm:$0xff]
  %v3204 = vld [vmem:[%s3194 + $0x68] sm:$0xff]
  %v3205 = vld [vmem:[%s3194 + $0x78] sm:$0xff]
  %v3206 = vld [vmem:[%s3194 + $0x80] sm:$0xff]
  %v3207 = vld [vmem:[%s3194 + $0x90] sm:$0xff]
  %v3208 = vld [vmem:[%s3194 + $0x98] sm:$0xff]
  %v3209 = vld [vmem:[%s3194 + $0xa8] sm:$0xff]
  %v3210 = vld [vmem:[%s3194 + $0xb0] sm:$0xff]
  %v3211 = vld [vmem:[%s3194 + $0xc0] sm:$0xff]
  %v3212 = vld [vmem:[%s3194 + $0xc8] sm:$0xff]
  %v3213 = vld [vmem:[%s3194 + $0xd8] sm:$0xff]
  %v3214 = vld [vmem:[%s3194 + $0xe0] sm:$0xff]
  %v3215 = vld [vmem:[%s3194 + $0xf0] sm:$0xff]
  %v3216 = vld [vmem:[%s3194 + $0xf8] sm:$0xff]
  %v3217 = vld [vmem:[%s3194 + $0x108] sm:$0xff]
  %v3218 = vld [vmem:[%s3194 + $0x110] sm:$0xff]
  %v3219 = vld [vmem:[%s3194 + $0x120] sm:$0xff]
  %v3220 = vld [vmem:[%s3194 + $0x128] sm:$0xff]
  %v3221 = vld [vmem:[%s3194 + $0x138] sm:$0xff]
  %v3222 = vld [vmem:[%s3194 + $0x140] sm:$0xff]
  %v3223 = vld [vmem:[%s3194 + $0x150] sm:$0xff]
  %v3224 = vld [vmem:[%s3194 + $0x158] sm:$0xff]
  %v3225 = vld [vmem:[%s3194 + $0x168] sm:$0xff]
  %v3226 = vld [vmem:[%s3194 + $0x170] sm:$0xff]
  %v3227 = vld [vmem:[%s3194 + $0x1b0] sm:$0xff]
  %v3228 = vld [vmem:[%s3194 + $0x1b8] sm:$0xff]
  %v3229 = vld [vmem:[%s3194 + $0x1c8] sm:$0xff]
  %v3230 = vld [vmem:[%s3194 + $0x1d0] sm:$0xff]
  %v3231 = vld [vmem:[%s3194 + $0x1e0] sm:$0xff]
  %v3232 = vld [vmem:[%s3194 + $0x1e8] sm:$0xff]
  %v3233 = vld [vmem:[%s3194 + $0x1f8] sm:$0xff]
  %v3234 = vld [vmem:[%s3194 + $0x200] sm:$0xff]
  %v3235 = vld [vmem:[%s3194 + $0x210] sm:$0xff]
  %v3236 = vld [vmem:[%s3194 + $0x218] sm:$0xff]
  %v3237 = vld [vmem:[%s3194 + $0x228] sm:$0xff]
  %v3238 = vld [vmem:[%s3194 + $0x230] sm:$0xff]
  %v3239 = vld [vmem:[%s3194 + $0x240] sm:$0xff]
  %v3240 = vld [vmem:[%s3194 + $0x248] sm:$0xff]
  %v3241 = vld [vmem:[%s3194 + $0x258] sm:$0xff]
  %v3242 = vld [vmem:[%s3194 + $0x260] sm:$0xff]
  %v3243 = vld [vmem:[%s3194 + $0x270] sm:$0xff]
  %v3244 = vld [vmem:[%s3194 + $0x278] sm:$0xff]
  %v3245 = vld [vmem:[%s3194 + $0x288] sm:$0xff]
  %v3246 = vld [vmem:[%s3194 + $0x290] sm:$0xff]
  %v3247 = vld [vmem:[%s3194 + $0x2a0] sm:$0xff]
  %v3248 = vld [vmem:[%s3194 + $0x2a8] sm:$0xff]
  %v3249 = vld [vmem:[%s3194 + $0x2b8] sm:$0xff]
  %v3250 = vld [vmem:[%s3194 + $0x2c0] sm:$0xff]
  %v3251 = vld [vmem:[%s3194 + $0x2d0] sm:$0xff]
  %v3252 = vld [vmem:[%s3194 + $0x2d8] sm:$0xff]
  %v3253 = vld [vmem:[%s3194 + $0x2e8] sm:$0xff]
  %v3254 = vld [vmem:[%s3194 + $0x2f0] sm:$0xff]
  %v3255 = vld [vmem:[%s3194 + $0x300] sm:$0xff]
  %v3256 = vld [vmem:[%s3194 + $0x308] sm:$0xff]
  %v3257 = vld [vmem:[%s3194 + $0x318] sm:$0xff]
  %v3258 = vld [vmem:[%s3194 + $0x320] sm:$0xff]
  %v3259 = vpack.c.bf16 %v3196, %v3195
  %v3260 = vpack.c.bf16 %v3198, %v3197
  %v3261 = vpack.c.bf16 %v3200, %v3199
  %v3262 = vpack.c.bf16 %v3202, %v3201
  %v3263 = vpack.c.bf16 %v3204, %v3203
  %v3264 = vpack.c.bf16 %v3206, %v3205
  %v3265 = vpack.c.bf16 %v3208, %v3207
  %v3266 = vpack.c.bf16 %v3210, %v3209
  %v3267 = vpack.c.bf16 %v3212, %v3211
  %v3268 = vpack.c.bf16 %v3214, %v3213
  %v3269 = vpack.c.bf16 %v3216, %v3215
  %v3270 = vpack.c.bf16 %v3218, %v3217
  %v3271 = vpack.c.bf16 %v3220, %v3219
  %v3272 = vpack.c.bf16 %v3222, %v3221
  %v3273 = vpack.c.bf16 %v3224, %v3223
  %v3274 = vpack.c.bf16 %v3226, %v3225
  %v3275 = vpack.c.bf16 %v3228, %v3227
  %v3276 = vpack.c.bf16 %v3230, %v3229
  %v3277 = vpack.c.bf16 %v3232, %v3231
  %v3278 = vpack.c.bf16 %v3234, %v3233
  %v3279 = vpack.c.bf16 %v3236, %v3235
  %v3280 = vpack.c.bf16 %v3238, %v3237
  %v3281 = vpack.c.bf16 %v3240, %v3239
  %v3282 = vpack.c.bf16 %v3242, %v3241
  %v3283 = vpack.c.bf16 %v3244, %v3243
  %v3284 = vpack.c.bf16 %v3246, %v3245
  %v3285 = vpack.c.bf16 %v3248, %v3247
  %v3286 = vpack.c.bf16 %v3250, %v3249
  %v3287 = vpack.c.bf16 %v3252, %v3251
  %v3288 = vpack.c.bf16 %v3254, %v3253
  %v3289 = vpack.c.bf16 %v3256, %v3255
  %v3290 = vpack.c.bf16 %v3258, %v3257
  %v3323 = vunpack.c.l.b16 %v3259
  %v3324 = vunpack.c.h.b16 %v3259
  %v3325 = vunpack.c.l.b16 %v3260
  %v3326 = vunpack.c.h.b16 %v3260
  %v3327 = vunpack.c.l.b16 %v3261
  %v3328 = vunpack.c.h.b16 %v3261
  %v3329 = vunpack.c.l.b16 %v3262
  %v3330 = vunpack.c.h.b16 %v3262
  %v3331 = vunpack.c.l.b16 %v3263
  %v3332 = vunpack.c.h.b16 %v3263
  %v3333 = vunpack.c.l.b16 %v3264
  %v3334 = vunpack.c.h.b16 %v3264
  %v3335 = vunpack.c.l.b16 %v3265
  %v3336 = vunpack.c.h.b16 %v3265
  %v3337 = vunpack.c.l.b16 %v3266
  %v3338 = vunpack.c.h.b16 %v3266
  %v3339 = vunpack.c.l.b16 %v3267
  %v3340 = vunpack.c.h.b16 %v3267
  %v3341 = vunpack.c.l.b16 %v3268
  %v3342 = vunpack.c.h.b16 %v3268
  %v3343 = vunpack.c.l.b16 %v3269
  %v3344 = vunpack.c.h.b16 %v3269
  %v3345 = vunpack.c.l.b16 %v3270
  %v3346 = vunpack.c.h.b16 %v3270
  %v3347 = vunpack.c.l.b16 %v3271
  %v3348 = vunpack.c.h.b16 %v3271
  %v3349 = vunpack.c.l.b16 %v3272
  %v3350 = vunpack.c.h.b16 %v3272
  %v3351 = vunpack.c.l.b16 %v3273
  %v3352 = vunpack.c.h.b16 %v3273
  %v3353 = vunpack.c.l.b16 %v3274
  %v3354 = vunpack.c.h.b16 %v3274
  %v3355 = vunpack.c.l.b16 %v3275
  %v3356 = vunpack.c.h.b16 %v3275
  %v3357 = vunpack.c.l.b16 %v3276
  %v3358 = vunpack.c.h.b16 %v3276
  %v3359 = vunpack.c.l.b16 %v3277
  %v3360 = vunpack.c.h.b16 %v3277
  %v3361 = vunpack.c.l.b16 %v3278
  %v3362 = vunpack.c.h.b16 %v3278
  %v3363 = vunpack.c.l.b16 %v3279
  %v3364 = vunpack.c.h.b16 %v3279
  %v3365 = vunpack.c.l.b16 %v3280
  %v3366 = vunpack.c.h.b16 %v3280
  %v3367 = vunpack.c.l.b16 %v3281
  %v3368 = vunpack.c.h.b16 %v3281
  %v3369 = vunpack.c.l.b16 %v3282
  %v3370 = vunpack.c.h.b16 %v3282
  %v3371 = vunpack.c.l.b16 %v3283
  %v3372 = vunpack.c.h.b16 %v3283
  %v3373 = vunpack.c.l.b16 %v3284
  %v3374 = vunpack.c.h.b16 %v3284
  %v3375 = vunpack.c.l.b16 %v3285
  %v3376 = vunpack.c.h.b16 %v3285
  %v3377 = vunpack.c.l.b16 %v3286
  %v3378 = vunpack.c.h.b16 %v3286
  %v3379 = vunpack.c.l.b16 %v3287
  %v3380 = vunpack.c.h.b16 %v3287
  %v3381 = vunpack.c.l.b16 %v3288
  %v3382 = vunpack.c.h.b16 %v3288
  %v3383 = vunpack.c.l.b16 %v3289
  %v3384 = vunpack.c.h.b16 %v3289
  %v3385 = vunpack.c.l.b16 %v3290
  %v3386 = vunpack.c.h.b16 %v3290
  %v3387 = vpack.c.b16 %v3323, %v3323
  %v3388 = vpack.c.b16 %v3324, %v3324
  %v3389 = vpack.c.b16 %v3325, %v3325
  %v3390 = vpack.c.b16 %v3326, %v3326
  %v3391 = vpack.c.b16 %v3327, %v3327
  %v3392 = vpack.c.b16 %v3328, %v3328
  %v3393 = vpack.c.b16 %v3329, %v3329
  %v3394 = vpack.c.b16 %v3330, %v3330
  %v3395 = vpack.c.b16 %v3331, %v3331
  %v3396 = vpack.c.b16 %v3332, %v3332
  %v3397 = vpack.c.b16 %v3333, %v3333
  %v3398 = vpack.c.b16 %v3334, %v3334
  %v3399 = vpack.c.b16 %v3335, %v3335
  %v3400 = vpack.c.b16 %v3336, %v3336
  %v3401 = vpack.c.b16 %v3337, %v3337
  %v3402 = vpack.c.b16 %v3338, %v3338
  %v3403 = vpack.c.b16 %v3339, %v3339
  %v3404 = vpack.c.b16 %v3340, %v3340
  %v3405 = vpack.c.b16 %v3341, %v3341
  %v3406 = vpack.c.b16 %v3342, %v3342
  %v3407 = vpack.c.b16 %v3343, %v3343
  %v3408 = vpack.c.b16 %v3344, %v3344
  %v3409 = vpack.c.b16 %v3345, %v3345
  %v3410 = vpack.c.b16 %v3346, %v3346
  %v3411 = vpack.c.b16 %v3347, %v3347
  %v3412 = vpack.c.b16 %v3348, %v3348
  %v3413 = vpack.c.b16 %v3349, %v3349
  %v3414 = vpack.c.b16 %v3350, %v3350
  %v3415 = vpack.c.b16 %v3351, %v3351
  %v3416 = vpack.c.b16 %v3352, %v3352
  %v3417 = vpack.c.b16 %v3353, %v3353
  %v3418 = vpack.c.b16 %v3354, %v3354
  %v3419 = vpack.c.b16 %v3355, %v3355
  %v3420 = vpack.c.b16 %v3356, %v3356
  %v3421 = vpack.c.b16 %v3357, %v3357
  %v3422 = vpack.c.b16 %v3358, %v3358
  %v3423 = vpack.c.b16 %v3359, %v3359
  %v3424 = vpack.c.b16 %v3360, %v3360
  %v3425 = vpack.c.b16 %v3361, %v3361
  %v3426 = vpack.c.b16 %v3362, %v3362
  %v3427 = vpack.c.b16 %v3363, %v3363
  %v3428 = vpack.c.b16 %v3364, %v3364
  %v3429 = vpack.c.b16 %v3365, %v3365
  %v3430 = vpack.c.b16 %v3366, %v3366
  %v3431 = vpack.c.b16 %v3367, %v3367
  %v3432 = vpack.c.b16 %v3368, %v3368
  %v3433 = vpack.c.b16 %v3369, %v3369
  %v3434 = vpack.c.b16 %v3370, %v3370
  %v3435 = vpack.c.b16 %v3371, %v3371
  %v3436 = vpack.c.b16 %v3372, %v3372
  %v3437 = vpack.c.b16 %v3373, %v3373
  %v3438 = vpack.c.b16 %v3374, %v3374
  %v3439 = vpack.c.b16 %v3375, %v3375
  %v3440 = vpack.c.b16 %v3376, %v3376
  %v3441 = vpack.c.b16 %v3377, %v3377
  %v3442 = vpack.c.b16 %v3378, %v3378
  %v3443 = vpack.c.b16 %v3379, %v3379
  %v3444 = vpack.c.b16 %v3380, %v3380
  %v3445 = vpack.c.b16 %v3381, %v3381
  %v3446 = vpack.c.b16 %v3382, %v3382
  %v3447 = vpack.c.b16 %v3383, %v3383
  %v3448 = vpack.c.b16 %v3384, %v3384
  %v3449 = vpack.c.b16 %v3385, %v3385
  %v3450 = vpack.c.b16 %v3386, %v3386
  %3451 = vrot.lane.b32.xlu0 %v3387, 48
  %v3452 = vpop.permute.xlu0 %3451
  %3453 = vrot.lane.b32.xlu0 %v3388, 48
  %v3454 = vpop.permute.xlu0 %3453
  %3455 = vrot.lane.b32.xlu0 %v3389, 48
  %v3456 = vpop.permute.xlu0 %3455
  %3457 = vrot.lane.b32.xlu0 %v3390, 48
  %v3458 = vpop.permute.xlu0 %3457
  %3459 = vrot.lane.b32.xlu0 %v3391, 48
  %v3460 = vpop.permute.xlu0 %3459
  %3461 = vrot.lane.b32.xlu0 %v3392, 48
  %v3462 = vpop.permute.xlu0 %3461
  %3463 = vrot.lane.b32.xlu0 %v3393, 48
  %v3464 = vpop.permute.xlu0 %3463
  %3465 = vrot.lane.b32.xlu0 %v3394, 48
  %v3466 = vpop.permute.xlu0 %3465
  %3467 = vrot.lane.b32.xlu0 %v3395, 48
  %v3468 = vpop.permute.xlu0 %3467
  %3469 = vrot.lane.b32.xlu0 %v3396, 48
  %v3470 = vpop.permute.xlu0 %3469
  %3471 = vrot.lane.b32.xlu0 %v3397, 48
  %v3472 = vpop.permute.xlu0 %3471
  %3473 = vrot.lane.b32.xlu0 %v3398, 48
  %v3474 = vpop.permute.xlu0 %3473
  %3475 = vrot.lane.b32.xlu0 %v3399, 48
  %v3476 = vpop.permute.xlu0 %3475
  %3477 = vrot.lane.b32.xlu0 %v3400, 48
  %v3478 = vpop.permute.xlu0 %3477
  %3479 = vrot.lane.b32.xlu0 %v3401, 48
  %v3480 = vpop.permute.xlu0 %3479
  %3481 = vrot.lane.b32.xlu0 %v3402, 48
  %v3482 = vpop.permute.xlu0 %3481
  %3483 = vrot.lane.b32.xlu0 %v3403, 48
  %v3484 = vpop.permute.xlu0 %3483
  %3485 = vrot.lane.b32.xlu0 %v3404, 48
  %v3486 = vpop.permute.xlu0 %3485
  %3487 = vrot.lane.b32.xlu0 %v3405, 48
  %v3488 = vpop.permute.xlu0 %3487
  %3489 = vrot.lane.b32.xlu0 %v3406, 48
  %v3490 = vpop.permute.xlu0 %3489
  %3491 = vrot.lane.b32.xlu0 %v3407, 48
  %v3492 = vpop.permute.xlu0 %3491
  %3493 = vrot.lane.b32.xlu0 %v3408, 48
  %v3494 = vpop.permute.xlu0 %3493
  %3495 = vrot.lane.b32.xlu0 %v3409, 48
  %v3496 = vpop.permute.xlu0 %3495
  %3497 = vrot.lane.b32.xlu0 %v3410, 48
  %v3498 = vpop.permute.xlu0 %3497
  %3499 = vrot.lane.b32.xlu0 %v3411, 48
  %v3500 = vpop.permute.xlu0 %3499
  %3501 = vrot.lane.b32.xlu0 %v3412, 48
  %v3502 = vpop.permute.xlu0 %3501
  %3503 = vrot.lane.b32.xlu0 %v3413, 48
  %v3504 = vpop.permute.xlu0 %3503
  %3505 = vrot.lane.b32.xlu0 %v3414, 48
  %v3506 = vpop.permute.xlu0 %3505
  %3507 = vrot.lane.b32.xlu0 %v3415, 48
  %v3508 = vpop.permute.xlu0 %3507
  %3509 = vrot.lane.b32.xlu0 %v3416, 48
  %v3510 = vpop.permute.xlu0 %3509
  %3511 = vrot.lane.b32.xlu0 %v3417, 48
  %v3512 = vpop.permute.xlu0 %3511
  %3513 = vrot.lane.b32.xlu0 %v3418, 48
  %v3514 = vpop.permute.xlu0 %3513
  %3515 = vrot.lane.b32.xlu0 %v3419, 48
  %v3516 = vpop.permute.xlu0 %3515
  %3517 = vrot.lane.b32.xlu0 %v3420, 48
  %v3518 = vpop.permute.xlu0 %3517
  %3519 = vrot.lane.b32.xlu0 %v3421, 48
  %v3520 = vpop.permute.xlu0 %3519
  %3521 = vrot.lane.b32.xlu0 %v3422, 48
  %v3522 = vpop.permute.xlu0 %3521
  %3523 = vrot.lane.b32.xlu0 %v3423, 48
  %v3524 = vpop.permute.xlu0 %3523
  %3525 = vrot.lane.b32.xlu0 %v3424, 48
  %v3526 = vpop.permute.xlu0 %3525
  %3527 = vrot.lane.b32.xlu0 %v3425, 48
  %v3528 = vpop.permute.xlu0 %3527
  %3529 = vrot.lane.b32.xlu0 %v3426, 48
  %v3530 = vpop.permute.xlu0 %3529
  %3531 = vrot.lane.b32.xlu0 %v3427, 48
  %v3532 = vpop.permute.xlu0 %3531
  %3533 = vrot.lane.b32.xlu0 %v3428, 48
  %v3534 = vpop.permute.xlu0 %3533
  %3535 = vrot.lane.b32.xlu0 %v3429, 48
  %v3536 = vpop.permute.xlu0 %3535
  %3537 = vrot.lane.b32.xlu0 %v3430, 48
  %v3538 = vpop.permute.xlu0 %3537
  %3539 = vrot.lane.b32.xlu0 %v3431, 48
  %v3540 = vpop.permute.xlu0 %3539
  %3541 = vrot.lane.b32.xlu0 %v3432, 48
  %v3542 = vpop.permute.xlu0 %3541
  %3543 = vrot.lane.b32.xlu0 %v3433, 48
  %v3544 = vpop.permute.xlu0 %3543
  %3545 = vrot.lane.b32.xlu0 %v3434, 48
  %v3546 = vpop.permute.xlu0 %3545
  %3547 = vrot.lane.b32.xlu0 %v3435, 48
  %v3548 = vpop.permute.xlu0 %3547
  %3549 = vrot.lane.b32.xlu0 %v3436, 48
  %v3550 = vpop.permute.xlu0 %3549
  %3551 = vrot.lane.b32.xlu0 %v3437, 48
  %v3552 = vpop.permute.xlu0 %3551
  %3553 = vrot.lane.b32.xlu0 %v3438, 48
  %v3554 = vpop.permute.xlu0 %3553
  %3555 = vrot.lane.b32.xlu0 %v3439, 48
  %v3556 = vpop.permute.xlu0 %3555
  %3557 = vrot.lane.b32.xlu0 %v3440, 48
  %v3558 = vpop.permute.xlu0 %3557
  %3559 = vrot.lane.b32.xlu0 %v3441, 48
  %v3560 = vpop.permute.xlu0 %3559
  %3561 = vrot.lane.b32.xlu0 %v3442, 48
  %v3562 = vpop.permute.xlu0 %3561
  %3563 = vrot.lane.b32.xlu0 %v3443, 48
  %v3564 = vpop.permute.xlu0 %3563
  %3565 = vrot.lane.b32.xlu0 %v3444, 48
  %v3566 = vpop.permute.xlu0 %3565
  %3567 = vrot.lane.b32.xlu0 %v3445, 48
  %v3568 = vpop.permute.xlu0 %3567
  %3569 = vrot.lane.b32.xlu0 %v3446, 48
  %v3570 = vpop.permute.xlu0 %3569
  %3571 = vrot.lane.b32.xlu0 %v3447, 48
  %v3572 = vpop.permute.xlu0 %3571
  %3573 = vrot.lane.b32.xlu0 %v3448, 48
  %v3574 = vpop.permute.xlu0 %3573
  %3575 = vrot.lane.b32.xlu0 %v3449, 48
  %v3576 = vpop.permute.xlu0 %3575
  %3577 = vrot.lane.b32.xlu0 %v3450, 48
  %v3578 = vpop.permute.xlu0 %3577
  %vm3643 = vcmask 454016
  %3644 = vst.msk [vmem:[#allocation3] sm:$0xf] %vm3643, %v3452
  %3645 = vst.msk [vmem:[#allocation3 + $0x4] sm:$0xf] %vm3643, %v3454
  %3646 = vst.msk [vmem:[#allocation3 + $0x8] sm:$0xf] %vm3643, %v3456
  %3647 = vst.msk [vmem:[#allocation3 + $0xc] sm:$0xf] %vm3643, %v3458
  %3648 = vst.msk [vmem:[#allocation3 + $0x10] sm:$0xf] %vm3643, %v3460
  %3649 = vst.msk [vmem:[#allocation3 + $0x14] sm:$0xf] %vm3643, %v3462
  %3650 = vst.msk [vmem:[#allocation3 + $0x18] sm:$0xf] %vm3643, %v3464
  %3651 = vst.msk [vmem:[#allocation3 + $0x1c] sm:$0xf] %vm3643, %v3466
  %3652 = vst.msk [vmem:[#allocation3 + $0x20] sm:$0xf] %vm3643, %v3468
  %3653 = vst.msk [vmem:[#allocation3 + $0x24] sm:$0xf] %vm3643, %v3470
  %3654 = vst.msk [vmem:[#allocation3 + $0x28] sm:$0xf] %vm3643, %v3472
  %3655 = vst.msk [vmem:[#allocation3 + $0x2c] sm:$0xf] %vm3643, %v3474
  %3656 = vst.msk [vmem:[#allocation3 + $0x30] sm:$0xf] %vm3643, %v3476
  %3657 = vst.msk [vmem:[#allocation3 + $0x34] sm:$0xf] %vm3643, %v3478
  %3658 = vst.msk [vmem:[#allocation3 + $0x38] sm:$0xf] %vm3643, %v3480
  %3659 = vst.msk [vmem:[#allocation3 + $0x3c] sm:$0xf] %vm3643, %v3482
  %3660 = vst.msk [vmem:[#allocation3 + $0x40] sm:$0xf] %vm3643, %v3484
  %3661 = vst.msk [vmem:[#allocation3 + $0x44] sm:$0xf] %vm3643, %v3486
  %3662 = vst.msk [vmem:[#allocation3 + $0x48] sm:$0xf] %vm3643, %v3488
  %3663 = vst.msk [vmem:[#allocation3 + $0x4c] sm:$0xf] %vm3643, %v3490
  %3664 = vst.msk [vmem:[#allocation3 + $0x50] sm:$0xf] %vm3643, %v3492
  %3665 = vst.msk [vmem:[#allocation3 + $0x54] sm:$0xf] %vm3643, %v3494
  %3666 = vst.msk [vmem:[#allocation3 + $0x58] sm:$0xf] %vm3643, %v3496
  %3667 = vst.msk [vmem:[#allocation3 + $0x5c] sm:$0xf] %vm3643, %v3498
  %3668 = vst.msk [vmem:[#allocation3 + $0x60] sm:$0xf] %vm3643, %v3500
  %3669 = vst.msk [vmem:[#allocation3 + $0x64] sm:$0xf] %vm3643, %v3502
  %3670 = vst.msk [vmem:[#allocation3 + $0x68] sm:$0xf] %vm3643, %v3504
  %3671 = vst.msk [vmem:[#allocation3 + $0x6c] sm:$0xf] %vm3643, %v3506
  %3672 = vst.msk [vmem:[#allocation3 + $0x70] sm:$0xf] %vm3643, %v3508
  %3673 = vst.msk [vmem:[#allocation3 + $0x74] sm:$0xf] %vm3643, %v3510
  %3674 = vst.msk [vmem:[#allocation3 + $0x78] sm:$0xf] %vm3643, %v3512
  %3675 = vst.msk [vmem:[#allocation3 + $0x7c] sm:$0xf] %vm3643, %v3514
  %3676 = vst.msk [vmem:[#allocation3 + $0x80] sm:$0xf] %vm3643, %v3516
  %3677 = vst.msk [vmem:[#allocation3 + $0x84] sm:$0xf] %vm3643, %v3518
  %3678 = vst.msk [vmem:[#allocation3 + $0x88] sm:$0xf] %vm3643, %v3520
  %3679 = vst.msk [vmem:[#allocation3 + $0x8c] sm:$0xf] %vm3643, %v3522
  %3680 = vst.msk [vmem:[#allocation3 + $0x90] sm:$0xf] %vm3643, %v3524
  %3681 = vst.msk [vmem:[#allocation3 + $0x94] sm:$0xf] %vm3643, %v3526
  %3682 = vst.msk [vmem:[#allocation3 + $0x98] sm:$0xf] %vm3643, %v3528
  %3683 = vst.msk [vmem:[#allocation3 + $0x9c] sm:$0xf] %vm3643, %v3530
  %3684 = vst.msk [vmem:[#allocation3 + $0xa0] sm:$0xf] %vm3643, %v3532
  %3685 = vst.msk [vmem:[#allocation3 + $0xa4] sm:$0xf] %vm3643, %v3534
  %3686 = vst.msk [vmem:[#allocation3 + $0xa8] sm:$0xf] %vm3643, %v3536
  %3687 = vst.msk [vmem:[#allocation3 + $0xac] sm:$0xf] %vm3643, %v3538
  %3688 = vst.msk [vmem:[#allocation3 + $0xb0] sm:$0xf] %vm3643, %v3540
  %3689 = vst.msk [vmem:[#allocation3 + $0xb4] sm:$0xf] %vm3643, %v3542
  %3690 = vst.msk [vmem:[#allocation3 + $0xb8] sm:$0xf] %vm3643, %v3544
  %3691 = vst.msk [vmem:[#allocation3 + $0xbc] sm:$0xf] %vm3643, %v3546
  %3692 = vst.msk [vmem:[#allocation3 + $0xc0] sm:$0xf] %vm3643, %v3548
  %3693 = vst.msk [vmem:[#allocation3 + $0xc4] sm:$0xf] %vm3643, %v3550
  %3694 = vst.msk [vmem:[#allocation3 + $0xc8] sm:$0xf] %vm3643, %v3552
  %3695 = vst.msk [vmem:[#allocation3 + $0xcc] sm:$0xf] %vm3643, %v3554
  %3696 = vst.msk [vmem:[#allocation3 + $0xd0] sm:$0xf] %vm3643, %v3556
  %3697 = vst.msk [vmem:[#allocation3 + $0xd4] sm:$0xf] %vm3643, %v3558
  %3698 = vst.msk [vmem:[#allocation3 + $0xd8] sm:$0xf] %vm3643, %v3560
  %3699 = vst.msk [vmem:[#allocation3 + $0xdc] sm:$0xf] %vm3643, %v3562
  %3700 = vst.msk [vmem:[#allocation3 + $0xe0] sm:$0xf] %vm3643, %v3564
  %3701 = vst.msk [vmem:[#allocation3 + $0xe4] sm:$0xf] %vm3643, %v3566
  %3702 = vst.msk [vmem:[#allocation3 + $0xe8] sm:$0xf] %vm3643, %v3568
  %3703 = vst.msk [vmem:[#allocation3 + $0xec] sm:$0xf] %vm3643, %v3570
  %3704 = vst.msk [vmem:[#allocation3 + $0xf0] sm:$0xf] %vm3643, %v3572
  %3705 = vst.msk [vmem:[#allocation3 + $0xf4] sm:$0xf] %vm3643, %v3574
  %3706 = vst.msk [vmem:[#allocation3 + $0xf8] sm:$0xf] %vm3643, %v3576
  %3707 = vst.msk [vmem:[#allocation3 + $0xfc] sm:$0xf] %vm3643, %v3578
  %v3708 = vld [vmem:[%s3194 + $0x1] sm:$0xff]
  %v3709 = vld [vmem:[%s3194 + $0x9] sm:$0xff]
  %v3710 = vld [vmem:[%s3194 + $0x19] sm:$0xff]
  %v3711 = vld [vmem:[%s3194 + $0x21] sm:$0xff]
  %v3712 = vld [vmem:[%s3194 + $0x31] sm:$0xff]
  %v3713 = vld [vmem:[%s3194 + $0x39] sm:$0xff]
  %v3714 = vld [vmem:[%s3194 + $0x49] sm:$0xff]
  %v3715 = vld [vmem:[%s3194 + $0x51] sm:$0xff]
  %v3716 = vld [vmem:[%s3194 + $0x61] sm:$0xff]
  %v3717 = vld [vmem:[%s3194 + $0x69] sm:$0xff]
  %v3718 = vld [vmem:[%s3194 + $0x79] sm:$0xff]
  %v3719 = vld [vmem:[%s3194 + $0x81] sm:$0xff]
  %v3720 = vld [vmem:[%s3194 + $0x91] sm:$0xff]
  %v3721 = vld [vmem:[%s3194 + $0x99] sm:$0xff]
  %v3722 = vld [vmem:[%s3194 + $0xa9] sm:$0xff]
  %v3723 = vld [vmem:[%s3194 + $0xb1] sm:$0xff]
  %v3724 = vld [vmem:[%s3194 + $0xc1] sm:$0xff]
  %v3725 = vld [vmem:[%s3194 + $0xc9] sm:$0xff]
  %v3726 = vld [vmem:[%s3194 + $0xd9] sm:$0xff]
  %v3727 = vld [vmem:[%s3194 + $0xe1] sm:$0xff]
  %v3728 = vld [vmem:[%s3194 + $0xf1] sm:$0xff]
  %v3729 = vld [vmem:[%s3194 + $0xf9] sm:$0xff]
  %v3730 = vld [vmem:[%s3194 + $0x109] sm:$0xff]
  %v3731 = vld [vmem:[%s3194 + $0x111] sm:$0xff]
  %v3732 = vld [vmem:[%s3194 + $0x121] sm:$0xff]
  %v3733 = vld [vmem:[%s3194 + $0x129] sm:$0xff]
  %v3734 = vld [vmem:[%s3194 + $0x139] sm:$0xff]
  %v3735 = vld [vmem:[%s3194 + $0x141] sm:$0xff]
  %v3736 = vld [vmem:[%s3194 + $0x151] sm:$0xff]
  %v3737 = vld [vmem:[%s3194 + $0x159] sm:$0xff]
  %v3738 = vld [vmem:[%s3194 + $0x169] sm:$0xff]
  %v3739 = vld [vmem:[%s3194 + $0x171] sm:$0xff]
  %v3740 = vld [vmem:[%s3194 + $0x1b1] sm:$0xff]
  %v3741 = vld [vmem:[%s3194 + $0x1b9] sm:$0xff]
  %v3742 = vld [vmem:[%s3194 + $0x1c9] sm:$0xff]
  %v3743 = vld [vmem:[%s3194 + $0x1d1] sm:$0xff]
  %v3744 = vld [vmem:[%s3194 + $0x1e1] sm:$0xff]
  %v3745 = vld [vmem:[%s3194 + $0x1e9] sm:$0xff]
  %v3746 = vld [vmem:[%s3194 + $0x1f9] sm:$0xff]
  %v3747 = vld [vmem:[%s3194 + $0x201] sm:$0xff]
  %v3748 = vld [vmem:[%s3194 + $0x211] sm:$0xff]
  %v3749 = vld [vmem:[%s3194 + $0x219] sm:$0xff]
  %v3750 = vld [vmem:[%s3194 + $0x229] sm:$0xff]
  %v3751 = vld [vmem:[%s3194 + $0x231] sm:$0xff]
  %v3752 = vld [vmem:[%s3194 + $0x241] sm:$0xff]
  %v3753 = vld [vmem:[%s3194 + $0x249] sm:$0xff]
  %v3754 = vld [vmem:[%s3194 + $0x259] sm:$0xff]
  %v3755 = vld [vmem:[%s3194 + $0x261] sm:$0xff]
  %v3756 = vld [vmem:[%s3194 + $0x271] sm:$0xff]
  %v3757 = vld [vmem:[%s3194 + $0x279] sm:$0xff]
  %v3758 = vld [vmem:[%s3194 + $0x289] sm:$0xff]
  %v3759 = vld [vmem:[%s3194 + $0x291] sm:$0xff]
  %v3760 = vld [vmem:[%s3194 + $0x2a1] sm:$0xff]
  %v3761 = vld [vmem:[%s3194 + $0x2a9] sm:$0xff]
  %v3762 = vld [vmem:[%s3194 + $0x2b9] sm:$0xff]
  %v3763 = vld [vmem:[%s3194 + $0x2c1] sm:$0xff]
  %v3764 = vld [vmem:[%s3194 + $0x2d1] sm:$0xff]
  %v3765 = vld [vmem:[%s3194 + $0x2d9] sm:$0xff]
  %v3766 = vld [vmem:[%s3194 + $0x2e9] sm:$0xff]
  %v3767 = vld [vmem:[%s3194 + $0x2f1] sm:$0xff]
  %v3768 = vld [vmem:[%s3194 + $0x301] sm:$0xff]
  %v3769 = vld [vmem:[%s3194 + $0x309] sm:$0xff]
  %v3770 = vld [vmem:[%s3194 + $0x319] sm:$0xff]
  %v3771 = vld [vmem:[%s3194 + $0x321] sm:$0xff]
  %v3772 = vpack.c.bf16 %v3709, %v3708
  %v3773 = vpack.c.bf16 %v3711, %v3710
  %v3774 = vpack.c.bf16 %v3713, %v3712
  %v3775 = vpack.c.bf16 %v3715, %v3714
  %v3776 = vpack.c.bf16 %v3717, %v3716
  %v3777 = vpack.c.bf16 %v3719, %v3718
  %v3778 = vpack.c.bf16 %v3721, %v3720
  %v3779 = vpack.c.bf16 %v3723, %v3722
  %v3780 = vpack.c.bf16 %v3725, %v3724
  %v3781 = vpack.c.bf16 %v3727, %v3726
  %v3782 = vpack.c.bf16 %v3729, %v3728
  %v3783 = vpack.c.bf16 %v3731, %v3730
  %v3784 = vpack.c.bf16 %v3733, %v3732
  %v3785 = vpack.c.bf16 %v3735, %v3734
  %v3786 = vpack.c.bf16 %v3737, %v3736
  %v3787 = vpack.c.bf16 %v3739, %v3738
  %v3788 = vpack.c.bf16 %v3741, %v3740
  %v3789 = vpack.c.bf16 %v3743, %v3742
  %v3790 = vpack.c.bf16 %v3745, %v3744
  %v3791 = vpack.c.bf16 %v3747, %v3746
  %v3792 = vpack.c.bf16 %v3749, %v3748
  %v3793 = vpack.c.bf16 %v3751, %v3750
  %v3794 = vpack.c.bf16 %v3753, %v3752
  %v3795 = vpack.c.bf16 %v3755, %v3754
  %v3796 = vpack.c.bf16 %v3757, %v3756
  %v3797 = vpack.c.bf16 %v3759, %v3758
  %v3798 = vpack.c.bf16 %v3761, %v3760
  %v3799 = vpack.c.bf16 %v3763, %v3762
  %v3800 = vpack.c.bf16 %v3765, %v3764
  %v3801 = vpack.c.bf16 %v3767, %v3766
  %v3802 = vpack.c.bf16 %v3769, %v3768
  %v3803 = vpack.c.bf16 %v3771, %v3770
  %v3836 = vunpack.c.l.b16 %v3772
  %v3837 = vunpack.c.h.b16 %v3772
  %v3838 = vunpack.c.l.b16 %v3773
  %v3839 = vunpack.c.h.b16 %v3773
  %v3840 = vunpack.c.l.b16 %v3774
  %v3841 = vunpack.c.h.b16 %v3774
  %v3842 = vunpack.c.l.b16 %v3775
  %v3843 = vunpack.c.h.b16 %v3775
  %v3844 = vunpack.c.l.b16 %v3776
  %v3845 = vunpack.c.h.b16 %v3776
  %v3846 = vunpack.c.l.b16 %v3777
  %v3847 = vunpack.c.h.b16 %v3777
  %v3848 = vunpack.c.l.b16 %v3778
  %v3849 = vunpack.c.h.b16 %v3778
  %v3850 = vunpack.c.l.b16 %v3779
  %v3851 = vunpack.c.h.b16 %v3779
  %v3852 = vunpack.c.l.b16 %v3780
  %v3853 = vunpack.c.h.b16 %v3780
  %v3854 = vunpack.c.l.b16 %v3781
  %v3855 = vunpack.c.h.b16 %v3781
  %v3856 = vunpack.c.l.b16 %v3782
  %v3857 = vunpack.c.h.b16 %v3782
  %v3858 = vunpack.c.l.b16 %v3783
  %v3859 = vunpack.c.h.b16 %v3783
  %v3860 = vunpack.c.l.b16 %v3784
  %v3861 = vunpack.c.h.b16 %v3784
  %v3862 = vunpack.c.l.b16 %v3785
  %v3863 = vunpack.c.h.b16 %v3785
  %v3864 = vunpack.c.l.b16 %v3786
  %v3865 = vunpack.c.h.b16 %v3786
  %v3866 = vunpack.c.l.b16 %v3787
  %v3867 = vunpack.c.h.b16 %v3787
  %v3868 = vunpack.c.l.b16 %v3788
  %v3869 = vunpack.c.h.b16 %v3788
  %v3870 = vunpack.c.l.b16 %v3789
  %v3871 = vunpack.c.h.b16 %v3789
  %v3872 = vunpack.c.l.b16 %v3790
  %v3873 = vunpack.c.h.b16 %v3790
  %v3874 = vunpack.c.l.b16 %v3791
  %v3875 = vunpack.c.h.b16 %v3791
  %v3876 = vunpack.c.l.b16 %v3792
  %v3877 = vunpack.c.h.b16 %v3792
  %v3878 = vunpack.c.l.b16 %v3793
  %v3879 = vunpack.c.h.b16 %v3793
  %v3880 = vunpack.c.l.b16 %v3794
  %v3881 = vunpack.c.h.b16 %v3794
  %v3882 = vunpack.c.l.b16 %v3795
  %v3883 = vunpack.c.h.b16 %v3795
  %v3884 = vunpack.c.l.b16 %v3796
  %v3885 = vunpack.c.h.b16 %v3796
  %v3886 = vunpack.c.l.b16 %v3797
  %v3887 = vunpack.c.h.b16 %v3797
  %v3888 = vunpack.c.l.b16 %v3798
  %v3889 = vunpack.c.h.b16 %v3798
  %v3890 = vunpack.c.l.b16 %v3799
  %v3891 = vunpack.c.h.b16 %v3799
  %v3892 = vunpack.c.l.b16 %v3800
  %v3893 = vunpack.c.h.b16 %v3800
  %v3894 = vunpack.c.l.b16 %v3801
  %v3895 = vunpack.c.h.b16 %v3801
  %v3896 = vunpack.c.l.b16 %v3802
  %v3897 = vunpack.c.h.b16 %v3802
  %v3898 = vunpack.c.l.b16 %v3803
  %v3899 = vunpack.c.h.b16 %v3803
  %v3900 = vpack.c.b16 %v3836, %v3836
  %v3901 = vpack.c.b16 %v3837, %v3837
  %v3902 = vpack.c.b16 %v3838, %v3838
  %v3903 = vpack.c.b16 %v3839, %v3839
  %v3904 = vpack.c.b16 %v3840, %v3840
  %v3905 = vpack.c.b16 %v3841, %v3841
  %v3906 = vpack.c.b16 %v3842, %v3842
  %v3907 = vpack.c.b16 %v3843, %v3843
  %v3908 = vpack.c.b16 %v3844, %v3844
  %v3909 = vpack.c.b16 %v3845, %v3845
  %v3910 = vpack.c.b16 %v3846, %v3846
  %v3911 = vpack.c.b16 %v3847, %v3847
  %v3912 = vpack.c.b16 %v3848, %v3848
  %v3913 = vpack.c.b16 %v3849, %v3849
  %v3914 = vpack.c.b16 %v3850, %v3850
  %v3915 = vpack.c.b16 %v3851, %v3851
  %v3916 = vpack.c.b16 %v3852, %v3852
  %v3917 = vpack.c.b16 %v3853, %v3853
  %v3918 = vpack.c.b16 %v3854, %v3854
  %v3919 = vpack.c.b16 %v3855, %v3855
  %v3920 = vpack.c.b16 %v3856, %v3856
  %v3921 = vpack.c.b16 %v3857, %v3857
  %v3922 = vpack.c.b16 %v3858, %v3858
  %v3923 = vpack.c.b16 %v3859, %v3859
  %v3924 = vpack.c.b16 %v3860, %v3860
  %v3925 = vpack.c.b16 %v3861, %v3861
  %v3926 = vpack.c.b16 %v3862, %v3862
  %v3927 = vpack.c.b16 %v3863, %v3863
  %v3928 = vpack.c.b16 %v3864, %v3864
  %v3929 = vpack.c.b16 %v3865, %v3865
  %v3930 = vpack.c.b16 %v3866, %v3866
  %v3931 = vpack.c.b16 %v3867, %v3867
  %v3932 = vpack.c.b16 %v3868, %v3868
  %v3933 = vpack.c.b16 %v3869, %v3869
  %v3934 = vpack.c.b16 %v3870, %v3870
  %v3935 = vpack.c.b16 %v3871, %v3871
  %v3936 = vpack.c.b16 %v3872, %v3872
  %v3937 = vpack.c.b16 %v3873, %v3873
  %v3938 = vpack.c.b16 %v3874, %v3874
  %v3939 = vpack.c.b16 %v3875, %v3875
  %v3940 = vpack.c.b16 %v3876, %v3876
  %v3941 = vpack.c.b16 %v3877, %v3877
  %v3942 = vpack.c.b16 %v3878, %v3878
  %v3943 = vpack.c.b16 %v3879, %v3879
  %v3944 = vpack.c.b16 %v3880, %v3880
  %v3945 = vpack.c.b16 %v3881, %v3881
  %v3946 = vpack.c.b16 %v3882, %v3882
  %v3947 = vpack.c.b16 %v3883, %v3883
  %v3948 = vpack.c.b16 %v3884, %v3884
  %v3949 = vpack.c.b16 %v3885, %v3885
  %v3950 = vpack.c.b16 %v3886, %v3886
  %v3951 = vpack.c.b16 %v3887, %v3887
  %v3952 = vpack.c.b16 %v3888, %v3888
  %v3953 = vpack.c.b16 %v3889, %v3889
  %v3954 = vpack.c.b16 %v3890, %v3890
  %v3955 = vpack.c.b16 %v3891, %v3891
  %v3956 = vpack.c.b16 %v3892, %v3892
  %v3957 = vpack.c.b16 %v3893, %v3893
  %v3958 = vpack.c.b16 %v3894, %v3894
  %v3959 = vpack.c.b16 %v3895, %v3895
  %v3960 = vpack.c.b16 %v3896, %v3896
  %v3961 = vpack.c.b16 %v3897, %v3897
  %v3962 = vpack.c.b16 %v3898, %v3898
  %v3963 = vpack.c.b16 %v3899, %v3899
  %3964 = vrot.lane.b32.xlu0 %v3900, 56
  %v3965 = vpop.permute.xlu0 %3964
  %3966 = vrot.lane.b32.xlu0 %v3901, 56
  %v3967 = vpop.permute.xlu0 %3966
  %3968 = vrot.lane.b32.xlu0 %v3902, 56
  %v3969 = vpop.permute.xlu0 %3968
  %3970 = vrot.lane.b32.xlu0 %v3903, 56
  %v3971 = vpop.permute.xlu0 %3970
  %3972 = vrot.lane.b32.xlu0 %v3904, 56
  %v3973 = vpop.permute.xlu0 %3972
  %3974 = vrot.lane.b32.xlu0 %v3905, 56
  %v3975 = vpop.permute.xlu0 %3974
  %3976 = vrot.lane.b32.xlu0 %v3906, 56
  %v3977 = vpop.permute.xlu0 %3976
  %3978 = vrot.lane.b32.xlu0 %v3907, 56
  %v3979 = vpop.permute.xlu0 %3978
  %3980 = vrot.lane.b32.xlu0 %v3908, 56
  %v3981 = vpop.permute.xlu0 %3980
  %3982 = vrot.lane.b32.xlu0 %v3909, 56
  %v3983 = vpop.permute.xlu0 %3982
  %3984 = vrot.lane.b32.xlu0 %v3910, 56
  %v3985 = vpop.permute.xlu0 %3984
  %3986 = vrot.lane.b32.xlu0 %v3911, 56
  %v3987 = vpop.permute.xlu0 %3986
  %3988 = vrot.lane.b32.xlu0 %v3912, 56
  %v3989 = vpop.permute.xlu0 %3988
  %3990 = vrot.lane.b32.xlu0 %v3913, 56
  %v3991 = vpop.permute.xlu0 %3990
  %3992 = vrot.lane.b32.xlu0 %v3914, 56
  %v3993 = vpop.permute.xlu0 %3992
  %3994 = vrot.lane.b32.xlu0 %v3915, 56
  %v3995 = vpop.permute.xlu0 %3994
  %3996 = vrot.lane.b32.xlu0 %v3916, 56
  %v3997 = vpop.permute.xlu0 %3996
  %3998 = vrot.lane.b32.xlu0 %v3917, 56
  %v3999 = vpop.permute.xlu0 %3998
  %4000 = vrot.lane.b32.xlu0 %v3918, 56
  %v4001 = vpop.permute.xlu0 %4000
  %4002 = vrot.lane.b32.xlu0 %v3919, 56
  %v4003 = vpop.permute.xlu0 %4002
  %4004 = vrot.lane.b32.xlu0 %v3920, 56
  %v4005 = vpop.permute.xlu0 %4004
  %4006 = vrot.lane.b32.xlu0 %v3921, 56
  %v4007 = vpop.permute.xlu0 %4006
  %4008 = vrot.lane.b32.xlu0 %v3922, 56
  %v4009 = vpop.permute.xlu0 %4008
  %4010 = vrot.lane.b32.xlu0 %v3923, 56
  %v4011 = vpop.permute.xlu0 %4010
  %4012 = vrot.lane.b32.xlu0 %v3924, 56
  %v4013 = vpop.permute.xlu0 %4012
  %4014 = vrot.lane.b32.xlu0 %v3925, 56
  %v4015 = vpop.permute.xlu0 %4014
  %4016 = vrot.lane.b32.xlu0 %v3926, 56
  %v4017 = vpop.permute.xlu0 %4016
  %4018 = vrot.lane.b32.xlu0 %v3927, 56
  %v4019 = vpop.permute.xlu0 %4018
  %4020 = vrot.lane.b32.xlu0 %v3928, 56
  %v4021 = vpop.permute.xlu0 %4020
  %4022 = vrot.lane.b32.xlu0 %v3929, 56
  %v4023 = vpop.permute.xlu0 %4022
  %4024 = vrot.lane.b32.xlu0 %v3930, 56
  %v4025 = vpop.permute.xlu0 %4024
  %4026 = vrot.lane.b32.xlu0 %v3931, 56
  %v4027 = vpop.permute.xlu0 %4026
  %4028 = vrot.lane.b32.xlu0 %v3932, 56
  %v4029 = vpop.permute.xlu0 %4028
  %4030 = vrot.lane.b32.xlu0 %v3933, 56
  %v4031 = vpop.permute.xlu0 %4030
  %4032 = vrot.lane.b32.xlu0 %v3934, 56
  %v4033 = vpop.permute.xlu0 %4032
  %4034 = vrot.lane.b32.xlu0 %v3935, 56
  %v4035 = vpop.permute.xlu0 %4034
  %4036 = vrot.lane.b32.xlu0 %v3936, 56
  %v4037 = vpop.permute.xlu0 %4036
  %4038 = vrot.lane.b32.xlu0 %v3937, 56
  %v4039 = vpop.permute.xlu0 %4038
  %4040 = vrot.lane.b32.xlu0 %v3938, 56
  %v4041 = vpop.permute.xlu0 %4040
  %4042 = vrot.lane.b32.xlu0 %v3939, 56
  %v4043 = vpop.permute.xlu0 %4042
  %4044 = vrot.lane.b32.xlu0 %v3940, 56
  %v4045 = vpop.permute.xlu0 %4044
  %4046 = vrot.lane.b32.xlu0 %v3941, 56
  %v4047 = vpop.permute.xlu0 %4046
  %4048 = vrot.lane.b32.xlu0 %v3942, 56
  %v4049 = vpop.permute.xlu0 %4048
  %4050 = vrot.lane.b32.xlu0 %v3943, 56
  %v4051 = vpop.permute.xlu0 %4050
  %4052 = vrot.lane.b32.xlu0 %v3944, 56
  %v4053 = vpop.permute.xlu0 %4052
  %4054 = vrot.lane.b32.xlu0 %v3945, 56
  %v4055 = vpop.permute.xlu0 %4054
  %4056 = vrot.lane.b32.xlu0 %v3946, 56
  %v4057 = vpop.permute.xlu0 %4056
  %4058 = vrot.lane.b32.xlu0 %v3947, 56
  %v4059 = vpop.permute.xlu0 %4058
  %4060 = vrot.lane.b32.xlu0 %v3948, 56
  %v4061 = vpop.permute.xlu0 %4060
  %4062 = vrot.lane.b32.xlu0 %v3949, 56
  %v4063 = vpop.permute.xlu0 %4062
  %4064 = vrot.lane.b32.xlu0 %v3950, 56
  %v4065 = vpop.permute.xlu0 %4064
  %4066 = vrot.lane.b32.xlu0 %v3951, 56
  %v4067 = vpop.permute.xlu0 %4066
  %4068 = vrot.lane.b32.xlu0 %v3952, 56
  %v4069 = vpop.permute.xlu0 %4068
  %4070 = vrot.lane.b32.xlu0 %v3953, 56
  %v4071 = vpop.permute.xlu0 %4070
  %4072 = vrot.lane.b32.xlu0 %v3954, 56
  %v4073 = vpop.permute.xlu0 %4072
  %4074 = vrot.lane.b32.xlu0 %v3955, 56
  %v4075 = vpop.permute.xlu0 %4074
  %4076 = vrot.lane.b32.xlu0 %v3956, 56
  %v4077 = vpop.permute.xlu0 %4076
  %4078 = vrot.lane.b32.xlu0 %v3957, 56
  %v4079 = vpop.permute.xlu0 %4078
  %4080 = vrot.lane.b32.xlu0 %v3958, 56
  %v4081 = vpop.permute.xlu0 %4080
  %4082 = vrot.lane.b32.xlu0 %v3959, 56
  %v4083 = vpop.permute.xlu0 %4082
  %4084 = vrot.lane.b32.xlu0 %v3960, 56
  %v4085 = vpop.permute.xlu0 %4084
  %4086 = vrot.lane.b32.xlu0 %v3961, 56
  %v4087 = vpop.permute.xlu0 %4086
  %4088 = vrot.lane.b32.xlu0 %v3962, 56
  %v4089 = vpop.permute.xlu0 %4088
  %4090 = vrot.lane.b32.xlu0 %v3963, 56
  %v4091 = vpop.permute.xlu0 %4090
  %vm4156 = vcmask 519616
  %4157 = vst.msk [vmem:[#allocation3] sm:$0xf] %vm4156, %v3965
  %4158 = vst.msk [vmem:[#allocation3 + $0x4] sm:$0xf] %vm4156, %v3967
  %4159 = vst.msk [vmem:[#allocation3 + $0x8] sm:$0xf] %vm4156, %v3969
  %4160 = vst.msk [vmem:[#allocation3 + $0xc] sm:$0xf] %vm4156, %v3971
  %4161 = vst.msk [vmem:[#allocation3 + $0x10] sm:$0xf] %vm4156, %v3973
  %4162 = vst.msk [vmem:[#allocation3 + $0x14] sm:$0xf] %vm4156, %v3975
  %4163 = vst.msk [vmem:[#allocation3 + $0x18] sm:$0xf] %vm4156, %v3977
  %4164 = vst.msk [vmem:[#allocation3 + $0x1c] sm:$0xf] %vm4156, %v3979
  %4165 = vst.msk [vmem:[#allocation3 + $0x20] sm:$0xf] %vm4156, %v3981
  %4166 = vst.msk [vmem:[#allocation3 + $0x24] sm:$0xf] %vm4156, %v3983
  %4167 = vst.msk [vmem:[#allocation3 + $0x28] sm:$0xf] %vm4156, %v3985
  %4168 = vst.msk [vmem:[#allocation3 + $0x2c] sm:$0xf] %vm4156, %v3987
  %4169 = vst.msk [vmem:[#allocation3 + $0x30] sm:$0xf] %vm4156, %v3989
  %4170 = vst.msk [vmem:[#allocation3 + $0x34] sm:$0xf] %vm4156, %v3991
  %4171 = vst.msk [vmem:[#allocation3 + $0x38] sm:$0xf] %vm4156, %v3993
  %4172 = vst.msk [vmem:[#allocation3 + $0x3c] sm:$0xf] %vm4156, %v3995
  %4173 = vst.msk [vmem:[#allocation3 + $0x40] sm:$0xf] %vm4156, %v3997
  %4174 = vst.msk [vmem:[#allocation3 + $0x44] sm:$0xf] %vm4156, %v3999
  %4175 = vst.msk [vmem:[#allocation3 + $0x48] sm:$0xf] %vm4156, %v4001
  %4176 = vst.msk [vmem:[#allocation3 + $0x4c] sm:$0xf] %vm4156, %v4003
  %4177 = vst.msk [vmem:[#allocation3 + $0x50] sm:$0xf] %vm4156, %v4005
  %4178 = vst.msk [vmem:[#allocation3 + $0x54] sm:$0xf] %vm4156, %v4007
  %4179 = vst.msk [vmem:[#allocation3 + $0x58] sm:$0xf] %vm4156, %v4009
  %4180 = vst.msk [vmem:[#allocation3 + $0x5c] sm:$0xf] %vm4156, %v4011
  %4181 = vst.msk [vmem:[#allocation3 + $0x60] sm:$0xf] %vm4156, %v4013
  %4182 = vst.msk [vmem:[#allocation3 + $0x64] sm:$0xf] %vm4156, %v4015
  %4183 = vst.msk [vmem:[#allocation3 + $0x68] sm:$0xf] %vm4156, %v4017
  %4184 = vst.msk [vmem:[#allocation3 + $0x6c] sm:$0xf] %vm4156, %v4019
  %4185 = vst.msk [vmem:[#allocation3 + $0x70] sm:$0xf] %vm4156, %v4021
  %4186 = vst.msk [vmem:[#allocation3 + $0x74] sm:$0xf] %vm4156, %v4023
  %4187 = vst.msk [vmem:[#allocation3 + $0x78] sm:$0xf] %vm4156, %v4025
  %4188 = vst.msk [vmem:[#allocation3 + $0x7c] sm:$0xf] %vm4156, %v4027
  %4189 = vst.msk [vmem:[#allocation3 + $0x80] sm:$0xf] %vm4156, %v4029
  %4190 = vst.msk [vmem:[#allocation3 + $0x84] sm:$0xf] %vm4156, %v4031
  %4191 = vst.msk [vmem:[#allocation3 + $0x88] sm:$0xf] %vm4156, %v4033
  %4192 = vst.msk [vmem:[#allocation3 + $0x8c] sm:$0xf] %vm4156, %v4035
  %4193 = vst.msk [vmem:[#allocation3 + $0x90] sm:$0xf] %vm4156, %v4037
  %4194 = vst.msk [vmem:[#allocation3 + $0x94] sm:$0xf] %vm4156, %v4039
  %4195 = vst.msk [vmem:[#allocation3 + $0x98] sm:$0xf] %vm4156, %v4041
  %4196 = vst.msk [vmem:[#allocation3 + $0x9c] sm:$0xf] %vm4156, %v4043
  %4197 = vst.msk [vmem:[#allocation3 + $0xa0] sm:$0xf] %vm4156, %v4045
  %4198 = vst.msk [vmem:[#allocation3 + $0xa4] sm:$0xf] %vm4156, %v4047
  %4199 = vst.msk [vmem:[#allocation3 + $0xa8] sm:$0xf] %vm4156, %v4049
  %4200 = vst.msk [vmem:[#allocation3 + $0xac] sm:$0xf] %vm4156, %v4051
  %4201 = vst.msk [vmem:[#allocation3 + $0xb0] sm:$0xf] %vm4156, %v4053
  %4202 = vst.msk [vmem:[#allocation3 + $0xb4] sm:$0xf] %vm4156, %v4055
  %4203 = vst.msk [vmem:[#allocation3 + $0xb8] sm:$0xf] %vm4156, %v4057
  %4204 = vst.msk [vmem:[#allocation3 + $0xbc] sm:$0xf] %vm4156, %v4059
  %4205 = vst.msk [vmem:[#allocation3 + $0xc0] sm:$0xf] %vm4156, %v4061
  %4206 = vst.msk [vmem:[#allocation3 + $0xc4] sm:$0xf] %vm4156, %v4063
  %4207 = vst.msk [vmem:[#allocation3 + $0xc8] sm:$0xf] %vm4156, %v4065
  %4208 = vst.msk [vmem:[#allocation3 + $0xcc] sm:$0xf] %vm4156, %v4067
  %4209 = vst.msk [vmem:[#allocation3 + $0xd0] sm:$0xf] %vm4156, %v4069
  %4210 = vst.msk [vmem:[#allocation3 + $0xd4] sm:$0xf] %vm4156, %v4071
  %4211 = vst.msk [vmem:[#allocation3 + $0xd8] sm:$0xf] %vm4156, %v4073
  %4212 = vst.msk [vmem:[#allocation3 + $0xdc] sm:$0xf] %vm4156, %v4075
  %4213 = vst.msk [vmem:[#allocation3 + $0xe0] sm:$0xf] %vm4156, %v4077
  %4214 = vst.msk [vmem:[#allocation3 + $0xe4] sm:$0xf] %vm4156, %v4079
  %4215 = vst.msk [vmem:[#allocation3 + $0xe8] sm:$0xf] %vm4156, %v4081
  %4216 = vst.msk [vmem:[#allocation3 + $0xec] sm:$0xf] %vm4156, %v4083
  %4217 = vst.msk [vmem:[#allocation3 + $0xf0] sm:$0xf] %vm4156, %v4085
  %4218 = vst.msk [vmem:[#allocation3 + $0xf4] sm:$0xf] %vm4156, %v4087
  %4219 = vst.msk [vmem:[#allocation3 + $0xf8] sm:$0xf] %vm4156, %v4089
  %4220 = vst.msk [vmem:[#allocation3 + $0xfc] sm:$0xf] %vm4156, %v4091
  %v4221 = vld [vmem:[%s3194 + $0x2] sm:$0xff]
  %v4222 = vld [vmem:[%s3194 + $0xa] sm:$0xff]
  %v4223 = vld [vmem:[%s3194 + $0x1a] sm:$0xff]
  %v4224 = vld [vmem:[%s3194 + $0x22] sm:$0xff]
  %v4225 = vld [vmem:[%s3194 + $0x32] sm:$0xff]
  %v4226 = vld [vmem:[%s3194 + $0x3a] sm:$0xff]
  %v4227 = vld [vmem:[%s3194 + $0x4a] sm:$0xff]
  %v4228 = vld [vmem:[%s3194 + $0x52] sm:$0xff]
  %v4229 = vld [vmem:[%s3194 + $0x62] sm:$0xff]
  %v4230 = vld [vmem:[%s3194 + $0x6a] sm:$0xff]
  %v4231 = vld [vmem:[%s3194 + $0x7a] sm:$0xff]
  %v4232 = vld [vmem:[%s3194 + $0x82] sm:$0xff]
  %v4233 = vld [vmem:[%s3194 + $0x92] sm:$0xff]
  %v4234 = vld [vmem:[%s3194 + $0x9a] sm:$0xff]
  %v4235 = vld [vmem:[%s3194 + $0xaa] sm:$0xff]
  %v4236 = vld [vmem:[%s3194 + $0xb2] sm:$0xff]
  %v4237 = vld [vmem:[%s3194 + $0xc2] sm:$0xff]
  %v4238 = vld [vmem:[%s3194 + $0xca] sm:$0xff]
  %v4239 = vld [vmem:[%s3194 + $0xda] sm:$0xff]
  %v4240 = vld [vmem:[%s3194 + $0xe2] sm:$0xff]
  %v4241 = vld [vmem:[%s3194 + $0xf2] sm:$0xff]
  %v4242 = vld [vmem:[%s3194 + $0xfa] sm:$0xff]
  %v4243 = vld [vmem:[%s3194 + $0x10a] sm:$0xff]
  %v4244 = vld [vmem:[%s3194 + $0x112] sm:$0xff]
  %v4245 = vld [vmem:[%s3194 + $0x122] sm:$0xff]
  %v4246 = vld [vmem:[%s3194 + $0x12a] sm:$0xff]
  %v4247 = vld [vmem:[%s3194 + $0x13a] sm:$0xff]
  %v4248 = vld [vmem:[%s3194 + $0x142] sm:$0xff]
  %v4249 = vld [vmem:[%s3194 + $0x152] sm:$0xff]
  %v4250 = vld [vmem:[%s3194 + $0x15a] sm:$0xff]
  %v4251 = vld [vmem:[%s3194 + $0x16a] sm:$0xff]
  %v4252 = vld [vmem:[%s3194 + $0x172] sm:$0xff]
  %v4253 = vld [vmem:[%s3194 + $0x1b2] sm:$0xff]
  %v4254 = vld [vmem:[%s3194 + $0x1ba] sm:$0xff]
  %v4255 = vld [vmem:[%s3194 + $0x1ca] sm:$0xff]
  %v4256 = vld [vmem:[%s3194 + $0x1d2] sm:$0xff]
  %v4257 = vld [vmem:[%s3194 + $0x1e2] sm:$0xff]
  %v4258 = vld [vmem:[%s3194 + $0x1ea] sm:$0xff]
  %v4259 = vld [vmem:[%s3194 + $0x1fa] sm:$0xff]
  %v4260 = vld [vmem:[%s3194 + $0x202] sm:$0xff]
  %v4261 = vld [vmem:[%s3194 + $0x212] sm:$0xff]
  %v4262 = vld [vmem:[%s3194 + $0x21a] sm:$0xff]
  %v4263 = vld [vmem:[%s3194 + $0x22a] sm:$0xff]
  %v4264 = vld [vmem:[%s3194 + $0x232] sm:$0xff]
  %v4265 = vld [vmem:[%s3194 + $0x242] sm:$0xff]
  %v4266 = vld [vmem:[%s3194 + $0x24a] sm:$0xff]
  %v4267 = vld [vmem:[%s3194 + $0x25a] sm:$0xff]
  %v4268 = vld [vmem:[%s3194 + $0x262] sm:$0xff]
  %v4269 = vld [vmem:[%s3194 + $0x272] sm:$0xff]
  %v4270 = vld [vmem:[%s3194 + $0x27a] sm:$0xff]
  %v4271 = vld [vmem:[%s3194 + $0x28a] sm:$0xff]
  %v4272 = vld [vmem:[%s3194 + $0x292] sm:$0xff]
  %v4273 = vld [vmem:[%s3194 + $0x2a2] sm:$0xff]
  %v4274 = vld [vmem:[%s3194 + $0x2aa] sm:$0xff]
  %v4275 = vld [vmem:[%s3194 + $0x2ba] sm:$0xff]
  %v4276 = vld [vmem:[%s3194 + $0x2c2] sm:$0xff]
  %v4277 = vld [vmem:[%s3194 + $0x2d2] sm:$0xff]
  %v4278 = vld [vmem:[%s3194 + $0x2da] sm:$0xff]
  %v4279 = vld [vmem:[%s3194 + $0x2ea] sm:$0xff]
  %v4280 = vld [vmem:[%s3194 + $0x2f2] sm:$0xff]
  %v4281 = vld [vmem:[%s3194 + $0x302] sm:$0xff]
  %v4282 = vld [vmem:[%s3194 + $0x30a] sm:$0xff]
  %v4283 = vld [vmem:[%s3194 + $0x31a] sm:$0xff]
  %v4284 = vld [vmem:[%s3194 + $0x322] sm:$0xff]
  %v4285 = vpack.c.bf16 %v4222, %v4221
  %v4286 = vpack.c.bf16 %v4224, %v4223
  %v4287 = vpack.c.bf16 %v4226, %v4225
  %v4288 = vpack.c.bf16 %v4228, %v4227
  %v4289 = vpack.c.bf16 %v4230, %v4229
  %v4290 = vpack.c.bf16 %v4232, %v4231
  %v4291 = vpack.c.bf16 %v4234, %v4233
  %v4292 = vpack.c.bf16 %v4236, %v4235
  %v4293 = vpack.c.bf16 %v4238, %v4237
  %v4294 = vpack.c.bf16 %v4240, %v4239
  %v4295 = vpack.c.bf16 %v4242, %v4241
  %v4296 = vpack.c.bf16 %v4244, %v4243
  %v4297 = vpack.c.bf16 %v4246, %v4245
  %v4298 = vpack.c.bf16 %v4248, %v4247
  %v4299 = vpack.c.bf16 %v4250, %v4249
  %v4300 = vpack.c.bf16 %v4252, %v4251
  %v4301 = vpack.c.bf16 %v4254, %v4253
  %v4302 = vpack.c.bf16 %v4256, %v4255
  %v4303 = vpack.c.bf16 %v4258, %v4257
  %v4304 = vpack.c.bf16 %v4260, %v4259
  %v4305 = vpack.c.bf16 %v4262, %v4261
  %v4306 = vpack.c.bf16 %v4264, %v4263
  %v4307 = vpack.c.bf16 %v4266, %v4265
  %v4308 = vpack.c.bf16 %v4268, %v4267
  %v4309 = vpack.c.bf16 %v4270, %v4269
  %v4310 = vpack.c.bf16 %v4272, %v4271
  %v4311 = vpack.c.bf16 %v4274, %v4273
  %v4312 = vpack.c.bf16 %v4276, %v4275
  %v4313 = vpack.c.bf16 %v4278, %v4277
  %v4314 = vpack.c.bf16 %v4280, %v4279
  %v4315 = vpack.c.bf16 %v4282, %v4281
  %v4316 = vpack.c.bf16 %v4284, %v4283
  %v4349 = vunpack.c.l.b16 %v4285
  %v4350 = vunpack.c.h.b16 %v4285
  %v4351 = vunpack.c.l.b16 %v4286
  %v4352 = vunpack.c.h.b16 %v4286
  %v4353 = vunpack.c.l.b16 %v4287
  %v4354 = vunpack.c.h.b16 %v4287
  %v4355 = vunpack.c.l.b16 %v4288
  %v4356 = vunpack.c.h.b16 %v4288
  %v4357 = vunpack.c.l.b16 %v4289
  %v4358 = vunpack.c.h.b16 %v4289
  %v4359 = vunpack.c.l.b16 %v4290
  %v4360 = vunpack.c.h.b16 %v4290
  %v4361 = vunpack.c.l.b16 %v4291
  %v4362 = vunpack.c.h.b16 %v4291
  %v4363 = vunpack.c.l.b16 %v4292
  %v4364 = vunpack.c.h.b16 %v4292
  %v4365 = vunpack.c.l.b16 %v4293
  %v4366 = vunpack.c.h.b16 %v4293
  %v4367 = vunpack.c.l.b16 %v4294
  %v4368 = vunpack.c.h.b16 %v4294
  %v4369 = vunpack.c.l.b16 %v4295
  %v4370 = vunpack.c.h.b16 %v4295
  %v4371 = vunpack.c.l.b16 %v4296
  %v4372 = vunpack.c.h.b16 %v4296
  %v4373 = vunpack.c.l.b16 %v4297
  %v4374 = vunpack.c.h.b16 %v4297
  %v4375 = vunpack.c.l.b16 %v4298
  %v4376 = vunpack.c.h.b16 %v4298
  %v4377 = vunpack.c.l.b16 %v4299
  %v4378 = vunpack.c.h.b16 %v4299
  %v4379 = vunpack.c.l.b16 %v4300
  %v4380 = vunpack.c.h.b16 %v4300
  %v4381 = vunpack.c.l.b16 %v4301
  %v4382 = vunpack.c.h.b16 %v4301
  %v4383 = vunpack.c.l.b16 %v4302
  %v4384 = vunpack.c.h.b16 %v4302
  %v4385 = vunpack.c.l.b16 %v4303
  %v4386 = vunpack.c.h.b16 %v4303
  %v4387 = vunpack.c.l.b16 %v4304
  %v4388 = vunpack.c.h.b16 %v4304
  %v4389 = vunpack.c.l.b16 %v4305
  %v4390 = vunpack.c.h.b16 %v4305
  %v4391 = vunpack.c.l.b16 %v4306
  %v4392 = vunpack.c.h.b16 %v4306
  %v4393 = vunpack.c.l.b16 %v4307
  %v4394 = vunpack.c.h.b16 %v4307
  %v4395 = vunpack.c.l.b16 %v4308
  %v4396 = vunpack.c.h.b16 %v4308
  %v4397 = vunpack.c.l.b16 %v4309
  %v4398 = vunpack.c.h.b16 %v4309
  %v4399 = vunpack.c.l.b16 %v4310
  %v4400 = vunpack.c.h.b16 %v4310
  %v4401 = vunpack.c.l.b16 %v4311
  %v4402 = vunpack.c.h.b16 %v4311
  %v4403 = vunpack.c.l.b16 %v4312
  %v4404 = vunpack.c.h.b16 %v4312
  %v4405 = vunpack.c.l.b16 %v4313
  %v4406 = vunpack.c.h.b16 %v4313
  %v4407 = vunpack.c.l.b16 %v4314
  %v4408 = vunpack.c.h.b16 %v4314
  %v4409 = vunpack.c.l.b16 %v4315
  %v4410 = vunpack.c.h.b16 %v4315
  %v4411 = vunpack.c.l.b16 %v4316
  %v4412 = vunpack.c.h.b16 %v4316
  %v4413 = vpack.c.b16 %v4349, %v4349
  %v4414 = vpack.c.b16 %v4350, %v4350
  %v4415 = vpack.c.b16 %v4351, %v4351
  %v4416 = vpack.c.b16 %v4352, %v4352
  %v4417 = vpack.c.b16 %v4353, %v4353
  %v4418 = vpack.c.b16 %v4354, %v4354
  %v4419 = vpack.c.b16 %v4355, %v4355
  %v4420 = vpack.c.b16 %v4356, %v4356
  %v4421 = vpack.c.b16 %v4357, %v4357
  %v4422 = vpack.c.b16 %v4358, %v4358
  %v4423 = vpack.c.b16 %v4359, %v4359
  %v4424 = vpack.c.b16 %v4360, %v4360
  %v4425 = vpack.c.b16 %v4361, %v4361
  %v4426 = vpack.c.b16 %v4362, %v4362
  %v4427 = vpack.c.b16 %v4363, %v4363
  %v4428 = vpack.c.b16 %v4364, %v4364
  %v4429 = vpack.c.b16 %v4365, %v4365
  %v4430 = vpack.c.b16 %v4366, %v4366
  %v4431 = vpack.c.b16 %v4367, %v4367
  %v4432 = vpack.c.b16 %v4368, %v4368
  %v4433 = vpack.c.b16 %v4369, %v4369
  %v4434 = vpack.c.b16 %v4370, %v4370
  %v4435 = vpack.c.b16 %v4371, %v4371
  %v4436 = vpack.c.b16 %v4372, %v4372
  %v4437 = vpack.c.b16 %v4373, %v4373
  %v4438 = vpack.c.b16 %v4374, %v4374
  %v4439 = vpack.c.b16 %v4375, %v4375
  %v4440 = vpack.c.b16 %v4376, %v4376
  %v4441 = vpack.c.b16 %v4377, %v4377
  %v4442 = vpack.c.b16 %v4378, %v4378
  %v4443 = vpack.c.b16 %v4379, %v4379
  %v4444 = vpack.c.b16 %v4380, %v4380
  %v4445 = vpack.c.b16 %v4381, %v4381
  %v4446 = vpack.c.b16 %v4382, %v4382
  %v4447 = vpack.c.b16 %v4383, %v4383
  %v4448 = vpack.c.b16 %v4384, %v4384
  %v4449 = vpack.c.b16 %v4385, %v4385
  %v4450 = vpack.c.b16 %v4386, %v4386
  %v4451 = vpack.c.b16 %v4387, %v4387
  %v4452 = vpack.c.b16 %v4388, %v4388
  %v4453 = vpack.c.b16 %v4389, %v4389
  %v4454 = vpack.c.b16 %v4390, %v4390
  %v4455 = vpack.c.b16 %v4391, %v4391
  %v4456 = vpack.c.b16 %v4392, %v4392
  %v4457 = vpack.c.b16 %v4393, %v4393
  %v4458 = vpack.c.b16 %v4394, %v4394
  %v4459 = vpack.c.b16 %v4395, %v4395
  %v4460 = vpack.c.b16 %v4396, %v4396
  %v4461 = vpack.c.b16 %v4397, %v4397
  %v4462 = vpack.c.b16 %v4398, %v4398
  %v4463 = vpack.c.b16 %v4399, %v4399
  %v4464 = vpack.c.b16 %v4400, %v4400
  %v4465 = vpack.c.b16 %v4401, %v4401
  %v4466 = vpack.c.b16 %v4402, %v4402
  %v4467 = vpack.c.b16 %v4403, %v4403
  %v4468 = vpack.c.b16 %v4404, %v4404
  %v4469 = vpack.c.b16 %v4405, %v4405
  %v4470 = vpack.c.b16 %v4406, %v4406
  %v4471 = vpack.c.b16 %v4407, %v4407
  %v4472 = vpack.c.b16 %v4408, %v4408
  %v4473 = vpack.c.b16 %v4409, %v4409
  %v4474 = vpack.c.b16 %v4410, %v4410
  %v4475 = vpack.c.b16 %v4411, %v4411
  %v4476 = vpack.c.b16 %v4412, %v4412
  %4477 = vrot.lane.b32.xlu0 %v4413, 64
  %v4478 = vpop.permute.xlu0 %4477
  %4479 = vrot.lane.b32.xlu0 %v4414, 64
  %v4480 = vpop.permute.xlu0 %4479
  %4481 = vrot.lane.b32.xlu0 %v4415, 64
  %v4482 = vpop.permute.xlu0 %4481
  %4483 = vrot.lane.b32.xlu0 %v4416, 64
  %v4484 = vpop.permute.xlu0 %4483
  %4485 = vrot.lane.b32.xlu0 %v4417, 64
  %v4486 = vpop.permute.xlu0 %4485
  %4487 = vrot.lane.b32.xlu0 %v4418, 64
  %v4488 = vpop.permute.xlu0 %4487
  %4489 = vrot.lane.b32.xlu0 %v4419, 64
  %v4490 = vpop.permute.xlu0 %4489
  %4491 = vrot.lane.b32.xlu0 %v4420, 64
  %v4492 = vpop.permute.xlu0 %4491
  %4493 = vrot.lane.b32.xlu0 %v4421, 64
  %v4494 = vpop.permute.xlu0 %4493
  %4495 = vrot.lane.b32.xlu0 %v4422, 64
  %v4496 = vpop.permute.xlu0 %4495
  %4497 = vrot.lane.b32.xlu0 %v4423, 64
  %v4498 = vpop.permute.xlu0 %4497
  %4499 = vrot.lane.b32.xlu0 %v4424, 64
  %v4500 = vpop.permute.xlu0 %4499
  %4501 = vrot.lane.b32.xlu0 %v4425, 64
  %v4502 = vpop.permute.xlu0 %4501
  %4503 = vrot.lane.b32.xlu0 %v4426, 64
  %v4504 = vpop.permute.xlu0 %4503
  %4505 = vrot.lane.b32.xlu0 %v4427, 64
  %v4506 = vpop.permute.xlu0 %4505
  %4507 = vrot.lane.b32.xlu0 %v4428, 64
  %v4508 = vpop.permute.xlu0 %4507
  %4509 = vrot.lane.b32.xlu0 %v4429, 64
  %v4510 = vpop.permute.xlu0 %4509
  %4511 = vrot.lane.b32.xlu0 %v4430, 64
  %v4512 = vpop.permute.xlu0 %4511
  %4513 = vrot.lane.b32.xlu0 %v4431, 64
  %v4514 = vpop.permute.xlu0 %4513
  %4515 = vrot.lane.b32.xlu0 %v4432, 64
  %v4516 = vpop.permute.xlu0 %4515
  %4517 = vrot.lane.b32.xlu0 %v4433, 64
  %v4518 = vpop.permute.xlu0 %4517
  %4519 = vrot.lane.b32.xlu0 %v4434, 64
  %v4520 = vpop.permute.xlu0 %4519
  %4521 = vrot.lane.b32.xlu0 %v4435, 64
  %v4522 = vpop.permute.xlu0 %4521
  %4523 = vrot.lane.b32.xlu0 %v4436, 64
  %v4524 = vpop.permute.xlu0 %4523
  %4525 = vrot.lane.b32.xlu0 %v4437, 64
  %v4526 = vpop.permute.xlu0 %4525
  %4527 = vrot.lane.b32.xlu0 %v4438, 64
  %v4528 = vpop.permute.xlu0 %4527
  %4529 = vrot.lane.b32.xlu0 %v4439, 64
  %v4530 = vpop.permute.xlu0 %4529
  %4531 = vrot.lane.b32.xlu0 %v4440, 64
  %v4532 = vpop.permute.xlu0 %4531
  %4533 = vrot.lane.b32.xlu0 %v4441, 64
  %v4534 = vpop.permute.xlu0 %4533
  %4535 = vrot.lane.b32.xlu0 %v4442, 64
  %v4536 = vpop.permute.xlu0 %4535
  %4537 = vrot.lane.b32.xlu0 %v4443, 64
  %v4538 = vpop.permute.xlu0 %4537
  %4539 = vrot.lane.b32.xlu0 %v4444, 64
  %v4540 = vpop.permute.xlu0 %4539
  %4541 = vrot.lane.b32.xlu0 %v4445, 64
  %v4542 = vpop.permute.xlu0 %4541
  %4543 = vrot.lane.b32.xlu0 %v4446, 64
  %v4544 = vpop.permute.xlu0 %4543
  %4545 = vrot.lane.b32.xlu0 %v4447, 64
  %v4546 = vpop.permute.xlu0 %4545
  %4547 = vrot.lane.b32.xlu0 %v4448, 64
  %v4548 = vpop.permute.xlu0 %4547
  %4549 = vrot.lane.b32.xlu0 %v4449, 64
  %v4550 = vpop.permute.xlu0 %4549
  %4551 = vrot.lane.b32.xlu0 %v4450, 64
  %v4552 = vpop.permute.xlu0 %4551
  %4553 = vrot.lane.b32.xlu0 %v4451, 64
  %v4554 = vpop.permute.xlu0 %4553
  %4555 = vrot.lane.b32.xlu0 %v4452, 64
  %v4556 = vpop.permute.xlu0 %4555
  %4557 = vrot.lane.b32.xlu0 %v4453, 64
  %v4558 = vpop.permute.xlu0 %4557
  %4559 = vrot.lane.b32.xlu0 %v4454, 64
  %v4560 = vpop.permute.xlu0 %4559
  %4561 = vrot.lane.b32.xlu0 %v4455, 64
  %v4562 = vpop.permute.xlu0 %4561
  %4563 = vrot.lane.b32.xlu0 %v4456, 64
  %v4564 = vpop.permute.xlu0 %4563
  %4565 = vrot.lane.b32.xlu0 %v4457, 64
  %v4566 = vpop.permute.xlu0 %4565
  %4567 = vrot.lane.b32.xlu0 %v4458, 64
  %v4568 = vpop.permute.xlu0 %4567
  %4569 = vrot.lane.b32.xlu0 %v4459, 64
  %v4570 = vpop.permute.xlu0 %4569
  %4571 = vrot.lane.b32.xlu0 %v4460, 64
  %v4572 = vpop.permute.xlu0 %4571
  %4573 = vrot.lane.b32.xlu0 %v4461, 64
  %v4574 = vpop.permute.xlu0 %4573
  %4575 = vrot.lane.b32.xlu0 %v4462, 64
  %v4576 = vpop.permute.xlu0 %4575
  %4577 = vrot.lane.b32.xlu0 %v4463, 64
  %v4578 = vpop.permute.xlu0 %4577
  %4579 = vrot.lane.b32.xlu0 %v4464, 64
  %v4580 = vpop.permute.xlu0 %4579
  %4581 = vrot.lane.b32.xlu0 %v4465, 64
  %v4582 = vpop.permute.xlu0 %4581
  %4583 = vrot.lane.b32.xlu0 %v4466, 64
  %v4584 = vpop.permute.xlu0 %4583
  %4585 = vrot.lane.b32.xlu0 %v4467, 64
  %v4586 = vpop.permute.xlu0 %4585
  %4587 = vrot.lane.b32.xlu0 %v4468, 64
  %v4588 = vpop.permute.xlu0 %4587
  %4589 = vrot.lane.b32.xlu0 %v4469, 64
  %v4590 = vpop.permute.xlu0 %4589
  %4591 = vrot.lane.b32.xlu0 %v4470, 64
  %v4592 = vpop.permute.xlu0 %4591
  %4593 = vrot.lane.b32.xlu0 %v4471, 64
  %v4594 = vpop.permute.xlu0 %4593
  %4595 = vrot.lane.b32.xlu0 %v4472, 64
  %v4596 = vpop.permute.xlu0 %4595
  %4597 = vrot.lane.b32.xlu0 %v4473, 64
  %v4598 = vpop.permute.xlu0 %4597
  %4599 = vrot.lane.b32.xlu0 %v4474, 64
  %v4600 = vpop.permute.xlu0 %4599
  %4601 = vrot.lane.b32.xlu0 %v4475, 64
  %v4602 = vpop.permute.xlu0 %4601
  %4603 = vrot.lane.b32.xlu0 %v4476, 64
  %v4604 = vpop.permute.xlu0 %4603
  %vm4669 = vcmask 585216
  %4670 = vst.msk [vmem:[#allocation3] sm:$0xf] %vm4669, %v4478
  %4671 = vst.msk [vmem:[#allocation3 + $0x4] sm:$0xf] %vm4669, %v4480
  %4672 = vst.msk [vmem:[#allocation3 + $0x8] sm:$0xf] %vm4669, %v4482
  %4673 = vst.msk [vmem:[#allocation3 + $0xc] sm:$0xf] %vm4669, %v4484
  %4674 = vst.msk [vmem:[#allocation3 + $0x10] sm:$0xf] %vm4669, %v4486
  %4675 = vst.msk [vmem:[#allocation3 + $0x14] sm:$0xf] %vm4669, %v4488
  %4676 = vst.msk [vmem:[#allocation3 + $0x18] sm:$0xf] %vm4669, %v4490
  %4677 = vst.msk [vmem:[#allocation3 + $0x1c] sm:$0xf] %vm4669, %v4492
  %4678 = vst.msk [vmem:[#allocation3 + $0x20] sm:$0xf] %vm4669, %v4494
  %4679 = vst.msk [vmem:[#allocation3 + $0x24] sm:$0xf] %vm4669, %v4496
  %4680 = vst.msk [vmem:[#allocation3 + $0x28] sm:$0xf] %vm4669, %v4498
  %4681 = vst.msk [vmem:[#allocation3 + $0x2c] sm:$0xf] %vm4669, %v4500
  %4682 = vst.msk [vmem:[#allocation3 + $0x30] sm:$0xf] %vm4669, %v4502
  %4683 = vst.msk [vmem:[#allocation3 + $0x34] sm:$0xf] %vm4669, %v4504
  %4684 = vst.msk [vmem:[#allocation3 + $0x38] sm:$0xf] %vm4669, %v4506
  %4685 = vst.msk [vmem:[#allocation3 + $0x3c] sm:$0xf] %vm4669, %v4508
  %4686 = vst.msk [vmem:[#allocation3 + $0x40] sm:$0xf] %vm4669, %v4510
  %4687 = vst.msk [vmem:[#allocation3 + $0x44] sm:$0xf] %vm4669, %v4512
  %4688 = vst.msk [vmem:[#allocation3 + $0x48] sm:$0xf] %vm4669, %v4514
  %4689 = vst.msk [vmem:[#allocation3 + $0x4c] sm:$0xf] %vm4669, %v4516
  %4690 = vst.msk [vmem:[#allocation3 + $0x50] sm:$0xf] %vm4669, %v4518
  %4691 = vst.msk [vmem:[#allocation3 + $0x54] sm:$0xf] %vm4669, %v4520
  %4692 = vst.msk [vmem:[#allocation3 + $0x58] sm:$0xf] %vm4669, %v4522
  %4693 = vst.msk [vmem:[#allocation3 + $0x5c] sm:$0xf] %vm4669, %v4524
  %4694 = vst.msk [vmem:[#allocation3 + $0x60] sm:$0xf] %vm4669, %v4526
  %4695 = vst.msk [vmem:[#allocation3 + $0x64] sm:$0xf] %vm4669, %v4528
  %4696 = vst.msk [vmem:[#allocation3 + $0x68] sm:$0xf] %vm4669, %v4530
  %4697 = vst.msk [vmem:[#allocation3 + $0x6c] sm:$0xf] %vm4669, %v4532
  %4698 = vst.msk [vmem:[#allocation3 + $0x70] sm:$0xf] %vm4669, %v4534
  %4699 = vst.msk [vmem:[#allocation3 + $0x74] sm:$0xf] %vm4669, %v4536
  %4700 = vst.msk [vmem:[#allocation3 + $0x78] sm:$0xf] %vm4669, %v4538
  %4701 = vst.msk [vmem:[#allocation3 + $0x7c] sm:$0xf] %vm4669, %v4540
  %4702 = vst.msk [vmem:[#allocation3 + $0x80] sm:$0xf] %vm4669, %v4542
  %4703 = vst.msk [vmem:[#allocation3 + $0x84] sm:$0xf] %vm4669, %v4544
  %4704 = vst.msk [vmem:[#allocation3 + $0x88] sm:$0xf] %vm4669, %v4546
  %4705 = vst.msk [vmem:[#allocation3 + $0x8c] sm:$0xf] %vm4669, %v4548
  %4706 = vst.msk [vmem:[#allocation3 + $0x90] sm:$0xf] %vm4669, %v4550
  %4707 = vst.msk [vmem:[#allocation3 + $0x94] sm:$0xf] %vm4669, %v4552
  %4708 = vst.msk [vmem:[#allocation3 + $0x98] sm:$0xf] %vm4669, %v4554
  %4709 = vst.msk [vmem:[#allocation3 + $0x9c] sm:$0xf] %vm4669, %v4556
  %4710 = vst.msk [vmem:[#allocation3 + $0xa0] sm:$0xf] %vm4669, %v4558
  %4711 = vst.msk [vmem:[#allocation3 + $0xa4] sm:$0xf] %vm4669, %v4560
  %4712 = vst.msk [vmem:[#allocation3 + $0xa8] sm:$0xf] %vm4669, %v4562
  %4713 = vst.msk [vmem:[#allocation3 + $0xac] sm:$0xf] %vm4669, %v4564
  %4714 = vst.msk [vmem:[#allocation3 + $0xb0] sm:$0xf] %vm4669, %v4566
  %4715 = vst.msk [vmem:[#allocation3 + $0xb4] sm:$0xf] %vm4669, %v4568
  %4716 = vst.msk [vmem:[#allocation3 + $0xb8] sm:$0xf] %vm4669, %v4570
  %4717 = vst.msk [vmem:[#allocation3 + $0xbc] sm:$0xf] %vm4669, %v4572
  %4718 = vst.msk [vmem:[#allocation3 + $0xc0] sm:$0xf] %vm4669, %v4574
  %4719 = vst.msk [vmem:[#allocation3 + $0xc4] sm:$0xf] %vm4669, %v4576
  %4720 = vst.msk [vmem:[#allocation3 + $0xc8] sm:$0xf] %vm4669, %v4578
  %4721 = vst.msk [vmem:[#allocation3 + $0xcc] sm:$0xf] %vm4669, %v4580
  %4722 = vst.msk [vmem:[#allocation3 + $0xd0] sm:$0xf] %vm4669, %v4582
  %4723 = vst.msk [vmem:[#allocation3 + $0xd4] sm:$0xf] %vm4669, %v4584
  %4724 = vst.msk [vmem:[#allocation3 + $0xd8] sm:$0xf] %vm4669, %v4586
  %4725 = vst.msk [vmem:[#allocation3 + $0xdc] sm:$0xf] %vm4669, %v4588
  %4726 = vst.msk [vmem:[#allocation3 + $0xe0] sm:$0xf] %vm4669, %v4590
  %4727 = vst.msk [vmem:[#allocation3 + $0xe4] sm:$0xf] %vm4669, %v4592
  %4728 = vst.msk [vmem:[#allocation3 + $0xe8] sm:$0xf] %vm4669, %v4594
  %4729 = vst.msk [vmem:[#allocation3 + $0xec] sm:$0xf] %vm4669, %v4596
  %4730 = vst.msk [vmem:[#allocation3 + $0xf0] sm:$0xf] %vm4669, %v4598
  %4731 = vst.msk [vmem:[#allocation3 + $0xf4] sm:$0xf] %vm4669, %v4600
  %4732 = vst.msk [vmem:[#allocation3 + $0xf8] sm:$0xf] %vm4669, %v4602
  %4733 = vst.msk [vmem:[#allocation3 + $0xfc] sm:$0xf] %vm4669, %v4604
  %v4734 = vld [vmem:[#allocation3] sm:$0xf]
  %v4735 = vld [vmem:[#allocation3 + $0x4] sm:$0xf]
  %v4736 = vld [vmem:[#allocation3 + $0x8] sm:$0xf]
  %v4737 = vld [vmem:[#allocation3 + $0xc] sm:$0xf]
  %v4738 = vld [vmem:[#allocation3 + $0x10] sm:$0xf]
  %v4739 = vld [vmem:[#allocation3 + $0x14] sm:$0xf]
  %v4740 = vld [vmem:[#allocation3 + $0x18] sm:$0xf]
  %v4741 = vld [vmem:[#allocation3 + $0x1c] sm:$0xf]
  %v4742 = vld [vmem:[#allocation3 + $0x20] sm:$0xf]
  %v4743 = vld [vmem:[#allocation3 + $0x24] sm:$0xf]
  %v4744 = vld [vmem:[#allocation3 + $0x28] sm:$0xf]
  %v4745 = vld [vmem:[#allocation3 + $0x2c] sm:$0xf]
  %v4746 = vld [vmem:[#allocation3 + $0x30] sm:$0xf]
  %v4747 = vld [vmem:[#allocation3 + $0x34] sm:$0xf]
  %v4748 = vld [vmem:[#allocation3 + $0x38] sm:$0xf]
  %v4749 = vld [vmem:[#allocation3 + $0x3c] sm:$0xf]
  %v4750 = vld [vmem:[#allocation3 + $0x40] sm:$0xf]
  %v4751 = vld [vmem:[#allocation3 + $0x44] sm:$0xf]
  %v4752 = vld [vmem:[#allocation3 + $0x48] sm:$0xf]
  %v4753 = vld [vmem:[#allocation3 + $0x4c] sm:$0xf]
  %v4754 = vld [vmem:[#allocation3 + $0x50] sm:$0xf]
  %v4755 = vld [vmem:[#allocation3 + $0x54] sm:$0xf]
  %v4756 = vld [vmem:[#allocation3 + $0x58] sm:$0xf]
  %v4757 = vld [vmem:[#allocation3 + $0x5c] sm:$0xf]
  %v4758 = vld [vmem:[#allocation3 + $0x60] sm:$0xf]
  %v4759 = vld [vmem:[#allocation3 + $0x64] sm:$0xf]
  %v4760 = vld [vmem:[#allocation3 + $0x68] sm:$0xf]
  %v4761 = vld [vmem:[#allocation3 + $0x6c] sm:$0xf]
  %v4762 = vld [vmem:[#allocation3 + $0x70] sm:$0xf]
  %v4763 = vld [vmem:[#allocation3 + $0x74] sm:$0xf]
  %v4764 = vld [vmem:[#allocation3 + $0x78] sm:$0xf]
  %v4765 = vld [vmem:[#allocation3 + $0x7c] sm:$0xf]
  %v4766 = vld [vmem:[#allocation3 + $0x80] sm:$0xf]
  %v4767 = vld [vmem:[#allocation3 + $0x84] sm:$0xf]
  %v4768 = vld [vmem:[#allocation3 + $0x88] sm:$0xf]
  %v4769 = vld [vmem:[#allocation3 + $0x8c] sm:$0xf]
  %v4770 = vld [vmem:[#allocation3 + $0x90] sm:$0xf]
  %v4771 = vld [vmem:[#allocation3 + $0x94] sm:$0xf]
  %v4772 = vld [vmem:[#allocation3 + $0x98] sm:$0xf]
  %v4773 = vld [vmem:[#allocation3 + $0x9c] sm:$0xf]
  %v4774 = vld [vmem:[#allocation3 + $0xa0] sm:$0xf]
  %v4775 = vld [vmem:[#allocation3 + $0xa4] sm:$0xf]
  %v4776 = vld [vmem:[#allocation3 + $0xa8] sm:$0xf]
  %v4777 = vld [vmem:[#allocation3 + $0xac] sm:$0xf]
  %v4778 = vld [vmem:[#allocation3 + $0xb0] sm:$0xf]
  %v4779 = vld [vmem:[#allocation3 + $0xb4] sm:$0xf]
  %v4780 = vld [vmem:[#allocation3 + $0xb8] sm:$0xf]
  %v4781 = vld [vmem:[#allocation3 + $0xbc] sm:$0xf]
  %v4782 = vld [vmem:[#allocation3 + $0xc0] sm:$0xf]
  %v4783 = vld [vmem:[#allocation3 + $0xc4] sm:$0xf]
  %v4784 = vld [vmem:[#allocation3 + $0xc8] sm:$0xf]
  %v4785 = vld [vmem:[#allocation3 + $0xcc] sm:$0xf]
  %v4786 = vld [vmem:[#allocation3 + $0xd0] sm:$0xf]
  %v4787 = vld [vmem:[#allocation3 + $0xd4] sm:$0xf]
  %v4788 = vld [vmem:[#allocation3 + $0xd8] sm:$0xf]
  %v4789 = vld [vmem:[#allocation3 + $0xdc] sm:$0xf]
  %v4790 = vld [vmem:[#allocation3 + $0xe0] sm:$0xf]
  %v4791 = vld [vmem:[#allocation3 + $0xe4] sm:$0xf]
  %v4792 = vld [vmem:[#allocation3 + $0xe8] sm:$0xf]
  %v4793 = vld [vmem:[#allocation3 + $0xec] sm:$0xf]
  %v4794 = vld [vmem:[#allocation3 + $0xf0] sm:$0xf]
  %v4795 = vld [vmem:[#allocation3 + $0xf4] sm:$0xf]
  %v4796 = vld [vmem:[#allocation3 + $0xf8] sm:$0xf]
  %v4797 = vld [vmem:[#allocation3 + $0xfc] sm:$0xf]
  %v4798 = vld [vmem:[%s1] sm:$0xf]
  %v4799 = vld [vmem:[%s1 + $0x4] sm:$0xf]
  %v4800 = vld [vmem:[%s1 + $0x8] sm:$0xf]
  %v4801 = vld [vmem:[%s1 + $0xc] sm:$0xf]
  %v4802 = vld [vmem:[%s1 + $0x10] sm:$0xf]
  %v4803 = vld [vmem:[%s1 + $0x14] sm:$0xf]
  %v4804 = vld [vmem:[%s1 + $0x18] sm:$0xf]
  %v4805 = vld [vmem:[%s1 + $0x1c] sm:$0xf]
  %v4806 = vld [vmem:[%s1 + $0x20] sm:$0xf]
  %v4871 = vunpack.c.l.b16 %v4734
  %v4872 = vunpack.c.l.b16 %v4735
  %v4873 = vunpack.c.l.b16 %v4736
  %v4874 = vunpack.c.l.b16 %v4737
  %v4875 = vunpack.c.l.b16 %v4738
  %v4876 = vunpack.c.l.b16 %v4739
  %v4877 = vunpack.c.l.b16 %v4740
  %v4878 = vunpack.c.l.b16 %v4741
  %v4879 = vunpack.c.l.b16 %v4742
  %v4880 = vunpack.c.l.b16 %v4743
  %v4881 = vunpack.c.l.b16 %v4744
  %v4882 = vunpack.c.l.b16 %v4745
  %v4883 = vunpack.c.l.b16 %v4746
  %v4884 = vunpack.c.l.b16 %v4747
  %v4885 = vunpack.c.l.b16 %v4748
  %v4886 = vunpack.c.l.b16 %v4749
  %v4887 = vunpack.c.l.b16 %v4750
  %v4888 = vunpack.c.l.b16 %v4751
  %v4889 = vunpack.c.l.b16 %v4752
  %v4890 = vunpack.c.l.b16 %v4753
  %v4891 = vunpack.c.l.b16 %v4754
  %v4892 = vunpack.c.l.b16 %v4755
  %v4893 = vunpack.c.l.b16 %v4756
  %v4894 = vunpack.c.l.b16 %v4757
  %v4895 = vunpack.c.l.b16 %v4758
  %v4896 = vunpack.c.l.b16 %v4759
  %v4897 = vunpack.c.l.b16 %v4760
  %v4898 = vunpack.c.l.b16 %v4761
  %v4899 = vunpack.c.l.b16 %v4762
  %v4900 = vunpack.c.l.b16 %v4763
  %v4901 = vunpack.c.l.b16 %v4764
  %v4902 = vunpack.c.l.b16 %v4765
  %v4903 = vunpack.c.l.b16 %v4766
  %v4904 = vunpack.c.l.b16 %v4767
  %v4905 = vunpack.c.l.b16 %v4768
  %v4906 = vunpack.c.l.b16 %v4769
  %v4907 = vunpack.c.l.b16 %v4770
  %v4908 = vunpack.c.l.b16 %v4771
  %v4909 = vunpack.c.l.b16 %v4772
  %v4910 = vunpack.c.l.b16 %v4773
  %v4911 = vunpack.c.l.b16 %v4774
  %v4912 = vunpack.c.l.b16 %v4775
  %v4913 = vunpack.c.l.b16 %v4776
  %v4914 = vunpack.c.l.b16 %v4777
  %v4915 = vunpack.c.l.b16 %v4778
  %v4916 = vunpack.c.l.b16 %v4779
  %v4917 = vunpack.c.l.b16 %v4780
  %v4918 = vunpack.c.l.b16 %v4781
  %v4919 = vunpack.c.l.b16 %v4782
  %v4920 = vunpack.c.l.b16 %v4783
  %v4921 = vunpack.c.l.b16 %v4784
  %v4922 = vunpack.c.l.b16 %v4785
  %v4923 = vunpack.c.l.b16 %v4786
  %v4924 = vunpack.c.l.b16 %v4787
  %v4925 = vunpack.c.l.b16 %v4788
  %v4926 = vunpack.c.l.b16 %v4789
  %v4927 = vunpack.c.l.b16 %v4790
  %v4928 = vunpack.c.l.b16 %v4791
  %v4929 = vunpack.c.l.b16 %v4792
  %v4930 = vunpack.c.l.b16 %v4793
  %v4931 = vunpack.c.l.b16 %v4794
  %v4932 = vunpack.c.l.b16 %v4795
  %v4933 = vunpack.c.l.b16 %v4796
  %v4934 = vunpack.c.l.b16 %v4797
  %v4935 = vpack.c.b16 %v4872, %v4871
  %v4936 = vpack.c.b16 %v4874, %v4873
  %v4937 = vpack.c.b16 %v4876, %v4875
  %v4938 = vpack.c.b16 %v4878, %v4877
  %v4939 = vpack.c.b16 %v4880, %v4879
  %v4940 = vpack.c.b16 %v4882, %v4881
  %v4941 = vpack.c.b16 %v4884, %v4883
  %v4942 = vpack.c.b16 %v4886, %v4885
  %v4943 = vpack.c.b16 %v4888, %v4887
  %v4944 = vpack.c.b16 %v4890, %v4889
  %v4945 = vpack.c.b16 %v4892, %v4891
  %v4946 = vpack.c.b16 %v4894, %v4893
  %v4947 = vpack.c.b16 %v4896, %v4895
  %v4948 = vpack.c.b16 %v4898, %v4897
  %v4949 = vpack.c.b16 %v4900, %v4899
  %v4950 = vpack.c.b16 %v4902, %v4901
  %v4951 = vpack.c.b16 %v4904, %v4903
  %v4952 = vpack.c.b16 %v4906, %v4905
  %v4953 = vpack.c.b16 %v4908, %v4907
  %v4954 = vpack.c.b16 %v4910, %v4909
  %v4955 = vpack.c.b16 %v4912, %v4911
  %v4956 = vpack.c.b16 %v4914, %v4913
  %v4957 = vpack.c.b16 %v4916, %v4915
  %v4958 = vpack.c.b16 %v4918, %v4917
  %v4959 = vpack.c.b16 %v4920, %v4919
  %v4960 = vpack.c.b16 %v4922, %v4921
  %v4961 = vpack.c.b16 %v4924, %v4923
  %v4962 = vpack.c.b16 %v4926, %v4925
  %v4963 = vpack.c.b16 %v4928, %v4927
  %v4964 = vpack.c.b16 %v4930, %v4929
  %v4965 = vpack.c.b16 %v4932, %v4931
  %v4966 = vpack.c.b16 %v4934, %v4933
  %v4976 = vunpack.c.l.b16 %v4798
  %v4977 = vunpack.c.l.b16 %v4799
  %v4978 = vunpack.c.l.b16 %v4800
  %v4979 = vunpack.c.l.b16 %v4801
  %v4980 = vunpack.c.l.b16 %v4802
  %v4981 = vunpack.c.l.b16 %v4803
  %v4982 = vunpack.c.l.b16 %v4804
  %v4983 = vunpack.c.l.b16 %v4805
  %v4984 = vunpack.c.l.b16 %v4806
  %v4985 = vpack.c.b16 %v4977, %v4976
  %v4986 = vpack.c.b16 %v4979, %v4978
  %v4987 = vpack.c.b16 %v4981, %v4980
  %v4988 = vpack.c.b16 %v4983, %v4982
  %v4989 = vpack.c.b16 %v4984, %v4984
  %vm4994 = vcmask 588800
  %v4996 = vsel %vm4994, %v4935, 0
  %v4999 = vsel %vm4994, %v4936, 0
  %v5002 = vsel %vm4994, %v4937, 0
  %v5005 = vsel %vm4994, %v4938, 0
  %v5008 = vsel %vm4994, %v4939, 0
  %v5011 = vsel %vm4994, %v4940, 0
  %v5014 = vsel %vm4994, %v4941, 0
  %v5017 = vsel %vm4994, %v4942, 0
  %v5020 = vsel %vm4994, %v4943, 0
  %v5023 = vsel %vm4994, %v4944, 0
  %v5026 = vsel %vm4994, %v4945, 0
  %v5029 = vsel %vm4994, %v4946, 0
  %v5032 = vsel %vm4994, %v4947, 0
  %v5035 = vsel %vm4994, %v4948, 0
  %v5038 = vsel %vm4994, %v4949, 0
  %v5041 = vsel %vm4994, %v4950, 0
  %v5044 = vsel %vm4994, %v4951, 0
  %v5047 = vsel %vm4994, %v4952, 0
  %v5050 = vsel %vm4994, %v4953, 0
  %v5053 = vsel %vm4994, %v4954, 0
  %v5056 = vsel %vm4994, %v4955, 0
  %v5059 = vsel %vm4994, %v4956, 0
  %v5062 = vsel %vm4994, %v4957, 0
  %v5065 = vsel %vm4994, %v4958, 0
  %v5068 = vsel %vm4994, %v4959, 0
  %v5071 = vsel %vm4994, %v4960, 0
  %v5074 = vsel %vm4994, %v4961, 0
  %v5077 = vsel %vm4994, %v4962, 0
  %v5080 = vsel %vm4994, %v4963, 0
  %v5083 = vsel %vm4994, %v4964, 0
  %v5086 = vsel %vm4994, %v4965, 0
  %v5089 = vsel %vm4994, %v4966, 0
  %vm5091 = vcmask 1043456
  %v5093 = vsel %vm5091, %v4989, 0
  %5095 = vmatprep.subr.bf16.mxu0 0
  %5096 = vmatpush1.bf16.msra.mxu0 0
  %5097 = vmatprep.subr.bf16.mxu0 0
  %5098 = vmatpush1.bf16.msra.mxu0 0
  %5099 = vmatprep.subr.bf16.mxu0 0
  %5100 = vmatpush1.bf16.msra.mxu0 0
  %5101 = vmatprep.subr.bf16.mxu0 0
  %5102 = vmatpush1.bf16.msra.mxu0 %v5093
  %5103 = vmatprep.subr.bf16.mxu0 0
  %5104 = vmatpush1.bf16.msra.mxu0 %v4988
  %5105 = vmatprep.subr.bf16.mxu0 0
  %5106 = vmatpush1.bf16.msra.mxu0 %v4987
  %5107 = vmatprep.subr.bf16.mxu0 0
  %5108 = vmatpush1.bf16.msra.mxu0 %v4986
  %5109 = vmatprep.subr.bf16.mxu0 0
  %5110 = vmatpush1.bf16.msra.mxu0 %v4985
  %5111 = vmatprep.subr.bf16.mxu0 0
  %5112 = vmatpush2.bf16.msra.mxu0 0
  %5113 = vmatprep.subr.bf16.mxu0 0
  %5114 = vmatpush2.bf16.msra.mxu0 0
  %5115 = vmatprep.subr.bf16.mxu0 0
  %5116 = vmatpush2.bf16.msra.mxu0 0
  %5117 = vmatprep.subr.bf16.mxu0 0
  %5118 = vmatpush2.bf16.msra.mxu0 0
  %5119 = vmatprep.subr.bf16.mxu0 0
  %5120 = vmatpush2.bf16.msra.mxu0 0
  %5121 = vmatprep.subr.bf16.mxu0 0
  %5122 = vmatpush2.bf16.msra.mxu0 0
  %5123 = vmatprep.subr.bf16.mxu0 0
  %5124 = vmatpush2.bf16.msra.mxu0 0
  %5125 = vmatprep.subr.bf16.mxu0 0
  %5126 = vmatpush2.bf16.msra.mxu0 0
  %5127 = vmatprep.mubr.bf16.mxu0 0
  %5128 = vmatmul.mubr.bf16.gmra.mxu0 %v4996
  %v5129 = vpop.f32.mrf.mxu0
  %v5130 = vadd.f32 0.0, %v5129
  %v5131 = vpop.f32.mrf.mxu0
  %v5132 = vpop.f32.mrf.mxu0
  %v5133 = vadd.f32 0.0, %v5132
  %v5134 = vpop.f32.mrf.mxu0
  %5135 = vmatprep.mubr.bf16.mxu0 0
  %5136 = vmatmul.mubr.bf16.gmra.mxu0 %v4999
  %v5137 = vpop.f32.mrf.mxu0
  %v5138 = vadd.f32 0.0, %v5137
  %v5139 = vpop.f32.mrf.mxu0
  %v5140 = vpop.f32.mrf.mxu0
  %v5141 = vadd.f32 0.0, %v5140
  %v5142 = vpop.f32.mrf.mxu0
  %5143 = vmatprep.mubr.bf16.mxu0 0
  %5144 = vmatmul.mubr.bf16.gmra.mxu0 %v5002
  %v5145 = vpop.f32.mrf.mxu0
  %v5146 = vadd.f32 0.0, %v5145
  %v5147 = vpop.f32.mrf.mxu0
  %v5148 = vpop.f32.mrf.mxu0
  %v5149 = vadd.f32 0.0, %v5148
  %v5150 = vpop.f32.mrf.mxu0
  %5151 = vmatprep.mubr.bf16.mxu0 0
  %5152 = vmatmul.mubr.bf16.gmra.mxu0 %v5005
  %v5153 = vpop.f32.mrf.mxu0
  %v5154 = vadd.f32 0.0, %v5153
  %v5155 = vpop.f32.mrf.mxu0
  %v5156 = vpop.f32.mrf.mxu0
  %v5157 = vadd.f32 0.0, %v5156
  %v5158 = vpop.f32.mrf.mxu0
  %5159 = vmatprep.mubr.bf16.mxu0 0
  %5160 = vmatmul.mubr.bf16.gmra.mxu0 %v5008
  %v5161 = vpop.f32.mrf.mxu0
  %v5162 = vadd.f32 0.0, %v5161
  %v5163 = vpop.f32.mrf.mxu0
  %v5164 = vpop.f32.mrf.mxu0
  %v5165 = vadd.f32 0.0, %v5164
  %v5166 = vpop.f32.mrf.mxu0
  %5167 = vmatprep.mubr.bf16.mxu0 0
  %5168 = vmatmul.mubr.bf16.gmra.mxu0 %v5011
  %v5169 = vpop.f32.mrf.mxu0
  %v5170 = vadd.f32 0.0, %v5169
  %v5171 = vpop.f32.mrf.mxu0
  %v5172 = vpop.f32.mrf.mxu0
  %v5173 = vadd.f32 0.0, %v5172
  %v5174 = vpop.f32.mrf.mxu0
  %5175 = vmatprep.mubr.bf16.mxu0 0
  %5176 = vmatmul.mubr.bf16.gmra.mxu0 %v5014
  %v5177 = vpop.f32.mrf.mxu0
  %v5178 = vadd.f32 0.0, %v5177
  %v5179 = vpop.f32.mrf.mxu0
  %v5180 = vpop.f32.mrf.mxu0
  %v5181 = vadd.f32 0.0, %v5180
  %v5182 = vpop.f32.mrf.mxu0
  %5183 = vmatprep.mubr.bf16.mxu0 0
  %5184 = vmatmul.mubr.bf16.gmra.mxu0 %v5017
  %v5185 = vpop.f32.mrf.mxu0
  %v5186 = vadd.f32 0.0, %v5185
  %v5187 = vpop.f32.mrf.mxu0
  %v5188 = vpop.f32.mrf.mxu0
  %v5189 = vadd.f32 0.0, %v5188
  %v5190 = vpop.f32.mrf.mxu0
  %5191 = vmatprep.mubr.bf16.mxu0 0
  %5192 = vmatmul.mubr.bf16.gmra.mxu0 %v5020
  %v5193 = vpop.f32.mrf.mxu0
  %v5194 = vadd.f32 0.0, %v5193
  %v5195 = vpop.f32.mrf.mxu0
  %v5196 = vpop.f32.mrf.mxu0
  %v5197 = vadd.f32 0.0, %v5196
  %v5198 = vpop.f32.mrf.mxu0
  %5199 = vmatprep.mubr.bf16.mxu0 0
  %5200 = vmatmul.mubr.bf16.gmra.mxu0 %v5023
  %v5201 = vpop.f32.mrf.mxu0
  %v5202 = vadd.f32 0.0, %v5201
  %v5203 = vpop.f32.mrf.mxu0
  %v5204 = vpop.f32.mrf.mxu0
  %v5205 = vadd.f32 0.0, %v5204
  %v5206 = vpop.f32.mrf.mxu0
  %5207 = vmatprep.mubr.bf16.mxu0 0
  %5208 = vmatmul.mubr.bf16.gmra.mxu0 %v5026
  %v5209 = vpop.f32.mrf.mxu0
  %v5210 = vadd.f32 0.0, %v5209
  %v5211 = vpop.f32.mrf.mxu0
  %v5212 = vpop.f32.mrf.mxu0
  %v5213 = vadd.f32 0.0, %v5212
  %v5214 = vpop.f32.mrf.mxu0
  %5215 = vmatprep.mubr.bf16.mxu0 0
  %5216 = vmatmul.mubr.bf16.gmra.mxu0 %v5029
  %v5217 = vpop.f32.mrf.mxu0
  %v5218 = vadd.f32 0.0, %v5217
  %v5219 = vpop.f32.mrf.mxu0
  %v5220 = vpop.f32.mrf.mxu0
  %v5221 = vadd.f32 0.0, %v5220
  %v5222 = vpop.f32.mrf.mxu0
  %5223 = vmatprep.mubr.bf16.mxu0 0
  %5224 = vmatmul.mubr.bf16.gmra.mxu0 %v5032
  %v5225 = vpop.f32.mrf.mxu0
  %v5226 = vadd.f32 0.0, %v5225
  %v5227 = vpop.f32.mrf.mxu0
  %v5228 = vpop.f32.mrf.mxu0
  %v5229 = vadd.f32 0.0, %v5228
  %v5230 = vpop.f32.mrf.mxu0
  %5231 = vmatprep.mubr.bf16.mxu0 0
  %5232 = vmatmul.mubr.bf16.gmra.mxu0 %v5035
  %v5233 = vpop.f32.mrf.mxu0
  %v5234 = vadd.f32 0.0, %v5233
  %v5235 = vpop.f32.mrf.mxu0
  %v5236 = vpop.f32.mrf.mxu0
  %v5237 = vadd.f32 0.0, %v5236
  %v5238 = vpop.f32.mrf.mxu0
  %5239 = vmatprep.mubr.bf16.mxu0 0
  %5240 = vmatmul.mubr.bf16.gmra.mxu0 %v5038
  %v5241 = vpop.f32.mrf.mxu0
  %v5242 = vadd.f32 0.0, %v5241
  %v5243 = vpop.f32.mrf.mxu0
  %v5244 = vpop.f32.mrf.mxu0
  %v5245 = vadd.f32 0.0, %v5244
  %v5246 = vpop.f32.mrf.mxu0
  %5247 = vmatprep.mubr.bf16.mxu0 0
  %5248 = vmatmul.mubr.bf16.gmra.mxu0 %v5041
  %v5249 = vpop.f32.mrf.mxu0
  %v5250 = vadd.f32 0.0, %v5249
  %v5251 = vpop.f32.mrf.mxu0
  %v5252 = vpop.f32.mrf.mxu0
  %v5253 = vadd.f32 0.0, %v5252
  %v5254 = vpop.f32.mrf.mxu0
  %5255 = vmatprep.mubr.bf16.mxu0 0
  %5256 = vmatmul.mubr.bf16.gmra.mxu0 %v5044
  %v5257 = vpop.f32.mrf.mxu0
  %v5258 = vadd.f32 0.0, %v5257
  %v5259 = vpop.f32.mrf.mxu0
  %v5260 = vpop.f32.mrf.mxu0
  %v5261 = vadd.f32 0.0, %v5260
  %v5262 = vpop.f32.mrf.mxu0
  %5263 = vmatprep.mubr.bf16.mxu0 0
  %5264 = vmatmul.mubr.bf16.gmra.mxu0 %v5047
  %v5265 = vpop.f32.mrf.mxu0
  %v5266 = vadd.f32 0.0, %v5265
  %v5267 = vpop.f32.mrf.mxu0
  %v5268 = vpop.f32.mrf.mxu0
  %v5269 = vadd.f32 0.0, %v5268
  %v5270 = vpop.f32.mrf.mxu0
  %5271 = vmatprep.mubr.bf16.mxu0 0
  %5272 = vmatmul.mubr.bf16.gmra.mxu0 %v5050
  %v5273 = vpop.f32.mrf.mxu0
  %v5274 = vadd.f32 0.0, %v5273
  %v5275 = vpop.f32.mrf.mxu0
  %v5276 = vpop.f32.mrf.mxu0
  %v5277 = vadd.f32 0.0, %v5276
  %v5278 = vpop.f32.mrf.mxu0
  %5279 = vmatprep.mubr.bf16.mxu0 0
  %5280 = vmatmul.mubr.bf16.gmra.mxu0 %v5053
  %v5281 = vpop.f32.mrf.mxu0
  %v5282 = vadd.f32 0.0, %v5281
  %v5283 = vpop.f32.mrf.mxu0
  %v5284 = vpop.f32.mrf.mxu0
  %v5285 = vadd.f32 0.0, %v5284
  %v5286 = vpop.f32.mrf.mxu0
  %5287 = vmatprep.mubr.bf16.mxu0 0
  %5288 = vmatmul.mubr.bf16.gmra.mxu0 %v5056
  %v5289 = vpop.f32.mrf.mxu0
  %v5290 = vadd.f32 0.0, %v5289
  %v5291 = vpop.f32.mrf.mxu0
  %v5292 = vpop.f32.mrf.mxu0
  %v5293 = vadd.f32 0.0, %v5292
  %v5294 = vpop.f32.mrf.mxu0
  %5295 = vmatprep.mubr.bf16.mxu0 0
  %5296 = vmatmul.mubr.bf16.gmra.mxu0 %v5059
  %v5297 = vpop.f32.mrf.mxu0
  %v5298 = vadd.f32 0.0, %v5297
  %v5299 = vpop.f32.mrf.mxu0
  %v5300 = vpop.f32.mrf.mxu0
  %v5301 = vadd.f32 0.0, %v5300
  %v5302 = vpop.f32.mrf.mxu0
  %5303 = vmatprep.mubr.bf16.mxu0 0
  %5304 = vmatmul.mubr.bf16.gmra.mxu0 %v5062
  %v5305 = vpop.f32.mrf.mxu0
  %v5306 = vadd.f32 0.0, %v5305
  %v5307 = vpop.f32.mrf.mxu0
  %v5308 = vpop.f32.mrf.mxu0
  %v5309 = vadd.f32 0.0, %v5308
  %v5310 = vpop.f32.mrf.mxu0
  %5311 = vmatprep.mubr.bf16.mxu0 0
  %5312 = vmatmul.mubr.bf16.gmra.mxu0 %v5065
  %v5313 = vpop.f32.mrf.mxu0
  %v5314 = vadd.f32 0.0, %v5313
  %v5315 = vpop.f32.mrf.mxu0
  %v5316 = vpop.f32.mrf.mxu0
  %v5317 = vadd.f32 0.0, %v5316
  %v5318 = vpop.f32.mrf.mxu0
  %5319 = vmatprep.mubr.bf16.mxu0 0
  %5320 = vmatmul.mubr.bf16.gmra.mxu0 %v5068
  %v5321 = vpop.f32.mrf.mxu0
  %v5322 = vadd.f32 0.0, %v5321
  %v5323 = vpop.f32.mrf.mxu0
  %v5324 = vpop.f32.mrf.mxu0
  %v5325 = vadd.f32 0.0, %v5324
  %v5326 = vpop.f32.mrf.mxu0
  %5327 = vmatprep.mubr.bf16.mxu0 0
  %5328 = vmatmul.mubr.bf16.gmra.mxu0 %v5071
  %v5329 = vpop.f32.mrf.mxu0
  %v5330 = vadd.f32 0.0, %v5329
  %v5331 = vpop.f32.mrf.mxu0
  %v5332 = vpop.f32.mrf.mxu0
  %v5333 = vadd.f32 0.0, %v5332
  %v5334 = vpop.f32.mrf.mxu0
  %5335 = vmatprep.mubr.bf16.mxu0 0
  %5336 = vmatmul.mubr.bf16.gmra.mxu0 %v5074
  %v5337 = vpop.f32.mrf.mxu0
  %v5338 = vadd.f32 0.0, %v5337
  %v5339 = vpop.f32.mrf.mxu0
  %v5340 = vpop.f32.mrf.mxu0
  %v5341 = vadd.f32 0.0, %v5340
  %v5342 = vpop.f32.mrf.mxu0
  %5343 = vmatprep.mubr.bf16.mxu0 0
  %5344 = vmatmul.mubr.bf16.gmra.mxu0 %v5077
  %v5345 = vpop.f32.mrf.mxu0
  %v5346 = vadd.f32 0.0, %v5345
  %v5347 = vpop.f32.mrf.mxu0
  %v5348 = vpop.f32.mrf.mxu0
  %v5349 = vadd.f32 0.0, %v5348
  %v5350 = vpop.f32.mrf.mxu0
  %5351 = vmatprep.mubr.bf16.mxu0 0
  %5352 = vmatmul.mubr.bf16.gmra.mxu0 %v5080
  %v5353 = vpop.f32.mrf.mxu0
  %v5354 = vadd.f32 0.0, %v5353
  %v5355 = vpop.f32.mrf.mxu0
  %v5356 = vpop.f32.mrf.mxu0
  %v5357 = vadd.f32 0.0, %v5356
  %v5358 = vpop.f32.mrf.mxu0
  %5359 = vmatprep.mubr.bf16.mxu0 0
  %5360 = vmatmul.mubr.bf16.gmra.mxu0 %v5083
  %v5361 = vpop.f32.mrf.mxu0
  %v5362 = vadd.f32 0.0, %v5361
  %v5363 = vpop.f32.mrf.mxu0
  %v5364 = vpop.f32.mrf.mxu0
  %v5365 = vadd.f32 0.0, %v5364
  %v5366 = vpop.f32.mrf.mxu0
  %5367 = vmatprep.mubr.bf16.mxu0 0
  %5368 = vmatmul.mubr.bf16.gmra.mxu0 %v5086
  %v5369 = vpop.f32.mrf.mxu0
  %v5370 = vadd.f32 0.0, %v5369
  %v5371 = vpop.f32.mrf.mxu0
  %v5372 = vpop.f32.mrf.mxu0
  %v5373 = vadd.f32 0.0, %v5372
  %v5374 = vpop.f32.mrf.mxu0
  %5375 = vmatprep.mubr.bf16.mxu0 0
  %5376 = vmatmul.mubr.bf16.gmra.mxu0 %v5089
  %v5377 = vpop.f32.mrf.mxu0
  %v5378 = vadd.f32 0.0, %v5377
  %v5379 = vpop.f32.mrf.mxu0
  %v5380 = vpop.f32.mrf.mxu0
  %v5381 = vadd.f32 0.0, %v5380
  %v5382 = vpop.f32.mrf.mxu0
  %5383 = vdwg.mxu0
  %v5384 = vsel %vm27, %v5130, 0.0
  %v5385 = vsel %vm27, %v5133, 0.0
  %v5386 = vadd.f32 %v5384, %v5385
  %v5387 = vsel %vm27, %v5138, 0.0
  %v5388 = vadd.f32 %v5386, %v5387
  %v5389 = vsel %vm27, %v5141, 0.0
  %v5390 = vadd.f32 %v5388, %v5389
  %v5391 = vsel %vm27, %v5146, 0.0
  %v5392 = vadd.f32 %v5390, %v5391
  %v5393 = vsel %vm27, %v5149, 0.0
  %v5394 = vadd.f32 %v5392, %v5393
  %v5395 = vsel %vm27, %v5154, 0.0
  %v5396 = vadd.f32 %v5394, %v5395
  %v5397 = vsel %vm27, %v5157, 0.0
  %v5398 = vadd.f32 %v5396, %v5397
  %v5399 = vsel %vm27, %v5162, 0.0
  %v5400 = vadd.f32 %v5398, %v5399
  %v5401 = vsel %vm27, %v5165, 0.0
  %v5402 = vadd.f32 %v5400, %v5401
  %v5403 = vsel %vm27, %v5170, 0.0
  %v5404 = vadd.f32 %v5402, %v5403
  %v5405 = vsel %vm27, %v5173, 0.0
  %v5406 = vadd.f32 %v5404, %v5405
  %v5407 = vsel %vm27, %v5178, 0.0
  %v5408 = vadd.f32 %v5406, %v5407
  %v5409 = vsel %vm27, %v5181, 0.0
  %v5410 = vadd.f32 %v5408, %v5409
  %v5411 = vsel %vm27, %v5186, 0.0
  %v5412 = vadd.f32 %v5410, %v5411
  %v5413 = vsel %vm27, %v5189, 0.0
  %v5414 = vadd.f32 %v5412, %v5413
  %v5415 = vsel %vm27, %v5194, 0.0
  %v5416 = vadd.f32 %v5414, %v5415
  %v5417 = vsel %vm27, %v5197, 0.0
  %v5418 = vadd.f32 %v5416, %v5417
  %v5419 = vsel %vm27, %v5202, 0.0
  %v5420 = vadd.f32 %v5418, %v5419
  %v5421 = vsel %vm27, %v5205, 0.0
  %v5422 = vadd.f32 %v5420, %v5421
  %v5423 = vsel %vm27, %v5210, 0.0
  %v5424 = vadd.f32 %v5422, %v5423
  %v5425 = vsel %vm27, %v5213, 0.0
  %v5426 = vadd.f32 %v5424, %v5425
  %v5427 = vsel %vm27, %v5218, 0.0
  %v5428 = vadd.f32 %v5426, %v5427
  %v5429 = vsel %vm27, %v5221, 0.0
  %v5430 = vadd.f32 %v5428, %v5429
  %v5431 = vsel %vm27, %v5226, 0.0
  %v5432 = vadd.f32 %v5430, %v5431
  %v5433 = vsel %vm27, %v5229, 0.0
  %v5434 = vadd.f32 %v5432, %v5433
  %v5435 = vsel %vm27, %v5234, 0.0
  %v5436 = vadd.f32 %v5434, %v5435
  %v5437 = vsel %vm27, %v5237, 0.0
  %v5438 = vadd.f32 %v5436, %v5437
  %v5439 = vsel %vm27, %v5242, 0.0
  %v5440 = vadd.f32 %v5438, %v5439
  %v5441 = vsel %vm27, %v5245, 0.0
  %v5442 = vadd.f32 %v5440, %v5441
  %v5443 = vsel %vm27, %v5250, 0.0
  %v5444 = vadd.f32 %v5442, %v5443
  %v5445 = vsel %vm27, %v5253, 0.0
  %v5446 = vadd.f32 %v5444, %v5445
  %v5447 = vsel %vm27, %v5258, 0.0
  %v5448 = vadd.f32 %v5446, %v5447
  %v5449 = vsel %vm27, %v5261, 0.0
  %v5450 = vadd.f32 %v5448, %v5449
  %v5451 = vsel %vm27, %v5266, 0.0
  %v5452 = vadd.f32 %v5450, %v5451
  %v5453 = vsel %vm27, %v5269, 0.0
  %v5454 = vadd.f32 %v5452, %v5453
  %v5455 = vsel %vm27, %v5274, 0.0
  %v5456 = vadd.f32 %v5454, %v5455
  %v5457 = vsel %vm27, %v5277, 0.0
  %v5458 = vadd.f32 %v5456, %v5457
  %v5459 = vsel %vm27, %v5282, 0.0
  %v5460 = vadd.f32 %v5458, %v5459
  %v5461 = vsel %vm27, %v5285, 0.0
  %v5462 = vadd.f32 %v5460, %v5461
  %v5463 = vsel %vm27, %v5290, 0.0
  %v5464 = vadd.f32 %v5462, %v5463
  %v5465 = vsel %vm27, %v5293, 0.0
  %v5466 = vadd.f32 %v5464, %v5465
  %v5467 = vsel %vm27, %v5298, 0.0
  %v5468 = vadd.f32 %v5466, %v5467
  %v5469 = vsel %vm27, %v5301, 0.0
  %v5470 = vadd.f32 %v5468, %v5469
  %v5471 = vsel %vm27, %v5306, 0.0
  %v5472 = vadd.f32 %v5470, %v5471
  %v5473 = vsel %vm27, %v5309, 0.0
  %v5474 = vadd.f32 %v5472, %v5473
  %v5475 = vsel %vm27, %v5314, 0.0
  %v5476 = vadd.f32 %v5474, %v5475
  %v5477 = vsel %vm27, %v5317, 0.0
  %v5478 = vadd.f32 %v5476, %v5477
  %v5479 = vsel %vm27, %v5322, 0.0
  %v5480 = vadd.f32 %v5478, %v5479
  %v5481 = vsel %vm27, %v5325, 0.0
  %v5482 = vadd.f32 %v5480, %v5481
  %v5483 = vsel %vm27, %v5330, 0.0
  %v5484 = vadd.f32 %v5482, %v5483
  %v5485 = vsel %vm27, %v5333, 0.0
  %v5486 = vadd.f32 %v5484, %v5485
  %v5487 = vsel %vm27, %v5338, 0.0
  %v5488 = vadd.f32 %v5486, %v5487
  %v5489 = vsel %vm27, %v5341, 0.0
  %v5490 = vadd.f32 %v5488, %v5489
  %v5491 = vsel %vm27, %v5346, 0.0
  %v5492 = vadd.f32 %v5490, %v5491
  %v5493 = vsel %vm27, %v5349, 0.0
  %v5494 = vadd.f32 %v5492, %v5493
  %v5495 = vsel %vm27, %v5354, 0.0
  %v5496 = vadd.f32 %v5494, %v5495
  %v5497 = vsel %vm27, %v5357, 0.0
  %v5498 = vadd.f32 %v5496, %v5497
  %v5499 = vsel %vm27, %v5362, 0.0
  %v5500 = vadd.f32 %v5498, %v5499
  %v5501 = vsel %vm27, %v5365, 0.0
  %v5502 = vadd.f32 %v5500, %v5501
  %v5503 = vsel %vm27, %v5370, 0.0
  %v5504 = vadd.f32 %v5502, %v5503
  %v5505 = vsel %vm27, %v5373, 0.0
  %v5506 = vadd.f32 %v5504, %v5505
  %v5507 = vsel %vm27, %v5378, 0.0
  %v5508 = vadd.f32 %v5506, %v5507
  %v5509 = vsel %vm27, %v5381, 0.0
  %v5510 = vadd.f32 %v5508, %v5509
  %v5511 = vrot.slane %v5510, 4
  %v5512 = vadd.f32 %v5510, %v5511
  %v5513 = vrot.slane %v5512, 2
  %v5514 = vadd.f32 %v5512, %v5513
  %v5515 = vrot.slane %v5514, 1
  %v5516 = vadd.f32 %v5514, %v5515
  %v5517 = vmul.f32 %v5516, 0.001953125
  %v5518 = vmul.f32 %v5130, %v5130
  %v5519 = vmul.f32 %v5133, %v5133
  %v5520 = vmul.f32 %v5138, %v5138
  %v5521 = vmul.f32 %v5141, %v5141
  %v5522 = vmul.f32 %v5146, %v5146
  %v5523 = vmul.f32 %v5149, %v5149
  %v5524 = vmul.f32 %v5154, %v5154
  %v5525 = vmul.f32 %v5157, %v5157
  %v5526 = vmul.f32 %v5162, %v5162
  %v5527 = vmul.f32 %v5165, %v5165
  %v5528 = vmul.f32 %v5170, %v5170
  %v5529 = vmul.f32 %v5173, %v5173
  %v5530 = vmul.f32 %v5178, %v5178
  %v5531 = vmul.f32 %v5181, %v5181
  %v5532 = vmul.f32 %v5186, %v5186
  %v5533 = vmul.f32 %v5189, %v5189
  %v5534 = vmul.f32 %v5194, %v5194
  %v5535 = vmul.f32 %v5197, %v5197
  %v5536 = vmul.f32 %v5202, %v5202
  %v5537 = vmul.f32 %v5205, %v5205
  %v5538 = vmul.f32 %v5210, %v5210
  %v5539 = vmul.f32 %v5213, %v5213
  %v5540 = vmul.f32 %v5218, %v5218
  %v5541 = vmul.f32 %v5221, %v5221
  %v5542 = vmul.f32 %v5226, %v5226
  %v5543 = vmul.f32 %v5229, %v5229
  %v5544 = vmul.f32 %v5234, %v5234
  %v5545 = vmul.f32 %v5237, %v5237
  %v5546 = vmul.f32 %v5242, %v5242
  %v5547 = vmul.f32 %v5245, %v5245
  %v5548 = vmul.f32 %v5250, %v5250
  %v5549 = vmul.f32 %v5253, %v5253
  %v5550 = vmul.f32 %v5258, %v5258
  %v5551 = vmul.f32 %v5261, %v5261
  %v5552 = vmul.f32 %v5266, %v5266
  %v5553 = vmul.f32 %v5269, %v5269
  %v5554 = vmul.f32 %v5274, %v5274
  %v5555 = vmul.f32 %v5277, %v5277
  %v5556 = vmul.f32 %v5282, %v5282
  %v5557 = vmul.f32 %v5285, %v5285
  %v5558 = vmul.f32 %v5290, %v5290
  %v5559 = vmul.f32 %v5293, %v5293
  %v5560 = vmul.f32 %v5298, %v5298
  %v5561 = vmul.f32 %v5301, %v5301
  %v5562 = vmul.f32 %v5306, %v5306
  %v5563 = vmul.f32 %v5309, %v5309
  %v5564 = vmul.f32 %v5314, %v5314
  %v5565 = vmul.f32 %v5317, %v5317
  %v5566 = vmul.f32 %v5322, %v5322
  %v5567 = vmul.f32 %v5325, %v5325
  %v5568 = vmul.f32 %v5330, %v5330
  %v5569 = vmul.f32 %v5333, %v5333
  %v5570 = vmul.f32 %v5338, %v5338
  %v5571 = vmul.f32 %v5341, %v5341
  %v5572 = vmul.f32 %v5346, %v5346
  %v5573 = vmul.f32 %v5349, %v5349
  %v5574 = vmul.f32 %v5354, %v5354
  %v5575 = vmul.f32 %v5357, %v5357
  %v5576 = vmul.f32 %v5362, %v5362
  %v5577 = vmul.f32 %v5365, %v5365
  %v5578 = vmul.f32 %v5370, %v5370
  %v5579 = vmul.f32 %v5373, %v5373
  %v5580 = vmul.f32 %v5378, %v5378
  %v5581 = vmul.f32 %v5381, %v5381
  %v5582 = vsel %vm27, %v5518, 0.0
  %v5583 = vsel %vm27, %v5519, 0.0
  %v5584 = vadd.f32 %v5582, %v5583
  %v5585 = vsel %vm27, %v5520, 0.0
  %v5586 = vadd.f32 %v5584, %v5585
  %v5587 = vsel %vm27, %v5521, 0.0
  %v5588 = vadd.f32 %v5586, %v5587
  %v5589 = vsel %vm27, %v5522, 0.0
  %v5590 = vadd.f32 %v5588, %v5589
  %v5591 = vsel %vm27, %v5523, 0.0
  %v5592 = vadd.f32 %v5590, %v5591
  %v5593 = vsel %vm27, %v5524, 0.0
  %v5594 = vadd.f32 %v5592, %v5593
  %v5595 = vsel %vm27, %v5525, 0.0
  %v5596 = vadd.f32 %v5594, %v5595
  %v5597 = vsel %vm27, %v5526, 0.0
  %v5598 = vadd.f32 %v5596, %v5597
  %v5599 = vsel %vm27, %v5527, 0.0
  %v5600 = vadd.f32 %v5598, %v5599
  %v5601 = vsel %vm27, %v5528, 0.0
  %v5602 = vadd.f32 %v5600, %v5601
  %v5603 = vsel %vm27, %v5529, 0.0
  %v5604 = vadd.f32 %v5602, %v5603
  %v5605 = vsel %vm27, %v5530, 0.0
  %v5606 = vadd.f32 %v5604, %v5605
  %v5607 = vsel %vm27, %v5531, 0.0
  %v5608 = vadd.f32 %v5606, %v5607
  %v5609 = vsel %vm27, %v5532, 0.0
  %v5610 = vadd.f32 %v5608, %v5609
  %v5611 = vsel %vm27, %v5533, 0.0
  %v5612 = vadd.f32 %v5610, %v5611
  %v5613 = vsel %vm27, %v5534, 0.0
  %v5614 = vadd.f32 %v5612, %v5613
  %v5615 = vsel %vm27, %v5535, 0.0
  %v5616 = vadd.f32 %v5614, %v5615
  %v5617 = vsel %vm27, %v5536, 0.0
  %v5618 = vadd.f32 %v5616, %v5617
  %v5619 = vsel %vm27, %v5537, 0.0
  %v5620 = vadd.f32 %v5618, %v5619
  %v5621 = vsel %vm27, %v5538, 0.0
  %v5622 = vadd.f32 %v5620, %v5621
  %v5623 = vsel %vm27, %v5539, 0.0
  %v5624 = vadd.f32 %v5622, %v5623
  %v5625 = vsel %vm27, %v5540, 0.0
  %v5626 = vadd.f32 %v5624, %v5625
  %v5627 = vsel %vm27, %v5541, 0.0
  %v5628 = vadd.f32 %v5626, %v5627
  %v5629 = vsel %vm27, %v5542, 0.0
  %v5630 = vadd.f32 %v5628, %v5629
  %v5631 = vsel %vm27, %v5543, 0.0
  %v5632 = vadd.f32 %v5630, %v5631
  %v5633 = vsel %vm27, %v5544, 0.0
  %v5634 = vadd.f32 %v5632, %v5633
  %v5635 = vsel %vm27, %v5545, 0.0
  %v5636 = vadd.f32 %v5634, %v5635
  %v5637 = vsel %vm27, %v5546, 0.0
  %v5638 = vadd.f32 %v5636, %v5637
  %v5639 = vsel %vm27, %v5547, 0.0
  %v5640 = vadd.f32 %v5638, %v5639
  %v5641 = vsel %vm27, %v5548, 0.0
  %v5642 = vadd.f32 %v5640, %v5641
  %v5643 = vsel %vm27, %v5549, 0.0
  %v5644 = vadd.f32 %v5642, %v5643
  %v5645 = vsel %vm27, %v5550, 0.0
  %v5646 = vadd.f32 %v5644, %v5645
  %v5647 = vsel %vm27, %v5551, 0.0
  %v5648 = vadd.f32 %v5646, %v5647
  %v5649 = vsel %vm27, %v5552, 0.0
  %v5650 = vadd.f32 %v5648, %v5649
  %v5651 = vsel %vm27, %v5553, 0.0
  %v5652 = vadd.f32 %v5650, %v5651
  %v5653 = vsel %vm27, %v5554, 0.0
  %v5654 = vadd.f32 %v5652, %v5653
  %v5655 = vsel %vm27, %v5555, 0.0
  %v5656 = vadd.f32 %v5654, %v5655
  %v5657 = vsel %vm27, %v5556, 0.0
  %v5658 = vadd.f32 %v5656, %v5657
  %v5659 = vsel %vm27, %v5557, 0.0
  %v5660 = vadd.f32 %v5658, %v5659
  %v5661 = vsel %vm27, %v5558, 0.0
  %v5662 = vadd.f32 %v5660, %v5661
  %v5663 = vsel %vm27, %v5559, 0.0
  %v5664 = vadd.f32 %v5662, %v5663
  %v5665 = vsel %vm27, %v5560, 0.0
  %v5666 = vadd.f32 %v5664, %v5665
  %v5667 = vsel %vm27, %v5561, 0.0
  %v5668 = vadd.f32 %v5666, %v5667
  %v5669 = vsel %vm27, %v5562, 0.0
  %v5670 = vadd.f32 %v5668, %v5669
  %v5671 = vsel %vm27, %v5563, 0.0
  %v5672 = vadd.f32 %v5670, %v5671
  %v5673 = vsel %vm27, %v5564, 0.0
  %v5674 = vadd.f32 %v5672, %v5673
  %v5675 = vsel %vm27, %v5565, 0.0
  %v5676 = vadd.f32 %v5674, %v5675
  %v5677 = vsel %vm27, %v5566, 0.0
  %v5678 = vadd.f32 %v5676, %v5677
  %v5679 = vsel %vm27, %v5567, 0.0
  %v5680 = vadd.f32 %v5678, %v5679
  %v5681 = vsel %vm27, %v5568, 0.0
  %v5682 = vadd.f32 %v5680, %v5681
  %v5683 = vsel %vm27, %v5569, 0.0
  %v5684 = vadd.f32 %v5682, %v5683
  %v5685 = vsel %vm27, %v5570, 0.0
  %v5686 = vadd.f32 %v5684, %v5685
  %v5687 = vsel %vm27, %v5571, 0.0
  %v5688 = vadd.f32 %v5686, %v5687
  %v5689 = vsel %vm27, %v5572, 0.0
  %v5690 = vadd.f32 %v5688, %v5689
  %v5691 = vsel %vm27, %v5573, 0.0
  %v5692 = vadd.f32 %v5690, %v5691
  %v5693 = vsel %vm27, %v5574, 0.0
  %v5694 = vadd.f32 %v5692, %v5693
  %v5695 = vsel %vm27, %v5575, 0.0
  %v5696 = vadd.f32 %v5694, %v5695
  %v5697 = vsel %vm27, %v5576, 0.0
  %v5698 = vadd.f32 %v5696, %v5697
  %v5699 = vsel %vm27, %v5577, 0.0
  %v5700 = vadd.f32 %v5698, %v5699
  %v5701 = vsel %vm27, %v5578, 0.0
  %v5702 = vadd.f32 %v5700, %v5701
  %v5703 = vsel %vm27, %v5579, 0.0
  %v5704 = vadd.f32 %v5702, %v5703
  %v5705 = vsel %vm27, %v5580, 0.0
  %v5706 = vadd.f32 %v5704, %v5705
  %v5707 = vsel %vm27, %v5581, 0.0
  %v5708 = vadd.f32 %v5706, %v5707
  %v5709 = vrot.slane %v5708, 4
  %v5710 = vadd.f32 %v5708, %v5709
  %v5711 = vrot.slane %v5710, 2
  %v5712 = vadd.f32 %v5710, %v5711
  %v5713 = vrot.slane %v5712, 1
  %v5714 = vadd.f32 %v5712, %v5713
  %v5715 = vmul.f32 %v5714, 0.001953125
  %v5716 = vmul.f32 %v5517, %v5517
  %v5717 = vsub.f32 %v5715, %v5716
  %v5718 = vmax.f32 %v5717, 0.0
  %v5719 = vld [vmem:[%s2] sm:$0x1]
  %v5720 = vadd.f32 %v5718, 1e-05
  %v5721 = vrsqrt.pop %v5720
  %v5722 = vmul.f32 %v5719, %v5721
  %v5723 = vld [vmem:[%s3] sm:$0x1]
  %v5724 = vmul.f32 %v5517, %v5722
  %v5725 = vsub.f32 %v5723, %v5724
  %v5727 = vlaneseq
  %v5728 = vshrl.u32 %v5727, 7
  %v5729 = vsub.s32 0, %v5728
  %v5730 = vrot.slane %v5722, %v5729
  %v5732 = vmul.f32 %v5130, %v5730
  %v5733 = vmul.f32 %v5133, %v5730
  %v5734 = vmul.f32 %v5138, %v5730
  %v5735 = vmul.f32 %v5141, %v5730
  %v5736 = vmul.f32 %v5146, %v5730
  %v5737 = vmul.f32 %v5149, %v5730
  %v5738 = vmul.f32 %v5154, %v5730
  %v5739 = vmul.f32 %v5157, %v5730
  %v5740 = vmul.f32 %v5162, %v5730
  %v5741 = vmul.f32 %v5165, %v5730
  %v5742 = vmul.f32 %v5170, %v5730
  %v5743 = vmul.f32 %v5173, %v5730
  %v5744 = vmul.f32 %v5178, %v5730
  %v5745 = vmul.f32 %v5181, %v5730
  %v5746 = vmul.f32 %v5186, %v5730
  %v5747 = vmul.f32 %v5189, %v5730
  %v5748 = vmul.f32 %v5194, %v5730
  %v5749 = vmul.f32 %v5197, %v5730
  %v5750 = vmul.f32 %v5202, %v5730
  %v5751 = vmul.f32 %v5205, %v5730
  %v5752 = vmul.f32 %v5210, %v5730
  %v5753 = vmul.f32 %v5213, %v5730
  %v5754 = vmul.f32 %v5218, %v5730
  %v5755 = vmul.f32 %v5221, %v5730
  %v5756 = vmul.f32 %v5226, %v5730
  %v5757 = vmul.f32 %v5229, %v5730
  %v5758 = vmul.f32 %v5234, %v5730
  %v5759 = vmul.f32 %v5237, %v5730
  %v5760 = vmul.f32 %v5242, %v5730
  %v5761 = vmul.f32 %v5245, %v5730
  %v5762 = vmul.f32 %v5250, %v5730
  %v5763 = vmul.f32 %v5253, %v5730
  %v5764 = vmul.f32 %v5258, %v5730
  %v5765 = vmul.f32 %v5261, %v5730
  %v5766 = vmul.f32 %v5266, %v5730
  %v5767 = vmul.f32 %v5269, %v5730
  %v5768 = vmul.f32 %v5274, %v5730
  %v5769 = vmul.f32 %v5277, %v5730
  %v5770 = vmul.f32 %v5282, %v5730
  %v5771 = vmul.f32 %v5285, %v5730
  %v5772 = vmul.f32 %v5290, %v5730
  %v5773 = vmul.f32 %v5293, %v5730
  %v5774 = vmul.f32 %v5298, %v5730
  %v5775 = vmul.f32 %v5301, %v5730
  %v5776 = vmul.f32 %v5306, %v5730
  %v5777 = vmul.f32 %v5309, %v5730
  %v5778 = vmul.f32 %v5314, %v5730
  %v5779 = vmul.f32 %v5317, %v5730
  %v5780 = vmul.f32 %v5322, %v5730
  %v5781 = vmul.f32 %v5325, %v5730
  %v5782 = vmul.f32 %v5330, %v5730
  %v5783 = vmul.f32 %v5333, %v5730
  %v5784 = vmul.f32 %v5338, %v5730
  %v5785 = vmul.f32 %v5341, %v5730
  %v5786 = vmul.f32 %v5346, %v5730
  %v5787 = vmul.f32 %v5349, %v5730
  %v5788 = vmul.f32 %v5354, %v5730
  %v5789 = vmul.f32 %v5357, %v5730
  %v5790 = vmul.f32 %v5362, %v5730
  %v5791 = vmul.f32 %v5365, %v5730
  %v5792 = vmul.f32 %v5370, %v5730
  %v5793 = vmul.f32 %v5373, %v5730
  %v5794 = vmul.f32 %v5378, %v5730
  %v5795 = vmul.f32 %v5381, %v5730
  %v5797 = vlaneseq
  %v5798 = vshrl.u32 %v5797, 7
  %v5799 = vsub.s32 0, %v5798
  %v5800 = vrot.slane %v5725, %v5799
  %v5802 = vadd.f32 %v5732, %v5800
  %v5803 = vadd.f32 %v5733, %v5800
  %v5804 = vadd.f32 %v5734, %v5800
  %v5805 = vadd.f32 %v5735, %v5800
  %v5806 = vadd.f32 %v5736, %v5800
  %v5807 = vadd.f32 %v5737, %v5800
  %v5808 = vadd.f32 %v5738, %v5800
  %v5809 = vadd.f32 %v5739, %v5800
  %v5810 = vadd.f32 %v5740, %v5800
  %v5811 = vadd.f32 %v5741, %v5800
  %v5812 = vadd.f32 %v5742, %v5800
  %v5813 = vadd.f32 %v5743, %v5800
  %v5814 = vadd.f32 %v5744, %v5800
  %v5815 = vadd.f32 %v5745, %v5800
  %v5816 = vadd.f32 %v5746, %v5800
  %v5817 = vadd.f32 %v5747, %v5800
  %v5818 = vadd.f32 %v5748, %v5800
  %v5819 = vadd.f32 %v5749, %v5800
  %v5820 = vadd.f32 %v5750, %v5800
  %v5821 = vadd.f32 %v5751, %v5800
  %v5822 = vadd.f32 %v5752, %v5800
  %v5823 = vadd.f32 %v5753, %v5800
  %v5824 = vadd.f32 %v5754, %v5800
  %v5825 = vadd.f32 %v5755, %v5800
  %v5826 = vadd.f32 %v5756, %v5800
  %v5827 = vadd.f32 %v5757, %v5800
  %v5828 = vadd.f32 %v5758, %v5800
  %v5829 = vadd.f32 %v5759, %v5800
  %v5830 = vadd.f32 %v5760, %v5800
  %v5831 = vadd.f32 %v5761, %v5800
  %v5832 = vadd.f32 %v5762, %v5800
  %v5833 = vadd.f32 %v5763, %v5800
  %v5834 = vadd.f32 %v5764, %v5800
  %v5835 = vadd.f32 %v5765, %v5800
  %v5836 = vadd.f32 %v5766, %v5800
  %v5837 = vadd.f32 %v5767, %v5800
  %v5838 = vadd.f32 %v5768, %v5800
  %v5839 = vadd.f32 %v5769, %v5800
  %v5840 = vadd.f32 %v5770, %v5800
  %v5841 = vadd.f32 %v5771, %v5800
  %v5842 = vadd.f32 %v5772, %v5800
  %v5843 = vadd.f32 %v5773, %v5800
  %v5844 = vadd.f32 %v5774, %v5800
  %v5845 = vadd.f32 %v5775, %v5800
  %v5846 = vadd.f32 %v5776, %v5800
  %v5847 = vadd.f32 %v5777, %v5800
  %v5848 = vadd.f32 %v5778, %v5800
  %v5849 = vadd.f32 %v5779, %v5800
  %v5850 = vadd.f32 %v5780, %v5800
  %v5851 = vadd.f32 %v5781, %v5800
  %v5852 = vadd.f32 %v5782, %v5800
  %v5853 = vadd.f32 %v5783, %v5800
  %v5854 = vadd.f32 %v5784, %v5800
  %v5855 = vadd.f32 %v5785, %v5800
  %v5856 = vadd.f32 %v5786, %v5800
  %v5857 = vadd.f32 %v5787, %v5800
  %v5858 = vadd.f32 %v5788, %v5800
  %v5859 = vadd.f32 %v5789, %v5800
  %v5860 = vadd.f32 %v5790, %v5800
  %v5861 = vadd.f32 %v5791, %v5800
  %v5862 = vadd.f32 %v5792, %v5800
  %v5863 = vadd.f32 %v5793, %v5800
  %v5864 = vadd.f32 %v5794, %v5800
  %v5865 = vadd.f32 %v5795, %v5800
  %v5866 = vmax.f32 %v5802, 0.0
  %v5867 = vmax.f32 %v5803, 0.0
  %v5868 = vmax.f32 %v5804, 0.0
  %v5869 = vmax.f32 %v5805, 0.0
  %v5870 = vmax.f32 %v5806, 0.0
  %v5871 = vmax.f32 %v5807, 0.0
  %v5872 = vmax.f32 %v5808, 0.0
  %v5873 = vmax.f32 %v5809, 0.0
  %v5874 = vmax.f32 %v5810, 0.0
  %v5875 = vmax.f32 %v5811, 0.0
  %v5876 = vmax.f32 %v5812, 0.0
  %v5877 = vmax.f32 %v5813, 0.0
  %v5878 = vmax.f32 %v5814, 0.0
  %v5879 = vmax.f32 %v5815, 0.0
  %v5880 = vmax.f32 %v5816, 0.0
  %v5881 = vmax.f32 %v5817, 0.0
  %v5882 = vmax.f32 %v5818, 0.0
  %v5883 = vmax.f32 %v5819, 0.0
  %v5884 = vmax.f32 %v5820, 0.0
  %v5885 = vmax.f32 %v5821, 0.0
  %v5886 = vmax.f32 %v5822, 0.0
  %v5887 = vmax.f32 %v5823, 0.0
  %v5888 = vmax.f32 %v5824, 0.0
  %v5889 = vmax.f32 %v5825, 0.0
  %v5890 = vmax.f32 %v5826, 0.0
  %v5891 = vmax.f32 %v5827, 0.0
  %v5892 = vmax.f32 %v5828, 0.0
  %v5893 = vmax.f32 %v5829, 0.0
  %v5894 = vmax.f32 %v5830, 0.0
  %v5895 = vmax.f32 %v5831, 0.0
  %v5896 = vmax.f32 %v5832, 0.0
  %v5897 = vmax.f32 %v5833, 0.0
  %v5898 = vmax.f32 %v5834, 0.0
  %v5899 = vmax.f32 %v5835, 0.0
  %v5900 = vmax.f32 %v5836, 0.0
  %v5901 = vmax.f32 %v5837, 0.0
  %v5902 = vmax.f32 %v5838, 0.0
  %v5903 = vmax.f32 %v5839, 0.0
  %v5904 = vmax.f32 %v5840, 0.0
  %v5905 = vmax.f32 %v5841, 0.0
  %v5906 = vmax.f32 %v5842, 0.0
  %v5907 = vmax.f32 %v5843, 0.0
  %v5908 = vmax.f32 %v5844, 0.0
  %v5909 = vmax.f32 %v5845, 0.0
  %v5910 = vmax.f32 %v5846, 0.0
  %v5911 = vmax.f32 %v5847, 0.0
  %v5912 = vmax.f32 %v5848, 0.0
  %v5913 = vmax.f32 %v5849, 0.0
  %v5914 = vmax.f32 %v5850, 0.0
  %v5915 = vmax.f32 %v5851, 0.0
  %v5916 = vmax.f32 %v5852, 0.0
  %v5917 = vmax.f32 %v5853, 0.0
  %v5918 = vmax.f32 %v5854, 0.0
  %v5919 = vmax.f32 %v5855, 0.0
  %v5920 = vmax.f32 %v5856, 0.0
  %v5921 = vmax.f32 %v5857, 0.0
  %v5922 = vmax.f32 %v5858, 0.0
  %v5923 = vmax.f32 %v5859, 0.0
  %v5924 = vmax.f32 %v5860, 0.0
  %v5925 = vmax.f32 %v5861, 0.0
  %v5926 = vmax.f32 %v5862, 0.0
  %v5927 = vmax.f32 %v5863, 0.0
  %v5928 = vmax.f32 %v5864, 0.0
  %v5929 = vmax.f32 %v5865, 0.0
  %5930 = vst.msk [vmem:[%s179 + $0x1] sm:$0xff] %vm27, %v5866
  %5931 = vst.msk [vmem:[%s179 + $0x9] sm:$0xff] %vm27, %v5867
  %5932 = vst.msk [vmem:[%s179 + $0x19] sm:$0xff] %vm27, %v5868
  %5933 = vst.msk [vmem:[%s179 + $0x21] sm:$0xff] %vm27, %v5869
  %5934 = vst.msk [vmem:[%s179 + $0x31] sm:$0xff] %vm27, %v5870
  %5935 = vst.msk [vmem:[%s179 + $0x39] sm:$0xff] %vm27, %v5871
  %5936 = vst.msk [vmem:[%s179 + $0x49] sm:$0xff] %vm27, %v5872
  %5937 = vst.msk [vmem:[%s179 + $0x51] sm:$0xff] %vm27, %v5873
  %5938 = vst.msk [vmem:[%s179 + $0x61] sm:$0xff] %vm27, %v5874
  %5939 = vst.msk [vmem:[%s179 + $0x69] sm:$0xff] %vm27, %v5875
  %5940 = vst.msk [vmem:[%s179 + $0x79] sm:$0xff] %vm27, %v5876
  %5941 = vst.msk [vmem:[%s179 + $0x81] sm:$0xff] %vm27, %v5877
  %5942 = vst.msk [vmem:[%s179 + $0x91] sm:$0xff] %vm27, %v5878
  %5943 = vst.msk [vmem:[%s179 + $0x99] sm:$0xff] %vm27, %v5879
  %5944 = vst.msk [vmem:[%s179 + $0xa9] sm:$0xff] %vm27, %v5880
  %5945 = vst.msk [vmem:[%s179 + $0xb1] sm:$0xff] %vm27, %v5881
  %5946 = vst.msk [vmem:[%s179 + $0xc1] sm:$0xff] %vm27, %v5882
  %5947 = vst.msk [vmem:[%s179 + $0xc9] sm:$0xff] %vm27, %v5883
  %5948 = vst.msk [vmem:[%s179 + $0xd9] sm:$0xff] %vm27, %v5884
  %5949 = vst.msk [vmem:[%s179 + $0xe1] sm:$0xff] %vm27, %v5885
  %5950 = vst.msk [vmem:[%s179 + $0xf1] sm:$0xff] %vm27, %v5886
  %5951 = vst.msk [vmem:[%s179 + $0xf9] sm:$0xff] %vm27, %v5887
  %5952 = vst.msk [vmem:[%s179 + $0x109] sm:$0xff] %vm27, %v5888
  %5953 = vst.msk [vmem:[%s179 + $0x111] sm:$0xff] %vm27, %v5889
  %5954 = vst.msk [vmem:[%s179 + $0x121] sm:$0xff] %vm27, %v5890
  %5955 = vst.msk [vmem:[%s179 + $0x129] sm:$0xff] %vm27, %v5891
  %5956 = vst.msk [vmem:[%s179 + $0x139] sm:$0xff] %vm27, %v5892
  %5957 = vst.msk [vmem:[%s179 + $0x141] sm:$0xff] %vm27, %v5893
  %5958 = vst.msk [vmem:[%s179 + $0x151] sm:$0xff] %vm27, %v5894
  %5959 = vst.msk [vmem:[%s179 + $0x159] sm:$0xff] %vm27, %v5895
  %5960 = vst.msk [vmem:[%s179 + $0x169] sm:$0xff] %vm27, %v5896
  %5961 = vst.msk [vmem:[%s179 + $0x171] sm:$0xff] %vm27, %v5897
  %5962 = vst.msk [vmem:[%s179 + $0x1b1] sm:$0xff] %vm27, %v5898
  %5963 = vst.msk [vmem:[%s179 + $0x1b9] sm:$0xff] %vm27, %v5899
  %5964 = vst.msk [vmem:[%s179 + $0x1c9] sm:$0xff] %vm27, %v5900
  %5965 = vst.msk [vmem:[%s179 + $0x1d1] sm:$0xff] %vm27, %v5901
  %5966 = vst.msk [vmem:[%s179 + $0x1e1] sm:$0xff] %vm27, %v5902
  %5967 = vst.msk [vmem:[%s179 + $0x1e9] sm:$0xff] %vm27, %v5903
  %5968 = vst.msk [vmem:[%s179 + $0x1f9] sm:$0xff] %vm27, %v5904
  %5969 = vst.msk [vmem:[%s179 + $0x201] sm:$0xff] %vm27, %v5905
  %5970 = vst.msk [vmem:[%s179 + $0x211] sm:$0xff] %vm27, %v5906
  %5971 = vst.msk [vmem:[%s179 + $0x219] sm:$0xff] %vm27, %v5907
  %5972 = vst.msk [vmem:[%s179 + $0x229] sm:$0xff] %vm27, %v5908
  %5973 = vst.msk [vmem:[%s179 + $0x231] sm:$0xff] %vm27, %v5909
  %5974 = vst.msk [vmem:[%s179 + $0x241] sm:$0xff] %vm27, %v5910
  %5975 = vst.msk [vmem:[%s179 + $0x249] sm:$0xff] %vm27, %v5911
  %5976 = vst.msk [vmem:[%s179 + $0x259] sm:$0xff] %vm27, %v5912
  %5977 = vst.msk [vmem:[%s179 + $0x261] sm:$0xff] %vm27, %v5913
  %5978 = vst.msk [vmem:[%s179 + $0x271] sm:$0xff] %vm27, %v5914
  %5979 = vst.msk [vmem:[%s179 + $0x279] sm:$0xff] %vm27, %v5915
  %5980 = vst.msk [vmem:[%s179 + $0x289] sm:$0xff] %vm27, %v5916
  %5981 = vst.msk [vmem:[%s179 + $0x291] sm:$0xff] %vm27, %v5917
  %5982 = vst.msk [vmem:[%s179 + $0x2a1] sm:$0xff] %vm27, %v5918
  %5983 = vst.msk [vmem:[%s179 + $0x2a9] sm:$0xff] %vm27, %v5919
  %5984 = vst.msk [vmem:[%s179 + $0x2b9] sm:$0xff] %vm27, %v5920
  %5985 = vst.msk [vmem:[%s179 + $0x2c1] sm:$0xff] %vm27, %v5921
  %5986 = vst.msk [vmem:[%s179 + $0x2d1] sm:$0xff] %vm27, %v5922
  %5987 = vst.msk [vmem:[%s179 + $0x2d9] sm:$0xff] %vm27, %v5923
  %5988 = vst.msk [vmem:[%s179 + $0x2e9] sm:$0xff] %vm27, %v5924
  %5989 = vst.msk [vmem:[%s179 + $0x2f1] sm:$0xff] %vm27, %v5925
  %5990 = vst.msk [vmem:[%s179 + $0x301] sm:$0xff] %vm27, %v5926
  %5991 = vst.msk [vmem:[%s179 + $0x309] sm:$0xff] %vm27, %v5927
  %5992 = vst.msk [vmem:[%s179 + $0x319] sm:$0xff] %vm27, %v5928
  %5993 = vst.msk [vmem:[%s179 + $0x321] sm:$0xff] %vm27, %v5929
  %v5994 = vld [vmem:[#allocation2] sm:$0xff]
  %v5995 = vld [vmem:[#allocation2 + $0x8] sm:$0xff]
  %v5996 = vld [vmem:[#allocation2 + $0x18] sm:$0xff]
  %v5997 = vld [vmem:[#allocation2 + $0x20] sm:$0xff]
  %v5998 = vld [vmem:[#allocation2 + $0x30] sm:$0xff]
  %v5999 = vld [vmem:[#allocation2 + $0x38] sm:$0xff]
  %v6000 = vld [vmem:[#allocation2 + $0x48] sm:$0xff]
  %v6001 = vld [vmem:[#allocation2 + $0x50] sm:$0xff]
  %v6002 = vld [vmem:[#allocation2 + $0x60] sm:$0xff]
  %v6003 = vld [vmem:[#allocation2 + $0x68] sm:$0xff]
  %v6004 = vld [vmem:[#allocation2 + $0x78] sm:$0xff]
  %v6005 = vld [vmem:[#allocation2 + $0x80] sm:$0xff]
  %v6006 = vld [vmem:[#allocation2 + $0x90] sm:$0xff]
  %v6007 = vld [vmem:[#allocation2 + $0x98] sm:$0xff]
  %v6008 = vld [vmem:[#allocation2 + $0xa8] sm:$0xff]
  %v6009 = vld [vmem:[#allocation2 + $0xb0] sm:$0xff]
  %v6010 = vld [vmem:[#allocation2 + $0xc0] sm:$0xff]
  %v6011 = vld [vmem:[#allocation2 + $0xc8] sm:$0xff]
  %v6012 = vld [vmem:[#allocation2 + $0xd8] sm:$0xff]
  %v6013 = vld [vmem:[#allocation2 + $0xe0] sm:$0xff]
  %v6014 = vld [vmem:[#allocation2 + $0xf0] sm:$0xff]
  %v6015 = vld [vmem:[#allocation2 + $0xf8] sm:$0xff]
  %v6016 = vld [vmem:[#allocation2 + $0x108] sm:$0xff]
  %v6017 = vld [vmem:[#allocation2 + $0x110] sm:$0xff]
  %v6018 = vld [vmem:[#allocation2 + $0x120] sm:$0xff]
  %v6019 = vld [vmem:[#allocation2 + $0x128] sm:$0xff]
  %v6020 = vld [vmem:[#allocation2 + $0x138] sm:$0xff]
  %v6021 = vld [vmem:[#allocation2 + $0x140] sm:$0xff]
  %v6022 = vld [vmem:[#allocation2 + $0x150] sm:$0xff]
  %v6023 = vld [vmem:[#allocation2 + $0x158] sm:$0xff]
  %v6024 = vld [vmem:[#allocation2 + $0x168] sm:$0xff]
  %v6025 = vld [vmem:[#allocation2 + $0x170] sm:$0xff]
  %v6026 = vld [vmem:[#allocation2 + $0x1b0] sm:$0xff]
  %v6027 = vld [vmem:[#allocation2 + $0x1b8] sm:$0xff]
  %v6028 = vld [vmem:[#allocation2 + $0x1c8] sm:$0xff]
  %v6029 = vld [vmem:[#allocation2 + $0x1d0] sm:$0xff]
  %v6030 = vld [vmem:[#allocation2 + $0x1e0] sm:$0xff]
  %v6031 = vld [vmem:[#allocation2 + $0x1e8] sm:$0xff]
  %v6032 = vld [vmem:[#allocation2 + $0x1f8] sm:$0xff]
  %v6033 = vld [vmem:[#allocation2 + $0x200] sm:$0xff]
  %v6034 = vld [vmem:[#allocation2 + $0x210] sm:$0xff]
  %v6035 = vld [vmem:[#allocation2 + $0x218] sm:$0xff]
  %v6036 = vld [vmem:[#allocation2 + $0x228] sm:$0xff]
  %v6037 = vld [vmem:[#allocation2 + $0x230] sm:$0xff]
  %v6038 = vld [vmem:[#allocation2 + $0x240] sm:$0xff]
  %v6039 = vld [vmem:[#allocation2 + $0x248] sm:$0xff]
  %v6040 = vld [vmem:[#allocation2 + $0x258] sm:$0xff]
  %v6041 = vld [vmem:[#allocation2 + $0x260] sm:$0xff]
  %v6042 = vld [vmem:[#allocation2 + $0x270] sm:$0xff]
  %v6043 = vld [vmem:[#allocation2 + $0x278] sm:$0xff]
  %v6044 = vld [vmem:[#allocation2 + $0x288] sm:$0xff]
  %v6045 = vld [vmem:[#allocation2 + $0x290] sm:$0xff]
  %v6046 = vld [vmem:[#allocation2 + $0x2a0] sm:$0xff]
  %v6047 = vld [vmem:[#allocation2 + $0x2a8] sm:$0xff]
  %v6048 = vld [vmem:[#allocation2 + $0x2b8] sm:$0xff]
  %v6049 = vld [vmem:[#allocation2 + $0x2c0] sm:$0xff]
  %v6050 = vld [vmem:[#allocation2 + $0x2d0] sm:$0xff]
  %v6051 = vld [vmem:[#allocation2 + $0x2d8] sm:$0xff]
  %v6052 = vld [vmem:[#allocation2 + $0x2e8] sm:$0xff]
  %v6053 = vld [vmem:[#allocation2 + $0x2f0] sm:$0xff]
  %v6054 = vld [vmem:[#allocation2 + $0x300] sm:$0xff]
  %v6055 = vld [vmem:[#allocation2 + $0x308] sm:$0xff]
  %v6056 = vld [vmem:[#allocation2 + $0x318] sm:$0xff]
  %v6057 = vld [vmem:[#allocation2 + $0x320] sm:$0xff]
  %v6058 = vpack.c.bf16 %v5995, %v5994
  %v6059 = vpack.c.bf16 %v5997, %v5996
  %v6060 = vpack.c.bf16 %v5999, %v5998
  %v6061 = vpack.c.bf16 %v6001, %v6000
  %v6062 = vpack.c.bf16 %v6003, %v6002
  %v6063 = vpack.c.bf16 %v6005, %v6004
  %v6064 = vpack.c.bf16 %v6007, %v6006
  %v6065 = vpack.c.bf16 %v6009, %v6008
  %v6066 = vpack.c.bf16 %v6011, %v6010
  %v6067 = vpack.c.bf16 %v6013, %v6012
  %v6068 = vpack.c.bf16 %v6015, %v6014
  %v6069 = vpack.c.bf16 %v6017, %v6016
  %v6070 = vpack.c.bf16 %v6019, %v6018
  %v6071 = vpack.c.bf16 %v6021, %v6020
  %v6072 = vpack.c.bf16 %v6023, %v6022
  %v6073 = vpack.c.bf16 %v6025, %v6024
  %v6074 = vpack.c.bf16 %v6027, %v6026
  %v6075 = vpack.c.bf16 %v6029, %v6028
  %v6076 = vpack.c.bf16 %v6031, %v6030
  %v6077 = vpack.c.bf16 %v6033, %v6032
  %v6078 = vpack.c.bf16 %v6035, %v6034
  %v6079 = vpack.c.bf16 %v6037, %v6036
  %v6080 = vpack.c.bf16 %v6039, %v6038
  %v6081 = vpack.c.bf16 %v6041, %v6040
  %v6082 = vpack.c.bf16 %v6043, %v6042
  %v6083 = vpack.c.bf16 %v6045, %v6044
  %v6084 = vpack.c.bf16 %v6047, %v6046
  %v6085 = vpack.c.bf16 %v6049, %v6048
  %v6086 = vpack.c.bf16 %v6051, %v6050
  %v6087 = vpack.c.bf16 %v6053, %v6052
  %v6088 = vpack.c.bf16 %v6055, %v6054
  %v6089 = vpack.c.bf16 %v6057, %v6056
  %v6122 = vunpack.c.l.b16 %v6058
  %v6123 = vunpack.c.h.b16 %v6058
  %v6124 = vunpack.c.l.b16 %v6059
  %v6125 = vunpack.c.h.b16 %v6059
  %v6126 = vunpack.c.l.b16 %v6060
  %v6127 = vunpack.c.h.b16 %v6060
  %v6128 = vunpack.c.l.b16 %v6061
  %v6129 = vunpack.c.h.b16 %v6061
  %v6130 = vunpack.c.l.b16 %v6062
  %v6131 = vunpack.c.h.b16 %v6062
  %v6132 = vunpack.c.l.b16 %v6063
  %v6133 = vunpack.c.h.b16 %v6063
  %v6134 = vunpack.c.l.b16 %v6064
  %v6135 = vunpack.c.h.b16 %v6064
  %v6136 = vunpack.c.l.b16 %v6065
  %v6137 = vunpack.c.h.b16 %v6065
  %v6138 = vunpack.c.l.b16 %v6066
  %v6139 = vunpack.c.h.b16 %v6066
  %v6140 = vunpack.c.l.b16 %v6067
  %v6141 = vunpack.c.h.b16 %v6067
  %v6142 = vunpack.c.l.b16 %v6068
  %v6143 = vunpack.c.h.b16 %v6068
  %v6144 = vunpack.c.l.b16 %v6069
  %v6145 = vunpack.c.h.b16 %v6069
  %v6146 = vunpack.c.l.b16 %v6070
  %v6147 = vunpack.c.h.b16 %v6070
  %v6148 = vunpack.c.l.b16 %v6071
  %v6149 = vunpack.c.h.b16 %v6071
  %v6150 = vunpack.c.l.b16 %v6072
  %v6151 = vunpack.c.h.b16 %v6072
  %v6152 = vunpack.c.l.b16 %v6073
  %v6153 = vunpack.c.h.b16 %v6073
  %v6154 = vunpack.c.l.b16 %v6074
  %v6155 = vunpack.c.h.b16 %v6074
  %v6156 = vunpack.c.l.b16 %v6075
  %v6157 = vunpack.c.h.b16 %v6075
  %v6158 = vunpack.c.l.b16 %v6076
  %v6159 = vunpack.c.h.b16 %v6076
  %v6160 = vunpack.c.l.b16 %v6077
  %v6161 = vunpack.c.h.b16 %v6077
  %v6162 = vunpack.c.l.b16 %v6078
  %v6163 = vunpack.c.h.b16 %v6078
  %v6164 = vunpack.c.l.b16 %v6079
  %v6165 = vunpack.c.h.b16 %v6079
  %v6166 = vunpack.c.l.b16 %v6080
  %v6167 = vunpack.c.h.b16 %v6080
  %v6168 = vunpack.c.l.b16 %v6081
  %v6169 = vunpack.c.h.b16 %v6081
  %v6170 = vunpack.c.l.b16 %v6082
  %v6171 = vunpack.c.h.b16 %v6082
  %v6172 = vunpack.c.l.b16 %v6083
  %v6173 = vunpack.c.h.b16 %v6083
  %v6174 = vunpack.c.l.b16 %v6084
  %v6175 = vunpack.c.h.b16 %v6084
  %v6176 = vunpack.c.l.b16 %v6085
  %v6177 = vunpack.c.h.b16 %v6085
  %v6178 = vunpack.c.l.b16 %v6086
  %v6179 = vunpack.c.h.b16 %v6086
  %v6180 = vunpack.c.l.b16 %v6087
  %v6181 = vunpack.c.h.b16 %v6087
  %v6182 = vunpack.c.l.b16 %v6088
  %v6183 = vunpack.c.h.b16 %v6088
  %v6184 = vunpack.c.l.b16 %v6089
  %v6185 = vunpack.c.h.b16 %v6089
  %v6186 = vpack.c.b16 %v6122, %v6122
  %v6187 = vpack.c.b16 %v6123, %v6123
  %v6188 = vpack.c.b16 %v6124, %v6124
  %v6189 = vpack.c.b16 %v6125, %v6125
  %v6190 = vpack.c.b16 %v6126, %v6126
  %v6191 = vpack.c.b16 %v6127, %v6127
  %v6192 = vpack.c.b16 %v6128, %v6128
  %v6193 = vpack.c.b16 %v6129, %v6129
  %v6194 = vpack.c.b16 %v6130, %v6130
  %v6195 = vpack.c.b16 %v6131, %v6131
  %v6196 = vpack.c.b16 %v6132, %v6132
  %v6197 = vpack.c.b16 %v6133, %v6133
  %v6198 = vpack.c.b16 %v6134, %v6134
  %v6199 = vpack.c.b16 %v6135, %v6135
  %v6200 = vpack.c.b16 %v6136, %v6136
  %v6201 = vpack.c.b16 %v6137, %v6137
  %v6202 = vpack.c.b16 %v6138, %v6138
  %v6203 = vpack.c.b16 %v6139, %v6139
  %v6204 = vpack.c.b16 %v6140, %v6140
  %v6205 = vpack.c.b16 %v6141, %v6141
  %v6206 = vpack.c.b16 %v6142, %v6142
  %v6207 = vpack.c.b16 %v6143, %v6143
  %v6208 = vpack.c.b16 %v6144, %v6144
  %v6209 = vpack.c.b16 %v6145, %v6145
  %v6210 = vpack.c.b16 %v6146, %v6146
  %v6211 = vpack.c.b16 %v6147, %v6147
  %v6212 = vpack.c.b16 %v6148, %v6148
  %v6213 = vpack.c.b16 %v6149, %v6149
  %v6214 = vpack.c.b16 %v6150, %v6150
  %v6215 = vpack.c.b16 %v6151, %v6151
  %v6216 = vpack.c.b16 %v6152, %v6152
  %v6217 = vpack.c.b16 %v6153, %v6153
  %v6218 = vpack.c.b16 %v6154, %v6154
  %v6219 = vpack.c.b16 %v6155, %v6155
  %v6220 = vpack.c.b16 %v6156, %v6156
  %v6221 = vpack.c.b16 %v6157, %v6157
  %v6222 = vpack.c.b16 %v6158, %v6158
  %v6223 = vpack.c.b16 %v6159, %v6159
  %v6224 = vpack.c.b16 %v6160, %v6160
  %v6225 = vpack.c.b16 %v6161, %v6161
  %v6226 = vpack.c.b16 %v6162, %v6162
  %v6227 = vpack.c.b16 %v6163, %v6163
  %v6228 = vpack.c.b16 %v6164, %v6164
  %v6229 = vpack.c.b16 %v6165, %v6165
  %v6230 = vpack.c.b16 %v6166, %v6166
  %v6231 = vpack.c.b16 %v6167, %v6167
  %v6232 = vpack.c.b16 %v6168, %v6168
  %v6233 = vpack.c.b16 %v6169, %v6169
  %v6234 = vpack.c.b16 %v6170, %v6170
  %v6235 = vpack.c.b16 %v6171, %v6171
  %v6236 = vpack.c.b16 %v6172, %v6172
  %v6237 = vpack.c.b16 %v6173, %v6173
  %v6238 = vpack.c.b16 %v6174, %v6174
  %v6239 = vpack.c.b16 %v6175, %v6175
  %v6240 = vpack.c.b16 %v6176, %v6176
  %v6241 = vpack.c.b16 %v6177, %v6177
  %v6242 = vpack.c.b16 %v6178, %v6178
  %v6243 = vpack.c.b16 %v6179, %v6179
  %v6244 = vpack.c.b16 %v6180, %v6180
  %v6245 = vpack.c.b16 %v6181, %v6181
  %v6246 = vpack.c.b16 %v6182, %v6182
  %v6247 = vpack.c.b16 %v6183, %v6183
  %v6248 = vpack.c.b16 %v6184, %v6184
  %v6249 = vpack.c.b16 %v6185, %v6185
  %6314 = vst.msk [vmem:[#allocation3] sm:$0xf] %vm564, %v6186
  %6315 = vst.msk [vmem:[#allocation3 + $0x4] sm:$0xf] %vm564, %v6187
  %6316 = vst.msk [vmem:[#allocation3 + $0x8] sm:$0xf] %vm564, %v6188
  %6317 = vst.msk [vmem:[#allocation3 + $0xc] sm:$0xf] %vm564, %v6189
  %6318 = vst.msk [vmem:[#allocation3 + $0x10] sm:$0xf] %vm564, %v6190
  %6319 = vst.msk [vmem:[#allocation3 + $0x14] sm:$0xf] %vm564, %v6191
  %6320 = vst.msk [vmem:[#allocation3 + $0x18] sm:$0xf] %vm564, %v6192
  %6321 = vst.msk [vmem:[#allocation3 + $0x1c] sm:$0xf] %vm564, %v6193
  %6322 = vst.msk [vmem:[#allocation3 + $0x20] sm:$0xf] %vm564, %v6194
  %6323 = vst.msk [vmem:[#allocation3 + $0x24] sm:$0xf] %vm564, %v6195
  %6324 = vst.msk [vmem:[#allocation3 + $0x28] sm:$0xf] %vm564, %v6196
  %6325 = vst.msk [vmem:[#allocation3 + $0x2c] sm:$0xf] %vm564, %v6197
  %6326 = vst.msk [vmem:[#allocation3 + $0x30] sm:$0xf] %vm564, %v6198
  %6327 = vst.msk [vmem:[#allocation3 + $0x34] sm:$0xf] %vm564, %v6199
  %6328 = vst.msk [vmem:[#allocation3 + $0x38] sm:$0xf] %vm564, %v6200
  %6329 = vst.msk [vmem:[#allocation3 + $0x3c] sm:$0xf] %vm564, %v6201
  %6330 = vst.msk [vmem:[#allocation3 + $0x40] sm:$0xf] %vm564, %v6202
  %6331 = vst.msk [vmem:[#allocation3 + $0x44] sm:$0xf] %vm564, %v6203
  %6332 = vst.msk [vmem:[#allocation3 + $0x48] sm:$0xf] %vm564, %v6204
  %6333 = vst.msk [vmem:[#allocation3 + $0x4c] sm:$0xf] %vm564, %v6205
  %6334 = vst.msk [vmem:[#allocation3 + $0x50] sm:$0xf] %vm564, %v6206
  %6335 = vst.msk [vmem:[#allocation3 + $0x54] sm:$0xf] %vm564, %v6207
  %6336 = vst.msk [vmem:[#allocation3 + $0x58] sm:$0xf] %vm564, %v6208
  %6337 = vst.msk [vmem:[#allocation3 + $0x5c] sm:$0xf] %vm564, %v6209
  %6338 = vst.msk [vmem:[#allocation3 + $0x60] sm:$0xf] %vm564, %v6210
  %6339 = vst.msk [vmem:[#allocation3 + $0x64] sm:$0xf] %vm564, %v6211
  %6340 = vst.msk [vmem:[#allocation3 + $0x68] sm:$0xf] %vm564, %v6212
  %6341 = vst.msk [vmem:[#allocation3 + $0x6c] sm:$0xf] %vm564, %v6213
  %6342 = vst.msk [vmem:[#allocation3 + $0x70] sm:$0xf] %vm564, %v6214
  %6343 = vst.msk [vmem:[#allocation3 + $0x74] sm:$0xf] %vm564, %v6215
  %6344 = vst.msk [vmem:[#allocation3 + $0x78] sm:$0xf] %vm564, %v6216
  %6345 = vst.msk [vmem:[#allocation3 + $0x7c] sm:$0xf] %vm564, %v6217
  %6346 = vst.msk [vmem:[#allocation3 + $0x80] sm:$0xf] %vm564, %v6218
  %6347 = vst.msk [vmem:[#allocation3 + $0x84] sm:$0xf] %vm564, %v6219
  %6348 = vst.msk [vmem:[#allocation3 + $0x88] sm:$0xf] %vm564, %v6220
  %6349 = vst.msk [vmem:[#allocation3 + $0x8c] sm:$0xf] %vm564, %v6221
  %6350 = vst.msk [vmem:[#allocation3 + $0x90] sm:$0xf] %vm564, %v6222
  %6351 = vst.msk [vmem:[#allocation3 + $0x94] sm:$0xf] %vm564, %v6223
  %6352 = vst.msk [vmem:[#allocation3 + $0x98] sm:$0xf] %vm564, %v6224
  %6353 = vst.msk [vmem:[#allocation3 + $0x9c] sm:$0xf] %vm564, %v6225
  %6354 = vst.msk [vmem:[#allocation3 + $0xa0] sm:$0xf] %vm564, %v6226
  %6355 = vst.msk [vmem:[#allocation3 + $0xa4] sm:$0xf] %vm564, %v6227
  %6356 = vst.msk [vmem:[#allocation3 + $0xa8] sm:$0xf] %vm564, %v6228
  %6357 = vst.msk [vmem:[#allocation3 + $0xac] sm:$0xf] %vm564, %v6229
  %6358 = vst.msk [vmem:[#allocation3 + $0xb0] sm:$0xf] %vm564, %v6230
  %6359 = vst.msk [vmem:[#allocation3 + $0xb4] sm:$0xf] %vm564, %v6231
  %6360 = vst.msk [vmem:[#allocation3 + $0xb8] sm:$0xf] %vm564, %v6232
  %6361 = vst.msk [vmem:[#allocation3 + $0xbc] sm:$0xf] %vm564, %v6233
  %6362 = vst.msk [vmem:[#allocation3 + $0xc0] sm:$0xf] %vm564, %v6234
  %6363 = vst.msk [vmem:[#allocation3 + $0xc4] sm:$0xf] %vm564, %v6235
  %6364 = vst.msk [vmem:[#allocation3 + $0xc8] sm:$0xf] %vm564, %v6236
  %6365 = vst.msk [vmem:[#allocation3 + $0xcc] sm:$0xf] %vm564, %v6237
  %6366 = vst.msk [vmem:[#allocation3 + $0xd0] sm:$0xf] %vm564, %v6238
  %6367 = vst.msk [vmem:[#allocation3 + $0xd4] sm:$0xf] %vm564, %v6239
  %6368 = vst.msk [vmem:[#allocation3 + $0xd8] sm:$0xf] %vm564, %v6240
  %6369 = vst.msk [vmem:[#allocation3 + $0xdc] sm:$0xf] %vm564, %v6241
  %6370 = vst.msk [vmem:[#allocation3 + $0xe0] sm:$0xf] %vm564, %v6242
  %6371 = vst.msk [vmem:[#allocation3 + $0xe4] sm:$0xf] %vm564, %v6243
  %6372 = vst.msk [vmem:[#allocation3 + $0xe8] sm:$0xf] %vm564, %v6244
  %6373 = vst.msk [vmem:[#allocation3 + $0xec] sm:$0xf] %vm564, %v6245
  %6374 = vst.msk [vmem:[#allocation3 + $0xf0] sm:$0xf] %vm564, %v6246
  %6375 = vst.msk [vmem:[#allocation3 + $0xf4] sm:$0xf] %vm564, %v6247
  %6376 = vst.msk [vmem:[#allocation3 + $0xf8] sm:$0xf] %vm564, %v6248
  %6377 = vst.msk [vmem:[#allocation3 + $0xfc] sm:$0xf] %vm564, %v6249
  %v6378 = vld [vmem:[#allocation2 + $0x1] sm:$0xff]
  %v6379 = vld [vmem:[#allocation2 + $0x9] sm:$0xff]
  %v6380 = vld [vmem:[#allocation2 + $0x19] sm:$0xff]
  %v6381 = vld [vmem:[#allocation2 + $0x21] sm:$0xff]
  %v6382 = vld [vmem:[#allocation2 + $0x31] sm:$0xff]
  %v6383 = vld [vmem:[#allocation2 + $0x39] sm:$0xff]
  %v6384 = vld [vmem:[#allocation2 + $0x49] sm:$0xff]
  %v6385 = vld [vmem:[#allocation2 + $0x51] sm:$0xff]
  %v6386 = vld [vmem:[#allocation2 + $0x61] sm:$0xff]
  %v6387 = vld [vmem:[#allocation2 + $0x69] sm:$0xff]
  %v6388 = vld [vmem:[#allocation2 + $0x79] sm:$0xff]
  %v6389 = vld [vmem:[#allocation2 + $0x81] sm:$0xff]
  %v6390 = vld [vmem:[#allocation2 + $0x91] sm:$0xff]
  %v6391 = vld [vmem:[#allocation2 + $0x99] sm:$0xff]
  %v6392 = vld [vmem:[#allocation2 + $0xa9] sm:$0xff]
  %v6393 = vld [vmem:[#allocation2 + $0xb1] sm:$0xff]
  %v6394 = vld [vmem:[#allocation2 + $0xc1] sm:$0xff]
  %v6395 = vld [vmem:[#allocation2 + $0xc9] sm:$0xff]
  %v6396 = vld [vmem:[#allocation2 + $0xd9] sm:$0xff]
  %v6397 = vld [vmem:[#allocation2 + $0xe1] sm:$0xff]
  %v6398 = vld [vmem:[#allocation2 + $0xf1] sm:$0xff]
  %v6399 = vld [vmem:[#allocation2 + $0xf9] sm:$0xff]
  %v6400 = vld [vmem:[#allocation2 + $0x109] sm:$0xff]
  %v6401 = vld [vmem:[#allocation2 + $0x111] sm:$0xff]
  %v6402 = vld [vmem:[#allocation2 + $0x121] sm:$0xff]
  %v6403 = vld [vmem:[#allocation2 + $0x129] sm:$0xff]
  %v6404 = vld [vmem:[#allocation2 + $0x139] sm:$0xff]
  %v6405 = vld [vmem:[#allocation2 + $0x141] sm:$0xff]
  %v6406 = vld [vmem:[#allocation2 + $0x151] sm:$0xff]
  %v6407 = vld [vmem:[#allocation2 + $0x159] sm:$0xff]
  %v6408 = vld [vmem:[#allocation2 + $0x169] sm:$0xff]
  %v6409 = vld [vmem:[#allocation2 + $0x171] sm:$0xff]
  %v6410 = vld [vmem:[#allocation2 + $0x1b1] sm:$0xff]
  %v6411 = vld [vmem:[#allocation2 + $0x1b9] sm:$0xff]
  %v6412 = vld [vmem:[#allocation2 + $0x1c9] sm:$0xff]
  %v6413 = vld [vmem:[#allocation2 + $0x1d1] sm:$0xff]
  %v6414 = vld [vmem:[#allocation2 + $0x1e1] sm:$0xff]
  %v6415 = vld [vmem:[#allocation2 + $0x1e9] sm:$0xff]
  %v6416 = vld [vmem:[#allocation2 + $0x1f9] sm:$0xff]
  %v6417 = vld [vmem:[#allocation2 + $0x201] sm:$0xff]
  %v6418 = vld [vmem:[#allocation2 + $0x211] sm:$0xff]
  %v6419 = vld [vmem:[#allocation2 + $0x219] sm:$0xff]
  %v6420 = vld [vmem:[#allocation2 + $0x229] sm:$0xff]
  %v6421 = vld [vmem:[#allocation2 + $0x231] sm:$0xff]
  %v6422 = vld [vmem:[#allocation2 + $0x241] sm:$0xff]
  %v6423 = vld [vmem:[#allocation2 + $0x249] sm:$0xff]
  %v6424 = vld [vmem:[#allocation2 + $0x259] sm:$0xff]
  %v6425 = vld [vmem:[#allocation2 + $0x261] sm:$0xff]
  %v6426 = vld [vmem:[#allocation2 + $0x271] sm:$0xff]
  %v6427 = vld [vmem:[#allocation2 + $0x279] sm:$0xff]
  %v6428 = vld [vmem:[#allocation2 + $0x289] sm:$0xff]
  %v6429 = vld [vmem:[#allocation2 + $0x291] sm:$0xff]
  %v6430 = vld [vmem:[#allocation2 + $0x2a1] sm:$0xff]
  %v6431 = vld [vmem:[#allocation2 + $0x2a9] sm:$0xff]
  %v6432 = vld [vmem:[#allocation2 + $0x2b9] sm:$0xff]
  %v6433 = vld [vmem:[#allocation2 + $0x2c1] sm:$0xff]
  %v6434 = vld [vmem:[#allocation2 + $0x2d1] sm:$0xff]
  %v6435 = vld [vmem:[#allocation2 + $0x2d9] sm:$0xff]
  %v6436 = vld [vmem:[#allocation2 + $0x2e9] sm:$0xff]
  %v6437 = vld [vmem:[#allocation2 + $0x2f1] sm:$0xff]
  %v6438 = vld [vmem:[#allocation2 + $0x301] sm:$0xff]
  %v6439 = vld [vmem:[#allocation2 + $0x309] sm:$0xff]
  %v6440 = vld [vmem:[#allocation2 + $0x319] sm:$0xff]
  %v6441 = vld [vmem:[#allocation2 + $0x321] sm:$0xff]
  %v6442 = vpack.c.bf16 %v6379, %v6378
  %v6443 = vpack.c.bf16 %v6381, %v6380
  %v6444 = vpack.c.bf16 %v6383, %v6382
  %v6445 = vpack.c.bf16 %v6385, %v6384
  %v6446 = vpack.c.bf16 %v6387, %v6386
  %v6447 = vpack.c.bf16 %v6389, %v6388
  %v6448 = vpack.c.bf16 %v6391, %v6390
  %v6449 = vpack.c.bf16 %v6393, %v6392
  %v6450 = vpack.c.bf16 %v6395, %v6394
  %v6451 = vpack.c.bf16 %v6397, %v6396
  %v6452 = vpack.c.bf16 %v6399, %v6398
  %v6453 = vpack.c.bf16 %v6401, %v6400
  %v6454 = vpack.c.bf16 %v6403, %v6402
  %v6455 = vpack.c.bf16 %v6405, %v6404
  %v6456 = vpack.c.bf16 %v6407, %v6406
  %v6457 = vpack.c.bf16 %v6409, %v6408
  %v6458 = vpack.c.bf16 %v6411, %v6410
  %v6459 = vpack.c.bf16 %v6413, %v6412
  %v6460 = vpack.c.bf16 %v6415, %v6414
  %v6461 = vpack.c.bf16 %v6417, %v6416
  %v6462 = vpack.c.bf16 %v6419, %v6418
  %v6463 = vpack.c.bf16 %v6421, %v6420
  %v6464 = vpack.c.bf16 %v6423, %v6422
  %v6465 = vpack.c.bf16 %v6425, %v6424
  %v6466 = vpack.c.bf16 %v6427, %v6426
  %v6467 = vpack.c.bf16 %v6429, %v6428
  %v6468 = vpack.c.bf16 %v6431, %v6430
  %v6469 = vpack.c.bf16 %v6433, %v6432
  %v6470 = vpack.c.bf16 %v6435, %v6434
  %v6471 = vpack.c.bf16 %v6437, %v6436
  %v6472 = vpack.c.bf16 %v6439, %v6438
  %v6473 = vpack.c.bf16 %v6441, %v6440
  %v6506 = vunpack.c.l.b16 %v6442
  %v6507 = vunpack.c.h.b16 %v6442
  %v6508 = vunpack.c.l.b16 %v6443
  %v6509 = vunpack.c.h.b16 %v6443
  %v6510 = vunpack.c.l.b16 %v6444
  %v6511 = vunpack.c.h.b16 %v6444
  %v6512 = vunpack.c.l.b16 %v6445
  %v6513 = vunpack.c.h.b16 %v6445
  %v6514 = vunpack.c.l.b16 %v6446
  %v6515 = vunpack.c.h.b16 %v6446
  %v6516 = vunpack.c.l.b16 %v6447
  %v6517 = vunpack.c.h.b16 %v6447
  %v6518 = vunpack.c.l.b16 %v6448
  %v6519 = vunpack.c.h.b16 %v6448
  %v6520 = vunpack.c.l.b16 %v6449
  %v6521 = vunpack.c.h.b16 %v6449
  %v6522 = vunpack.c.l.b16 %v6450
  %v6523 = vunpack.c.h.b16 %v6450
  %v6524 = vunpack.c.l.b16 %v6451
  %v6525 = vunpack.c.h.b16 %v6451
  %v6526 = vunpack.c.l.b16 %v6452
  %v6527 = vunpack.c.h.b16 %v6452
  %v6528 = vunpack.c.l.b16 %v6453
  %v6529 = vunpack.c.h.b16 %v6453
  %v6530 = vunpack.c.l.b16 %v6454
  %v6531 = vunpack.c.h.b16 %v6454
  %v6532 = vunpack.c.l.b16 %v6455
  %v6533 = vunpack.c.h.b16 %v6455
  %v6534 = vunpack.c.l.b16 %v6456
  %v6535 = vunpack.c.h.b16 %v6456
  %v6536 = vunpack.c.l.b16 %v6457
  %v6537 = vunpack.c.h.b16 %v6457
  %v6538 = vunpack.c.l.b16 %v6458
  %v6539 = vunpack.c.h.b16 %v6458
  %v6540 = vunpack.c.l.b16 %v6459
  %v6541 = vunpack.c.h.b16 %v6459
  %v6542 = vunpack.c.l.b16 %v6460
  %v6543 = vunpack.c.h.b16 %v6460
  %v6544 = vunpack.c.l.b16 %v6461
  %v6545 = vunpack.c.h.b16 %v6461
  %v6546 = vunpack.c.l.b16 %v6462
  %v6547 = vunpack.c.h.b16 %v6462
  %v6548 = vunpack.c.l.b16 %v6463
  %v6549 = vunpack.c.h.b16 %v6463
  %v6550 = vunpack.c.l.b16 %v6464
  %v6551 = vunpack.c.h.b16 %v6464
  %v6552 = vunpack.c.l.b16 %v6465
  %v6553 = vunpack.c.h.b16 %v6465
  %v6554 = vunpack.c.l.b16 %v6466
  %v6555 = vunpack.c.h.b16 %v6466
  %v6556 = vunpack.c.l.b16 %v6467
  %v6557 = vunpack.c.h.b16 %v6467
  %v6558 = vunpack.c.l.b16 %v6468
  %v6559 = vunpack.c.h.b16 %v6468
  %v6560 = vunpack.c.l.b16 %v6469
  %v6561 = vunpack.c.h.b16 %v6469
  %v6562 = vunpack.c.l.b16 %v6470
  %v6563 = vunpack.c.h.b16 %v6470
  %v6564 = vunpack.c.l.b16 %v6471
  %v6565 = vunpack.c.h.b16 %v6471
  %v6566 = vunpack.c.l.b16 %v6472
  %v6567 = vunpack.c.h.b16 %v6472
  %v6568 = vunpack.c.l.b16 %v6473
  %v6569 = vunpack.c.h.b16 %v6473
  %v6570 = vpack.c.b16 %v6506, %v6506
  %v6571 = vpack.c.b16 %v6507, %v6507
  %v6572 = vpack.c.b16 %v6508, %v6508
  %v6573 = vpack.c.b16 %v6509, %v6509
  %v6574 = vpack.c.b16 %v6510, %v6510
  %v6575 = vpack.c.b16 %v6511, %v6511
  %v6576 = vpack.c.b16 %v6512, %v6512
  %v6577 = vpack.c.b16 %v6513, %v6513
  %v6578 = vpack.c.b16 %v6514, %v6514
  %v6579 = vpack.c.b16 %v6515, %v6515
  %v6580 = vpack.c.b16 %v6516, %v6516
  %v6581 = vpack.c.b16 %v6517, %v6517
  %v6582 = vpack.c.b16 %v6518, %v6518
  %v6583 = vpack.c.b16 %v6519, %v6519
  %v6584 = vpack.c.b16 %v6520, %v6520
  %v6585 = vpack.c.b16 %v6521, %v6521
  %v6586 = vpack.c.b16 %v6522, %v6522
  %v6587 = vpack.c.b16 %v6523, %v6523
  %v6588 = vpack.c.b16 %v6524, %v6524
  %v6589 = vpack.c.b16 %v6525, %v6525
  %v6590 = vpack.c.b16 %v6526, %v6526
  %v6591 = vpack.c.b16 %v6527, %v6527
  %v6592 = vpack.c.b16 %v6528, %v6528
  %v6593 = vpack.c.b16 %v6529, %v6529
  %v6594 = vpack.c.b16 %v6530, %v6530
  %v6595 = vpack.c.b16 %v6531, %v6531
  %v6596 = vpack.c.b16 %v6532, %v6532
  %v6597 = vpack.c.b16 %v6533, %v6533
  %v6598 = vpack.c.b16 %v6534, %v6534
  %v6599 = vpack.c.b16 %v6535, %v6535
  %v6600 = vpack.c.b16 %v6536, %v6536
  %v6601 = vpack.c.b16 %v6537, %v6537
  %v6602 = vpack.c.b16 %v6538, %v6538
  %v6603 = vpack.c.b16 %v6539, %v6539
  %v6604 = vpack.c.b16 %v6540, %v6540
  %v6605 = vpack.c.b16 %v6541, %v6541
  %v6606 = vpack.c.b16 %v6542, %v6542
  %v6607 = vpack.c.b16 %v6543, %v6543
  %v6608 = vpack.c.b16 %v6544, %v6544
  %v6609 = vpack.c.b16 %v6545, %v6545
  %v6610 = vpack.c.b16 %v6546, %v6546
  %v6611 = vpack.c.b16 %v6547, %v6547
  %v6612 = vpack.c.b16 %v6548, %v6548
  %v6613 = vpack.c.b16 %v6549, %v6549
  %v6614 = vpack.c.b16 %v6550, %v6550
  %v6615 = vpack.c.b16 %v6551, %v6551
  %v6616 = vpack.c.b16 %v6552, %v6552
  %v6617 = vpack.c.b16 %v6553, %v6553
  %v6618 = vpack.c.b16 %v6554, %v6554
  %v6619 = vpack.c.b16 %v6555, %v6555
  %v6620 = vpack.c.b16 %v6556, %v6556
  %v6621 = vpack.c.b16 %v6557, %v6557
  %v6622 = vpack.c.b16 %v6558, %v6558
  %v6623 = vpack.c.b16 %v6559, %v6559
  %v6624 = vpack.c.b16 %v6560, %v6560
  %v6625 = vpack.c.b16 %v6561, %v6561
  %v6626 = vpack.c.b16 %v6562, %v6562
  %v6627 = vpack.c.b16 %v6563, %v6563
  %v6628 = vpack.c.b16 %v6564, %v6564
  %v6629 = vpack.c.b16 %v6565, %v6565
  %v6630 = vpack.c.b16 %v6566, %v6566
  %v6631 = vpack.c.b16 %v6567, %v6567
  %v6632 = vpack.c.b16 %v6568, %v6568
  %v6633 = vpack.c.b16 %v6569, %v6569
  %6634 = vrot.lane.b32.xlu0 %v6570, 8
  %v6635 = vpop.permute.xlu0 %6634
  %6636 = vrot.lane.b32.xlu0 %v6571, 8
  %v6637 = vpop.permute.xlu0 %6636
  %6638 = vrot.lane.b32.xlu0 %v6572, 8
  %v6639 = vpop.permute.xlu0 %6638
  %6640 = vrot.lane.b32.xlu0 %v6573, 8
  %v6641 = vpop.permute.xlu0 %6640
  %6642 = vrot.lane.b32.xlu0 %v6574, 8
  %v6643 = vpop.permute.xlu0 %6642
  %6644 = vrot.lane.b32.xlu0 %v6575, 8
  %v6645 = vpop.permute.xlu0 %6644
  %6646 = vrot.lane.b32.xlu0 %v6576, 8
  %v6647 = vpop.permute.xlu0 %6646
  %6648 = vrot.lane.b32.xlu0 %v6577, 8
  %v6649 = vpop.permute.xlu0 %6648
  %6650 = vrot.lane.b32.xlu0 %v6578, 8
  %v6651 = vpop.permute.xlu0 %6650
  %6652 = vrot.lane.b32.xlu0 %v6579, 8
  %v6653 = vpop.permute.xlu0 %6652
  %6654 = vrot.lane.b32.xlu0 %v6580, 8
  %v6655 = vpop.permute.xlu0 %6654
  %6656 = vrot.lane.b32.xlu0 %v6581, 8
  %v6657 = vpop.permute.xlu0 %6656
  %6658 = vrot.lane.b32.xlu0 %v6582, 8
  %v6659 = vpop.permute.xlu0 %6658
  %6660 = vrot.lane.b32.xlu0 %v6583, 8
  %v6661 = vpop.permute.xlu0 %6660
  %6662 = vrot.lane.b32.xlu0 %v6584, 8
  %v6663 = vpop.permute.xlu0 %6662
  %6664 = vrot.lane.b32.xlu0 %v6585, 8
  %v6665 = vpop.permute.xlu0 %6664
  %6666 = vrot.lane.b32.xlu0 %v6586, 8
  %v6667 = vpop.permute.xlu0 %6666
  %6668 = vrot.lane.b32.xlu0 %v6587, 8
  %v6669 = vpop.permute.xlu0 %6668
  %6670 = vrot.lane.b32.xlu0 %v6588, 8
  %v6671 = vpop.permute.xlu0 %6670
  %6672 = vrot.lane.b32.xlu0 %v6589, 8
  %v6673 = vpop.permute.xlu0 %6672
  %6674 = vrot.lane.b32.xlu0 %v6590, 8
  %v6675 = vpop.permute.xlu0 %6674
  %6676 = vrot.lane.b32.xlu0 %v6591, 8
  %v6677 = vpop.permute.xlu0 %6676
  %6678 = vrot.lane.b32.xlu0 %v6592, 8
  %v6679 = vpop.permute.xlu0 %6678
  %6680 = vrot.lane.b32.xlu0 %v6593, 8
  %v6681 = vpop.permute.xlu0 %6680
  %6682 = vrot.lane.b32.xlu0 %v6594, 8
  %v6683 = vpop.permute.xlu0 %6682
  %6684 = vrot.lane.b32.xlu0 %v6595, 8
  %v6685 = vpop.permute.xlu0 %6684
  %6686 = vrot.lane.b32.xlu0 %v6596, 8
  %v6687 = vpop.permute.xlu0 %6686
  %6688 = vrot.lane.b32.xlu0 %v6597, 8
  %v6689 = vpop.permute.xlu0 %6688
  %6690 = vrot.lane.b32.xlu0 %v6598, 8
  %v6691 = vpop.permute.xlu0 %6690
  %6692 = vrot.lane.b32.xlu0 %v6599, 8
  %v6693 = vpop.permute.xlu0 %6692
  %6694 = vrot.lane.b32.xlu0 %v6600, 8
  %v6695 = vpop.permute.xlu0 %6694
  %6696 = vrot.lane.b32.xlu0 %v6601, 8
  %v6697 = vpop.permute.xlu0 %6696
  %6698 = vrot.lane.b32.xlu0 %v6602, 8
  %v6699 = vpop.permute.xlu0 %6698
  %6700 = vrot.lane.b32.xlu0 %v6603, 8
  %v6701 = vpop.permute.xlu0 %6700
  %6702 = vrot.lane.b32.xlu0 %v6604, 8
  %v6703 = vpop.permute.xlu0 %6702
  %6704 = vrot.lane.b32.xlu0 %v6605, 8
  %v6705 = vpop.permute.xlu0 %6704
  %6706 = vrot.lane.b32.xlu0 %v6606, 8
  %v6707 = vpop.permute.xlu0 %6706
  %6708 = vrot.lane.b32.xlu0 %v6607, 8
  %v6709 = vpop.permute.xlu0 %6708
  %6710 = vrot.lane.b32.xlu0 %v6608, 8
  %v6711 = vpop.permute.xlu0 %6710
  %6712 = vrot.lane.b32.xlu0 %v6609, 8
  %v6713 = vpop.permute.xlu0 %6712
  %6714 = vrot.lane.b32.xlu0 %v6610, 8
  %v6715 = vpop.permute.xlu0 %6714
  %6716 = vrot.lane.b32.xlu0 %v6611, 8
  %v6717 = vpop.permute.xlu0 %6716
  %6718 = vrot.lane.b32.xlu0 %v6612, 8
  %v6719 = vpop.permute.xlu0 %6718
  %6720 = vrot.lane.b32.xlu0 %v6613, 8
  %v6721 = vpop.permute.xlu0 %6720
  %6722 = vrot.lane.b32.xlu0 %v6614, 8
  %v6723 = vpop.permute.xlu0 %6722
  %6724 = vrot.lane.b32.xlu0 %v6615, 8
  %v6725 = vpop.permute.xlu0 %6724
  %6726 = vrot.lane.b32.xlu0 %v6616, 8
  %v6727 = vpop.permute.xlu0 %6726
  %6728 = vrot.lane.b32.xlu0 %v6617, 8
  %v6729 = vpop.permute.xlu0 %6728
  %6730 = vrot.lane.b32.xlu0 %v6618, 8
  %v6731 = vpop.permute.xlu0 %6730
  %6732 = vrot.lane.b32.xlu0 %v6619, 8
  %v6733 = vpop.permute.xlu0 %6732
  %6734 = vrot.lane.b32.xlu0 %v6620, 8
  %v6735 = vpop.permute.xlu0 %6734
  %6736 = vrot.lane.b32.xlu0 %v6621, 8
  %v6737 = vpop.permute.xlu0 %6736
  %6738 = vrot.lane.b32.xlu0 %v6622, 8
  %v6739 = vpop.permute.xlu0 %6738
  %6740 = vrot.lane.b32.xlu0 %v6623, 8
  %v6741 = vpop.permute.xlu0 %6740
  %6742 = vrot.lane.b32.xlu0 %v6624, 8
  %v6743 = vpop.permute.xlu0 %6742
  %6744 = vrot.lane.b32.xlu0 %v6625, 8
  %v6745 = vpop.permute.xlu0 %6744
  %6746 = vrot.lane.b32.xlu0 %v6626, 8
  %v6747 = vpop.permute.xlu0 %6746
  %6748 = vrot.lane.b32.xlu0 %v6627, 8
  %v6749 = vpop.permute.xlu0 %6748
  %6750 = vrot.lane.b32.xlu0 %v6628, 8
  %v6751 = vpop.permute.xlu0 %6750
  %6752 = vrot.lane.b32.xlu0 %v6629, 8
  %v6753 = vpop.permute.xlu0 %6752
  %6754 = vrot.lane.b32.xlu0 %v6630, 8
  %v6755 = vpop.permute.xlu0 %6754
  %6756 = vrot.lane.b32.xlu0 %v6631, 8
  %v6757 = vpop.permute.xlu0 %6756
  %6758 = vrot.lane.b32.xlu0 %v6632, 8
  %v6759 = vpop.permute.xlu0 %6758
  %6760 = vrot.lane.b32.xlu0 %v6633, 8
  %v6761 = vpop.permute.xlu0 %6760
  %6826 = vst.msk [vmem:[#allocation3] sm:$0xf] %vm1077, %v6635
  %6827 = vst.msk [vmem:[#allocation3 + $0x4] sm:$0xf] %vm1077, %v6637
  %6828 = vst.msk [vmem:[#allocation3 + $0x8] sm:$0xf] %vm1077, %v6639
  %6829 = vst.msk [vmem:[#allocation3 + $0xc] sm:$0xf] %vm1077, %v6641
  %6830 = vst.msk [vmem:[#allocation3 + $0x10] sm:$0xf] %vm1077, %v6643
  %6831 = vst.msk [vmem:[#allocation3 + $0x14] sm:$0xf] %vm1077, %v6645
  %6832 = vst.msk [vmem:[#allocation3 + $0x18] sm:$0xf] %vm1077, %v6647
  %6833 = vst.msk [vmem:[#allocation3 + $0x1c] sm:$0xf] %vm1077, %v6649
  %6834 = vst.msk [vmem:[#allocation3 + $0x20] sm:$0xf] %vm1077, %v6651
  %6835 = vst.msk [vmem:[#allocation3 + $0x24] sm:$0xf] %vm1077, %v6653
  %6836 = vst.msk [vmem:[#allocation3 + $0x28] sm:$0xf] %vm1077, %v6655
  %6837 = vst.msk [vmem:[#allocation3 + $0x2c] sm:$0xf] %vm1077, %v6657
  %6838 = vst.msk [vmem:[#allocation3 + $0x30] sm:$0xf] %vm1077, %v6659
  %6839 = vst.msk [vmem:[#allocation3 + $0x34] sm:$0xf] %vm1077, %v6661
  %6840 = vst.msk [vmem:[#allocation3 + $0x38] sm:$0xf] %vm1077, %v6663
  %6841 = vst.msk [vmem:[#allocation3 + $0x3c] sm:$0xf] %vm1077, %v6665
  %6842 = vst.msk [vmem:[#allocation3 + $0x40] sm:$0xf] %vm1077, %v6667
  %6843 = vst.msk [vmem:[#allocation3 + $0x44] sm:$0xf] %vm1077, %v6669
  %6844 = vst.msk [vmem:[#allocation3 + $0x48] sm:$0xf] %vm1077, %v6671
  %6845 = vst.msk [vmem:[#allocation3 + $0x4c] sm:$0xf] %vm1077, %v6673
  %6846 = vst.msk [vmem:[#allocation3 + $0x50] sm:$0xf] %vm1077, %v6675
  %6847 = vst.msk [vmem:[#allocation3 + $0x54] sm:$0xf] %vm1077, %v6677
  %6848 = vst.msk [vmem:[#allocation3 + $0x58] sm:$0xf] %vm1077, %v6679
  %6849 = vst.msk [vmem:[#allocation3 + $0x5c] sm:$0xf] %vm1077, %v6681
  %6850 = vst.msk [vmem:[#allocation3 + $0x60] sm:$0xf] %vm1077, %v6683
  %6851 = vst.msk [vmem:[#allocation3 + $0x64] sm:$0xf] %vm1077, %v6685
  %6852 = vst.msk [vmem:[#allocation3 + $0x68] sm:$0xf] %vm1077, %v6687
  %6853 = vst.msk [vmem:[#allocation3 + $0x6c] sm:$0xf] %vm1077, %v6689
  %6854 = vst.msk [vmem:[#allocation3 + $0x70] sm:$0xf] %vm1077, %v6691
  %6855 = vst.msk [vmem:[#allocation3 + $0x74] sm:$0xf] %vm1077, %v6693
  %6856 = vst.msk [vmem:[#allocation3 + $0x78] sm:$0xf] %vm1077, %v6695
  %6857 = vst.msk [vmem:[#allocation3 + $0x7c] sm:$0xf] %vm1077, %v6697
  %6858 = vst.msk [vmem:[#allocation3 + $0x80] sm:$0xf] %vm1077, %v6699
  %6859 = vst.msk [vmem:[#allocation3 + $0x84] sm:$0xf] %vm1077, %v6701
  %6860 = vst.msk [vmem:[#allocation3 + $0x88] sm:$0xf] %vm1077, %v6703
  %6861 = vst.msk [vmem:[#allocation3 + $0x8c] sm:$0xf] %vm1077, %v6705
  %6862 = vst.msk [vmem:[#allocation3 + $0x90] sm:$0xf] %vm1077, %v6707
  %6863 = vst.msk [vmem:[#allocation3 + $0x94] sm:$0xf] %vm1077, %v6709
  %6864 = vst.msk [vmem:[#allocation3 + $0x98] sm:$0xf] %vm1077, %v6711
  %6865 = vst.msk [vmem:[#allocation3 + $0x9c] sm:$0xf] %vm1077, %v6713
  %6866 = vst.msk [vmem:[#allocation3 + $0xa0] sm:$0xf] %vm1077, %v6715
  %6867 = vst.msk [vmem:[#allocation3 + $0xa4] sm:$0xf] %vm1077, %v6717
  %6868 = vst.msk [vmem:[#allocation3 + $0xa8] sm:$0xf] %vm1077, %v6719
  %6869 = vst.msk [vmem:[#allocation3 + $0xac] sm:$0xf] %vm1077, %v6721
  %6870 = vst.msk [vmem:[#allocation3 + $0xb0] sm:$0xf] %vm1077, %v6723
  %6871 = vst.msk [vmem:[#allocation3 + $0xb4] sm:$0xf] %vm1077, %v6725
  %6872 = vst.msk [vmem:[#allocation3 + $0xb8] sm:$0xf] %vm1077, %v6727
  %6873 = vst.msk [vmem:[#allocation3 + $0xbc] sm:$0xf] %vm1077, %v6729
  %6874 = vst.msk [vmem:[#allocation3 + $0xc0] sm:$0xf] %vm1077, %v6731
  %6875 = vst.msk [vmem:[#allocation3 + $0xc4] sm:$0xf] %vm1077, %v6733
  %6876 = vst.msk [vmem:[#allocation3 + $0xc8] sm:$0xf] %vm1077, %v6735
  %6877 = vst.msk [vmem:[#allocation3 + $0xcc] sm:$0xf] %vm1077, %v6737
  %6878 = vst.msk [vmem:[#allocation3 + $0xd0] sm:$0xf] %vm1077, %v6739
  %6879 = vst.msk [vmem:[#allocation3 + $0xd4] sm:$0xf] %vm1077, %v6741
  %6880 = vst.msk [vmem:[#allocation3 + $0xd8] sm:$0xf] %vm1077, %v6743
  %6881 = vst.msk [vmem:[#allocation3 + $0xdc] sm:$0xf] %vm1077, %v6745
  %6882 = vst.msk [vmem:[#allocation3 + $0xe0] sm:$0xf] %vm1077, %v6747
  %6883 = vst.msk [vmem:[#allocation3 + $0xe4] sm:$0xf] %vm1077, %v6749
  %6884 = vst.msk [vmem:[#allocation3 + $0xe8] sm:$0xf] %vm1077, %v6751
  %6885 = vst.msk [vmem:[#allocation3 + $0xec] sm:$0xf] %vm1077, %v6753
  %6886 = vst.msk [vmem:[#allocation3 + $0xf0] sm:$0xf] %vm1077, %v6755
  %6887 = vst.msk [vmem:[#allocation3 + $0xf4] sm:$0xf] %vm1077, %v6757
  %6888 = vst.msk [vmem:[#allocation3 + $0xf8] sm:$0xf] %vm1077, %v6759
  %6889 = vst.msk [vmem:[#allocation3 + $0xfc] sm:$0xf] %vm1077, %v6761
  %v6890 = vld [vmem:[#allocation2 + $0x2] sm:$0xff]
  %v6891 = vld [vmem:[#allocation2 + $0xa] sm:$0xff]
  %v6892 = vld [vmem:[#allocation2 + $0x1a] sm:$0xff]
  %v6893 = vld [vmem:[#allocation2 + $0x22] sm:$0xff]
  %v6894 = vld [vmem:[#allocation2 + $0x32] sm:$0xff]
  %v6895 = vld [vmem:[#allocation2 + $0x3a] sm:$0xff]
  %v6896 = vld [vmem:[#allocation2 + $0x4a] sm:$0xff]
  %v6897 = vld [vmem:[#allocation2 + $0x52] sm:$0xff]
  %v6898 = vld [vmem:[#allocation2 + $0x62] sm:$0xff]
  %v6899 = vld [vmem:[#allocation2 + $0x6a] sm:$0xff]
  %v6900 = vld [vmem:[#allocation2 + $0x7a] sm:$0xff]
  %v6901 = vld [vmem:[#allocation2 + $0x82] sm:$0xff]
  %v6902 = vld [vmem:[#allocation2 + $0x92] sm:$0xff]
  %v6903 = vld [vmem:[#allocation2 + $0x9a] sm:$0xff]
  %v6904 = vld [vmem:[#allocation2 + $0xaa] sm:$0xff]
  %v6905 = vld [vmem:[#allocation2 + $0xb2] sm:$0xff]
  %v6906 = vld [vmem:[#allocation2 + $0xc2] sm:$0xff]
  %v6907 = vld [vmem:[#allocation2 + $0xca] sm:$0xff]
  %v6908 = vld [vmem:[#allocation2 + $0xda] sm:$0xff]
  %v6909 = vld [vmem:[#allocation2 + $0xe2] sm:$0xff]
  %v6910 = vld [vmem:[#allocation2 + $0xf2] sm:$0xff]
  %v6911 = vld [vmem:[#allocation2 + $0xfa] sm:$0xff]
  %v6912 = vld [vmem:[#allocation2 + $0x10a] sm:$0xff]
  %v6913 = vld [vmem:[#allocation2 + $0x112] sm:$0xff]
  %v6914 = vld [vmem:[#allocation2 + $0x122] sm:$0xff]
  %v6915 = vld [vmem:[#allocation2 + $0x12a] sm:$0xff]
  %v6916 = vld [vmem:[#allocation2 + $0x13a] sm:$0xff]
  %v6917 = vld [vmem:[#allocation2 + $0x142] sm:$0xff]
  %v6918 = vld [vmem:[#allocation2 + $0x152] sm:$0xff]
  %v6919 = vld [vmem:[#allocation2 + $0x15a] sm:$0xff]
  %v6920 = vld [vmem:[#allocation2 + $0x16a] sm:$0xff]
  %v6921 = vld [vmem:[#allocation2 + $0x172] sm:$0xff]
  %v6922 = vld [vmem:[#allocation2 + $0x1b2] sm:$0xff]
  %v6923 = vld [vmem:[#allocation2 + $0x1ba] sm:$0xff]
  %v6924 = vld [vmem:[#allocation2 + $0x1ca] sm:$0xff]
  %v6925 = vld [vmem:[#allocation2 + $0x1d2] sm:$0xff]
  %v6926 = vld [vmem:[#allocation2 + $0x1e2] sm:$0xff]
  %v6927 = vld [vmem:[#allocation2 + $0x1ea] sm:$0xff]
  %v6928 = vld [vmem:[#allocation2 + $0x1fa] sm:$0xff]
  %v6929 = vld [vmem:[#allocation2 + $0x202] sm:$0xff]
  %v6930 = vld [vmem:[#allocation2 + $0x212] sm:$0xff]
  %v6931 = vld [vmem:[#allocation2 + $0x21a] sm:$0xff]
  %v6932 = vld [vmem:[#allocation2 + $0x22a] sm:$0xff]
  %v6933 = vld [vmem:[#allocation2 + $0x232] sm:$0xff]
  %v6934 = vld [vmem:[#allocation2 + $0x242] sm:$0xff]
  %v6935 = vld [vmem:[#allocation2 + $0x24a] sm:$0xff]
  %v6936 = vld [vmem:[#allocation2 + $0x25a] sm:$0xff]
  %v6937 = vld [vmem:[#allocation2 + $0x262] sm:$0xff]
  %v6938 = vld [vmem:[#allocation2 + $0x272] sm:$0xff]
  %v6939 = vld [vmem:[#allocation2 + $0x27a] sm:$0xff]
  %v6940 = vld [vmem:[#allocation2 + $0x28a] sm:$0xff]
  %v6941 = vld [vmem:[#allocation2 + $0x292] sm:$0xff]
  %v6942 = vld [vmem:[#allocation2 + $0x2a2] sm:$0xff]
  %v6943 = vld [vmem:[#allocation2 + $0x2aa] sm:$0xff]
  %v6944 = vld [vmem:[#allocation2 + $0x2ba] sm:$0xff]
  %v6945 = vld [vmem:[#allocation2 + $0x2c2] sm:$0xff]
  %v6946 = vld [vmem:[#allocation2 + $0x2d2] sm:$0xff]
  %v6947 = vld [vmem:[#allocation2 + $0x2da] sm:$0xff]
  %v6948 = vld [vmem:[#allocation2 + $0x2ea] sm:$0xff]
  %v6949 = vld [vmem:[#allocation2 + $0x2f2] sm:$0xff]
  %v6950 = vld [vmem:[#allocation2 + $0x302] sm:$0xff]
  %v6951 = vld [vmem:[#allocation2 + $0x30a] sm:$0xff]
  %v6952 = vld [vmem:[#allocation2 + $0x31a] sm:$0xff]
  %v6953 = vld [vmem:[#allocation2 + $0x322] sm:$0xff]
  %v6954 = vpack.c.bf16 %v6891, %v6890
  %v6955 = vpack.c.bf16 %v6893, %v6892
  %v6956 = vpack.c.bf16 %v6895, %v6894
  %v6957 = vpack.c.bf16 %v6897, %v6896
  %v6958 = vpack.c.bf16 %v6899, %v6898
  %v6959 = vpack.c.bf16 %v6901, %v6900
  %v6960 = vpack.c.bf16 %v6903, %v6902
  %v6961 = vpack.c.bf16 %v6905, %v6904
  %v6962 = vpack.c.bf16 %v6907, %v6906
  %v6963 = vpack.c.bf16 %v6909, %v6908
  %v6964 = vpack.c.bf16 %v6911, %v6910
  %v6965 = vpack.c.bf16 %v6913, %v6912
  %v6966 = vpack.c.bf16 %v6915, %v6914
  %v6967 = vpack.c.bf16 %v6917, %v6916
  %v6968 = vpack.c.bf16 %v6919, %v6918
  %v6969 = vpack.c.bf16 %v6921, %v6920
  %v6970 = vpack.c.bf16 %v6923, %v6922
  %v6971 = vpack.c.bf16 %v6925, %v6924
  %v6972 = vpack.c.bf16 %v6927, %v6926
  %v6973 = vpack.c.bf16 %v6929, %v6928
  %v6974 = vpack.c.bf16 %v6931, %v6930
  %v6975 = vpack.c.bf16 %v6933, %v6932
  %v6976 = vpack.c.bf16 %v6935, %v6934
  %v6977 = vpack.c.bf16 %v6937, %v6936
  %v6978 = vpack.c.bf16 %v6939, %v6938
  %v6979 = vpack.c.bf16 %v6941, %v6940
  %v6980 = vpack.c.bf16 %v6943, %v6942
  %v6981 = vpack.c.bf16 %v6945, %v6944
  %v6982 = vpack.c.bf16 %v6947, %v6946
  %v6983 = vpack.c.bf16 %v6949, %v6948
  %v6984 = vpack.c.bf16 %v6951, %v6950
  %v6985 = vpack.c.bf16 %v6953, %v6952
  %v7018 = vunpack.c.l.b16 %v6954
  %v7019 = vunpack.c.h.b16 %v6954
  %v7020 = vunpack.c.l.b16 %v6955
  %v7021 = vunpack.c.h.b16 %v6955
  %v7022 = vunpack.c.l.b16 %v6956
  %v7023 = vunpack.c.h.b16 %v6956
  %v7024 = vunpack.c.l.b16 %v6957
  %v7025 = vunpack.c.h.b16 %v6957
  %v7026 = vunpack.c.l.b16 %v6958
  %v7027 = vunpack.c.h.b16 %v6958
  %v7028 = vunpack.c.l.b16 %v6959
  %v7029 = vunpack.c.h.b16 %v6959
  %v7030 = vunpack.c.l.b16 %v6960
  %v7031 = vunpack.c.h.b16 %v6960
  %v7032 = vunpack.c.l.b16 %v6961
  %v7033 = vunpack.c.h.b16 %v6961
  %v7034 = vunpack.c.l.b16 %v6962
  %v7035 = vunpack.c.h.b16 %v6962
  %v7036 = vunpack.c.l.b16 %v6963
  %v7037 = vunpack.c.h.b16 %v6963
  %v7038 = vunpack.c.l.b16 %v6964
  %v7039 = vunpack.c.h.b16 %v6964
  %v7040 = vunpack.c.l.b16 %v6965
  %v7041 = vunpack.c.h.b16 %v6965
  %v7042 = vunpack.c.l.b16 %v6966
  %v7043 = vunpack.c.h.b16 %v6966
  %v7044 = vunpack.c.l.b16 %v6967
  %v7045 = vunpack.c.h.b16 %v6967
  %v7046 = vunpack.c.l.b16 %v6968
  %v7047 = vunpack.c.h.b16 %v6968
  %v7048 = vunpack.c.l.b16 %v6969
  %v7049 = vunpack.c.h.b16 %v6969
  %v7050 = vunpack.c.l.b16 %v6970
  %v7051 = vunpack.c.h.b16 %v6970
  %v7052 = vunpack.c.l.b16 %v6971
  %v7053 = vunpack.c.h.b16 %v6971
  %v7054 = vunpack.c.l.b16 %v6972
  %v7055 = vunpack.c.h.b16 %v6972
  %v7056 = vunpack.c.l.b16 %v6973
  %v7057 = vunpack.c.h.b16 %v6973
  %v7058 = vunpack.c.l.b16 %v6974
  %v7059 = vunpack.c.h.b16 %v6974
  %v7060 = vunpack.c.l.b16 %v6975
  %v7061 = vunpack.c.h.b16 %v6975
  %v7062 = vunpack.c.l.b16 %v6976
  %v7063 = vunpack.c.h.b16 %v6976
  %v7064 = vunpack.c.l.b16 %v6977
  %v7065 = vunpack.c.h.b16 %v6977
  %v7066 = vunpack.c.l.b16 %v6978
  %v7067 = vunpack.c.h.b16 %v6978
  %v7068 = vunpack.c.l.b16 %v6979
  %v7069 = vunpack.c.h.b16 %v6979
  %v7070 = vunpack.c.l.b16 %v6980
  %v7071 = vunpack.c.h.b16 %v6980
  %v7072 = vunpack.c.l.b16 %v6981
  %v7073 = vunpack.c.h.b16 %v6981
  %v7074 = vunpack.c.l.b16 %v6982
  %v7075 = vunpack.c.h.b16 %v6982
  %v7076 = vunpack.c.l.b16 %v6983
  %v7077 = vunpack.c.h.b16 %v6983
  %v7078 = vunpack.c.l.b16 %v6984
  %v7079 = vunpack.c.h.b16 %v6984
  %v7080 = vunpack.c.l.b16 %v6985
  %v7081 = vunpack.c.h.b16 %v6985
  %v7082 = vpack.c.b16 %v7018, %v7018
  %v7083 = vpack.c.b16 %v7019, %v7019
  %v7084 = vpack.c.b16 %v7020, %v7020
  %v7085 = vpack.c.b16 %v7021, %v7021
  %v7086 = vpack.c.b16 %v7022, %v7022
  %v7087 = vpack.c.b16 %v7023, %v7023
  %v7088 = vpack.c.b16 %v7024, %v7024
  %v7089 = vpack.c.b16 %v7025, %v7025
  %v7090 = vpack.c.b16 %v7026, %v7026
  %v7091 = vpack.c.b16 %v7027, %v7027
  %v7092 = vpack.c.b16 %v7028, %v7028
  %v7093 = vpack.c.b16 %v7029, %v7029
  %v7094 = vpack.c.b16 %v7030, %v7030
  %v7095 = vpack.c.b16 %v7031, %v7031
  %v7096 = vpack.c.b16 %v7032, %v7032
  %v7097 = vpack.c.b16 %v7033, %v7033
  %v7098 = vpack.c.b16 %v7034, %v7034
  %v7099 = vpack.c.b16 %v7035, %v7035
  %v7100 = vpack.c.b16 %v7036, %v7036
  %v7101 = vpack.c.b16 %v7037, %v7037
  %v7102 = vpack.c.b16 %v7038, %v7038
  %v7103 = vpack.c.b16 %v7039, %v7039
  %v7104 = vpack.c.b16 %v7040, %v7040
  %v7105 = vpack.c.b16 %v7041, %v7041
  %v7106 = vpack.c.b16 %v7042, %v7042
  %v7107 = vpack.c.b16 %v7043, %v7043
  %v7108 = vpack.c.b16 %v7044, %v7044
  %v7109 = vpack.c.b16 %v7045, %v7045
  %v7110 = vpack.c.b16 %v7046, %v7046
  %v7111 = vpack.c.b16 %v7047, %v7047
  %v7112 = vpack.c.b16 %v7048, %v7048
  %v7113 = vpack.c.b16 %v7049, %v7049
  %v7114 = vpack.c.b16 %v7050, %v7050
  %v7115 = vpack.c.b16 %v7051, %v7051
  %v7116 = vpack.c.b16 %v7052, %v7052
  %v7117 = vpack.c.b16 %v7053, %v7053
  %v7118 = vpack.c.b16 %v7054, %v7054
  %v7119 = vpack.c.b16 %v7055, %v7055
  %v7120 = vpack.c.b16 %v7056, %v7056
  %v7121 = vpack.c.b16 %v7057, %v7057
  %v7122 = vpack.c.b16 %v7058, %v7058
  %v7123 = vpack.c.b16 %v7059, %v7059
  %v7124 = vpack.c.b16 %v7060, %v7060
  %v7125 = vpack.c.b16 %v7061, %v7061
  %v7126 = vpack.c.b16 %v7062, %v7062
  %v7127 = vpack.c.b16 %v7063, %v7063
  %v7128 = vpack.c.b16 %v7064, %v7064
  %v7129 = vpack.c.b16 %v7065, %v7065
  %v7130 = vpack.c.b16 %v7066, %v7066
  %v7131 = vpack.c.b16 %v7067, %v7067
  %v7132 = vpack.c.b16 %v7068, %v7068
  %v7133 = vpack.c.b16 %v7069, %v7069
  %v7134 = vpack.c.b16 %v7070, %v7070
  %v7135 = vpack.c.b16 %v7071, %v7071
  %v7136 = vpack.c.b16 %v7072, %v7072
  %v7137 = vpack.c.b16 %v7073, %v7073
  %v7138 = vpack.c.b16 %v7074, %v7074
  %v7139 = vpack.c.b16 %v7075, %v7075
  %v7140 = vpack.c.b16 %v7076, %v7076
  %v7141 = vpack.c.b16 %v7077, %v7077
  %v7142 = vpack.c.b16 %v7078, %v7078
  %v7143 = vpack.c.b16 %v7079, %v7079
  %v7144 = vpack.c.b16 %v7080, %v7080
  %v7145 = vpack.c.b16 %v7081, %v7081
  %7146 = vrot.lane.b32.xlu0 %v7082, 16
  %v7147 = vpop.permute.xlu0 %7146
  %7148 = vrot.lane.b32.xlu0 %v7083, 16
  %v7149 = vpop.permute.xlu0 %7148
  %7150 = vrot.lane.b32.xlu0 %v7084, 16
  %v7151 = vpop.permute.xlu0 %7150
  %7152 = vrot.lane.b32.xlu0 %v7085, 16
  %v7153 = vpop.permute.xlu0 %7152
  %7154 = vrot.lane.b32.xlu0 %v7086, 16
  %v7155 = vpop.permute.xlu0 %7154
  %7156 = vrot.lane.b32.xlu0 %v7087, 16
  %v7157 = vpop.permute.xlu0 %7156
  %7158 = vrot.lane.b32.xlu0 %v7088, 16
  %v7159 = vpop.permute.xlu0 %7158
  %7160 = vrot.lane.b32.xlu0 %v7089, 16
  %v7161 = vpop.permute.xlu0 %7160
  %7162 = vrot.lane.b32.xlu0 %v7090, 16
  %v7163 = vpop.permute.xlu0 %7162
  %7164 = vrot.lane.b32.xlu0 %v7091, 16
  %v7165 = vpop.permute.xlu0 %7164
  %7166 = vrot.lane.b32.xlu0 %v7092, 16
  %v7167 = vpop.permute.xlu0 %7166
  %7168 = vrot.lane.b32.xlu0 %v7093, 16
  %v7169 = vpop.permute.xlu0 %7168
  %7170 = vrot.lane.b32.xlu0 %v7094, 16
  %v7171 = vpop.permute.xlu0 %7170
  %7172 = vrot.lane.b32.xlu0 %v7095, 16
  %v7173 = vpop.permute.xlu0 %7172
  %7174 = vrot.lane.b32.xlu0 %v7096, 16
  %v7175 = vpop.permute.xlu0 %7174
  %7176 = vrot.lane.b32.xlu0 %v7097, 16
  %v7177 = vpop.permute.xlu0 %7176
  %7178 = vrot.lane.b32.xlu0 %v7098, 16
  %v7179 = vpop.permute.xlu0 %7178
  %7180 = vrot.lane.b32.xlu0 %v7099, 16
  %v7181 = vpop.permute.xlu0 %7180
  %7182 = vrot.lane.b32.xlu0 %v7100, 16
  %v7183 = vpop.permute.xlu0 %7182
  %7184 = vrot.lane.b32.xlu0 %v7101, 16
  %v7185 = vpop.permute.xlu0 %7184
  %7186 = vrot.lane.b32.xlu0 %v7102, 16
  %v7187 = vpop.permute.xlu0 %7186
  %7188 = vrot.lane.b32.xlu0 %v7103, 16
  %v7189 = vpop.permute.xlu0 %7188
  %7190 = vrot.lane.b32.xlu0 %v7104, 16
  %v7191 = vpop.permute.xlu0 %7190
  %7192 = vrot.lane.b32.xlu0 %v7105, 16
  %v7193 = vpop.permute.xlu0 %7192
  %7194 = vrot.lane.b32.xlu0 %v7106, 16
  %v7195 = vpop.permute.xlu0 %7194
  %7196 = vrot.lane.b32.xlu0 %v7107, 16
  %v7197 = vpop.permute.xlu0 %7196
  %7198 = vrot.lane.b32.xlu0 %v7108, 16
  %v7199 = vpop.permute.xlu0 %7198
  %7200 = vrot.lane.b32.xlu0 %v7109, 16
  %v7201 = vpop.permute.xlu0 %7200
  %7202 = vrot.lane.b32.xlu0 %v7110, 16
  %v7203 = vpop.permute.xlu0 %7202
  %7204 = vrot.lane.b32.xlu0 %v7111, 16
  %v7205 = vpop.permute.xlu0 %7204
  %7206 = vrot.lane.b32.xlu0 %v7112, 16
  %v7207 = vpop.permute.xlu0 %7206
  %7208 = vrot.lane.b32.xlu0 %v7113, 16
  %v7209 = vpop.permute.xlu0 %7208
  %7210 = vrot.lane.b32.xlu0 %v7114, 16
  %v7211 = vpop.permute.xlu0 %7210
  %7212 = vrot.lane.b32.xlu0 %v7115, 16
  %v7213 = vpop.permute.xlu0 %7212
  %7214 = vrot.lane.b32.xlu0 %v7116, 16
  %v7215 = vpop.permute.xlu0 %7214
  %7216 = vrot.lane.b32.xlu0 %v7117, 16
  %v7217 = vpop.permute.xlu0 %7216
  %7218 = vrot.lane.b32.xlu0 %v7118, 16
  %v7219 = vpop.permute.xlu0 %7218
  %7220 = vrot.lane.b32.xlu0 %v7119, 16
  %v7221 = vpop.permute.xlu0 %7220
  %7222 = vrot.lane.b32.xlu0 %v7120, 16
  %v7223 = vpop.permute.xlu0 %7222
  %7224 = vrot.lane.b32.xlu0 %v7121, 16
  %v7225 = vpop.permute.xlu0 %7224
  %7226 = vrot.lane.b32.xlu0 %v7122, 16
  %v7227 = vpop.permute.xlu0 %7226
  %7228 = vrot.lane.b32.xlu0 %v7123, 16
  %v7229 = vpop.permute.xlu0 %7228
  %7230 = vrot.lane.b32.xlu0 %v7124, 16
  %v7231 = vpop.permute.xlu0 %7230
  %7232 = vrot.lane.b32.xlu0 %v7125, 16
  %v7233 = vpop.permute.xlu0 %7232
  %7234 = vrot.lane.b32.xlu0 %v7126, 16
  %v7235 = vpop.permute.xlu0 %7234
  %7236 = vrot.lane.b32.xlu0 %v7127, 16
  %v7237 = vpop.permute.xlu0 %7236
  %7238 = vrot.lane.b32.xlu0 %v7128, 16
  %v7239 = vpop.permute.xlu0 %7238
  %7240 = vrot.lane.b32.xlu0 %v7129, 16
  %v7241 = vpop.permute.xlu0 %7240
  %7242 = vrot.lane.b32.xlu0 %v7130, 16
  %v7243 = vpop.permute.xlu0 %7242
  %7244 = vrot.lane.b32.xlu0 %v7131, 16
  %v7245 = vpop.permute.xlu0 %7244
  %7246 = vrot.lane.b32.xlu0 %v7132, 16
  %v7247 = vpop.permute.xlu0 %7246
  %7248 = vrot.lane.b32.xlu0 %v7133, 16
  %v7249 = vpop.permute.xlu0 %7248
  %7250 = vrot.lane.b32.xlu0 %v7134, 16
  %v7251 = vpop.permute.xlu0 %7250
  %7252 = vrot.lane.b32.xlu0 %v7135, 16
  %v7253 = vpop.permute.xlu0 %7252
  %7254 = vrot.lane.b32.xlu0 %v7136, 16
  %v7255 = vpop.permute.xlu0 %7254
  %7256 = vrot.lane.b32.xlu0 %v7137, 16
  %v7257 = vpop.permute.xlu0 %7256
  %7258 = vrot.lane.b32.xlu0 %v7138, 16
  %v7259 = vpop.permute.xlu0 %7258
  %7260 = vrot.lane.b32.xlu0 %v7139, 16
  %v7261 = vpop.permute.xlu0 %7260
  %7262 = vrot.lane.b32.xlu0 %v7140, 16
  %v7263 = vpop.permute.xlu0 %7262
  %7264 = vrot.lane.b32.xlu0 %v7141, 16
  %v7265 = vpop.permute.xlu0 %7264
  %7266 = vrot.lane.b32.xlu0 %v7142, 16
  %v7267 = vpop.permute.xlu0 %7266
  %7268 = vrot.lane.b32.xlu0 %v7143, 16
  %v7269 = vpop.permute.xlu0 %7268
  %7270 = vrot.lane.b32.xlu0 %v7144, 16
  %v7271 = vpop.permute.xlu0 %7270
  %7272 = vrot.lane.b32.xlu0 %v7145, 16
  %v7273 = vpop.permute.xlu0 %7272
  %7338 = vst.msk [vmem:[#allocation3] sm:$0xf] %vm1590, %v7147
  %7339 = vst.msk [vmem:[#allocation3 + $0x4] sm:$0xf] %vm1590, %v7149
  %7340 = vst.msk [vmem:[#allocation3 + $0x8] sm:$0xf] %vm1590, %v7151
  %7341 = vst.msk [vmem:[#allocation3 + $0xc] sm:$0xf] %vm1590, %v7153
  %7342 = vst.msk [vmem:[#allocation3 + $0x10] sm:$0xf] %vm1590, %v7155
  %7343 = vst.msk [vmem:[#allocation3 + $0x14] sm:$0xf] %vm1590, %v7157
  %7344 = vst.msk [vmem:[#allocation3 + $0x18] sm:$0xf] %vm1590, %v7159
  %7345 = vst.msk [vmem:[#allocation3 + $0x1c] sm:$0xf] %vm1590, %v7161
  %7346 = vst.msk [vmem:[#allocation3 + $0x20] sm:$0xf] %vm1590, %v7163
  %7347 = vst.msk [vmem:[#allocation3 + $0x24] sm:$0xf] %vm1590, %v7165
  %7348 = vst.msk [vmem:[#allocation3 + $0x28] sm:$0xf] %vm1590, %v7167
  %7349 = vst.msk [vmem:[#allocation3 + $0x2c] sm:$0xf] %vm1590, %v7169
  %7350 = vst.msk [vmem:[#allocation3 + $0x30] sm:$0xf] %vm1590, %v7171
  %7351 = vst.msk [vmem:[#allocation3 + $0x34] sm:$0xf] %vm1590, %v7173
  %7352 = vst.msk [vmem:[#allocation3 + $0x38] sm:$0xf] %vm1590, %v7175
  %7353 = vst.msk [vmem:[#allocation3 + $0x3c] sm:$0xf] %vm1590, %v7177
  %7354 = vst.msk [vmem:[#allocation3 + $0x40] sm:$0xf] %vm1590, %v7179
  %7355 = vst.msk [vmem:[#allocation3 + $0x44] sm:$0xf] %vm1590, %v7181
  %7356 = vst.msk [vmem:[#allocation3 + $0x48] sm:$0xf] %vm1590, %v7183
  %7357 = vst.msk [vmem:[#allocation3 + $0x4c] sm:$0xf] %vm1590, %v7185
  %7358 = vst.msk [vmem:[#allocation3 + $0x50] sm:$0xf] %vm1590, %v7187
  %7359 = vst.msk [vmem:[#allocation3 + $0x54] sm:$0xf] %vm1590, %v7189
  %7360 = vst.msk [vmem:[#allocation3 + $0x58] sm:$0xf] %vm1590, %v7191
  %7361 = vst.msk [vmem:[#allocation3 + $0x5c] sm:$0xf] %vm1590, %v7193
  %7362 = vst.msk [vmem:[#allocation3 + $0x60] sm:$0xf] %vm1590, %v7195
  %7363 = vst.msk [vmem:[#allocation3 + $0x64] sm:$0xf] %vm1590, %v7197
  %7364 = vst.msk [vmem:[#allocation3 + $0x68] sm:$0xf] %vm1590, %v7199
  %7365 = vst.msk [vmem:[#allocation3 + $0x6c] sm:$0xf] %vm1590, %v7201
  %7366 = vst.msk [vmem:[#allocation3 + $0x70] sm:$0xf] %vm1590, %v7203
  %7367 = vst.msk [vmem:[#allocation3 + $0x74] sm:$0xf] %vm1590, %v7205
  %7368 = vst.msk [vmem:[#allocation3 + $0x78] sm:$0xf] %vm1590, %v7207
  %7369 = vst.msk [vmem:[#allocation3 + $0x7c] sm:$0xf] %vm1590, %v7209
  %7370 = vst.msk [vmem:[#allocation3 + $0x80] sm:$0xf] %vm1590, %v7211
  %7371 = vst.msk [vmem:[#allocation3 + $0x84] sm:$0xf] %vm1590, %v7213
  %7372 = vst.msk [vmem:[#allocation3 + $0x88] sm:$0xf] %vm1590, %v7215
  %7373 = vst.msk [vmem:[#allocation3 + $0x8c] sm:$0xf] %vm1590, %v7217
  %7374 = vst.msk [vmem:[#allocation3 + $0x90] sm:$0xf] %vm1590, %v7219
  %7375 = vst.msk [vmem:[#allocation3 + $0x94] sm:$0xf] %vm1590, %v7221
  %7376 = vst.msk [vmem:[#allocation3 + $0x98] sm:$0xf] %vm1590, %v7223
  %7377 = vst.msk [vmem:[#allocation3 + $0x9c] sm:$0xf] %vm1590, %v7225
  %7378 = vst.msk [vmem:[#allocation3 + $0xa0] sm:$0xf] %vm1590, %v7227
  %7379 = vst.msk [vmem:[#allocation3 + $0xa4] sm:$0xf] %vm1590, %v7229
  %7380 = vst.msk [vmem:[#allocation3 + $0xa8] sm:$0xf] %vm1590, %v7231
  %7381 = vst.msk [vmem:[#allocation3 + $0xac] sm:$0xf] %vm1590, %v7233
  %7382 = vst.msk [vmem:[#allocation3 + $0xb0] sm:$0xf] %vm1590, %v7235
  %7383 = vst.msk [vmem:[#allocation3 + $0xb4] sm:$0xf] %vm1590, %v7237
  %7384 = vst.msk [vmem:[#allocation3 + $0xb8] sm:$0xf] %vm1590, %v7239
  %7385 = vst.msk [vmem:[#allocation3 + $0xbc] sm:$0xf] %vm1590, %v7241
  %7386 = vst.msk [vmem:[#allocation3 + $0xc0] sm:$0xf] %vm1590, %v7243
  %7387 = vst.msk [vmem:[#allocation3 + $0xc4] sm:$0xf] %vm1590, %v7245
  %7388 = vst.msk [vmem:[#allocation3 + $0xc8] sm:$0xf] %vm1590, %v7247
  %7389 = vst.msk [vmem:[#allocation3 + $0xcc] sm:$0xf] %vm1590, %v7249
  %7390 = vst.msk [vmem:[#allocation3 + $0xd0] sm:$0xf] %vm1590, %v7251
  %7391 = vst.msk [vmem:[#allocation3 + $0xd4] sm:$0xf] %vm1590, %v7253
  %7392 = vst.msk [vmem:[#allocation3 + $0xd8] sm:$0xf] %vm1590, %v7255
  %7393 = vst.msk [vmem:[#allocation3 + $0xdc] sm:$0xf] %vm1590, %v7257
  %7394 = vst.msk [vmem:[#allocation3 + $0xe0] sm:$0xf] %vm1590, %v7259
  %7395 = vst.msk [vmem:[#allocation3 + $0xe4] sm:$0xf] %vm1590, %v7261
  %7396 = vst.msk [vmem:[#allocation3 + $0xe8] sm:$0xf] %vm1590, %v7263
  %7397 = vst.msk [vmem:[#allocation3 + $0xec] sm:$0xf] %vm1590, %v7265
  %7398 = vst.msk [vmem:[#allocation3 + $0xf0] sm:$0xf] %vm1590, %v7267
  %7399 = vst.msk [vmem:[#allocation3 + $0xf4] sm:$0xf] %vm1590, %v7269
  %7400 = vst.msk [vmem:[#allocation3 + $0xf8] sm:$0xf] %vm1590, %v7271
  %7401 = vst.msk [vmem:[#allocation3 + $0xfc] sm:$0xf] %vm1590, %v7273
  %v7402 = vld [vmem:[%s179] sm:$0xff]
  %v7403 = vld [vmem:[%s179 + $0x8] sm:$0xff]
  %v7404 = vld [vmem:[%s179 + $0x18] sm:$0xff]
  %v7405 = vld [vmem:[%s179 + $0x20] sm:$0xff]
  %v7406 = vld [vmem:[%s179 + $0x30] sm:$0xff]
  %v7407 = vld [vmem:[%s179 + $0x38] sm:$0xff]
  %v7408 = vld [vmem:[%s179 + $0x48] sm:$0xff]
  %v7409 = vld [vmem:[%s179 + $0x50] sm:$0xff]
  %v7410 = vld [vmem:[%s179 + $0x60] sm:$0xff]
  %v7411 = vld [vmem:[%s179 + $0x68] sm:$0xff]
  %v7412 = vld [vmem:[%s179 + $0x78] sm:$0xff]
  %v7413 = vld [vmem:[%s179 + $0x80] sm:$0xff]
  %v7414 = vld [vmem:[%s179 + $0x90] sm:$0xff]
  %v7415 = vld [vmem:[%s179 + $0x98] sm:$0xff]
  %v7416 = vld [vmem:[%s179 + $0xa8] sm:$0xff]
  %v7417 = vld [vmem:[%s179 + $0xb0] sm:$0xff]
  %v7418 = vld [vmem:[%s179 + $0xc0] sm:$0xff]
  %v7419 = vld [vmem:[%s179 + $0xc8] sm:$0xff]
  %v7420 = vld [vmem:[%s179 + $0xd8] sm:$0xff]
  %v7421 = vld [vmem:[%s179 + $0xe0] sm:$0xff]
  %v7422 = vld [vmem:[%s179 + $0xf0] sm:$0xff]
  %v7423 = vld [vmem:[%s179 + $0xf8] sm:$0xff]
  %v7424 = vld [vmem:[%s179 + $0x108] sm:$0xff]
  %v7425 = vld [vmem:[%s179 + $0x110] sm:$0xff]
  %v7426 = vld [vmem:[%s179 + $0x120] sm:$0xff]
  %v7427 = vld [vmem:[%s179 + $0x128] sm:$0xff]
  %v7428 = vld [vmem:[%s179 + $0x138] sm:$0xff]
  %v7429 = vld [vmem:[%s179 + $0x140] sm:$0xff]
  %v7430 = vld [vmem:[%s179 + $0x150] sm:$0xff]
  %v7431 = vld [vmem:[%s179 + $0x158] sm:$0xff]
  %v7432 = vld [vmem:[%s179 + $0x168] sm:$0xff]
  %v7433 = vld [vmem:[%s179 + $0x170] sm:$0xff]
  %v7434 = vld [vmem:[%s179 + $0x1b0] sm:$0xff]
  %v7435 = vld [vmem:[%s179 + $0x1b8] sm:$0xff]
  %v7436 = vld [vmem:[%s179 + $0x1c8] sm:$0xff]
  %v7437 = vld [vmem:[%s179 + $0x1d0] sm:$0xff]
  %v7438 = vld [vmem:[%s179 + $0x1e0] sm:$0xff]
  %v7439 = vld [vmem:[%s179 + $0x1e8] sm:$0xff]
  %v7440 = vld [vmem:[%s179 + $0x1f8] sm:$0xff]
  %v7441 = vld [vmem:[%s179 + $0x200] sm:$0xff]
  %v7442 = vld [vmem:[%s179 + $0x210] sm:$0xff]
  %v7443 = vld [vmem:[%s179 + $0x218] sm:$0xff]
  %v7444 = vld [vmem:[%s179 + $0x228] sm:$0xff]
  %v7445 = vld [vmem:[%s179 + $0x230] sm:$0xff]
  %v7446 = vld [vmem:[%s179 + $0x240] sm:$0xff]
  %v7447 = vld [vmem:[%s179 + $0x248] sm:$0xff]
  %v7448 = vld [vmem:[%s179 + $0x258] sm:$0xff]
  %v7449 = vld [vmem:[%s179 + $0x260] sm:$0xff]
  %v7450 = vld [vmem:[%s179 + $0x270] sm:$0xff]
  %v7451 = vld [vmem:[%s179 + $0x278] sm:$0xff]
  %v7452 = vld [vmem:[%s179 + $0x288] sm:$0xff]
  %v7453 = vld [vmem:[%s179 + $0x290] sm:$0xff]
  %v7454 = vld [vmem:[%s179 + $0x2a0] sm:$0xff]
  %v7455 = vld [vmem:[%s179 + $0x2a8] sm:$0xff]
  %v7456 = vld [vmem:[%s179 + $0x2b8] sm:$0xff]
  %v7457 = vld [vmem:[%s179 + $0x2c0] sm:$0xff]
  %v7458 = vld [vmem:[%s179 + $0x2d0] sm:$0xff]
  %v7459 = vld [vmem:[%s179 + $0x2d8] sm:$0xff]
  %v7460 = vld [vmem:[%s179 + $0x2e8] sm:$0xff]
  %v7461 = vld [vmem:[%s179 + $0x2f0] sm:$0xff]
  %v7462 = vld [vmem:[%s179 + $0x300] sm:$0xff]
  %v7463 = vld [vmem:[%s179 + $0x308] sm:$0xff]
  %v7464 = vld [vmem:[%s179 + $0x318] sm:$0xff]
  %v7465 = vld [vmem:[%s179 + $0x320] sm:$0xff]
  %v7466 = vpack.c.bf16 %v7403, %v7402
  %v7467 = vpack.c.bf16 %v7405, %v7404
  %v7468 = vpack.c.bf16 %v7407, %v7406
  %v7469 = vpack.c.bf16 %v7409, %v7408
  %v7470 = vpack.c.bf16 %v7411, %v7410
  %v7471 = vpack.c.bf16 %v7413, %v7412
  %v7472 = vpack.c.bf16 %v7415, %v7414
  %v7473 = vpack.c.bf16 %v7417, %v7416
  %v7474 = vpack.c.bf16 %v7419, %v7418
  %v7475 = vpack.c.bf16 %v7421, %v7420
  %v7476 = vpack.c.bf16 %v7423, %v7422
  %v7477 = vpack.c.bf16 %v7425, %v7424
  %v7478 = vpack.c.bf16 %v7427, %v7426
  %v7479 = vpack.c.bf16 %v7429, %v7428
  %v7480 = vpack.c.bf16 %v7431, %v7430
  %v7481 = vpack.c.bf16 %v7433, %v7432
  %v7482 = vpack.c.bf16 %v7435, %v7434
  %v7483 = vpack.c.bf16 %v7437, %v7436
  %v7484 = vpack.c.bf16 %v7439, %v7438
  %v7485 = vpack.c.bf16 %v7441, %v7440
  %v7486 = vpack.c.bf16 %v7443, %v7442
  %v7487 = vpack.c.bf16 %v7445, %v7444
  %v7488 = vpack.c.bf16 %v7447, %v7446
  %v7489 = vpack.c.bf16 %v7449, %v7448
  %v7490 = vpack.c.bf16 %v7451, %v7450
  %v7491 = vpack.c.bf16 %v7453, %v7452
  %v7492 = vpack.c.bf16 %v7455, %v7454
  %v7493 = vpack.c.bf16 %v7457, %v7456
  %v7494 = vpack.c.bf16 %v7459, %v7458
  %v7495 = vpack.c.bf16 %v7461, %v7460
  %v7496 = vpack.c.bf16 %v7463, %v7462
  %v7497 = vpack.c.bf16 %v7465, %v7464
  %v7530 = vunpack.c.l.b16 %v7466
  %v7531 = vunpack.c.h.b16 %v7466
  %v7532 = vunpack.c.l.b16 %v7467
  %v7533 = vunpack.c.h.b16 %v7467
  %v7534 = vunpack.c.l.b16 %v7468
  %v7535 = vunpack.c.h.b16 %v7468
  %v7536 = vunpack.c.l.b16 %v7469
  %v7537 = vunpack.c.h.b16 %v7469
  %v7538 = vunpack.c.l.b16 %v7470
  %v7539 = vunpack.c.h.b16 %v7470
  %v7540 = vunpack.c.l.b16 %v7471
  %v7541 = vunpack.c.h.b16 %v7471
  %v7542 = vunpack.c.l.b16 %v7472
  %v7543 = vunpack.c.h.b16 %v7472
  %v7544 = vunpack.c.l.b16 %v7473
  %v7545 = vunpack.c.h.b16 %v7473
  %v7546 = vunpack.c.l.b16 %v7474
  %v7547 = vunpack.c.h.b16 %v7474
  %v7548 = vunpack.c.l.b16 %v7475
  %v7549 = vunpack.c.h.b16 %v7475
  %v7550 = vunpack.c.l.b16 %v7476
  %v7551 = vunpack.c.h.b16 %v7476
  %v7552 = vunpack.c.l.b16 %v7477
  %v7553 = vunpack.c.h.b16 %v7477
  %v7554 = vunpack.c.l.b16 %v7478
  %v7555 = vunpack.c.h.b16 %v7478
  %v7556 = vunpack.c.l.b16 %v7479
  %v7557 = vunpack.c.h.b16 %v7479
  %v7558 = vunpack.c.l.b16 %v7480
  %v7559 = vunpack.c.h.b16 %v7480
  %v7560 = vunpack.c.l.b16 %v7481
  %v7561 = vunpack.c.h.b16 %v7481
  %v7562 = vunpack.c.l.b16 %v7482
  %v7563 = vunpack.c.h.b16 %v7482
  %v7564 = vunpack.c.l.b16 %v7483
  %v7565 = vunpack.c.h.b16 %v7483
  %v7566 = vunpack.c.l.b16 %v7484
  %v7567 = vunpack.c.h.b16 %v7484
  %v7568 = vunpack.c.l.b16 %v7485
  %v7569 = vunpack.c.h.b16 %v7485
  %v7570 = vunpack.c.l.b16 %v7486
  %v7571 = vunpack.c.h.b16 %v7486
  %v7572 = vunpack.c.l.b16 %v7487
  %v7573 = vunpack.c.h.b16 %v7487
  %v7574 = vunpack.c.l.b16 %v7488
  %v7575 = vunpack.c.h.b16 %v7488
  %v7576 = vunpack.c.l.b16 %v7489
  %v7577 = vunpack.c.h.b16 %v7489
  %v7578 = vunpack.c.l.b16 %v7490
  %v7579 = vunpack.c.h.b16 %v7490
  %v7580 = vunpack.c.l.b16 %v7491
  %v7581 = vunpack.c.h.b16 %v7491
  %v7582 = vunpack.c.l.b16 %v7492
  %v7583 = vunpack.c.h.b16 %v7492
  %v7584 = vunpack.c.l.b16 %v7493
  %v7585 = vunpack.c.h.b16 %v7493
  %v7586 = vunpack.c.l.b16 %v7494
  %v7587 = vunpack.c.h.b16 %v7494
  %v7588 = vunpack.c.l.b16 %v7495
  %v7589 = vunpack.c.h.b16 %v7495
  %v7590 = vunpack.c.l.b16 %v7496
  %v7591 = vunpack.c.h.b16 %v7496
  %v7592 = vunpack.c.l.b16 %v7497
  %v7593 = vunpack.c.h.b16 %v7497
  %v7594 = vpack.c.b16 %v7530, %v7530
  %v7595 = vpack.c.b16 %v7531, %v7531
  %v7596 = vpack.c.b16 %v7532, %v7532
  %v7597 = vpack.c.b16 %v7533, %v7533
  %v7598 = vpack.c.b16 %v7534, %v7534
  %v7599 = vpack.c.b16 %v7535, %v7535
  %v7600 = vpack.c.b16 %v7536, %v7536
  %v7601 = vpack.c.b16 %v7537, %v7537
  %v7602 = vpack.c.b16 %v7538, %v7538
  %v7603 = vpack.c.b16 %v7539, %v7539
  %v7604 = vpack.c.b16 %v7540, %v7540
  %v7605 = vpack.c.b16 %v7541, %v7541
  %v7606 = vpack.c.b16 %v7542, %v7542
  %v7607 = vpack.c.b16 %v7543, %v7543
  %v7608 = vpack.c.b16 %v7544, %v7544
  %v7609 = vpack.c.b16 %v7545, %v7545
  %v7610 = vpack.c.b16 %v7546, %v7546
  %v7611 = vpack.c.b16 %v7547, %v7547
  %v7612 = vpack.c.b16 %v7548, %v7548
  %v7613 = vpack.c.b16 %v7549, %v7549
  %v7614 = vpack.c.b16 %v7550, %v7550
  %v7615 = vpack.c.b16 %v7551, %v7551
  %v7616 = vpack.c.b16 %v7552, %v7552
  %v7617 = vpack.c.b16 %v7553, %v7553
  %v7618 = vpack.c.b16 %v7554, %v7554
  %v7619 = vpack.c.b16 %v7555, %v7555
  %v7620 = vpack.c.b16 %v7556, %v7556
  %v7621 = vpack.c.b16 %v7557, %v7557
  %v7622 = vpack.c.b16 %v7558, %v7558
  %v7623 = vpack.c.b16 %v7559, %v7559
  %v7624 = vpack.c.b16 %v7560, %v7560
  %v7625 = vpack.c.b16 %v7561, %v7561
  %v7626 = vpack.c.b16 %v7562, %v7562
  %v7627 = vpack.c.b16 %v7563, %v7563
  %v7628 = vpack.c.b16 %v7564, %v7564
  %v7629 = vpack.c.b16 %v7565, %v7565
  %v7630 = vpack.c.b16 %v7566, %v7566
  %v7631 = vpack.c.b16 %v7567, %v7567
  %v7632 = vpack.c.b16 %v7568, %v7568
  %v7633 = vpack.c.b16 %v7569, %v7569
  %v7634 = vpack.c.b16 %v7570, %v7570
  %v7635 = vpack.c.b16 %v7571, %v7571
  %v7636 = vpack.c.b16 %v7572, %v7572
  %v7637 = vpack.c.b16 %v7573, %v7573
  %v7638 = vpack.c.b16 %v7574, %v7574
  %v7639 = vpack.c.b16 %v7575, %v7575
  %v7640 = vpack.c.b16 %v7576, %v7576
  %v7641 = vpack.c.b16 %v7577, %v7577
  %v7642 = vpack.c.b16 %v7578, %v7578
  %v7643 = vpack.c.b16 %v7579, %v7579
  %v7644 = vpack.c.b16 %v7580, %v7580
  %v7645 = vpack.c.b16 %v7581, %v7581
  %v7646 = vpack.c.b16 %v7582, %v7582
  %v7647 = vpack.c.b16 %v7583, %v7583
  %v7648 = vpack.c.b16 %v7584, %v7584
  %v7649 = vpack.c.b16 %v7585, %v7585
  %v7650 = vpack.c.b16 %v7586, %v7586
  %v7651 = vpack.c.b16 %v7587, %v7587
  %v7652 = vpack.c.b16 %v7588, %v7588
  %v7653 = vpack.c.b16 %v7589, %v7589
  %v7654 = vpack.c.b16 %v7590, %v7590
  %v7655 = vpack.c.b16 %v7591, %v7591
  %v7656 = vpack.c.b16 %v7592, %v7592
  %v7657 = vpack.c.b16 %v7593, %v7593
  %7658 = vrot.lane.b32.xlu0 %v7594, 24
  %v7659 = vpop.permute.xlu0 %7658
  %7660 = vrot.lane.b32.xlu0 %v7595, 24
  %v7661 = vpop.permute.xlu0 %7660
  %7662 = vrot.lane.b32.xlu0 %v7596, 24
  %v7663 = vpop.permute.xlu0 %7662
  %7664 = vrot.lane.b32.xlu0 %v7597, 24
  %v7665 = vpop.permute.xlu0 %7664
  %7666 = vrot.lane.b32.xlu0 %v7598, 24
  %v7667 = vpop.permute.xlu0 %7666
  %7668 = vrot.lane.b32.xlu0 %v7599, 24
  %v7669 = vpop.permute.xlu0 %7668
  %7670 = vrot.lane.b32.xlu0 %v7600, 24
  %v7671 = vpop.permute.xlu0 %7670
  %7672 = vrot.lane.b32.xlu0 %v7601, 24
  %v7673 = vpop.permute.xlu0 %7672
  %7674 = vrot.lane.b32.xlu0 %v7602, 24
  %v7675 = vpop.permute.xlu0 %7674
  %7676 = vrot.lane.b32.xlu0 %v7603, 24
  %v7677 = vpop.permute.xlu0 %7676
  %7678 = vrot.lane.b32.xlu0 %v7604, 24
  %v7679 = vpop.permute.xlu0 %7678
  %7680 = vrot.lane.b32.xlu0 %v7605, 24
  %v7681 = vpop.permute.xlu0 %7680
  %7682 = vrot.lane.b32.xlu0 %v7606, 24
  %v7683 = vpop.permute.xlu0 %7682
  %7684 = vrot.lane.b32.xlu0 %v7607, 24
  %v7685 = vpop.permute.xlu0 %7684
  %7686 = vrot.lane.b32.xlu0 %v7608, 24
  %v7687 = vpop.permute.xlu0 %7686
  %7688 = vrot.lane.b32.xlu0 %v7609, 24
  %v7689 = vpop.permute.xlu0 %7688
  %7690 = vrot.lane.b32.xlu0 %v7610, 24
  %v7691 = vpop.permute.xlu0 %7690
  %7692 = vrot.lane.b32.xlu0 %v7611, 24
  %v7693 = vpop.permute.xlu0 %7692
  %7694 = vrot.lane.b32.xlu0 %v7612, 24
  %v7695 = vpop.permute.xlu0 %7694
  %7696 = vrot.lane.b32.xlu0 %v7613, 24
  %v7697 = vpop.permute.xlu0 %7696
  %7698 = vrot.lane.b32.xlu0 %v7614, 24
  %v7699 = vpop.permute.xlu0 %7698
  %7700 = vrot.lane.b32.xlu0 %v7615, 24
  %v7701 = vpop.permute.xlu0 %7700
  %7702 = vrot.lane.b32.xlu0 %v7616, 24
  %v7703 = vpop.permute.xlu0 %7702
  %7704 = vrot.lane.b32.xlu0 %v7617, 24
  %v7705 = vpop.permute.xlu0 %7704
  %7706 = vrot.lane.b32.xlu0 %v7618, 24
  %v7707 = vpop.permute.xlu0 %7706
  %7708 = vrot.lane.b32.xlu0 %v7619, 24
  %v7709 = vpop.permute.xlu0 %7708
  %7710 = vrot.lane.b32.xlu0 %v7620, 24
  %v7711 = vpop.permute.xlu0 %7710
  %7712 = vrot.lane.b32.xlu0 %v7621, 24
  %v7713 = vpop.permute.xlu0 %7712
  %7714 = vrot.lane.b32.xlu0 %v7622, 24
  %v7715 = vpop.permute.xlu0 %7714
  %7716 = vrot.lane.b32.xlu0 %v7623, 24
  %v7717 = vpop.permute.xlu0 %7716
  %7718 = vrot.lane.b32.xlu0 %v7624, 24
  %v7719 = vpop.permute.xlu0 %7718
  %7720 = vrot.lane.b32.xlu0 %v7625, 24
  %v7721 = vpop.permute.xlu0 %7720
  %7722 = vrot.lane.b32.xlu0 %v7626, 24
  %v7723 = vpop.permute.xlu0 %7722
  %7724 = vrot.lane.b32.xlu0 %v7627, 24
  %v7725 = vpop.permute.xlu0 %7724
  %7726 = vrot.lane.b32.xlu0 %v7628, 24
  %v7727 = vpop.permute.xlu0 %7726
  %7728 = vrot.lane.b32.xlu0 %v7629, 24
  %v7729 = vpop.permute.xlu0 %7728
  %7730 = vrot.lane.b32.xlu0 %v7630, 24
  %v7731 = vpop.permute.xlu0 %7730
  %7732 = vrot.lane.b32.xlu0 %v7631, 24
  %v7733 = vpop.permute.xlu0 %7732
  %7734 = vrot.lane.b32.xlu0 %v7632, 24
  %v7735 = vpop.permute.xlu0 %7734
  %7736 = vrot.lane.b32.xlu0 %v7633, 24
  %v7737 = vpop.permute.xlu0 %7736
  %7738 = vrot.lane.b32.xlu0 %v7634, 24
  %v7739 = vpop.permute.xlu0 %7738
  %7740 = vrot.lane.b32.xlu0 %v7635, 24
  %v7741 = vpop.permute.xlu0 %7740
  %7742 = vrot.lane.b32.xlu0 %v7636, 24
  %v7743 = vpop.permute.xlu0 %7742
  %7744 = vrot.lane.b32.xlu0 %v7637, 24
  %v7745 = vpop.permute.xlu0 %7744
  %7746 = vrot.lane.b32.xlu0 %v7638, 24
  %v7747 = vpop.permute.xlu0 %7746
  %7748 = vrot.lane.b32.xlu0 %v7639, 24
  %v7749 = vpop.permute.xlu0 %7748
  %7750 = vrot.lane.b32.xlu0 %v7640, 24
  %v7751 = vpop.permute.xlu0 %7750
  %7752 = vrot.lane.b32.xlu0 %v7641, 24
  %v7753 = vpop.permute.xlu0 %7752
  %7754 = vrot.lane.b32.xlu0 %v7642, 24
  %v7755 = vpop.permute.xlu0 %7754
  %7756 = vrot.lane.b32.xlu0 %v7643, 24
  %v7757 = vpop.permute.xlu0 %7756
  %7758 = vrot.lane.b32.xlu0 %v7644, 24
  %v7759 = vpop.permute.xlu0 %7758
  %7760 = vrot.lane.b32.xlu0 %v7645, 24
  %v7761 = vpop.permute.xlu0 %7760
  %7762 = vrot.lane.b32.xlu0 %v7646, 24
  %v7763 = vpop.permute.xlu0 %7762
  %7764 = vrot.lane.b32.xlu0 %v7647, 24
  %v7765 = vpop.permute.xlu0 %7764
  %7766 = vrot.lane.b32.xlu0 %v7648, 24
  %v7767 = vpop.permute.xlu0 %7766
  %7768 = vrot.lane.b32.xlu0 %v7649, 24
  %v7769 = vpop.permute.xlu0 %7768
  %7770 = vrot.lane.b32.xlu0 %v7650, 24
  %v7771 = vpop.permute.xlu0 %7770
  %7772 = vrot.lane.b32.xlu0 %v7651, 24
  %v7773 = vpop.permute.xlu0 %7772
  %7774 = vrot.lane.b32.xlu0 %v7652, 24
  %v7775 = vpop.permute.xlu0 %7774
  %7776 = vrot.lane.b32.xlu0 %v7653, 24
  %v7777 = vpop.permute.xlu0 %7776
  %7778 = vrot.lane.b32.xlu0 %v7654, 24
  %v7779 = vpop.permute.xlu0 %7778
  %7780 = vrot.lane.b32.xlu0 %v7655, 24
  %v7781 = vpop.permute.xlu0 %7780
  %7782 = vrot.lane.b32.xlu0 %v7656, 24
  %v7783 = vpop.permute.xlu0 %7782
  %7784 = vrot.lane.b32.xlu0 %v7657, 24
  %v7785 = vpop.permute.xlu0 %7784
  %7850 = vst.msk [vmem:[#allocation3] sm:$0xf] %vm2103, %v7659
  %7851 = vst.msk [vmem:[#allocation3 + $0x4] sm:$0xf] %vm2103, %v7661
  %7852 = vst.msk [vmem:[#allocation3 + $0x8] sm:$0xf] %vm2103, %v7663
  %7853 = vst.msk [vmem:[#allocation3 + $0xc] sm:$0xf] %vm2103, %v7665
  %7854 = vst.msk [vmem:[#allocation3 + $0x10] sm:$0xf] %vm2103, %v7667
  %7855 = vst.msk [vmem:[#allocation3 + $0x14] sm:$0xf] %vm2103, %v7669
  %7856 = vst.msk [vmem:[#allocation3 + $0x18] sm:$0xf] %vm2103, %v7671
  %7857 = vst.msk [vmem:[#allocation3 + $0x1c] sm:$0xf] %vm2103, %v7673
  %7858 = vst.msk [vmem:[#allocation3 + $0x20] sm:$0xf] %vm2103, %v7675
  %7859 = vst.msk [vmem:[#allocation3 + $0x24] sm:$0xf] %vm2103, %v7677
  %7860 = vst.msk [vmem:[#allocation3 + $0x28] sm:$0xf] %vm2103, %v7679
  %7861 = vst.msk [vmem:[#allocation3 + $0x2c] sm:$0xf] %vm2103, %v7681
  %7862 = vst.msk [vmem:[#allocation3 + $0x30] sm:$0xf] %vm2103, %v7683
  %7863 = vst.msk [vmem:[#allocation3 + $0x34] sm:$0xf] %vm2103, %v7685
  %7864 = vst.msk [vmem:[#allocation3 + $0x38] sm:$0xf] %vm2103, %v7687
  %7865 = vst.msk [vmem:[#allocation3 + $0x3c] sm:$0xf] %vm2103, %v7689
  %7866 = vst.msk [vmem:[#allocation3 + $0x40] sm:$0xf] %vm2103, %v7691
  %7867 = vst.msk [vmem:[#allocation3 + $0x44] sm:$0xf] %vm2103, %v7693
  %7868 = vst.msk [vmem:[#allocation3 + $0x48] sm:$0xf] %vm2103, %v7695
  %7869 = vst.msk [vmem:[#allocation3 + $0x4c] sm:$0xf] %vm2103, %v7697
  %7870 = vst.msk [vmem:[#allocation3 + $0x50] sm:$0xf] %vm2103, %v7699
  %7871 = vst.msk [vmem:[#allocation3 + $0x54] sm:$0xf] %vm2103, %v7701
  %7872 = vst.msk [vmem:[#allocation3 + $0x58] sm:$0xf] %vm2103, %v7703
  %7873 = vst.msk [vmem:[#allocation3 + $0x5c] sm:$0xf] %vm2103, %v7705
  %7874 = vst.msk [vmem:[#allocation3 + $0x60] sm:$0xf] %vm2103, %v7707
  %7875 = vst.msk [vmem:[#allocation3 + $0x64] sm:$0xf] %vm2103, %v7709
  %7876 = vst.msk [vmem:[#allocation3 + $0x68] sm:$0xf] %vm2103, %v7711
  %7877 = vst.msk [vmem:[#allocation3 + $0x6c] sm:$0xf] %vm2103, %v7713
  %7878 = vst.msk [vmem:[#allocation3 + $0x70] sm:$0xf] %vm2103, %v7715
  %7879 = vst.msk [vmem:[#allocation3 + $0x74] sm:$0xf] %vm2103, %v7717
  %7880 = vst.msk [vmem:[#allocation3 + $0x78] sm:$0xf] %vm2103, %v7719
  %7881 = vst.msk [vmem:[#allocation3 + $0x7c] sm:$0xf] %vm2103, %v7721
  %7882 = vst.msk [vmem:[#allocation3 + $0x80] sm:$0xf] %vm2103, %v7723
  %7883 = vst.msk [vmem:[#allocation3 + $0x84] sm:$0xf] %vm2103, %v7725
  %7884 = vst.msk [vmem:[#allocation3 + $0x88] sm:$0xf] %vm2103, %v7727
  %7885 = vst.msk [vmem:[#allocation3 + $0x8c] sm:$0xf] %vm2103, %v7729
  %7886 = vst.msk [vmem:[#allocation3 + $0x90] sm:$0xf] %vm2103, %v7731
  %7887 = vst.msk [vmem:[#allocation3 + $0x94] sm:$0xf] %vm2103, %v7733
  %7888 = vst.msk [vmem:[#allocation3 + $0x98] sm:$0xf] %vm2103, %v7735
  %7889 = vst.msk [vmem:[#allocation3 + $0x9c] sm:$0xf] %vm2103, %v7737
  %7890 = vst.msk [vmem:[#allocation3 + $0xa0] sm:$0xf] %vm2103, %v7739
  %7891 = vst.msk [vmem:[#allocation3 + $0xa4] sm:$0xf] %vm2103, %v7741
  %7892 = vst.msk [vmem:[#allocation3 + $0xa8] sm:$0xf] %vm2103, %v7743
  %7893 = vst.msk [vmem:[#allocation3 + $0xac] sm:$0xf] %vm2103, %v7745
  %7894 = vst.msk [vmem:[#allocation3 + $0xb0] sm:$0xf] %vm2103, %v7747
  %7895 = vst.msk [vmem:[#allocation3 + $0xb4] sm:$0xf] %vm2103, %v7749
  %7896 = vst.msk [vmem:[#allocation3 + $0xb8] sm:$0xf] %vm2103, %v7751
  %7897 = vst.msk [vmem:[#allocation3 + $0xbc] sm:$0xf] %vm2103, %v7753
  %7898 = vst.msk [vmem:[#allocation3 + $0xc0] sm:$0xf] %vm2103, %v7755
  %7899 = vst.msk [vmem:[#allocation3 + $0xc4] sm:$0xf] %vm2103, %v7757
  %7900 = vst.msk [vmem:[#allocation3 + $0xc8] sm:$0xf] %vm2103, %v7759
  %7901 = vst.msk [vmem:[#allocation3 + $0xcc] sm:$0xf] %vm2103, %v7761
  %7902 = vst.msk [vmem:[#allocation3 + $0xd0] sm:$0xf] %vm2103, %v7763
  %7903 = vst.msk [vmem:[#allocation3 + $0xd4] sm:$0xf] %vm2103, %v7765
  %7904 = vst.msk [vmem:[#allocation3 + $0xd8] sm:$0xf] %vm2103, %v7767
  %7905 = vst.msk [vmem:[#allocation3 + $0xdc] sm:$0xf] %vm2103, %v7769
  %7906 = vst.msk [vmem:[#allocation3 + $0xe0] sm:$0xf] %vm2103, %v7771
  %7907 = vst.msk [vmem:[#allocation3 + $0xe4] sm:$0xf] %vm2103, %v7773
  %7908 = vst.msk [vmem:[#allocation3 + $0xe8] sm:$0xf] %vm2103, %v7775
  %7909 = vst.msk [vmem:[#allocation3 + $0xec] sm:$0xf] %vm2103, %v7777
  %7910 = vst.msk [vmem:[#allocation3 + $0xf0] sm:$0xf] %vm2103, %v7779
  %7911 = vst.msk [vmem:[#allocation3 + $0xf4] sm:$0xf] %vm2103, %v7781
  %7912 = vst.msk [vmem:[#allocation3 + $0xf8] sm:$0xf] %vm2103, %v7783
  %7913 = vst.msk [vmem:[#allocation3 + $0xfc] sm:$0xf] %vm2103, %v7785
  %v7914 = vld [vmem:[%s179 + $0x1] sm:$0xff]
  %v7915 = vld [vmem:[%s179 + $0x9] sm:$0xff]
  %v7916 = vld [vmem:[%s179 + $0x19] sm:$0xff]
  %v7917 = vld [vmem:[%s179 + $0x21] sm:$0xff]
  %v7918 = vld [vmem:[%s179 + $0x31] sm:$0xff]
  %v7919 = vld [vmem:[%s179 + $0x39] sm:$0xff]
  %v7920 = vld [vmem:[%s179 + $0x49] sm:$0xff]
  %v7921 = vld [vmem:[%s179 + $0x51] sm:$0xff]
  %v7922 = vld [vmem:[%s179 + $0x61] sm:$0xff]
  %v7923 = vld [vmem:[%s179 + $0x69] sm:$0xff]
  %v7924 = vld [vmem:[%s179 + $0x79] sm:$0xff]
  %v7925 = vld [vmem:[%s179 + $0x81] sm:$0xff]
  %v7926 = vld [vmem:[%s179 + $0x91] sm:$0xff]
  %v7927 = vld [vmem:[%s179 + $0x99] sm:$0xff]
  %v7928 = vld [vmem:[%s179 + $0xa9] sm:$0xff]
  %v7929 = vld [vmem:[%s179 + $0xb1] sm:$0xff]
  %v7930 = vld [vmem:[%s179 + $0xc1] sm:$0xff]
  %v7931 = vld [vmem:[%s179 + $0xc9] sm:$0xff]
  %v7932 = vld [vmem:[%s179 + $0xd9] sm:$0xff]
  %v7933 = vld [vmem:[%s179 + $0xe1] sm:$0xff]
  %v7934 = vld [vmem:[%s179 + $0xf1] sm:$0xff]
  %v7935 = vld [vmem:[%s179 + $0xf9] sm:$0xff]
  %v7936 = vld [vmem:[%s179 + $0x109] sm:$0xff]
  %v7937 = vld [vmem:[%s179 + $0x111] sm:$0xff]
  %v7938 = vld [vmem:[%s179 + $0x121] sm:$0xff]
  %v7939 = vld [vmem:[%s179 + $0x129] sm:$0xff]
  %v7940 = vld [vmem:[%s179 + $0x139] sm:$0xff]
  %v7941 = vld [vmem:[%s179 + $0x141] sm:$0xff]
  %v7942 = vld [vmem:[%s179 + $0x151] sm:$0xff]
  %v7943 = vld [vmem:[%s179 + $0x159] sm:$0xff]
  %v7944 = vld [vmem:[%s179 + $0x169] sm:$0xff]
  %v7945 = vld [vmem:[%s179 + $0x171] sm:$0xff]
  %v7946 = vld [vmem:[%s179 + $0x1b1] sm:$0xff]
  %v7947 = vld [vmem:[%s179 + $0x1b9] sm:$0xff]
  %v7948 = vld [vmem:[%s179 + $0x1c9] sm:$0xff]
  %v7949 = vld [vmem:[%s179 + $0x1d1] sm:$0xff]
  %v7950 = vld [vmem:[%s179 + $0x1e1] sm:$0xff]
  %v7951 = vld [vmem:[%s179 + $0x1e9] sm:$0xff]
  %v7952 = vld [vmem:[%s179 + $0x1f9] sm:$0xff]
  %v7953 = vld [vmem:[%s179 + $0x201] sm:$0xff]
  %v7954 = vld [vmem:[%s179 + $0x211] sm:$0xff]
  %v7955 = vld [vmem:[%s179 + $0x219] sm:$0xff]
  %v7956 = vld [vmem:[%s179 + $0x229] sm:$0xff]
  %v7957 = vld [vmem:[%s179 + $0x231] sm:$0xff]
  %v7958 = vld [vmem:[%s179 + $0x241] sm:$0xff]
  %v7959 = vld [vmem:[%s179 + $0x249] sm:$0xff]
  %v7960 = vld [vmem:[%s179 + $0x259] sm:$0xff]
  %v7961 = vld [vmem:[%s179 + $0x261] sm:$0xff]
  %v7962 = vld [vmem:[%s179 + $0x271] sm:$0xff]
  %v7963 = vld [vmem:[%s179 + $0x279] sm:$0xff]
  %v7964 = vld [vmem:[%s179 + $0x289] sm:$0xff]
  %v7965 = vld [vmem:[%s179 + $0x291] sm:$0xff]
  %v7966 = vld [vmem:[%s179 + $0x2a1] sm:$0xff]
  %v7967 = vld [vmem:[%s179 + $0x2a9] sm:$0xff]
  %v7968 = vld [vmem:[%s179 + $0x2b9] sm:$0xff]
  %v7969 = vld [vmem:[%s179 + $0x2c1] sm:$0xff]
  %v7970 = vld [vmem:[%s179 + $0x2d1] sm:$0xff]
  %v7971 = vld [vmem:[%s179 + $0x2d9] sm:$0xff]
  %v7972 = vld [vmem:[%s179 + $0x2e9] sm:$0xff]
  %v7973 = vld [vmem:[%s179 + $0x2f1] sm:$0xff]
  %v7974 = vld [vmem:[%s179 + $0x301] sm:$0xff]
  %v7975 = vld [vmem:[%s179 + $0x309] sm:$0xff]
  %v7976 = vld [vmem:[%s179 + $0x319] sm:$0xff]
  %v7977 = vld [vmem:[%s179 + $0x321] sm:$0xff]
  %v7978 = vpack.c.bf16 %v7915, %v7914
  %v7979 = vpack.c.bf16 %v7917, %v7916
  %v7980 = vpack.c.bf16 %v7919, %v7918
  %v7981 = vpack.c.bf16 %v7921, %v7920
  %v7982 = vpack.c.bf16 %v7923, %v7922
  %v7983 = vpack.c.bf16 %v7925, %v7924
  %v7984 = vpack.c.bf16 %v7927, %v7926
  %v7985 = vpack.c.bf16 %v7929, %v7928
  %v7986 = vpack.c.bf16 %v7931, %v7930
  %v7987 = vpack.c.bf16 %v7933, %v7932
  %v7988 = vpack.c.bf16 %v7935, %v7934
  %v7989 = vpack.c.bf16 %v7937, %v7936
  %v7990 = vpack.c.bf16 %v7939, %v7938
  %v7991 = vpack.c.bf16 %v7941, %v7940
  %v7992 = vpack.c.bf16 %v7943, %v7942
  %v7993 = vpack.c.bf16 %v7945, %v7944
  %v7994 = vpack.c.bf16 %v7947, %v7946
  %v7995 = vpack.c.bf16 %v7949, %v7948
  %v7996 = vpack.c.bf16 %v7951, %v7950
  %v7997 = vpack.c.bf16 %v7953, %v7952
  %v7998 = vpack.c.bf16 %v7955, %v7954
  %v7999 = vpack.c.bf16 %v7957, %v7956
  %v8000 = vpack.c.bf16 %v7959, %v7958
  %v8001 = vpack.c.bf16 %v7961, %v7960
  %v8002 = vpack.c.bf16 %v7963, %v7962
  %v8003 = vpack.c.bf16 %v7965, %v7964
  %v8004 = vpack.c.bf16 %v7967, %v7966
  %v8005 = vpack.c.bf16 %v7969, %v7968
  %v8006 = vpack.c.bf16 %v7971, %v7970
  %v8007 = vpack.c.bf16 %v7973, %v7972
  %v8008 = vpack.c.bf16 %v7975, %v7974
  %v8009 = vpack.c.bf16 %v7977, %v7976
  %v8042 = vunpack.c.l.b16 %v7978
  %v8043 = vunpack.c.h.b16 %v7978
  %v8044 = vunpack.c.l.b16 %v7979
  %v8045 = vunpack.c.h.b16 %v7979
  %v8046 = vunpack.c.l.b16 %v7980
  %v8047 = vunpack.c.h.b16 %v7980
  %v8048 = vunpack.c.l.b16 %v7981
  %v8049 = vunpack.c.h.b16 %v7981
  %v8050 = vunpack.c.l.b16 %v7982
  %v8051 = vunpack.c.h.b16 %v7982
  %v8052 = vunpack.c.l.b16 %v7983
  %v8053 = vunpack.c.h.b16 %v7983
  %v8054 = vunpack.c.l.b16 %v7984
  %v8055 = vunpack.c.h.b16 %v7984
  %v8056 = vunpack.c.l.b16 %v7985
  %v8057 = vunpack.c.h.b16 %v7985
  %v8058 = vunpack.c.l.b16 %v7986
  %v8059 = vunpack.c.h.b16 %v7986
  %v8060 = vunpack.c.l.b16 %v7987
  %v8061 = vunpack.c.h.b16 %v7987
  %v8062 = vunpack.c.l.b16 %v7988
  %v8063 = vunpack.c.h.b16 %v7988
  %v8064 = vunpack.c.l.b16 %v7989
  %v8065 = vunpack.c.h.b16 %v7989
  %v8066 = vunpack.c.l.b16 %v7990
  %v8067 = vunpack.c.h.b16 %v7990
  %v8068 = vunpack.c.l.b16 %v7991
  %v8069 = vunpack.c.h.b16 %v7991
  %v8070 = vunpack.c.l.b16 %v7992
  %v8071 = vunpack.c.h.b16 %v7992
  %v8072 = vunpack.c.l.b16 %v7993
  %v8073 = vunpack.c.h.b16 %v7993
  %v8074 = vunpack.c.l.b16 %v7994
  %v8075 = vunpack.c.h.b16 %v7994
  %v8076 = vunpack.c.l.b16 %v7995
  %v8077 = vunpack.c.h.b16 %v7995
  %v8078 = vunpack.c.l.b16 %v7996
  %v8079 = vunpack.c.h.b16 %v7996
  %v8080 = vunpack.c.l.b16 %v7997
  %v8081 = vunpack.c.h.b16 %v7997
  %v8082 = vunpack.c.l.b16 %v7998
  %v8083 = vunpack.c.h.b16 %v7998
  %v8084 = vunpack.c.l.b16 %v7999
  %v8085 = vunpack.c.h.b16 %v7999
  %v8086 = vunpack.c.l.b16 %v8000
  %v8087 = vunpack.c.h.b16 %v8000
  %v8088 = vunpack.c.l.b16 %v8001
  %v8089 = vunpack.c.h.b16 %v8001
  %v8090 = vunpack.c.l.b16 %v8002
  %v8091 = vunpack.c.h.b16 %v8002
  %v8092 = vunpack.c.l.b16 %v8003
  %v8093 = vunpack.c.h.b16 %v8003
  %v8094 = vunpack.c.l.b16 %v8004
  %v8095 = vunpack.c.h.b16 %v8004
  %v8096 = vunpack.c.l.b16 %v8005
  %v8097 = vunpack.c.h.b16 %v8005
  %v8098 = vunpack.c.l.b16 %v8006
  %v8099 = vunpack.c.h.b16 %v8006
  %v8100 = vunpack.c.l.b16 %v8007
  %v8101 = vunpack.c.h.b16 %v8007
  %v8102 = vunpack.c.l.b16 %v8008
  %v8103 = vunpack.c.h.b16 %v8008
  %v8104 = vunpack.c.l.b16 %v8009
  %v8105 = vunpack.c.h.b16 %v8009
  %v8106 = vpack.c.b16 %v8042, %v8042
  %v8107 = vpack.c.b16 %v8043, %v8043
  %v8108 = vpack.c.b16 %v8044, %v8044
  %v8109 = vpack.c.b16 %v8045, %v8045
  %v8110 = vpack.c.b16 %v8046, %v8046
  %v8111 = vpack.c.b16 %v8047, %v8047
  %v8112 = vpack.c.b16 %v8048, %v8048
  %v8113 = vpack.c.b16 %v8049, %v8049
  %v8114 = vpack.c.b16 %v8050, %v8050
  %v8115 = vpack.c.b16 %v8051, %v8051
  %v8116 = vpack.c.b16 %v8052, %v8052
  %v8117 = vpack.c.b16 %v8053, %v8053
  %v8118 = vpack.c.b16 %v8054, %v8054
  %v8119 = vpack.c.b16 %v8055, %v8055
  %v8120 = vpack.c.b16 %v8056, %v8056
  %v8121 = vpack.c.b16 %v8057, %v8057
  %v8122 = vpack.c.b16 %v8058, %v8058
  %v8123 = vpack.c.b16 %v8059, %v8059
  %v8124 = vpack.c.b16 %v8060, %v8060
  %v8125 = vpack.c.b16 %v8061, %v8061
  %v8126 = vpack.c.b16 %v8062, %v8062
  %v8127 = vpack.c.b16 %v8063, %v8063
  %v8128 = vpack.c.b16 %v8064, %v8064
  %v8129 = vpack.c.b16 %v8065, %v8065
  %v8130 = vpack.c.b16 %v8066, %v8066
  %v8131 = vpack.c.b16 %v8067, %v8067
  %v8132 = vpack.c.b16 %v8068, %v8068
  %v8133 = vpack.c.b16 %v8069, %v8069
  %v8134 = vpack.c.b16 %v8070, %v8070
  %v8135 = vpack.c.b16 %v8071, %v8071
  %v8136 = vpack.c.b16 %v8072, %v8072
  %v8137 = vpack.c.b16 %v8073, %v8073
  %v8138 = vpack.c.b16 %v8074, %v8074
  %v8139 = vpack.c.b16 %v8075, %v8075
  %v8140 = vpack.c.b16 %v8076, %v8076
  %v8141 = vpack.c.b16 %v8077, %v8077
  %v8142 = vpack.c.b16 %v8078, %v8078
  %v8143 = vpack.c.b16 %v8079, %v8079
  %v8144 = vpack.c.b16 %v8080, %v8080
  %v8145 = vpack.c.b16 %v8081, %v8081
  %v8146 = vpack.c.b16 %v8082, %v8082
  %v8147 = vpack.c.b16 %v8083, %v8083
  %v8148 = vpack.c.b16 %v8084, %v8084
  %v8149 = vpack.c.b16 %v8085, %v8085
  %v8150 = vpack.c.b16 %v8086, %v8086
  %v8151 = vpack.c.b16 %v8087, %v8087
  %v8152 = vpack.c.b16 %v8088, %v8088
  %v8153 = vpack.c.b16 %v8089, %v8089
  %v8154 = vpack.c.b16 %v8090, %v8090
  %v8155 = vpack.c.b16 %v8091, %v8091
  %v8156 = vpack.c.b16 %v8092, %v8092
  %v8157 = vpack.c.b16 %v8093, %v8093
  %v8158 = vpack.c.b16 %v8094, %v8094
  %v8159 = vpack.c.b16 %v8095, %v8095
  %v8160 = vpack.c.b16 %v8096, %v8096
  %v8161 = vpack.c.b16 %v8097, %v8097
  %v8162 = vpack.c.b16 %v8098, %v8098
  %v8163 = vpack.c.b16 %v8099, %v8099
  %v8164 = vpack.c.b16 %v8100, %v8100
  %v8165 = vpack.c.b16 %v8101, %v8101
  %v8166 = vpack.c.b16 %v8102, %v8102
  %v8167 = vpack.c.b16 %v8103, %v8103
  %v8168 = vpack.c.b16 %v8104, %v8104
  %v8169 = vpack.c.b16 %v8105, %v8105
  %8170 = vrot.lane.b32.xlu0 %v8106, 32
  %v8171 = vpop.permute.xlu0 %8170
  %8172 = vrot.lane.b32.xlu0 %v8107, 32
  %v8173 = vpop.permute.xlu0 %8172
  %8174 = vrot.lane.b32.xlu0 %v8108, 32
  %v8175 = vpop.permute.xlu0 %8174
  %8176 = vrot.lane.b32.xlu0 %v8109, 32
  %v8177 = vpop.permute.xlu0 %8176
  %8178 = vrot.lane.b32.xlu0 %v8110, 32
  %v8179 = vpop.permute.xlu0 %8178
  %8180 = vrot.lane.b32.xlu0 %v8111, 32
  %v8181 = vpop.permute.xlu0 %8180
  %8182 = vrot.lane.b32.xlu0 %v8112, 32
  %v8183 = vpop.permute.xlu0 %8182
  %8184 = vrot.lane.b32.xlu0 %v8113, 32
  %v8185 = vpop.permute.xlu0 %8184
  %8186 = vrot.lane.b32.xlu0 %v8114, 32
  %v8187 = vpop.permute.xlu0 %8186
  %8188 = vrot.lane.b32.xlu0 %v8115, 32
  %v8189 = vpop.permute.xlu0 %8188
  %8190 = vrot.lane.b32.xlu0 %v8116, 32
  %v8191 = vpop.permute.xlu0 %8190
  %8192 = vrot.lane.b32.xlu0 %v8117, 32
  %v8193 = vpop.permute.xlu0 %8192
  %8194 = vrot.lane.b32.xlu0 %v8118, 32
  %v8195 = vpop.permute.xlu0 %8194
  %8196 = vrot.lane.b32.xlu0 %v8119, 32
  %v8197 = vpop.permute.xlu0 %8196
  %8198 = vrot.lane.b32.xlu0 %v8120, 32
  %v8199 = vpop.permute.xlu0 %8198
  %8200 = vrot.lane.b32.xlu0 %v8121, 32
  %v8201 = vpop.permute.xlu0 %8200
  %8202 = vrot.lane.b32.xlu0 %v8122, 32
  %v8203 = vpop.permute.xlu0 %8202
  %8204 = vrot.lane.b32.xlu0 %v8123, 32
  %v8205 = vpop.permute.xlu0 %8204
  %8206 = vrot.lane.b32.xlu0 %v8124, 32
  %v8207 = vpop.permute.xlu0 %8206
  %8208 = vrot.lane.b32.xlu0 %v8125, 32
  %v8209 = vpop.permute.xlu0 %8208
  %8210 = vrot.lane.b32.xlu0 %v8126, 32
  %v8211 = vpop.permute.xlu0 %8210
  %8212 = vrot.lane.b32.xlu0 %v8127, 32
  %v8213 = vpop.permute.xlu0 %8212
  %8214 = vrot.lane.b32.xlu0 %v8128, 32
  %v8215 = vpop.permute.xlu0 %8214
  %8216 = vrot.lane.b32.xlu0 %v8129, 32
  %v8217 = vpop.permute.xlu0 %8216
  %8218 = vrot.lane.b32.xlu0 %v8130, 32
  %v8219 = vpop.permute.xlu0 %8218
  %8220 = vrot.lane.b32.xlu0 %v8131, 32
  %v8221 = vpop.permute.xlu0 %8220
  %8222 = vrot.lane.b32.xlu0 %v8132, 32
  %v8223 = vpop.permute.xlu0 %8222
  %8224 = vrot.lane.b32.xlu0 %v8133, 32
  %v8225 = vpop.permute.xlu0 %8224
  %8226 = vrot.lane.b32.xlu0 %v8134, 32
  %v8227 = vpop.permute.xlu0 %8226
  %8228 = vrot.lane.b32.xlu0 %v8135, 32
  %v8229 = vpop.permute.xlu0 %8228
  %8230 = vrot.lane.b32.xlu0 %v8136, 32
  %v8231 = vpop.permute.xlu0 %8230
  %8232 = vrot.lane.b32.xlu0 %v8137, 32
  %v8233 = vpop.permute.xlu0 %8232
  %8234 = vrot.lane.b32.xlu0 %v8138, 32
  %v8235 = vpop.permute.xlu0 %8234
  %8236 = vrot.lane.b32.xlu0 %v8139, 32
  %v8237 = vpop.permute.xlu0 %8236
  %8238 = vrot.lane.b32.xlu0 %v8140, 32
  %v8239 = vpop.permute.xlu0 %8238
  %8240 = vrot.lane.b32.xlu0 %v8141, 32
  %v8241 = vpop.permute.xlu0 %8240
  %8242 = vrot.lane.b32.xlu0 %v8142, 32
  %v8243 = vpop.permute.xlu0 %8242
  %8244 = vrot.lane.b32.xlu0 %v8143, 32
  %v8245 = vpop.permute.xlu0 %8244
  %8246 = vrot.lane.b32.xlu0 %v8144, 32
  %v8247 = vpop.permute.xlu0 %8246
  %8248 = vrot.lane.b32.xlu0 %v8145, 32
  %v8249 = vpop.permute.xlu0 %8248
  %8250 = vrot.lane.b32.xlu0 %v8146, 32
  %v8251 = vpop.permute.xlu0 %8250
  %8252 = vrot.lane.b32.xlu0 %v8147, 32
  %v8253 = vpop.permute.xlu0 %8252
  %8254 = vrot.lane.b32.xlu0 %v8148, 32
  %v8255 = vpop.permute.xlu0 %8254
  %8256 = vrot.lane.b32.xlu0 %v8149, 32
  %v8257 = vpop.permute.xlu0 %8256
  %8258 = vrot.lane.b32.xlu0 %v8150, 32
  %v8259 = vpop.permute.xlu0 %8258
  %8260 = vrot.lane.b32.xlu0 %v8151, 32
  %v8261 = vpop.permute.xlu0 %8260
  %8262 = vrot.lane.b32.xlu0 %v8152, 32
  %v8263 = vpop.permute.xlu0 %8262
  %8264 = vrot.lane.b32.xlu0 %v8153, 32
  %v8265 = vpop.permute.xlu0 %8264
  %8266 = vrot.lane.b32.xlu0 %v8154, 32
  %v8267 = vpop.permute.xlu0 %8266
  %8268 = vrot.lane.b32.xlu0 %v8155, 32
  %v8269 = vpop.permute.xlu0 %8268
  %8270 = vrot.lane.b32.xlu0 %v8156, 32
  %v8271 = vpop.permute.xlu0 %8270
  %8272 = vrot.lane.b32.xlu0 %v8157, 32
  %v8273 = vpop.permute.xlu0 %8272
  %8274 = vrot.lane.b32.xlu0 %v8158, 32
  %v8275 = vpop.permute.xlu0 %8274
  %8276 = vrot.lane.b32.xlu0 %v8159, 32
  %v8277 = vpop.permute.xlu0 %8276
  %8278 = vrot.lane.b32.xlu0 %v8160, 32
  %v8279 = vpop.permute.xlu0 %8278
  %8280 = vrot.lane.b32.xlu0 %v8161, 32
  %v8281 = vpop.permute.xlu0 %8280
  %8282 = vrot.lane.b32.xlu0 %v8162, 32
  %v8283 = vpop.permute.xlu0 %8282
  %8284 = vrot.lane.b32.xlu0 %v8163, 32
  %v8285 = vpop.permute.xlu0 %8284
  %8286 = vrot.lane.b32.xlu0 %v8164, 32
  %v8287 = vpop.permute.xlu0 %8286
  %8288 = vrot.lane.b32.xlu0 %v8165, 32
  %v8289 = vpop.permute.xlu0 %8288
  %8290 = vrot.lane.b32.xlu0 %v8166, 32
  %v8291 = vpop.permute.xlu0 %8290
  %8292 = vrot.lane.b32.xlu0 %v8167, 32
  %v8293 = vpop.permute.xlu0 %8292
  %8294 = vrot.lane.b32.xlu0 %v8168, 32
  %v8295 = vpop.permute.xlu0 %8294
  %8296 = vrot.lane.b32.xlu0 %v8169, 32
  %v8297 = vpop.permute.xlu0 %8296
  %8362 = vst.msk [vmem:[#allocation3] sm:$0xf] %vm2616, %v8171
  %8363 = vst.msk [vmem:[#allocation3 + $0x4] sm:$0xf] %vm2616, %v8173
  %8364 = vst.msk [vmem:[#allocation3 + $0x8] sm:$0xf] %vm2616, %v8175
  %8365 = vst.msk [vmem:[#allocation3 + $0xc] sm:$0xf] %vm2616, %v8177
  %8366 = vst.msk [vmem:[#allocation3 + $0x10] sm:$0xf] %vm2616, %v8179
  %8367 = vst.msk [vmem:[#allocation3 + $0x14] sm:$0xf] %vm2616, %v8181
  %8368 = vst.msk [vmem:[#allocation3 + $0x18] sm:$0xf] %vm2616, %v8183
  %8369 = vst.msk [vmem:[#allocation3 + $0x1c] sm:$0xf] %vm2616, %v8185
  %8370 = vst.msk [vmem:[#allocation3 + $0x20] sm:$0xf] %vm2616, %v8187
  %8371 = vst.msk [vmem:[#allocation3 + $0x24] sm:$0xf] %vm2616, %v8189
  %8372 = vst.msk [vmem:[#allocation3 + $0x28] sm:$0xf] %vm2616, %v8191
  %8373 = vst.msk [vmem:[#allocation3 + $0x2c] sm:$0xf] %vm2616, %v8193
  %8374 = vst.msk [vmem:[#allocation3 + $0x30] sm:$0xf] %vm2616, %v8195
  %8375 = vst.msk [vmem:[#allocation3 + $0x34] sm:$0xf] %vm2616, %v8197
  %8376 = vst.msk [vmem:[#allocation3 + $0x38] sm:$0xf] %vm2616, %v8199
  %8377 = vst.msk [vmem:[#allocation3 + $0x3c] sm:$0xf] %vm2616, %v8201
  %8378 = vst.msk [vmem:[#allocation3 + $0x40] sm:$0xf] %vm2616, %v8203
  %8379 = vst.msk [vmem:[#allocation3 + $0x44] sm:$0xf] %vm2616, %v8205
  %8380 = vst.msk [vmem:[#allocation3 + $0x48] sm:$0xf] %vm2616, %v8207
  %8381 = vst.msk [vmem:[#allocation3 + $0x4c] sm:$0xf] %vm2616, %v8209
  %8382 = vst.msk [vmem:[#allocation3 + $0x50] sm:$0xf] %vm2616, %v8211
  %8383 = vst.msk [vmem:[#allocation3 + $0x54] sm:$0xf] %vm2616, %v8213
  %8384 = vst.msk [vmem:[#allocation3 + $0x58] sm:$0xf] %vm2616, %v8215
  %8385 = vst.msk [vmem:[#allocation3 + $0x5c] sm:$0xf] %vm2616, %v8217
  %8386 = vst.msk [vmem:[#allocation3 + $0x60] sm:$0xf] %vm2616, %v8219
  %8387 = vst.msk [vmem:[#allocation3 + $0x64] sm:$0xf] %vm2616, %v8221
  %8388 = vst.msk [vmem:[#allocation3 + $0x68] sm:$0xf] %vm2616, %v8223
  %8389 = vst.msk [vmem:[#allocation3 + $0x6c] sm:$0xf] %vm2616, %v8225
  %8390 = vst.msk [vmem:[#allocation3 + $0x70] sm:$0xf] %vm2616, %v8227
  %8391 = vst.msk [vmem:[#allocation3 + $0x74] sm:$0xf] %vm2616, %v8229
  %8392 = vst.msk [vmem:[#allocation3 + $0x78] sm:$0xf] %vm2616, %v8231
  %8393 = vst.msk [vmem:[#allocation3 + $0x7c] sm:$0xf] %vm2616, %v8233
  %8394 = vst.msk [vmem:[#allocation3 + $0x80] sm:$0xf] %vm2616, %v8235
  %8395 = vst.msk [vmem:[#allocation3 + $0x84] sm:$0xf] %vm2616, %v8237
  %8396 = vst.msk [vmem:[#allocation3 + $0x88] sm:$0xf] %vm2616, %v8239
  %8397 = vst.msk [vmem:[#allocation3 + $0x8c] sm:$0xf] %vm2616, %v8241
  %8398 = vst.msk [vmem:[#allocation3 + $0x90] sm:$0xf] %vm2616, %v8243
  %8399 = vst.msk [vmem:[#allocation3 + $0x94] sm:$0xf] %vm2616, %v8245
  %8400 = vst.msk [vmem:[#allocation3 + $0x98] sm:$0xf] %vm2616, %v8247
  %8401 = vst.msk [vmem:[#allocation3 + $0x9c] sm:$0xf] %vm2616, %v8249
  %8402 = vst.msk [vmem:[#allocation3 + $0xa0] sm:$0xf] %vm2616, %v8251
  %8403 = vst.msk [vmem:[#allocation3 + $0xa4] sm:$0xf] %vm2616, %v8253
  %8404 = vst.msk [vmem:[#allocation3 + $0xa8] sm:$0xf] %vm2616, %v8255
  %8405 = vst.msk [vmem:[#allocation3 + $0xac] sm:$0xf] %vm2616, %v8257
  %8406 = vst.msk [vmem:[#allocation3 + $0xb0] sm:$0xf] %vm2616, %v8259
  %8407 = vst.msk [vmem:[#allocation3 + $0xb4] sm:$0xf] %vm2616, %v8261
  %8408 = vst.msk [vmem:[#allocation3 + $0xb8] sm:$0xf] %vm2616, %v8263
  %8409 = vst.msk [vmem:[#allocation3 + $0xbc] sm:$0xf] %vm2616, %v8265
  %8410 = vst.msk [vmem:[#allocation3 + $0xc0] sm:$0xf] %vm2616, %v8267
  %8411 = vst.msk [vmem:[#allocation3 + $0xc4] sm:$0xf] %vm2616, %v8269
  %8412 = vst.msk [vmem:[#allocation3 + $0xc8] sm:$0xf] %vm2616, %v8271
  %8413 = vst.msk [vmem:[#allocation3 + $0xcc] sm:$0xf] %vm2616, %v8273
  %8414 = vst.msk [vmem:[#allocation3 + $0xd0] sm:$0xf] %vm2616, %v8275
  %8415 = vst.msk [vmem:[#allocation3 + $0xd4] sm:$0xf] %vm2616, %v8277
  %8416 = vst.msk [vmem:[#allocation3 + $0xd8] sm:$0xf] %vm2616, %v8279
  %8417 = vst.msk [vmem:[#allocation3 + $0xdc] sm:$0xf] %vm2616, %v8281
  %8418 = vst.msk [vmem:[#allocation3 + $0xe0] sm:$0xf] %vm2616, %v8283
  %8419 = vst.msk [vmem:[#allocation3 + $0xe4] sm:$0xf] %vm2616, %v8285
  %8420 = vst.msk [vmem:[#allocation3 + $0xe8] sm:$0xf] %vm2616, %v8287
  %8421 = vst.msk [vmem:[#allocation3 + $0xec] sm:$0xf] %vm2616, %v8289
  %8422 = vst.msk [vmem:[#allocation3 + $0xf0] sm:$0xf] %vm2616, %v8291
  %8423 = vst.msk [vmem:[#allocation3 + $0xf4] sm:$0xf] %vm2616, %v8293
  %8424 = vst.msk [vmem:[#allocation3 + $0xf8] sm:$0xf] %vm2616, %v8295
  %8425 = vst.msk [vmem:[#allocation3 + $0xfc] sm:$0xf] %vm2616, %v8297
  %v8426 = vld [vmem:[%s179 + $0x2] sm:$0xff]
  %v8427 = vld [vmem:[%s179 + $0xa] sm:$0xff]
  %v8428 = vld [vmem:[%s179 + $0x1a] sm:$0xff]
  %v8429 = vld [vmem:[%s179 + $0x22] sm:$0xff]
  %v8430 = vld [vmem:[%s179 + $0x32] sm:$0xff]
  %v8431 = vld [vmem:[%s179 + $0x3a] sm:$0xff]
  %v8432 = vld [vmem:[%s179 + $0x4a] sm:$0xff]
  %v8433 = vld [vmem:[%s179 + $0x52] sm:$0xff]
  %v8434 = vld [vmem:[%s179 + $0x62] sm:$0xff]
  %v8435 = vld [vmem:[%s179 + $0x6a] sm:$0xff]
  %v8436 = vld [vmem:[%s179 + $0x7a] sm:$0xff]
  %v8437 = vld [vmem:[%s179 + $0x82] sm:$0xff]
  %v8438 = vld [vmem:[%s179 + $0x92] sm:$0xff]
  %v8439 = vld [vmem:[%s179 + $0x9a] sm:$0xff]
  %v8440 = vld [vmem:[%s179 + $0xaa] sm:$0xff]
  %v8441 = vld [vmem:[%s179 + $0xb2] sm:$0xff]
  %v8442 = vld [vmem:[%s179 + $0xc2] sm:$0xff]
  %v8443 = vld [vmem:[%s179 + $0xca] sm:$0xff]
  %v8444 = vld [vmem:[%s179 + $0xda] sm:$0xff]
  %v8445 = vld [vmem:[%s179 + $0xe2] sm:$0xff]
  %v8446 = vld [vmem:[%s179 + $0xf2] sm:$0xff]
  %v8447 = vld [vmem:[%s179 + $0xfa] sm:$0xff]
  %v8448 = vld [vmem:[%s179 + $0x10a] sm:$0xff]
  %v8449 = vld [vmem:[%s179 + $0x112] sm:$0xff]
  %v8450 = vld [vmem:[%s179 + $0x122] sm:$0xff]
  %v8451 = vld [vmem:[%s179 + $0x12a] sm:$0xff]
  %v8452 = vld [vmem:[%s179 + $0x13a] sm:$0xff]
  %v8453 = vld [vmem:[%s179 + $0x142] sm:$0xff]
  %v8454 = vld [vmem:[%s179 + $0x152] sm:$0xff]
  %v8455 = vld [vmem:[%s179 + $0x15a] sm:$0xff]
  %v8456 = vld [vmem:[%s179 + $0x16a] sm:$0xff]
  %v8457 = vld [vmem:[%s179 + $0x172] sm:$0xff]
  %v8458 = vld [vmem:[%s179 + $0x1b2] sm:$0xff]
  %v8459 = vld [vmem:[%s179 + $0x1ba] sm:$0xff]
  %v8460 = vld [vmem:[%s179 + $0x1ca] sm:$0xff]
  %v8461 = vld [vmem:[%s179 + $0x1d2] sm:$0xff]
  %v8462 = vld [vmem:[%s179 + $0x1e2] sm:$0xff]
  %v8463 = vld [vmem:[%s179 + $0x1ea] sm:$0xff]
  %v8464 = vld [vmem:[%s179 + $0x1fa] sm:$0xff]
  %v8465 = vld [vmem:[%s179 + $0x202] sm:$0xff]
  %v8466 = vld [vmem:[%s179 + $0x212] sm:$0xff]
  %v8467 = vld [vmem:[%s179 + $0x21a] sm:$0xff]
  %v8468 = vld [vmem:[%s179 + $0x22a] sm:$0xff]
  %v8469 = vld [vmem:[%s179 + $0x232] sm:$0xff]
  %v8470 = vld [vmem:[%s179 + $0x242] sm:$0xff]
  %v8471 = vld [vmem:[%s179 + $0x24a] sm:$0xff]
  %v8472 = vld [vmem:[%s179 + $0x25a] sm:$0xff]
  %v8473 = vld [vmem:[%s179 + $0x262] sm:$0xff]
  %v8474 = vld [vmem:[%s179 + $0x272] sm:$0xff]
  %v8475 = vld [vmem:[%s179 + $0x27a] sm:$0xff]
  %v8476 = vld [vmem:[%s179 + $0x28a] sm:$0xff]
  %v8477 = vld [vmem:[%s179 + $0x292] sm:$0xff]
  %v8478 = vld [vmem:[%s179 + $0x2a2] sm:$0xff]
  %v8479 = vld [vmem:[%s179 + $0x2aa] sm:$0xff]
  %v8480 = vld [vmem:[%s179 + $0x2ba] sm:$0xff]
  %v8481 = vld [vmem:[%s179 + $0x2c2] sm:$0xff]
  %v8482 = vld [vmem:[%s179 + $0x2d2] sm:$0xff]
  %v8483 = vld [vmem:[%s179 + $0x2da] sm:$0xff]
  %v8484 = vld [vmem:[%s179 + $0x2ea] sm:$0xff]
  %v8485 = vld [vmem:[%s179 + $0x2f2] sm:$0xff]
  %v8486 = vld [vmem:[%s179 + $0x302] sm:$0xff]
  %v8487 = vld [vmem:[%s179 + $0x30a] sm:$0xff]
  %v8488 = vld [vmem:[%s179 + $0x31a] sm:$0xff]
  %v8489 = vld [vmem:[%s179 + $0x322] sm:$0xff]
  %v8490 = vpack.c.bf16 %v8427, %v8426
  %v8491 = vpack.c.bf16 %v8429, %v8428
  %v8492 = vpack.c.bf16 %v8431, %v8430
  %v8493 = vpack.c.bf16 %v8433, %v8432
  %v8494 = vpack.c.bf16 %v8435, %v8434
  %v8495 = vpack.c.bf16 %v8437, %v8436
  %v8496 = vpack.c.bf16 %v8439, %v8438
  %v8497 = vpack.c.bf16 %v8441, %v8440
  %v8498 = vpack.c.bf16 %v8443, %v8442
  %v8499 = vpack.c.bf16 %v8445, %v8444
  %v8500 = vpack.c.bf16 %v8447, %v8446
  %v8501 = vpack.c.bf16 %v8449, %v8448
  %v8502 = vpack.c.bf16 %v8451, %v8450
  %v8503 = vpack.c.bf16 %v8453, %v8452
  %v8504 = vpack.c.bf16 %v8455, %v8454
  %v8505 = vpack.c.bf16 %v8457, %v8456
  %v8506 = vpack.c.bf16 %v8459, %v8458
  %v8507 = vpack.c.bf16 %v8461, %v8460
  %v8508 = vpack.c.bf16 %v8463, %v8462
  %v8509 = vpack.c.bf16 %v8465, %v8464
  %v8510 = vpack.c.bf16 %v8467, %v8466
  %v8511 = vpack.c.bf16 %v8469, %v8468
  %v8512 = vpack.c.bf16 %v8471, %v8470
  %v8513 = vpack.c.bf16 %v8473, %v8472
  %v8514 = vpack.c.bf16 %v8475, %v8474
  %v8515 = vpack.c.bf16 %v8477, %v8476
  %v8516 = vpack.c.bf16 %v8479, %v8478
  %v8517 = vpack.c.bf16 %v8481, %v8480
  %v8518 = vpack.c.bf16 %v8483, %v8482
  %v8519 = vpack.c.bf16 %v8485, %v8484
  %v8520 = vpack.c.bf16 %v8487, %v8486
  %v8521 = vpack.c.bf16 %v8489, %v8488
  %v8554 = vunpack.c.l.b16 %v8490
  %v8555 = vunpack.c.h.b16 %v8490
  %v8556 = vunpack.c.l.b16 %v8491
  %v8557 = vunpack.c.h.b16 %v8491
  %v8558 = vunpack.c.l.b16 %v8492
  %v8559 = vunpack.c.h.b16 %v8492
  %v8560 = vunpack.c.l.b16 %v8493
  %v8561 = vunpack.c.h.b16 %v8493
  %v8562 = vunpack.c.l.b16 %v8494
  %v8563 = vunpack.c.h.b16 %v8494
  %v8564 = vunpack.c.l.b16 %v8495
  %v8565 = vunpack.c.h.b16 %v8495
  %v8566 = vunpack.c.l.b16 %v8496
  %v8567 = vunpack.c.h.b16 %v8496
  %v8568 = vunpack.c.l.b16 %v8497
  %v8569 = vunpack.c.h.b16 %v8497
  %v8570 = vunpack.c.l.b16 %v8498
  %v8571 = vunpack.c.h.b16 %v8498
  %v8572 = vunpack.c.l.b16 %v8499
  %v8573 = vunpack.c.h.b16 %v8499
  %v8574 = vunpack.c.l.b16 %v8500
  %v8575 = vunpack.c.h.b16 %v8500
  %v8576 = vunpack.c.l.b16 %v8501
  %v8577 = vunpack.c.h.b16 %v8501
  %v8578 = vunpack.c.l.b16 %v8502
  %v8579 = vunpack.c.h.b16 %v8502
  %v8580 = vunpack.c.l.b16 %v8503
  %v8581 = vunpack.c.h.b16 %v8503
  %v8582 = vunpack.c.l.b16 %v8504
  %v8583 = vunpack.c.h.b16 %v8504
  %v8584 = vunpack.c.l.b16 %v8505
  %v8585 = vunpack.c.h.b16 %v8505
  %v8586 = vunpack.c.l.b16 %v8506
  %v8587 = vunpack.c.h.b16 %v8506
  %v8588 = vunpack.c.l.b16 %v8507
  %v8589 = vunpack.c.h.b16 %v8507
  %v8590 = vunpack.c.l.b16 %v8508
  %v8591 = vunpack.c.h.b16 %v8508
  %v8592 = vunpack.c.l.b16 %v8509
  %v8593 = vunpack.c.h.b16 %v8509
  %v8594 = vunpack.c.l.b16 %v8510
  %v8595 = vunpack.c.h.b16 %v8510
  %v8596 = vunpack.c.l.b16 %v8511
  %v8597 = vunpack.c.h.b16 %v8511
  %v8598 = vunpack.c.l.b16 %v8512
  %v8599 = vunpack.c.h.b16 %v8512
  %v8600 = vunpack.c.l.b16 %v8513
  %v8601 = vunpack.c.h.b16 %v8513
  %v8602 = vunpack.c.l.b16 %v8514
  %v8603 = vunpack.c.h.b16 %v8514
  %v8604 = vunpack.c.l.b16 %v8515
  %v8605 = vunpack.c.h.b16 %v8515
  %v8606 = vunpack.c.l.b16 %v8516
  %v8607 = vunpack.c.h.b16 %v8516
  %v8608 = vunpack.c.l.b16 %v8517
  %v8609 = vunpack.c.h.b16 %v8517
  %v8610 = vunpack.c.l.b16 %v8518
  %v8611 = vunpack.c.h.b16 %v8518
  %v8612 = vunpack.c.l.b16 %v8519
  %v8613 = vunpack.c.h.b16 %v8519
  %v8614 = vunpack.c.l.b16 %v8520
  %v8615 = vunpack.c.h.b16 %v8520
  %v8616 = vunpack.c.l.b16 %v8521
  %v8617 = vunpack.c.h.b16 %v8521
  %v8618 = vpack.c.b16 %v8554, %v8554
  %v8619 = vpack.c.b16 %v8555, %v8555
  %v8620 = vpack.c.b16 %v8556, %v8556
  %v8621 = vpack.c.b16 %v8557, %v8557
  %v8622 = vpack.c.b16 %v8558, %v8558
  %v8623 = vpack.c.b16 %v8559, %v8559
  %v8624 = vpack.c.b16 %v8560, %v8560
  %v8625 = vpack.c.b16 %v8561, %v8561
  %v8626 = vpack.c.b16 %v8562, %v8562
  %v8627 = vpack.c.b16 %v8563, %v8563
  %v8628 = vpack.c.b16 %v8564, %v8564
  %v8629 = vpack.c.b16 %v8565, %v8565
  %v8630 = vpack.c.b16 %v8566, %v8566
  %v8631 = vpack.c.b16 %v8567, %v8567
  %v8632 = vpack.c.b16 %v8568, %v8568
  %v8633 = vpack.c.b16 %v8569, %v8569
  %v8634 = vpack.c.b16 %v8570, %v8570
  %v8635 = vpack.c.b16 %v8571, %v8571
  %v8636 = vpack.c.b16 %v8572, %v8572
  %v8637 = vpack.c.b16 %v8573, %v8573
  %v8638 = vpack.c.b16 %v8574, %v8574
  %v8639 = vpack.c.b16 %v8575, %v8575
  %v8640 = vpack.c.b16 %v8576, %v8576
  %v8641 = vpack.c.b16 %v8577, %v8577
  %v8642 = vpack.c.b16 %v8578, %v8578
  %v8643 = vpack.c.b16 %v8579, %v8579
  %v8644 = vpack.c.b16 %v8580, %v8580
  %v8645 = vpack.c.b16 %v8581, %v8581
  %v8646 = vpack.c.b16 %v8582, %v8582
  %v8647 = vpack.c.b16 %v8583, %v8583
  %v8648 = vpack.c.b16 %v8584, %v8584
  %v8649 = vpack.c.b16 %v8585, %v8585
  %v8650 = vpack.c.b16 %v8586, %v8586
  %v8651 = vpack.c.b16 %v8587, %v8587
  %v8652 = vpack.c.b16 %v8588, %v8588
  %v8653 = vpack.c.b16 %v8589, %v8589
  %v8654 = vpack.c.b16 %v8590, %v8590
  %v8655 = vpack.c.b16 %v8591, %v8591
  %v8656 = vpack.c.b16 %v8592, %v8592
  %v8657 = vpack.c.b16 %v8593, %v8593
  %v8658 = vpack.c.b16 %v8594, %v8594
  %v8659 = vpack.c.b16 %v8595, %v8595
  %v8660 = vpack.c.b16 %v8596, %v8596
  %v8661 = vpack.c.b16 %v8597, %v8597
  %v8662 = vpack.c.b16 %v8598, %v8598
  %v8663 = vpack.c.b16 %v8599, %v8599
  %v8664 = vpack.c.b16 %v8600, %v8600
  %v8665 = vpack.c.b16 %v8601, %v8601
  %v8666 = vpack.c.b16 %v8602, %v8602
  %v8667 = vpack.c.b16 %v8603, %v8603
  %v8668 = vpack.c.b16 %v8604, %v8604
  %v8669 = vpack.c.b16 %v8605, %v8605
  %v8670 = vpack.c.b16 %v8606, %v8606
  %v8671 = vpack.c.b16 %v8607, %v8607
  %v8672 = vpack.c.b16 %v8608, %v8608
  %v8673 = vpack.c.b16 %v8609, %v8609
  %v8674 = vpack.c.b16 %v8610, %v8610
  %v8675 = vpack.c.b16 %v8611, %v8611
  %v8676 = vpack.c.b16 %v8612, %v8612
  %v8677 = vpack.c.b16 %v8613, %v8613
  %v8678 = vpack.c.b16 %v8614, %v8614
  %v8679 = vpack.c.b16 %v8615, %v8615
  %v8680 = vpack.c.b16 %v8616, %v8616
  %v8681 = vpack.c.b16 %v8617, %v8617
  %8682 = vrot.lane.b32.xlu0 %v8618, 40
  %v8683 = vpop.permute.xlu0 %8682
  %8684 = vrot.lane.b32.xlu0 %v8619, 40
  %v8685 = vpop.permute.xlu0 %8684
  %8686 = vrot.lane.b32.xlu0 %v8620, 40
  %v8687 = vpop.permute.xlu0 %8686
  %8688 = vrot.lane.b32.xlu0 %v8621, 40
  %v8689 = vpop.permute.xlu0 %8688
  %8690 = vrot.lane.b32.xlu0 %v8622, 40
  %v8691 = vpop.permute.xlu0 %8690
  %8692 = vrot.lane.b32.xlu0 %v8623, 40
  %v8693 = vpop.permute.xlu0 %8692
  %8694 = vrot.lane.b32.xlu0 %v8624, 40
  %v8695 = vpop.permute.xlu0 %8694
  %8696 = vrot.lane.b32.xlu0 %v8625, 40
  %v8697 = vpop.permute.xlu0 %8696
  %8698 = vrot.lane.b32.xlu0 %v8626, 40
  %v8699 = vpop.permute.xlu0 %8698
  %8700 = vrot.lane.b32.xlu0 %v8627, 40
  %v8701 = vpop.permute.xlu0 %8700
  %8702 = vrot.lane.b32.xlu0 %v8628, 40
  %v8703 = vpop.permute.xlu0 %8702
  %8704 = vrot.lane.b32.xlu0 %v8629, 40
  %v8705 = vpop.permute.xlu0 %8704
  %8706 = vrot.lane.b32.xlu0 %v8630, 40
  %v8707 = vpop.permute.xlu0 %8706
  %8708 = vrot.lane.b32.xlu0 %v8631, 40
  %v8709 = vpop.permute.xlu0 %8708
  %8710 = vrot.lane.b32.xlu0 %v8632, 40
  %v8711 = vpop.permute.xlu0 %8710
  %8712 = vrot.lane.b32.xlu0 %v8633, 40
  %v8713 = vpop.permute.xlu0 %8712
  %8714 = vrot.lane.b32.xlu0 %v8634, 40
  %v8715 = vpop.permute.xlu0 %8714
  %8716 = vrot.lane.b32.xlu0 %v8635, 40
  %v8717 = vpop.permute.xlu0 %8716
  %8718 = vrot.lane.b32.xlu0 %v8636, 40
  %v8719 = vpop.permute.xlu0 %8718
  %8720 = vrot.lane.b32.xlu0 %v8637, 40
  %v8721 = vpop.permute.xlu0 %8720
  %8722 = vrot.lane.b32.xlu0 %v8638, 40
  %v8723 = vpop.permute.xlu0 %8722
  %8724 = vrot.lane.b32.xlu0 %v8639, 40
  %v8725 = vpop.permute.xlu0 %8724
  %8726 = vrot.lane.b32.xlu0 %v8640, 40
  %v8727 = vpop.permute.xlu0 %8726
  %8728 = vrot.lane.b32.xlu0 %v8641, 40
  %v8729 = vpop.permute.xlu0 %8728
  %8730 = vrot.lane.b32.xlu0 %v8642, 40
  %v8731 = vpop.permute.xlu0 %8730
  %8732 = vrot.lane.b32.xlu0 %v8643, 40
  %v8733 = vpop.permute.xlu0 %8732
  %8734 = vrot.lane.b32.xlu0 %v8644, 40
  %v8735 = vpop.permute.xlu0 %8734
  %8736 = vrot.lane.b32.xlu0 %v8645, 40
  %v8737 = vpop.permute.xlu0 %8736
  %8738 = vrot.lane.b32.xlu0 %v8646, 40
  %v8739 = vpop.permute.xlu0 %8738
  %8740 = vrot.lane.b32.xlu0 %v8647, 40
  %v8741 = vpop.permute.xlu0 %8740
  %8742 = vrot.lane.b32.xlu0 %v8648, 40
  %v8743 = vpop.permute.xlu0 %8742
  %8744 = vrot.lane.b32.xlu0 %v8649, 40
  %v8745 = vpop.permute.xlu0 %8744
  %8746 = vrot.lane.b32.xlu0 %v8650, 40
  %v8747 = vpop.permute.xlu0 %8746
  %8748 = vrot.lane.b32.xlu0 %v8651, 40
  %v8749 = vpop.permute.xlu0 %8748
  %8750 = vrot.lane.b32.xlu0 %v8652, 40
  %v8751 = vpop.permute.xlu0 %8750
  %8752 = vrot.lane.b32.xlu0 %v8653, 40
  %v8753 = vpop.permute.xlu0 %8752
  %8754 = vrot.lane.b32.xlu0 %v8654, 40
  %v8755 = vpop.permute.xlu0 %8754
  %8756 = vrot.lane.b32.xlu0 %v8655, 40
  %v8757 = vpop.permute.xlu0 %8756
  %8758 = vrot.lane.b32.xlu0 %v8656, 40
  %v8759 = vpop.permute.xlu0 %8758
  %8760 = vrot.lane.b32.xlu0 %v8657, 40
  %v8761 = vpop.permute.xlu0 %8760
  %8762 = vrot.lane.b32.xlu0 %v8658, 40
  %v8763 = vpop.permute.xlu0 %8762
  %8764 = vrot.lane.b32.xlu0 %v8659, 40
  %v8765 = vpop.permute.xlu0 %8764
  %8766 = vrot.lane.b32.xlu0 %v8660, 40
  %v8767 = vpop.permute.xlu0 %8766
  %8768 = vrot.lane.b32.xlu0 %v8661, 40
  %v8769 = vpop.permute.xlu0 %8768
  %8770 = vrot.lane.b32.xlu0 %v8662, 40
  %v8771 = vpop.permute.xlu0 %8770
  %8772 = vrot.lane.b32.xlu0 %v8663, 40
  %v8773 = vpop.permute.xlu0 %8772
  %8774 = vrot.lane.b32.xlu0 %v8664, 40
  %v8775 = vpop.permute.xlu0 %8774
  %8776 = vrot.lane.b32.xlu0 %v8665, 40
  %v8777 = vpop.permute.xlu0 %8776
  %8778 = vrot.lane.b32.xlu0 %v8666, 40
  %v8779 = vpop.permute.xlu0 %8778
  %8780 = vrot.lane.b32.xlu0 %v8667, 40
  %v8781 = vpop.permute.xlu0 %8780
  %8782 = vrot.lane.b32.xlu0 %v8668, 40
  %v8783 = vpop.permute.xlu0 %8782
  %8784 = vrot.lane.b32.xlu0 %v8669, 40
  %v8785 = vpop.permute.xlu0 %8784
  %8786 = vrot.lane.b32.xlu0 %v8670, 40
  %v8787 = vpop.permute.xlu0 %8786
  %8788 = vrot.lane.b32.xlu0 %v8671, 40
  %v8789 = vpop.permute.xlu0 %8788
  %8790 = vrot.lane.b32.xlu0 %v8672, 40
  %v8791 = vpop.permute.xlu0 %8790
  %8792 = vrot.lane.b32.xlu0 %v8673, 40
  %v8793 = vpop.permute.xlu0 %8792
  %8794 = vrot.lane.b32.xlu0 %v8674, 40
  %v8795 = vpop.permute.xlu0 %8794
  %8796 = vrot.lane.b32.xlu0 %v8675, 40
  %v8797 = vpop.permute.xlu0 %8796
  %8798 = vrot.lane.b32.xlu0 %v8676, 40
  %v8799 = vpop.permute.xlu0 %8798
  %8800 = vrot.lane.b32.xlu0 %v8677, 40
  %v8801 = vpop.permute.xlu0 %8800
  %8802 = vrot.lane.b32.xlu0 %v8678, 40
  %v8803 = vpop.permute.xlu0 %8802
  %8804 = vrot.lane.b32.xlu0 %v8679, 40
  %v8805 = vpop.permute.xlu0 %8804
  %8806 = vrot.lane.b32.xlu0 %v8680, 40
  %v8807 = vpop.permute.xlu0 %8806
  %8808 = vrot.lane.b32.xlu0 %v8681, 40
  %v8809 = vpop.permute.xlu0 %8808
  %8874 = vst.msk [vmem:[#allocation3] sm:$0xf] %vm3129, %v8683
  %8875 = vst.msk [vmem:[#allocation3 + $0x4] sm:$0xf] %vm3129, %v8685
  %8876 = vst.msk [vmem:[#allocation3 + $0x8] sm:$0xf] %vm3129, %v8687
  %8877 = vst.msk [vmem:[#allocation3 + $0xc] sm:$0xf] %vm3129, %v8689
  %8878 = vst.msk [vmem:[#allocation3 + $0x10] sm:$0xf] %vm3129, %v8691
  %8879 = vst.msk [vmem:[#allocation3 + $0x14] sm:$0xf] %vm3129, %v8693
  %8880 = vst.msk [vmem:[#allocation3 + $0x18] sm:$0xf] %vm3129, %v8695
  %8881 = vst.msk [vmem:[#allocation3 + $0x1c] sm:$0xf] %vm3129, %v8697
  %8882 = vst.msk [vmem:[#allocation3 + $0x20] sm:$0xf] %vm3129, %v8699
  %8883 = vst.msk [vmem:[#allocation3 + $0x24] sm:$0xf] %vm3129, %v8701
  %8884 = vst.msk [vmem:[#allocation3 + $0x28] sm:$0xf] %vm3129, %v8703
  %8885 = vst.msk [vmem:[#allocation3 + $0x2c] sm:$0xf] %vm3129, %v8705
  %8886 = vst.msk [vmem:[#allocation3 + $0x30] sm:$0xf] %vm3129, %v8707
  %8887 = vst.msk [vmem:[#allocation3 + $0x34] sm:$0xf] %vm3129, %v8709
  %8888 = vst.msk [vmem:[#allocation3 + $0x38] sm:$0xf] %vm3129, %v8711
  %8889 = vst.msk [vmem:[#allocation3 + $0x3c] sm:$0xf] %vm3129, %v8713
  %8890 = vst.msk [vmem:[#allocation3 + $0x40] sm:$0xf] %vm3129, %v8715
  %8891 = vst.msk [vmem:[#allocation3 + $0x44] sm:$0xf] %vm3129, %v8717
  %8892 = vst.msk [vmem:[#allocation3 + $0x48] sm:$0xf] %vm3129, %v8719
  %8893 = vst.msk [vmem:[#allocation3 + $0x4c] sm:$0xf] %vm3129, %v8721
  %8894 = vst.msk [vmem:[#allocation3 + $0x50] sm:$0xf] %vm3129, %v8723
  %8895 = vst.msk [vmem:[#allocation3 + $0x54] sm:$0xf] %vm3129, %v8725
  %8896 = vst.msk [vmem:[#allocation3 + $0x58] sm:$0xf] %vm3129, %v8727
  %8897 = vst.msk [vmem:[#allocation3 + $0x5c] sm:$0xf] %vm3129, %v8729
  %8898 = vst.msk [vmem:[#allocation3 + $0x60] sm:$0xf] %vm3129, %v8731
  %8899 = vst.msk [vmem:[#allocation3 + $0x64] sm:$0xf] %vm3129, %v8733
  %8900 = vst.msk [vmem:[#allocation3 + $0x68] sm:$0xf] %vm3129, %v8735
  %8901 = vst.msk [vmem:[#allocation3 + $0x6c] sm:$0xf] %vm3129, %v8737
  %8902 = vst.msk [vmem:[#allocation3 + $0x70] sm:$0xf] %vm3129, %v8739
  %8903 = vst.msk [vmem:[#allocation3 + $0x74] sm:$0xf] %vm3129, %v8741
  %8904 = vst.msk [vmem:[#allocation3 + $0x78] sm:$0xf] %vm3129, %v8743
  %8905 = vst.msk [vmem:[#allocation3 + $0x7c] sm:$0xf] %vm3129, %v8745
  %8906 = vst.msk [vmem:[#allocation3 + $0x80] sm:$0xf] %vm3129, %v8747
  %8907 = vst.msk [vmem:[#allocation3 + $0x84] sm:$0xf] %vm3129, %v8749
  %8908 = vst.msk [vmem:[#allocation3 + $0x88] sm:$0xf] %vm3129, %v8751
  %8909 = vst.msk [vmem:[#allocation3 + $0x8c] sm:$0xf] %vm3129, %v8753
  %8910 = vst.msk [vmem:[#allocation3 + $0x90] sm:$0xf] %vm3129, %v8755
  %8911 = vst.msk [vmem:[#allocation3 + $0x94] sm:$0xf] %vm3129, %v8757
  %8912 = vst.msk [vmem:[#allocation3 + $0x98] sm:$0xf] %vm3129, %v8759
  %8913 = vst.msk [vmem:[#allocation3 + $0x9c] sm:$0xf] %vm3129, %v8761
  %8914 = vst.msk [vmem:[#allocation3 + $0xa0] sm:$0xf] %vm3129, %v8763
  %8915 = vst.msk [vmem:[#allocation3 + $0xa4] sm:$0xf] %vm3129, %v8765
  %8916 = vst.msk [vmem:[#allocation3 + $0xa8] sm:$0xf] %vm3129, %v8767
  %8917 = vst.msk [vmem:[#allocation3 + $0xac] sm:$0xf] %vm3129, %v8769
  %8918 = vst.msk [vmem:[#allocation3 + $0xb0] sm:$0xf] %vm3129, %v8771
  %8919 = vst.msk [vmem:[#allocation3 + $0xb4] sm:$0xf] %vm3129, %v8773
  %8920 = vst.msk [vmem:[#allocation3 + $0xb8] sm:$0xf] %vm3129, %v8775
  %8921 = vst.msk [vmem:[#allocation3 + $0xbc] sm:$0xf] %vm3129, %v8777
  %8922 = vst.msk [vmem:[#allocation3 + $0xc0] sm:$0xf] %vm3129, %v8779
  %8923 = vst.msk [vmem:[#allocation3 + $0xc4] sm:$0xf] %vm3129, %v8781
  %8924 = vst.msk [vmem:[#allocation3 + $0xc8] sm:$0xf] %vm3129, %v8783
  %8925 = vst.msk [vmem:[#allocation3 + $0xcc] sm:$0xf] %vm3129, %v8785
  %8926 = vst.msk [vmem:[#allocation3 + $0xd0] sm:$0xf] %vm3129, %v8787
  %8927 = vst.msk [vmem:[#allocation3 + $0xd4] sm:$0xf] %vm3129, %v8789
  %8928 = vst.msk [vmem:[#allocation3 + $0xd8] sm:$0xf] %vm3129, %v8791
  %8929 = vst.msk [vmem:[#allocation3 + $0xdc] sm:$0xf] %vm3129, %v8793
  %8930 = vst.msk [vmem:[#allocation3 + $0xe0] sm:$0xf] %vm3129, %v8795
  %8931 = vst.msk [vmem:[#allocation3 + $0xe4] sm:$0xf] %vm3129, %v8797
  %8932 = vst.msk [vmem:[#allocation3 + $0xe8] sm:$0xf] %vm3129, %v8799
  %8933 = vst.msk [vmem:[#allocation3 + $0xec] sm:$0xf] %vm3129, %v8801
  %8934 = vst.msk [vmem:[#allocation3 + $0xf0] sm:$0xf] %vm3129, %v8803
  %8935 = vst.msk [vmem:[#allocation3 + $0xf4] sm:$0xf] %vm3129, %v8805
  %8936 = vst.msk [vmem:[#allocation3 + $0xf8] sm:$0xf] %vm3129, %v8807
  %8937 = vst.msk [vmem:[#allocation3 + $0xfc] sm:$0xf] %vm3129, %v8809
  %v8938 = vld [vmem:[%s3194] sm:$0xff]
  %v8939 = vld [vmem:[%s3194 + $0x8] sm:$0xff]
  %v8940 = vld [vmem:[%s3194 + $0x18] sm:$0xff]
  %v8941 = vld [vmem:[%s3194 + $0x20] sm:$0xff]
  %v8942 = vld [vmem:[%s3194 + $0x30] sm:$0xff]
  %v8943 = vld [vmem:[%s3194 + $0x38] sm:$0xff]
  %v8944 = vld [vmem:[%s3194 + $0x48] sm:$0xff]
  %v8945 = vld [vmem:[%s3194 + $0x50] sm:$0xff]
  %v8946 = vld [vmem:[%s3194 + $0x60] sm:$0xff]
  %v8947 = vld [vmem:[%s3194 + $0x68] sm:$0xff]
  %v8948 = vld [vmem:[%s3194 + $0x78] sm:$0xff]
  %v8949 = vld [vmem:[%s3194 + $0x80] sm:$0xff]
  %v8950 = vld [vmem:[%s3194 + $0x90] sm:$0xff]
  %v8951 = vld [vmem:[%s3194 + $0x98] sm:$0xff]
  %v8952 = vld [vmem:[%s3194 + $0xa8] sm:$0xff]
  %v8953 = vld [vmem:[%s3194 + $0xb0] sm:$0xff]
  %v8954 = vld [vmem:[%s3194 + $0xc0] sm:$0xff]
  %v8955 = vld [vmem:[%s3194 + $0xc8] sm:$0xff]
  %v8956 = vld [vmem:[%s3194 + $0xd8] sm:$0xff]
  %v8957 = vld [vmem:[%s3194 + $0xe0] sm:$0xff]
  %v8958 = vld [vmem:[%s3194 + $0xf0] sm:$0xff]
  %v8959 = vld [vmem:[%s3194 + $0xf8] sm:$0xff]
  %v8960 = vld [vmem:[%s3194 + $0x108] sm:$0xff]
  %v8961 = vld [vmem:[%s3194 + $0x110] sm:$0xff]
  %v8962 = vld [vmem:[%s3194 + $0x120] sm:$0xff]
  %v8963 = vld [vmem:[%s3194 + $0x128] sm:$0xff]
  %v8964 = vld [vmem:[%s3194 + $0x138] sm:$0xff]
  %v8965 = vld [vmem:[%s3194 + $0x140] sm:$0xff]
  %v8966 = vld [vmem:[%s3194 + $0x150] sm:$0xff]
  %v8967 = vld [vmem:[%s3194 + $0x158] sm:$0xff]
  %v8968 = vld [vmem:[%s3194 + $0x168] sm:$0xff]
  %v8969 = vld [vmem:[%s3194 + $0x170] sm:$0xff]
  %v8970 = vld [vmem:[%s3194 + $0x1b0] sm:$0xff]
  %v8971 = vld [vmem:[%s3194 + $0x1b8] sm:$0xff]
  %v8972 = vld [vmem:[%s3194 + $0x1c8] sm:$0xff]
  %v8973 = vld [vmem:[%s3194 + $0x1d0] sm:$0xff]
  %v8974 = vld [vmem:[%s3194 + $0x1e0] sm:$0xff]
  %v8975 = vld [vmem:[%s3194 + $0x1e8] sm:$0xff]
  %v8976 = vld [vmem:[%s3194 + $0x1f8] sm:$0xff]
  %v8977 = vld [vmem:[%s3194 + $0x200] sm:$0xff]
  %v8978 = vld [vmem:[%s3194 + $0x210] sm:$0xff]
  %v8979 = vld [vmem:[%s3194 + $0x218] sm:$0xff]
  %v8980 = vld [vmem:[%s3194 + $0x228] sm:$0xff]
  %v8981 = vld [vmem:[%s3194 + $0x230] sm:$0xff]
  %v8982 = vld [vmem:[%s3194 + $0x240] sm:$0xff]
  %v8983 = vld [vmem:[%s3194 + $0x248] sm:$0xff]
  %v8984 = vld [vmem:[%s3194 + $0x258] sm:$0xff]
  %v8985 = vld [vmem:[%s3194 + $0x260] sm:$0xff]
  %v8986 = vld [vmem:[%s3194 + $0x270] sm:$0xff]
  %v8987 = vld [vmem:[%s3194 + $0x278] sm:$0xff]
  %v8988 = vld [vmem:[%s3194 + $0x288] sm:$0xff]
  %v8989 = vld [vmem:[%s3194 + $0x290] sm:$0xff]
  %v8990 = vld [vmem:[%s3194 + $0x2a0] sm:$0xff]
  %v8991 = vld [vmem:[%s3194 + $0x2a8] sm:$0xff]
  %v8992 = vld [vmem:[%s3194 + $0x2b8] sm:$0xff]
  %v8993 = vld [vmem:[%s3194 + $0x2c0] sm:$0xff]
  %v8994 = vld [vmem:[%s3194 + $0x2d0] sm:$0xff]
  %v8995 = vld [vmem:[%s3194 + $0x2d8] sm:$0xff]
  %v8996 = vld [vmem:[%s3194 + $0x2e8] sm:$0xff]
  %v8997 = vld [vmem:[%s3194 + $0x2f0] sm:$0xff]
  %v8998 = vld [vmem:[%s3194 + $0x300] sm:$0xff]
  %v8999 = vld [vmem:[%s3194 + $0x308] sm:$0xff]
  %v9000 = vld [vmem:[%s3194 + $0x318] sm:$0xff]
  %v9001 = vld [vmem:[%s3194 + $0x320] sm:$0xff]
  %v9002 = vpack.c.bf16 %v8939, %v8938
  %v9003 = vpack.c.bf16 %v8941, %v8940
  %v9004 = vpack.c.bf16 %v8943, %v8942
  %v9005 = vpack.c.bf16 %v8945, %v8944
  %v9006 = vpack.c.bf16 %v8947, %v8946
  %v9007 = vpack.c.bf16 %v8949, %v8948
  %v9008 = vpack.c.bf16 %v8951, %v8950
  %v9009 = vpack.c.bf16 %v8953, %v8952
  %v9010 = vpack.c.bf16 %v8955, %v8954
  %v9011 = vpack.c.bf16 %v8957, %v8956
  %v9012 = vpack.c.bf16 %v8959, %v8958
  %v9013 = vpack.c.bf16 %v8961, %v8960
  %v9014 = vpack.c.bf16 %v8963, %v8962
  %v9015 = vpack.c.bf16 %v8965, %v8964
  %v9016 = vpack.c.bf16 %v8967, %v8966
  %v9017 = vpack.c.bf16 %v8969, %v8968
  %v9018 = vpack.c.bf16 %v8971, %v8970
  %v9019 = vpack.c.bf16 %v8973, %v8972
  %v9020 = vpack.c.bf16 %v8975, %v8974
  %v9021 = vpack.c.bf16 %v8977, %v8976
  %v9022 = vpack.c.bf16 %v8979, %v8978
  %v9023 = vpack.c.bf16 %v8981, %v8980
  %v9024 = vpack.c.bf16 %v8983, %v8982
  %v9025 = vpack.c.bf16 %v8985, %v8984
  %v9026 = vpack.c.bf16 %v8987, %v8986
  %v9027 = vpack.c.bf16 %v8989, %v8988
  %v9028 = vpack.c.bf16 %v8991, %v8990
  %v9029 = vpack.c.bf16 %v8993, %v8992
  %v9030 = vpack.c.bf16 %v8995, %v8994
  %v9031 = vpack.c.bf16 %v8997, %v8996
  %v9032 = vpack.c.bf16 %v8999, %v8998
  %v9033 = vpack.c.bf16 %v9001, %v9000
  %v9066 = vunpack.c.l.b16 %v9002
  %v9067 = vunpack.c.h.b16 %v9002
  %v9068 = vunpack.c.l.b16 %v9003
  %v9069 = vunpack.c.h.b16 %v9003
  %v9070 = vunpack.c.l.b16 %v9004
  %v9071 = vunpack.c.h.b16 %v9004
  %v9072 = vunpack.c.l.b16 %v9005
  %v9073 = vunpack.c.h.b16 %v9005
  %v9074 = vunpack.c.l.b16 %v9006
  %v9075 = vunpack.c.h.b16 %v9006
  %v9076 = vunpack.c.l.b16 %v9007
  %v9077 = vunpack.c.h.b16 %v9007
  %v9078 = vunpack.c.l.b16 %v9008
  %v9079 = vunpack.c.h.b16 %v9008
  %v9080 = vunpack.c.l.b16 %v9009
  %v9081 = vunpack.c.h.b16 %v9009
  %v9082 = vunpack.c.l.b16 %v9010
  %v9083 = vunpack.c.h.b16 %v9010
  %v9084 = vunpack.c.l.b16 %v9011
  %v9085 = vunpack.c.h.b16 %v9011
  %v9086 = vunpack.c.l.b16 %v9012
  %v9087 = vunpack.c.h.b16 %v9012
  %v9088 = vunpack.c.l.b16 %v9013
  %v9089 = vunpack.c.h.b16 %v9013
  %v9090 = vunpack.c.l.b16 %v9014
  %v9091 = vunpack.c.h.b16 %v9014
  %v9092 = vunpack.c.l.b16 %v9015
  %v9093 = vunpack.c.h.b16 %v9015
  %v9094 = vunpack.c.l.b16 %v9016
  %v9095 = vunpack.c.h.b16 %v9016
  %v9096 = vunpack.c.l.b16 %v9017
  %v9097 = vunpack.c.h.b16 %v9017
  %v9098 = vunpack.c.l.b16 %v9018
  %v9099 = vunpack.c.h.b16 %v9018
  %v9100 = vunpack.c.l.b16 %v9019
  %v9101 = vunpack.c.h.b16 %v9019
  %v9102 = vunpack.c.l.b16 %v9020
  %v9103 = vunpack.c.h.b16 %v9020
  %v9104 = vunpack.c.l.b16 %v9021
  %v9105 = vunpack.c.h.b16 %v9021
  %v9106 = vunpack.c.l.b16 %v9022
  %v9107 = vunpack.c.h.b16 %v9022
  %v9108 = vunpack.c.l.b16 %v9023
  %v9109 = vunpack.c.h.b16 %v9023
  %v9110 = vunpack.c.l.b16 %v9024
  %v9111 = vunpack.c.h.b16 %v9024
  %v9112 = vunpack.c.l.b16 %v9025
  %v9113 = vunpack.c.h.b16 %v9025
  %v9114 = vunpack.c.l.b16 %v9026
  %v9115 = vunpack.c.h.b16 %v9026
  %v9116 = vunpack.c.l.b16 %v9027
  %v9117 = vunpack.c.h.b16 %v9027
  %v9118 = vunpack.c.l.b16 %v9028
  %v9119 = vunpack.c.h.b16 %v9028
  %v9120 = vunpack.c.l.b16 %v9029
  %v9121 = vunpack.c.h.b16 %v9029
  %v9122 = vunpack.c.l.b16 %v9030
  %v9123 = vunpack.c.h.b16 %v9030
  %v9124 = vunpack.c.l.b16 %v9031
  %v9125 = vunpack.c.h.b16 %v9031
  %v9126 = vunpack.c.l.b16 %v9032
  %v9127 = vunpack.c.h.b16 %v9032
  %v9128 = vunpack.c.l.b16 %v9033
  %v9129 = vunpack.c.h.b16 %v9033
  %v9130 = vpack.c.b16 %v9066, %v9066
  %v9131 = vpack.c.b16 %v9067, %v9067
  %v9132 = vpack.c.b16 %v9068, %v9068
  %v9133 = vpack.c.b16 %v9069, %v9069
  %v9134 = vpack.c.b16 %v9070, %v9070
  %v9135 = vpack.c.b16 %v9071, %v9071
  %v9136 = vpack.c.b16 %v9072, %v9072
  %v9137 = vpack.c.b16 %v9073, %v9073
  %v9138 = vpack.c.b16 %v9074, %v9074
  %v9139 = vpack.c.b16 %v9075, %v9075
  %v9140 = vpack.c.b16 %v9076, %v9076
  %v9141 = vpack.c.b16 %v9077, %v9077
  %v9142 = vpack.c.b16 %v9078, %v9078
  %v9143 = vpack.c.b16 %v9079, %v9079
  %v9144 = vpack.c.b16 %v9080, %v9080
  %v9145 = vpack.c.b16 %v9081, %v9081
  %v9146 = vpack.c.b16 %v9082, %v9082
  %v9147 = vpack.c.b16 %v9083, %v9083
  %v9148 = vpack.c.b16 %v9084, %v9084
  %v9149 = vpack.c.b16 %v9085, %v9085
  %v9150 = vpack.c.b16 %v9086, %v9086
  %v9151 = vpack.c.b16 %v9087, %v9087
  %v9152 = vpack.c.b16 %v9088, %v9088
  %v9153 = vpack.c.b16 %v9089, %v9089
  %v9154 = vpack.c.b16 %v9090, %v9090
  %v9155 = vpack.c.b16 %v9091, %v9091
  %v9156 = vpack.c.b16 %v9092, %v9092
  %v9157 = vpack.c.b16 %v9093, %v9093
  %v9158 = vpack.c.b16 %v9094, %v9094
  %v9159 = vpack.c.b16 %v9095, %v9095
  %v9160 = vpack.c.b16 %v9096, %v9096
  %v9161 = vpack.c.b16 %v9097, %v9097
  %v9162 = vpack.c.b16 %v9098, %v9098
  %v9163 = vpack.c.b16 %v9099, %v9099
  %v9164 = vpack.c.b16 %v9100, %v9100
  %v9165 = vpack.c.b16 %v9101, %v9101
  %v9166 = vpack.c.b16 %v9102, %v9102
  %v9167 = vpack.c.b16 %v9103, %v9103
  %v9168 = vpack.c.b16 %v9104, %v9104
  %v9169 = vpack.c.b16 %v9105, %v9105
  %v9170 = vpack.c.b16 %v9106, %v9106
  %v9171 = vpack.c.b16 %v9107, %v9107
  %v9172 = vpack.c.b16 %v9108, %v9108
  %v9173 = vpack.c.b16 %v9109, %v9109
  %v9174 = vpack.c.b16 %v9110, %v9110
  %v9175 = vpack.c.b16 %v9111, %v9111
  %v9176 = vpack.c.b16 %v9112, %v9112
  %v9177 = vpack.c.b16 %v9113, %v9113
  %v9178 = vpack.c.b16 %v9114, %v9114
  %v9179 = vpack.c.b16 %v9115, %v9115
  %v9180 = vpack.c.b16 %v9116, %v9116
  %v9181 = vpack.c.b16 %v9117, %v9117
  %v9182 = vpack.c.b16 %v9118, %v9118
  %v9183 = vpack.c.b16 %v9119, %v9119
  %v9184 = vpack.c.b16 %v9120, %v9120
  %v9185 = vpack.c.b16 %v9121, %v9121
  %v9186 = vpack.c.b16 %v9122, %v9122
  %v9187 = vpack.c.b16 %v9123, %v9123
  %v9188 = vpack.c.b16 %v9124, %v9124
  %v9189 = vpack.c.b16 %v9125, %v9125
  %v9190 = vpack.c.b16 %v9126, %v9126
  %v9191 = vpack.c.b16 %v9127, %v9127
  %v9192 = vpack.c.b16 %v9128, %v9128
  %v9193 = vpack.c.b16 %v9129, %v9129
  %9194 = vrot.lane.b32.xlu0 %v9130, 48
  %v9195 = vpop.permute.xlu0 %9194
  %9196 = vrot.lane.b32.xlu0 %v9131, 48
  %v9197 = vpop.permute.xlu0 %9196
  %9198 = vrot.lane.b32.xlu0 %v9132, 48
  %v9199 = vpop.permute.xlu0 %9198
  %9200 = vrot.lane.b32.xlu0 %v9133, 48
  %v9201 = vpop.permute.xlu0 %9200
  %9202 = vrot.lane.b32.xlu0 %v9134, 48
  %v9203 = vpop.permute.xlu0 %9202
  %9204 = vrot.lane.b32.xlu0 %v9135, 48
  %v9205 = vpop.permute.xlu0 %9204
  %9206 = vrot.lane.b32.xlu0 %v9136, 48
  %v9207 = vpop.permute.xlu0 %9206
  %9208 = vrot.lane.b32.xlu0 %v9137, 48
  %v9209 = vpop.permute.xlu0 %9208
  %9210 = vrot.lane.b32.xlu0 %v9138, 48
  %v9211 = vpop.permute.xlu0 %9210
  %9212 = vrot.lane.b32.xlu0 %v9139, 48
  %v9213 = vpop.permute.xlu0 %9212
  %9214 = vrot.lane.b32.xlu0 %v9140, 48
  %v9215 = vpop.permute.xlu0 %9214
  %9216 = vrot.lane.b32.xlu0 %v9141, 48
  %v9217 = vpop.permute.xlu0 %9216
  %9218 = vrot.lane.b32.xlu0 %v9142, 48
  %v9219 = vpop.permute.xlu0 %9218
  %9220 = vrot.lane.b32.xlu0 %v9143, 48
  %v9221 = vpop.permute.xlu0 %9220
  %9222 = vrot.lane.b32.xlu0 %v9144, 48
  %v9223 = vpop.permute.xlu0 %9222
  %9224 = vrot.lane.b32.xlu0 %v9145, 48
  %v9225 = vpop.permute.xlu0 %9224
  %9226 = vrot.lane.b32.xlu0 %v9146, 48
  %v9227 = vpop.permute.xlu0 %9226
  %9228 = vrot.lane.b32.xlu0 %v9147, 48
  %v9229 = vpop.permute.xlu0 %9228
  %9230 = vrot.lane.b32.xlu0 %v9148, 48
  %v9231 = vpop.permute.xlu0 %9230
  %9232 = vrot.lane.b32.xlu0 %v9149, 48
  %v9233 = vpop.permute.xlu0 %9232
  %9234 = vrot.lane.b32.xlu0 %v9150, 48
  %v9235 = vpop.permute.xlu0 %9234
  %9236 = vrot.lane.b32.xlu0 %v9151, 48
  %v9237 = vpop.permute.xlu0 %9236
  %9238 = vrot.lane.b32.xlu0 %v9152, 48
  %v9239 = vpop.permute.xlu0 %9238
  %9240 = vrot.lane.b32.xlu0 %v9153, 48
  %v9241 = vpop.permute.xlu0 %9240
  %9242 = vrot.lane.b32.xlu0 %v9154, 48
  %v9243 = vpop.permute.xlu0 %9242
  %9244 = vrot.lane.b32.xlu0 %v9155, 48
  %v9245 = vpop.permute.xlu0 %9244
  %9246 = vrot.lane.b32.xlu0 %v9156, 48
  %v9247 = vpop.permute.xlu0 %9246
  %9248 = vrot.lane.b32.xlu0 %v9157, 48
  %v9249 = vpop.permute.xlu0 %9248
  %9250 = vrot.lane.b32.xlu0 %v9158, 48
  %v9251 = vpop.permute.xlu0 %9250
  %9252 = vrot.lane.b32.xlu0 %v9159, 48
  %v9253 = vpop.permute.xlu0 %9252
  %9254 = vrot.lane.b32.xlu0 %v9160, 48
  %v9255 = vpop.permute.xlu0 %9254
  %9256 = vrot.lane.b32.xlu0 %v9161, 48
  %v9257 = vpop.permute.xlu0 %9256
  %9258 = vrot.lane.b32.xlu0 %v9162, 48
  %v9259 = vpop.permute.xlu0 %9258
  %9260 = vrot.lane.b32.xlu0 %v9163, 48
  %v9261 = vpop.permute.xlu0 %9260
  %9262 = vrot.lane.b32.xlu0 %v9164, 48
  %v9263 = vpop.permute.xlu0 %9262
  %9264 = vrot.lane.b32.xlu0 %v9165, 48
  %v9265 = vpop.permute.xlu0 %9264
  %9266 = vrot.lane.b32.xlu0 %v9166, 48
  %v9267 = vpop.permute.xlu0 %9266
  %9268 = vrot.lane.b32.xlu0 %v9167, 48
  %v9269 = vpop.permute.xlu0 %9268
  %9270 = vrot.lane.b32.xlu0 %v9168, 48
  %v9271 = vpop.permute.xlu0 %9270
  %9272 = vrot.lane.b32.xlu0 %v9169, 48
  %v9273 = vpop.permute.xlu0 %9272
  %9274 = vrot.lane.b32.xlu0 %v9170, 48
  %v9275 = vpop.permute.xlu0 %9274
  %9276 = vrot.lane.b32.xlu0 %v9171, 48
  %v9277 = vpop.permute.xlu0 %9276
  %9278 = vrot.lane.b32.xlu0 %v9172, 48
  %v9279 = vpop.permute.xlu0 %9278
  %9280 = vrot.lane.b32.xlu0 %v9173, 48
  %v9281 = vpop.permute.xlu0 %9280
  %9282 = vrot.lane.b32.xlu0 %v9174, 48
  %v9283 = vpop.permute.xlu0 %9282
  %9284 = vrot.lane.b32.xlu0 %v9175, 48
  %v9285 = vpop.permute.xlu0 %9284
  %9286 = vrot.lane.b32.xlu0 %v9176, 48
  %v9287 = vpop.permute.xlu0 %9286
  %9288 = vrot.lane.b32.xlu0 %v9177, 48
  %v9289 = vpop.permute.xlu0 %9288
  %9290 = vrot.lane.b32.xlu0 %v9178, 48
  %v9291 = vpop.permute.xlu0 %9290
  %9292 = vrot.lane.b32.xlu0 %v9179, 48
  %v9293 = vpop.permute.xlu0 %9292
  %9294 = vrot.lane.b32.xlu0 %v9180, 48
  %v9295 = vpop.permute.xlu0 %9294
  %9296 = vrot.lane.b32.xlu0 %v9181, 48
  %v9297 = vpop.permute.xlu0 %9296
  %9298 = vrot.lane.b32.xlu0 %v9182, 48
  %v9299 = vpop.permute.xlu0 %9298
  %9300 = vrot.lane.b32.xlu0 %v9183, 48
  %v9301 = vpop.permute.xlu0 %9300
  %9302 = vrot.lane.b32.xlu0 %v9184, 48
  %v9303 = vpop.permute.xlu0 %9302
  %9304 = vrot.lane.b32.xlu0 %v9185, 48
  %v9305 = vpop.permute.xlu0 %9304
  %9306 = vrot.lane.b32.xlu0 %v9186, 48
  %v9307 = vpop.permute.xlu0 %9306
  %9308 = vrot.lane.b32.xlu0 %v9187, 48
  %v9309 = vpop.permute.xlu0 %9308
  %9310 = vrot.lane.b32.xlu0 %v9188, 48
  %v9311 = vpop.permute.xlu0 %9310
  %9312 = vrot.lane.b32.xlu0 %v9189, 48
  %v9313 = vpop.permute.xlu0 %9312
  %9314 = vrot.lane.b32.xlu0 %v9190, 48
  %v9315 = vpop.permute.xlu0 %9314
  %9316 = vrot.lane.b32.xlu0 %v9191, 48
  %v9317 = vpop.permute.xlu0 %9316
  %9318 = vrot.lane.b32.xlu0 %v9192, 48
  %v9319 = vpop.permute.xlu0 %9318
  %9320 = vrot.lane.b32.xlu0 %v9193, 48
  %v9321 = vpop.permute.xlu0 %9320
  %9386 = vst.msk [vmem:[#allocation3] sm:$0xf] %vm3643, %v9195
  %9387 = vst.msk [vmem:[#allocation3 + $0x4] sm:$0xf] %vm3643, %v9197
  %9388 = vst.msk [vmem:[#allocation3 + $0x8] sm:$0xf] %vm3643, %v9199
  %9389 = vst.msk [vmem:[#allocation3 + $0xc] sm:$0xf] %vm3643, %v9201
  %9390 = vst.msk [vmem:[#allocation3 + $0x10] sm:$0xf] %vm3643, %v9203
  %9391 = vst.msk [vmem:[#allocation3 + $0x14] sm:$0xf] %vm3643, %v9205
  %9392 = vst.msk [vmem:[#allocation3 + $0x18] sm:$0xf] %vm3643, %v9207
  %9393 = vst.msk [vmem:[#allocation3 + $0x1c] sm:$0xf] %vm3643, %v9209
  %9394 = vst.msk [vmem:[#allocation3 + $0x20] sm:$0xf] %vm3643, %v9211
  %9395 = vst.msk [vmem:[#allocation3 + $0x24] sm:$0xf] %vm3643, %v9213
  %9396 = vst.msk [vmem:[#allocation3 + $0x28] sm:$0xf] %vm3643, %v9215
  %9397 = vst.msk [vmem:[#allocation3 + $0x2c] sm:$0xf] %vm3643, %v9217
  %9398 = vst.msk [vmem:[#allocation3 + $0x30] sm:$0xf] %vm3643, %v9219
  %9399 = vst.msk [vmem:[#allocation3 + $0x34] sm:$0xf] %vm3643, %v9221
  %9400 = vst.msk [vmem:[#allocation3 + $0x38] sm:$0xf] %vm3643, %v9223
  %9401 = vst.msk [vmem:[#allocation3 + $0x3c] sm:$0xf] %vm3643, %v9225
  %9402 = vst.msk [vmem:[#allocation3 + $0x40] sm:$0xf] %vm3643, %v9227
  %9403 = vst.msk [vmem:[#allocation3 + $0x44] sm:$0xf] %vm3643, %v9229
  %9404 = vst.msk [vmem:[#allocation3 + $0x48] sm:$0xf] %vm3643, %v9231
  %9405 = vst.msk [vmem:[#allocation3 + $0x4c] sm:$0xf] %vm3643, %v9233
  %9406 = vst.msk [vmem:[#allocation3 + $0x50] sm:$0xf] %vm3643, %v9235
  %9407 = vst.msk [vmem:[#allocation3 + $0x54] sm:$0xf] %vm3643, %v9237
  %9408 = vst.msk [vmem:[#allocation3 + $0x58] sm:$0xf] %vm3643, %v9239
  %9409 = vst.msk [vmem:[#allocation3 + $0x5c] sm:$0xf] %vm3643, %v9241
  %9410 = vst.msk [vmem:[#allocation3 + $0x60] sm:$0xf] %vm3643, %v9243
  %9411 = vst.msk [vmem:[#allocation3 + $0x64] sm:$0xf] %vm3643, %v9245
  %9412 = vst.msk [vmem:[#allocation3 + $0x68] sm:$0xf] %vm3643, %v9247
  %9413 = vst.msk [vmem:[#allocation3 + $0x6c] sm:$0xf] %vm3643, %v9249
  %9414 = vst.msk [vmem:[#allocation3 + $0x70] sm:$0xf] %vm3643, %v9251
  %9415 = vst.msk [vmem:[#allocation3 + $0x74] sm:$0xf] %vm3643, %v9253
  %9416 = vst.msk [vmem:[#allocation3 + $0x78] sm:$0xf] %vm3643, %v9255
  %9417 = vst.msk [vmem:[#allocation3 + $0x7c] sm:$0xf] %vm3643, %v9257
  %9418 = vst.msk [vmem:[#allocation3 + $0x80] sm:$0xf] %vm3643, %v9259
  %9419 = vst.msk [vmem:[#allocation3 + $0x84] sm:$0xf] %vm3643, %v9261
  %9420 = vst.msk [vmem:[#allocation3 + $0x88] sm:$0xf] %vm3643, %v9263
  %9421 = vst.msk [vmem:[#allocation3 + $0x8c] sm:$0xf] %vm3643, %v9265
  %9422 = vst.msk [vmem:[#allocation3 + $0x90] sm:$0xf] %vm3643, %v9267
  %9423 = vst.msk [vmem:[#allocation3 + $0x94] sm:$0xf] %vm3643, %v9269
  %9424 = vst.msk [vmem:[#allocation3 + $0x98] sm:$0xf] %vm3643, %v9271
  %9425 = vst.msk [vmem:[#allocation3 + $0x9c] sm:$0xf] %vm3643, %v9273
  %9426 = vst.msk [vmem:[#allocation3 + $0xa0] sm:$0xf] %vm3643, %v9275
  %9427 = vst.msk [vmem:[#allocation3 + $0xa4] sm:$0xf] %vm3643, %v9277
  %9428 = vst.msk [vmem:[#allocation3 + $0xa8] sm:$0xf] %vm3643, %v9279
  %9429 = vst.msk [vmem:[#allocation3 + $0xac] sm:$0xf] %vm3643, %v9281
  %9430 = vst.msk [vmem:[#allocation3 + $0xb0] sm:$0xf] %vm3643, %v9283
  %9431 = vst.msk [vmem:[#allocation3 + $0xb4] sm:$0xf] %vm3643, %v9285
  %9432 = vst.msk [vmem:[#allocation3 + $0xb8] sm:$0xf] %vm3643, %v9287
  %9433 = vst.msk [vmem:[#allocation3 + $0xbc] sm:$0xf] %vm3643, %v9289
  %9434 = vst.msk [vmem:[#allocation3 + $0xc0] sm:$0xf] %vm3643, %v9291
  %9435 = vst.msk [vmem:[#allocation3 + $0xc4] sm:$0xf] %vm3643, %v9293
  %9436 = vst.msk [vmem:[#allocation3 + $0xc8] sm:$0xf] %vm3643, %v9295
  %9437 = vst.msk [vmem:[#allocation3 + $0xcc] sm:$0xf] %vm3643, %v9297
  %9438 = vst.msk [vmem:[#allocation3 + $0xd0] sm:$0xf] %vm3643, %v9299
  %9439 = vst.msk [vmem:[#allocation3 + $0xd4] sm:$0xf] %vm3643, %v9301
  %9440 = vst.msk [vmem:[#allocation3 + $0xd8] sm:$0xf] %vm3643, %v9303
  %9441 = vst.msk [vmem:[#allocation3 + $0xdc] sm:$0xf] %vm3643, %v9305
  %9442 = vst.msk [vmem:[#allocation3 + $0xe0] sm:$0xf] %vm3643, %v9307
  %9443 = vst.msk [vmem:[#allocation3 + $0xe4] sm:$0xf] %vm3643, %v9309
  %9444 = vst.msk [vmem:[#allocation3 + $0xe8] sm:$0xf] %vm3643, %v9311
  %9445 = vst.msk [vmem:[#allocation3 + $0xec] sm:$0xf] %vm3643, %v9313
  %9446 = vst.msk [vmem:[#allocation3 + $0xf0] sm:$0xf] %vm3643, %v9315
  %9447 = vst.msk [vmem:[#allocation3 + $0xf4] sm:$0xf] %vm3643, %v9317
  %9448 = vst.msk [vmem:[#allocation3 + $0xf8] sm:$0xf] %vm3643, %v9319
  %9449 = vst.msk [vmem:[#allocation3 + $0xfc] sm:$0xf] %vm3643, %v9321
  %v9450 = vld [vmem:[%s3194 + $0x1] sm:$0xff]
  %v9451 = vld [vmem:[%s3194 + $0x9] sm:$0xff]
  %v9452 = vld [vmem:[%s3194 + $0x19] sm:$0xff]
  %v9453 = vld [vmem:[%s3194 + $0x21] sm:$0xff]
  %v9454 = vld [vmem:[%s3194 + $0x31] sm:$0xff]
  %v9455 = vld [vmem:[%s3194 + $0x39] sm:$0xff]
  %v9456 = vld [vmem:[%s3194 + $0x49] sm:$0xff]
  %v9457 = vld [vmem:[%s3194 + $0x51] sm:$0xff]
  %v9458 = vld [vmem:[%s3194 + $0x61] sm:$0xff]
  %v9459 = vld [vmem:[%s3194 + $0x69] sm:$0xff]
  %v9460 = vld [vmem:[%s3194 + $0x79] sm:$0xff]
  %v9461 = vld [vmem:[%s3194 + $0x81] sm:$0xff]
  %v9462 = vld [vmem:[%s3194 + $0x91] sm:$0xff]
  %v9463 = vld [vmem:[%s3194 + $0x99] sm:$0xff]
  %v9464 = vld [vmem:[%s3194 + $0xa9] sm:$0xff]
  %v9465 = vld [vmem:[%s3194 + $0xb1] sm:$0xff]
  %v9466 = vld [vmem:[%s3194 + $0xc1] sm:$0xff]
  %v9467 = vld [vmem:[%s3194 + $0xc9] sm:$0xff]
  %v9468 = vld [vmem:[%s3194 + $0xd9] sm:$0xff]
  %v9469 = vld [vmem:[%s3194 + $0xe1] sm:$0xff]
  %v9470 = vld [vmem:[%s3194 + $0xf1] sm:$0xff]
  %v9471 = vld [vmem:[%s3194 + $0xf9] sm:$0xff]
  %v9472 = vld [vmem:[%s3194 + $0x109] sm:$0xff]
  %v9473 = vld [vmem:[%s3194 + $0x111] sm:$0xff]
  %v9474 = vld [vmem:[%s3194 + $0x121] sm:$0xff]
  %v9475 = vld [vmem:[%s3194 + $0x129] sm:$0xff]
  %v9476 = vld [vmem:[%s3194 + $0x139] sm:$0xff]
  %v9477 = vld [vmem:[%s3194 + $0x141] sm:$0xff]
  %v9478 = vld [vmem:[%s3194 + $0x151] sm:$0xff]
  %v9479 = vld [vmem:[%s3194 + $0x159] sm:$0xff]
  %v9480 = vld [vmem:[%s3194 + $0x169] sm:$0xff]
  %v9481 = vld [vmem:[%s3194 + $0x171] sm:$0xff]
  %v9482 = vld [vmem:[%s3194 + $0x1b1] sm:$0xff]
  %v9483 = vld [vmem:[%s3194 + $0x1b9] sm:$0xff]
  %v9484 = vld [vmem:[%s3194 + $0x1c9] sm:$0xff]
  %v9485 = vld [vmem:[%s3194 + $0x1d1] sm:$0xff]
  %v9486 = vld [vmem:[%s3194 + $0x1e1] sm:$0xff]
  %v9487 = vld [vmem:[%s3194 + $0x1e9] sm:$0xff]
  %v9488 = vld [vmem:[%s3194 + $0x1f9] sm:$0xff]
  %v9489 = vld [vmem:[%s3194 + $0x201] sm:$0xff]
  %v9490 = vld [vmem:[%s3194 + $0x211] sm:$0xff]
  %v9491 = vld [vmem:[%s3194 + $0x219] sm:$0xff]
  %v9492 = vld [vmem:[%s3194 + $0x229] sm:$0xff]
  %v9493 = vld [vmem:[%s3194 + $0x231] sm:$0xff]
  %v9494 = vld [vmem:[%s3194 + $0x241] sm:$0xff]
  %v9495 = vld [vmem:[%s3194 + $0x249] sm:$0xff]
  %v9496 = vld [vmem:[%s3194 + $0x259] sm:$0xff]
  %v9497 = vld [vmem:[%s3194 + $0x261] sm:$0xff]
  %v9498 = vld [vmem:[%s3194 + $0x271] sm:$0xff]
  %v9499 = vld [vmem:[%s3194 + $0x279] sm:$0xff]
  %v9500 = vld [vmem:[%s3194 + $0x289] sm:$0xff]
  %v9501 = vld [vmem:[%s3194 + $0x291] sm:$0xff]
  %v9502 = vld [vmem:[%s3194 + $0x2a1] sm:$0xff]
  %v9503 = vld [vmem:[%s3194 + $0x2a9] sm:$0xff]
  %v9504 = vld [vmem:[%s3194 + $0x2b9] sm:$0xff]
  %v9505 = vld [vmem:[%s3194 + $0x2c1] sm:$0xff]
  %v9506 = vld [vmem:[%s3194 + $0x2d1] sm:$0xff]
  %v9507 = vld [vmem:[%s3194 + $0x2d9] sm:$0xff]
  %v9508 = vld [vmem:[%s3194 + $0x2e9] sm:$0xff]
  %v9509 = vld [vmem:[%s3194 + $0x2f1] sm:$0xff]
  %v9510 = vld [vmem:[%s3194 + $0x301] sm:$0xff]
  %v9511 = vld [vmem:[%s3194 + $0x309] sm:$0xff]
  %v9512 = vld [vmem:[%s3194 + $0x319] sm:$0xff]
  %v9513 = vld [vmem:[%s3194 + $0x321] sm:$0xff]
  %v9514 = vpack.c.bf16 %v9451, %v9450
  %v9515 = vpack.c.bf16 %v9453, %v9452
  %v9516 = vpack.c.bf16 %v9455, %v9454
  %v9517 = vpack.c.bf16 %v9457, %v9456
  %v9518 = vpack.c.bf16 %v9459, %v9458
  %v9519 = vpack.c.bf16 %v9461, %v9460
  %v9520 = vpack.c.bf16 %v9463, %v9462
  %v9521 = vpack.c.bf16 %v9465, %v9464
  %v9522 = vpack.c.bf16 %v9467, %v9466
  %v9523 = vpack.c.bf16 %v9469, %v9468
  %v9524 = vpack.c.bf16 %v9471, %v9470
  %v9525 = vpack.c.bf16 %v9473, %v9472
  %v9526 = vpack.c.bf16 %v9475, %v9474
  %v9527 = vpack.c.bf16 %v9477, %v9476
  %v9528 = vpack.c.bf16 %v9479, %v9478
  %v9529 = vpack.c.bf16 %v9481, %v9480
  %v9530 = vpack.c.bf16 %v9483, %v9482
  %v9531 = vpack.c.bf16 %v9485, %v9484
  %v9532 = vpack.c.bf16 %v9487, %v9486
  %v9533 = vpack.c.bf16 %v9489, %v9488
  %v9534 = vpack.c.bf16 %v9491, %v9490
  %v9535 = vpack.c.bf16 %v9493, %v9492
  %v9536 = vpack.c.bf16 %v9495, %v9494
  %v9537 = vpack.c.bf16 %v9497, %v9496
  %v9538 = vpack.c.bf16 %v9499, %v9498
  %v9539 = vpack.c.bf16 %v9501, %v9500
  %v9540 = vpack.c.bf16 %v9503, %v9502
  %v9541 = vpack.c.bf16 %v9505, %v9504
  %v9542 = vpack.c.bf16 %v9507, %v9506
  %v9543 = vpack.c.bf16 %v9509, %v9508
  %v9544 = vpack.c.bf16 %v9511, %v9510
  %v9545 = vpack.c.bf16 %v9513, %v9512
  %v9578 = vunpack.c.l.b16 %v9514
  %v9579 = vunpack.c.h.b16 %v9514
  %v9580 = vunpack.c.l.b16 %v9515
  %v9581 = vunpack.c.h.b16 %v9515
  %v9582 = vunpack.c.l.b16 %v9516
  %v9583 = vunpack.c.h.b16 %v9516
  %v9584 = vunpack.c.l.b16 %v9517
  %v9585 = vunpack.c.h.b16 %v9517
  %v9586 = vunpack.c.l.b16 %v9518
  %v9587 = vunpack.c.h.b16 %v9518
  %v9588 = vunpack.c.l.b16 %v9519
  %v9589 = vunpack.c.h.b16 %v9519
  %v9590 = vunpack.c.l.b16 %v9520
  %v9591 = vunpack.c.h.b16 %v9520
  %v9592 = vunpack.c.l.b16 %v9521
  %v9593 = vunpack.c.h.b16 %v9521
  %v9594 = vunpack.c.l.b16 %v9522
  %v9595 = vunpack.c.h.b16 %v9522
  %v9596 = vunpack.c.l.b16 %v9523
  %v9597 = vunpack.c.h.b16 %v9523
  %v9598 = vunpack.c.l.b16 %v9524
  %v9599 = vunpack.c.h.b16 %v9524
  %v9600 = vunpack.c.l.b16 %v9525
  %v9601 = vunpack.c.h.b16 %v9525
  %v9602 = vunpack.c.l.b16 %v9526
  %v9603 = vunpack.c.h.b16 %v9526
  %v9604 = vunpack.c.l.b16 %v9527
  %v9605 = vunpack.c.h.b16 %v9527
  %v9606 = vunpack.c.l.b16 %v9528
  %v9607 = vunpack.c.h.b16 %v9528
  %v9608 = vunpack.c.l.b16 %v9529
  %v9609 = vunpack.c.h.b16 %v9529
  %v9610 = vunpack.c.l.b16 %v9530
  %v9611 = vunpack.c.h.b16 %v9530
  %v9612 = vunpack.c.l.b16 %v9531
  %v9613 = vunpack.c.h.b16 %v9531
  %v9614 = vunpack.c.l.b16 %v9532
  %v9615 = vunpack.c.h.b16 %v9532
  %v9616 = vunpack.c.l.b16 %v9533
  %v9617 = vunpack.c.h.b16 %v9533
  %v9618 = vunpack.c.l.b16 %v9534
  %v9619 = vunpack.c.h.b16 %v9534
  %v9620 = vunpack.c.l.b16 %v9535
  %v9621 = vunpack.c.h.b16 %v9535
  %v9622 = vunpack.c.l.b16 %v9536
  %v9623 = vunpack.c.h.b16 %v9536
  %v9624 = vunpack.c.l.b16 %v9537
  %v9625 = vunpack.c.h.b16 %v9537
  %v9626 = vunpack.c.l.b16 %v9538
  %v9627 = vunpack.c.h.b16 %v9538
  %v9628 = vunpack.c.l.b16 %v9539
  %v9629 = vunpack.c.h.b16 %v9539
  %v9630 = vunpack.c.l.b16 %v9540
  %v9631 = vunpack.c.h.b16 %v9540
  %v9632 = vunpack.c.l.b16 %v9541
  %v9633 = vunpack.c.h.b16 %v9541
  %v9634 = vunpack.c.l.b16 %v9542
  %v9635 = vunpack.c.h.b16 %v9542
  %v9636 = vunpack.c.l.b16 %v9543
  %v9637 = vunpack.c.h.b16 %v9543
  %v9638 = vunpack.c.l.b16 %v9544
  %v9639 = vunpack.c.h.b16 %v9544
  %v9640 = vunpack.c.l.b16 %v9545
  %v9641 = vunpack.c.h.b16 %v9545
  %v9642 = vpack.c.b16 %v9578, %v9578
  %v9643 = vpack.c.b16 %v9579, %v9579
  %v9644 = vpack.c.b16 %v9580, %v9580
  %v9645 = vpack.c.b16 %v9581, %v9581
  %v9646 = vpack.c.b16 %v9582, %v9582
  %v9647 = vpack.c.b16 %v9583, %v9583
  %v9648 = vpack.c.b16 %v9584, %v9584
  %v9649 = vpack.c.b16 %v9585, %v9585
  %v9650 = vpack.c.b16 %v9586, %v9586
  %v9651 = vpack.c.b16 %v9587, %v9587
  %v9652 = vpack.c.b16 %v9588, %v9588
  %v9653 = vpack.c.b16 %v9589, %v9589
  %v9654 = vpack.c.b16 %v9590, %v9590
  %v9655 = vpack.c.b16 %v9591, %v9591
  %v9656 = vpack.c.b16 %v9592, %v9592
  %v9657 = vpack.c.b16 %v9593, %v9593
  %v9658 = vpack.c.b16 %v9594, %v9594
  %v9659 = vpack.c.b16 %v9595, %v9595
  %v9660 = vpack.c.b16 %v9596, %v9596
  %v9661 = vpack.c.b16 %v9597, %v9597
  %v9662 = vpack.c.b16 %v9598, %v9598
  %v9663 = vpack.c.b16 %v9599, %v9599
  %v9664 = vpack.c.b16 %v9600, %v9600
  %v9665 = vpack.c.b16 %v9601, %v9601
  %v9666 = vpack.c.b16 %v9602, %v9602
  %v9667 = vpack.c.b16 %v9603, %v9603
  %v9668 = vpack.c.b16 %v9604, %v9604
  %v9669 = vpack.c.b16 %v9605, %v9605
  %v9670 = vpack.c.b16 %v9606, %v9606
  %v9671 = vpack.c.b16 %v9607, %v9607
  %v9672 = vpack.c.b16 %v9608, %v9608
  %v9673 = vpack.c.b16 %v9609, %v9609
  %v9674 = vpack.c.b16 %v9610, %v9610
  %v9675 = vpack.c.b16 %v9611, %v9611
  %v9676 = vpack.c.b16 %v9612, %v9612
  %v9677 = vpack.c.b16 %v9613, %v9613
  %v9678 = vpack.c.b16 %v9614, %v9614
  %v9679 = vpack.c.b16 %v9615, %v9615
  %v9680 = vpack.c.b16 %v9616, %v9616
  %v9681 = vpack.c.b16 %v9617, %v9617
  %v9682 = vpack.c.b16 %v9618, %v9618
  %v9683 = vpack.c.b16 %v9619, %v9619
  %v9684 = vpack.c.b16 %v9620, %v9620
  %v9685 = vpack.c.b16 %v9621, %v9621
  %v9686 = vpack.c.b16 %v9622, %v9622
  %v9687 = vpack.c.b16 %v9623, %v9623
  %v9688 = vpack.c.b16 %v9624, %v9624
  %v9689 = vpack.c.b16 %v9625, %v9625
  %v9690 = vpack.c.b16 %v9626, %v9626
  %v9691 = vpack.c.b16 %v9627, %v9627
  %v9692 = vpack.c.b16 %v9628, %v9628
  %v9693 = vpack.c.b16 %v9629, %v9629
  %v9694 = vpack.c.b16 %v9630, %v9630
  %v9695 = vpack.c.b16 %v9631, %v9631
  %v9696 = vpack.c.b16 %v9632, %v9632
  %v9697 = vpack.c.b16 %v9633, %v9633
  %v9698 = vpack.c.b16 %v9634, %v9634
  %v9699 = vpack.c.b16 %v9635, %v9635
  %v9700 = vpack.c.b16 %v9636, %v9636
  %v9701 = vpack.c.b16 %v9637, %v9637
  %v9702 = vpack.c.b16 %v9638, %v9638
  %v9703 = vpack.c.b16 %v9639, %v9639
  %v9704 = vpack.c.b16 %v9640, %v9640
  %v9705 = vpack.c.b16 %v9641, %v9641
  %9706 = vrot.lane.b32.xlu0 %v9642, 56
  %v9707 = vpop.permute.xlu0 %9706
  %9708 = vrot.lane.b32.xlu0 %v9643, 56
  %v9709 = vpop.permute.xlu0 %9708
  %9710 = vrot.lane.b32.xlu0 %v9644, 56
  %v9711 = vpop.permute.xlu0 %9710
  %9712 = vrot.lane.b32.xlu0 %v9645, 56
  %v9713 = vpop.permute.xlu0 %9712
  %9714 = vrot.lane.b32.xlu0 %v9646, 56
  %v9715 = vpop.permute.xlu0 %9714
  %9716 = vrot.lane.b32.xlu0 %v9647, 56
  %v9717 = vpop.permute.xlu0 %9716
  %9718 = vrot.lane.b32.xlu0 %v9648, 56
  %v9719 = vpop.permute.xlu0 %9718
  %9720 = vrot.lane.b32.xlu0 %v9649, 56
  %v9721 = vpop.permute.xlu0 %9720
  %9722 = vrot.lane.b32.xlu0 %v9650, 56
  %v9723 = vpop.permute.xlu0 %9722
  %9724 = vrot.lane.b32.xlu0 %v9651, 56
  %v9725 = vpop.permute.xlu0 %9724
  %9726 = vrot.lane.b32.xlu0 %v9652, 56
  %v9727 = vpop.permute.xlu0 %9726
  %9728 = vrot.lane.b32.xlu0 %v9653, 56
  %v9729 = vpop.permute.xlu0 %9728
  %9730 = vrot.lane.b32.xlu0 %v9654, 56
  %v9731 = vpop.permute.xlu0 %9730
  %9732 = vrot.lane.b32.xlu0 %v9655, 56
  %v9733 = vpop.permute.xlu0 %9732
  %9734 = vrot.lane.b32.xlu0 %v9656, 56
  %v9735 = vpop.permute.xlu0 %9734
  %9736 = vrot.lane.b32.xlu0 %v9657, 56
  %v9737 = vpop.permute.xlu0 %9736
  %9738 = vrot.lane.b32.xlu0 %v9658, 56
  %v9739 = vpop.permute.xlu0 %9738
  %9740 = vrot.lane.b32.xlu0 %v9659, 56
  %v9741 = vpop.permute.xlu0 %9740
  %9742 = vrot.lane.b32.xlu0 %v9660, 56
  %v9743 = vpop.permute.xlu0 %9742
  %9744 = vrot.lane.b32.xlu0 %v9661, 56
  %v9745 = vpop.permute.xlu0 %9744
  %9746 = vrot.lane.b32.xlu0 %v9662, 56
  %v9747 = vpop.permute.xlu0 %9746
  %9748 = vrot.lane.b32.xlu0 %v9663, 56
  %v9749 = vpop.permute.xlu0 %9748
  %9750 = vrot.lane.b32.xlu0 %v9664, 56
  %v9751 = vpop.permute.xlu0 %9750
  %9752 = vrot.lane.b32.xlu0 %v9665, 56
  %v9753 = vpop.permute.xlu0 %9752
  %9754 = vrot.lane.b32.xlu0 %v9666, 56
  %v9755 = vpop.permute.xlu0 %9754
  %9756 = vrot.lane.b32.xlu0 %v9667, 56
  %v9757 = vpop.permute.xlu0 %9756
  %9758 = vrot.lane.b32.xlu0 %v9668, 56
  %v9759 = vpop.permute.xlu0 %9758
  %9760 = vrot.lane.b32.xlu0 %v9669, 56
  %v9761 = vpop.permute.xlu0 %9760
  %9762 = vrot.lane.b32.xlu0 %v9670, 56
  %v9763 = vpop.permute.xlu0 %9762
  %9764 = vrot.lane.b32.xlu0 %v9671, 56
  %v9765 = vpop.permute.xlu0 %9764
  %9766 = vrot.lane.b32.xlu0 %v9672, 56
  %v9767 = vpop.permute.xlu0 %9766
  %9768 = vrot.lane.b32.xlu0 %v9673, 56
  %v9769 = vpop.permute.xlu0 %9768
  %9770 = vrot.lane.b32.xlu0 %v9674, 56
  %v9771 = vpop.permute.xlu0 %9770
  %9772 = vrot.lane.b32.xlu0 %v9675, 56
  %v9773 = vpop.permute.xlu0 %9772
  %9774 = vrot.lane.b32.xlu0 %v9676, 56
  %v9775 = vpop.permute.xlu0 %9774
  %9776 = vrot.lane.b32.xlu0 %v9677, 56
  %v9777 = vpop.permute.xlu0 %9776
  %9778 = vrot.lane.b32.xlu0 %v9678, 56
  %v9779 = vpop.permute.xlu0 %9778
  %9780 = vrot.lane.b32.xlu0 %v9679, 56
  %v9781 = vpop.permute.xlu0 %9780
  %9782 = vrot.lane.b32.xlu0 %v9680, 56
  %v9783 = vpop.permute.xlu0 %9782
  %9784 = vrot.lane.b32.xlu0 %v9681, 56
  %v9785 = vpop.permute.xlu0 %9784
  %9786 = vrot.lane.b32.xlu0 %v9682, 56
  %v9787 = vpop.permute.xlu0 %9786
  %9788 = vrot.lane.b32.xlu0 %v9683, 56
  %v9789 = vpop.permute.xlu0 %9788
  %9790 = vrot.lane.b32.xlu0 %v9684, 56
  %v9791 = vpop.permute.xlu0 %9790
  %9792 = vrot.lane.b32.xlu0 %v9685, 56
  %v9793 = vpop.permute.xlu0 %9792
  %9794 = vrot.lane.b32.xlu0 %v9686, 56
  %v9795 = vpop.permute.xlu0 %9794
  %9796 = vrot.lane.b32.xlu0 %v9687, 56
  %v9797 = vpop.permute.xlu0 %9796
  %9798 = vrot.lane.b32.xlu0 %v9688, 56
  %v9799 = vpop.permute.xlu0 %9798
  %9800 = vrot.lane.b32.xlu0 %v9689, 56
  %v9801 = vpop.permute.xlu0 %9800
  %9802 = vrot.lane.b32.xlu0 %v9690, 56
  %v9803 = vpop.permute.xlu0 %9802
  %9804 = vrot.lane.b32.xlu0 %v9691, 56
  %v9805 = vpop.permute.xlu0 %9804
  %9806 = vrot.lane.b32.xlu0 %v9692, 56
  %v9807 = vpop.permute.xlu0 %9806
  %9808 = vrot.lane.b32.xlu0 %v9693, 56
  %v9809 = vpop.permute.xlu0 %9808
  %9810 = vrot.lane.b32.xlu0 %v9694, 56
  %v9811 = vpop.permute.xlu0 %9810
  %9812 = vrot.lane.b32.xlu0 %v9695, 56
  %v9813 = vpop.permute.xlu0 %9812
  %9814 = vrot.lane.b32.xlu0 %v9696, 56
  %v9815 = vpop.permute.xlu0 %9814
  %9816 = vrot.lane.b32.xlu0 %v9697, 56
  %v9817 = vpop.permute.xlu0 %9816
  %9818 = vrot.lane.b32.xlu0 %v9698, 56
  %v9819 = vpop.permute.xlu0 %9818
  %9820 = vrot.lane.b32.xlu0 %v9699, 56
  %v9821 = vpop.permute.xlu0 %9820
  %9822 = vrot.lane.b32.xlu0 %v9700, 56
  %v9823 = vpop.permute.xlu0 %9822
  %9824 = vrot.lane.b32.xlu0 %v9701, 56
  %v9825 = vpop.permute.xlu0 %9824
  %9826 = vrot.lane.b32.xlu0 %v9702, 56
  %v9827 = vpop.permute.xlu0 %9826
  %9828 = vrot.lane.b32.xlu0 %v9703, 56
  %v9829 = vpop.permute.xlu0 %9828
  %9830 = vrot.lane.b32.xlu0 %v9704, 56
  %v9831 = vpop.permute.xlu0 %9830
  %9832 = vrot.lane.b32.xlu0 %v9705, 56
  %v9833 = vpop.permute.xlu0 %9832
  %9898 = vst.msk [vmem:[#allocation3] sm:$0xf] %vm4156, %v9707
  %9899 = vst.msk [vmem:[#allocation3 + $0x4] sm:$0xf] %vm4156, %v9709
  %9900 = vst.msk [vmem:[#allocation3 + $0x8] sm:$0xf] %vm4156, %v9711
  %9901 = vst.msk [vmem:[#allocation3 + $0xc] sm:$0xf] %vm4156, %v9713
  %9902 = vst.msk [vmem:[#allocation3 + $0x10] sm:$0xf] %vm4156, %v9715
  %9903 = vst.msk [vmem:[#allocation3 + $0x14] sm:$0xf] %vm4156, %v9717
  %9904 = vst.msk [vmem:[#allocation3 + $0x18] sm:$0xf] %vm4156, %v9719
  %9905 = vst.msk [vmem:[#allocation3 + $0x1c] sm:$0xf] %vm4156, %v9721
  %9906 = vst.msk [vmem:[#allocation3 + $0x20] sm:$0xf] %vm4156, %v9723
  %9907 = vst.msk [vmem:[#allocation3 + $0x24] sm:$0xf] %vm4156, %v9725
  %9908 = vst.msk [vmem:[#allocation3 + $0x28] sm:$0xf] %vm4156, %v9727
  %9909 = vst.msk [vmem:[#allocation3 + $0x2c] sm:$0xf] %vm4156, %v9729
  %9910 = vst.msk [vmem:[#allocation3 + $0x30] sm:$0xf] %vm4156, %v9731
  %9911 = vst.msk [vmem:[#allocation3 + $0x34] sm:$0xf] %vm4156, %v9733
  %9912 = vst.msk [vmem:[#allocation3 + $0x38] sm:$0xf] %vm4156, %v9735
  %9913 = vst.msk [vmem:[#allocation3 + $0x3c] sm:$0xf] %vm4156, %v9737
  %9914 = vst.msk [vmem:[#allocation3 + $0x40] sm:$0xf] %vm4156, %v9739
  %9915 = vst.msk [vmem:[#allocation3 + $0x44] sm:$0xf] %vm4156, %v9741
  %9916 = vst.msk [vmem:[#allocation3 + $0x48] sm:$0xf] %vm4156, %v9743
  %9917 = vst.msk [vmem:[#allocation3 + $0x4c] sm:$0xf] %vm4156, %v9745
  %9918 = vst.msk [vmem:[#allocation3 + $0x50] sm:$0xf] %vm4156, %v9747
  %9919 = vst.msk [vmem:[#allocation3 + $0x54] sm:$0xf] %vm4156, %v9749
  %9920 = vst.msk [vmem:[#allocation3 + $0x58] sm:$0xf] %vm4156, %v9751
  %9921 = vst.msk [vmem:[#allocation3 + $0x5c] sm:$0xf] %vm4156, %v9753
  %9922 = vst.msk [vmem:[#allocation3 + $0x60] sm:$0xf] %vm4156, %v9755
  %9923 = vst.msk [vmem:[#allocation3 + $0x64] sm:$0xf] %vm4156, %v9757
  %9924 = vst.msk [vmem:[#allocation3 + $0x68] sm:$0xf] %vm4156, %v9759
  %9925 = vst.msk [vmem:[#allocation3 + $0x6c] sm:$0xf] %vm4156, %v9761
  %9926 = vst.msk [vmem:[#allocation3 + $0x70] sm:$0xf] %vm4156, %v9763
  %9927 = vst.msk [vmem:[#allocation3 + $0x74] sm:$0xf] %vm4156, %v9765
  %9928 = vst.msk [vmem:[#allocation3 + $0x78] sm:$0xf] %vm4156, %v9767
  %9929 = vst.msk [vmem:[#allocation3 + $0x7c] sm:$0xf] %vm4156, %v9769
  %9930 = vst.msk [vmem:[#allocation3 + $0x80] sm:$0xf] %vm4156, %v9771
  %9931 = vst.msk [vmem:[#allocation3 + $0x84] sm:$0xf] %vm4156, %v9773
  %9932 = vst.msk [vmem:[#allocation3 + $0x88] sm:$0xf] %vm4156, %v9775
  %9933 = vst.msk [vmem:[#allocation3 + $0x8c] sm:$0xf] %vm4156, %v9777
  %9934 = vst.msk [vmem:[#allocation3 + $0x90] sm:$0xf] %vm4156, %v9779
  %9935 = vst.msk [vmem:[#allocation3 + $0x94] sm:$0xf] %vm4156, %v9781
  %9936 = vst.msk [vmem:[#allocation3 + $0x98] sm:$0xf] %vm4156, %v9783
  %9937 = vst.msk [vmem:[#allocation3 + $0x9c] sm:$0xf] %vm4156, %v9785
  %9938 = vst.msk [vmem:[#allocation3 + $0xa0] sm:$0xf] %vm4156, %v9787
  %9939 = vst.msk [vmem:[#allocation3 + $0xa4] sm:$0xf] %vm4156, %v9789
  %9940 = vst.msk [vmem:[#allocation3 + $0xa8] sm:$0xf] %vm4156, %v9791
  %9941 = vst.msk [vmem:[#allocation3 + $0xac] sm:$0xf] %vm4156, %v9793
  %9942 = vst.msk [vmem:[#allocation3 + $0xb0] sm:$0xf] %vm4156, %v9795
  %9943 = vst.msk [vmem:[#allocation3 + $0xb4] sm:$0xf] %vm4156, %v9797
  %9944 = vst.msk [vmem:[#allocation3 + $0xb8] sm:$0xf] %vm4156, %v9799
  %9945 = vst.msk [vmem:[#allocation3 + $0xbc] sm:$0xf] %vm4156, %v9801
  %9946 = vst.msk [vmem:[#allocation3 + $0xc0] sm:$0xf] %vm4156, %v9803
  %9947 = vst.msk [vmem:[#allocation3 + $0xc4] sm:$0xf] %vm4156, %v9805
  %9948 = vst.msk [vmem:[#allocation3 + $0xc8] sm:$0xf] %vm4156, %v9807
  %9949 = vst.msk [vmem:[#allocation3 + $0xcc] sm:$0xf] %vm4156, %v9809
  %9950 = vst.msk [vmem:[#allocation3 + $0xd0] sm:$0xf] %vm4156, %v9811
  %9951 = vst.msk [vmem:[#allocation3 + $0xd4] sm:$0xf] %vm4156, %v9813
  %9952 = vst.msk [vmem:[#allocation3 + $0xd8] sm:$0xf] %vm4156, %v9815
  %9953 = vst.msk [vmem:[#allocation3 + $0xdc] sm:$0xf] %vm4156, %v9817
  %9954 = vst.msk [vmem:[#allocation3 + $0xe0] sm:$0xf] %vm4156, %v9819
  %9955 = vst.msk [vmem:[#allocation3 + $0xe4] sm:$0xf] %vm4156, %v9821
  %9956 = vst.msk [vmem:[#allocation3 + $0xe8] sm:$0xf] %vm4156, %v9823
  %9957 = vst.msk [vmem:[#allocation3 + $0xec] sm:$0xf] %vm4156, %v9825
  %9958 = vst.msk [vmem:[#allocation3 + $0xf0] sm:$0xf] %vm4156, %v9827
  %9959 = vst.msk [vmem:[#allocation3 + $0xf4] sm:$0xf] %vm4156, %v9829
  %9960 = vst.msk [vmem:[#allocation3 + $0xf8] sm:$0xf] %vm4156, %v9831
  %9961 = vst.msk [vmem:[#allocation3 + $0xfc] sm:$0xf] %vm4156, %v9833
  %v9962 = vld [vmem:[%s3194 + $0x2] sm:$0xff]
  %v9963 = vld [vmem:[%s3194 + $0xa] sm:$0xff]
  %v9964 = vld [vmem:[%s3194 + $0x1a] sm:$0xff]
  %v9965 = vld [vmem:[%s3194 + $0x22] sm:$0xff]
  %v9966 = vld [vmem:[%s3194 + $0x32] sm:$0xff]
  %v9967 = vld [vmem:[%s3194 + $0x3a] sm:$0xff]
  %v9968 = vld [vmem:[%s3194 + $0x4a] sm:$0xff]
  %v9969 = vld [vmem:[%s3194 + $0x52] sm:$0xff]
  %v9970 = vld [vmem:[%s3194 + $0x62] sm:$0xff]
  %v9971 = vld [vmem:[%s3194 + $0x6a] sm:$0xff]
  %v9972 = vld [vmem:[%s3194 + $0x7a] sm:$0xff]
  %v9973 = vld [vmem:[%s3194 + $0x82] sm:$0xff]
  %v9974 = vld [vmem:[%s3194 + $0x92] sm:$0xff]
  %v9975 = vld [vmem:[%s3194 + $0x9a] sm:$0xff]
  %v9976 = vld [vmem:[%s3194 + $0xaa] sm:$0xff]
  %v9977 = vld [vmem:[%s3194 + $0xb2] sm:$0xff]
  %v9978 = vld [vmem:[%s3194 + $0xc2] sm:$0xff]
  %v9979 = vld [vmem:[%s3194 + $0xca] sm:$0xff]
  %v9980 = vld [vmem:[%s3194 + $0xda] sm:$0xff]
  %v9981 = vld [vmem:[%s3194 + $0xe2] sm:$0xff]
  %v9982 = vld [vmem:[%s3194 + $0xf2] sm:$0xff]
  %v9983 = vld [vmem:[%s3194 + $0xfa] sm:$0xff]
  %v9984 = vld [vmem:[%s3194 + $0x10a] sm:$0xff]
  %v9985 = vld [vmem:[%s3194 + $0x112] sm:$0xff]
  %v9986 = vld [vmem:[%s3194 + $0x122] sm:$0xff]
  %v9987 = vld [vmem:[%s3194 + $0x12a] sm:$0xff]
  %v9988 = vld [vmem:[%s3194 + $0x13a] sm:$0xff]
  %v9989 = vld [vmem:[%s3194 + $0x142] sm:$0xff]
  %v9990 = vld [vmem:[%s3194 + $0x152] sm:$0xff]
  %v9991 = vld [vmem:[%s3194 + $0x15a] sm:$0xff]
  %v9992 = vld [vmem:[%s3194 + $0x16a] sm:$0xff]
  %v9993 = vld [vmem:[%s3194 + $0x172] sm:$0xff]
  %v9994 = vld [vmem:[%s3194 + $0x1b2] sm:$0xff]
  %v9995 = vld [vmem:[%s3194 + $0x1ba] sm:$0xff]
  %v9996 = vld [vmem:[%s3194 + $0x1ca] sm:$0xff]
  %v9997 = vld [vmem:[%s3194 + $0x1d2] sm:$0xff]
  %v9998 = vld [vmem:[%s3194 + $0x1e2] sm:$0xff]
  %v9999 = vld [vmem:[%s3194 + $0x1ea] sm:$0xff]
  %v10000 = vld [vmem:[%s3194 + $0x1fa] sm:$0xff]
  %v10001 = vld [vmem:[%s3194 + $0x202] sm:$0xff]
  %v10002 = vld [vmem:[%s3194 + $0x212] sm:$0xff]
  %v10003 = vld [vmem:[%s3194 + $0x21a] sm:$0xff]
  %v10004 = vld [vmem:[%s3194 + $0x22a] sm:$0xff]
  %v10005 = vld [vmem:[%s3194 + $0x232] sm:$0xff]
  %v10006 = vld [vmem:[%s3194 + $0x242] sm:$0xff]
  %v10007 = vld [vmem:[%s3194 + $0x24a] sm:$0xff]
  %v10008 = vld [vmem:[%s3194 + $0x25a] sm:$0xff]
  %v10009 = vld [vmem:[%s3194 + $0x262] sm:$0xff]
  %v10010 = vld [vmem:[%s3194 + $0x272] sm:$0xff]
  %v10011 = vld [vmem:[%s3194 + $0x27a] sm:$0xff]
  %v10012 = vld [vmem:[%s3194 + $0x28a] sm:$0xff]
  %v10013 = vld [vmem:[%s3194 + $0x292] sm:$0xff]
  %v10014 = vld [vmem:[%s3194 + $0x2a2] sm:$0xff]
  %v10015 = vld [vmem:[%s3194 + $0x2aa] sm:$0xff]
  %v10016 = vld [vmem:[%s3194 + $0x2ba] sm:$0xff]
  %v10017 = vld [vmem:[%s3194 + $0x2c2] sm:$0xff]
  %v10018 = vld [vmem:[%s3194 + $0x2d2] sm:$0xff]
  %v10019 = vld [vmem:[%s3194 + $0x2da] sm:$0xff]
  %v10020 = vld [vmem:[%s3194 + $0x2ea] sm:$0xff]
  %v10021 = vld [vmem:[%s3194 + $0x2f2] sm:$0xff]
  %v10022 = vld [vmem:[%s3194 + $0x302] sm:$0xff]
  %v10023 = vld [vmem:[%s3194 + $0x30a] sm:$0xff]
  %v10024 = vld [vmem:[%s3194 + $0x31a] sm:$0xff]
  %v10025 = vld [vmem:[%s3194 + $0x322] sm:$0xff]
  %v10026 = vpack.c.bf16 %v9963, %v9962
  %v10027 = vpack.c.bf16 %v9965, %v9964
  %v10028 = vpack.c.bf16 %v9967, %v9966
  %v10029 = vpack.c.bf16 %v9969, %v9968
  %v10030 = vpack.c.bf16 %v9971, %v9970
  %v10031 = vpack.c.bf16 %v9973, %v9972
  %v10032 = vpack.c.bf16 %v9975, %v9974
  %v10033 = vpack.c.bf16 %v9977, %v9976
  %v10034 = vpack.c.bf16 %v9979, %v9978
  %v10035 = vpack.c.bf16 %v9981, %v9980
  %v10036 = vpack.c.bf16 %v9983, %v9982
  %v10037 = vpack.c.bf16 %v9985, %v9984
  %v10038 = vpack.c.bf16 %v9987, %v9986
  %v10039 = vpack.c.bf16 %v9989, %v9988
  %v10040 = vpack.c.bf16 %v9991, %v9990
  %v10041 = vpack.c.bf16 %v9993, %v9992
  %v10042 = vpack.c.bf16 %v9995, %v9994
  %v10043 = vpack.c.bf16 %v9997, %v9996
  %v10044 = vpack.c.bf16 %v9999, %v9998
  %v10045 = vpack.c.bf16 %v10001, %v10000
  %v10046 = vpack.c.bf16 %v10003, %v10002
  %v10047 = vpack.c.bf16 %v10005, %v10004
  %v10048 = vpack.c.bf16 %v10007, %v10006
  %v10049 = vpack.c.bf16 %v10009, %v10008
  %v10050 = vpack.c.bf16 %v10011, %v10010
  %v10051 = vpack.c.bf16 %v10013, %v10012
  %v10052 = vpack.c.bf16 %v10015, %v10014
  %v10053 = vpack.c.bf16 %v10017, %v10016
  %v10054 = vpack.c.bf16 %v10019, %v10018
  %v10055 = vpack.c.bf16 %v10021, %v10020
  %v10056 = vpack.c.bf16 %v10023, %v10022
  %v10057 = vpack.c.bf16 %v10025, %v10024
  %v10090 = vunpack.c.l.b16 %v10026
  %v10091 = vunpack.c.h.b16 %v10026
  %v10092 = vunpack.c.l.b16 %v10027
  %v10093 = vunpack.c.h.b16 %v10027
  %v10094 = vunpack.c.l.b16 %v10028
  %v10095 = vunpack.c.h.b16 %v10028
  %v10096 = vunpack.c.l.b16 %v10029
  %v10097 = vunpack.c.h.b16 %v10029
  %v10098 = vunpack.c.l.b16 %v10030
  %v10099 = vunpack.c.h.b16 %v10030
  %v10100 = vunpack.c.l.b16 %v10031
  %v10101 = vunpack.c.h.b16 %v10031
  %v10102 = vunpack.c.l.b16 %v10032
  %v10103 = vunpack.c.h.b16 %v10032
  %v10104 = vunpack.c.l.b16 %v10033
  %v10105 = vunpack.c.h.b16 %v10033
  %v10106 = vunpack.c.l.b16 %v10034
  %v10107 = vunpack.c.h.b16 %v10034
  %v10108 = vunpack.c.l.b16 %v10035
  %v10109 = vunpack.c.h.b16 %v10035
  %v10110 = vunpack.c.l.b16 %v10036
  %v10111 = vunpack.c.h.b16 %v10036
  %v10112 = vunpack.c.l.b16 %v10037
  %v10113 = vunpack.c.h.b16 %v10037
  %v10114 = vunpack.c.l.b16 %v10038
  %v10115 = vunpack.c.h.b16 %v10038
  %v10116 = vunpack.c.l.b16 %v10039
  %v10117 = vunpack.c.h.b16 %v10039
  %v10118 = vunpack.c.l.b16 %v10040
  %v10119 = vunpack.c.h.b16 %v10040
  %v10120 = vunpack.c.l.b16 %v10041
  %v10121 = vunpack.c.h.b16 %v10041
  %v10122 = vunpack.c.l.b16 %v10042
  %v10123 = vunpack.c.h.b16 %v10042
  %v10124 = vunpack.c.l.b16 %v10043
  %v10125 = vunpack.c.h.b16 %v10043
  %v10126 = vunpack.c.l.b16 %v10044
  %v10127 = vunpack.c.h.b16 %v10044
  %v10128 = vunpack.c.l.b16 %v10045
  %v10129 = vunpack.c.h.b16 %v10045
  %v10130 = vunpack.c.l.b16 %v10046
  %v10131 = vunpack.c.h.b16 %v10046
  %v10132 = vunpack.c.l.b16 %v10047
  %v10133 = vunpack.c.h.b16 %v10047
  %v10134 = vunpack.c.l.b16 %v10048
  %v10135 = vunpack.c.h.b16 %v10048
  %v10136 = vunpack.c.l.b16 %v10049
  %v10137 = vunpack.c.h.b16 %v10049
  %v10138 = vunpack.c.l.b16 %v10050
  %v10139 = vunpack.c.h.b16 %v10050
  %v10140 = vunpack.c.l.b16 %v10051
  %v10141 = vunpack.c.h.b16 %v10051
  %v10142 = vunpack.c.l.b16 %v10052
  %v10143 = vunpack.c.h.b16 %v10052
  %v10144 = vunpack.c.l.b16 %v10053
  %v10145 = vunpack.c.h.b16 %v10053
  %v10146 = vunpack.c.l.b16 %v10054
  %v10147 = vunpack.c.h.b16 %v10054
  %v10148 = vunpack.c.l.b16 %v10055
  %v10149 = vunpack.c.h.b16 %v10055
  %v10150 = vunpack.c.l.b16 %v10056
  %v10151 = vunpack.c.h.b16 %v10056
  %v10152 = vunpack.c.l.b16 %v10057
  %v10153 = vunpack.c.h.b16 %v10057
  %v10154 = vpack.c.b16 %v10090, %v10090
  %v10155 = vpack.c.b16 %v10091, %v10091
  %v10156 = vpack.c.b16 %v10092, %v10092
  %v10157 = vpack.c.b16 %v10093, %v10093
  %v10158 = vpack.c.b16 %v10094, %v10094
  %v10159 = vpack.c.b16 %v10095, %v10095
  %v10160 = vpack.c.b16 %v10096, %v10096
  %v10161 = vpack.c.b16 %v10097, %v10097
  %v10162 = vpack.c.b16 %v10098, %v10098
  %v10163 = vpack.c.b16 %v10099, %v10099
  %v10164 = vpack.c.b16 %v10100, %v10100
  %v10165 = vpack.c.b16 %v10101, %v10101
  %v10166 = vpack.c.b16 %v10102, %v10102
  %v10167 = vpack.c.b16 %v10103, %v10103
  %v10168 = vpack.c.b16 %v10104, %v10104
  %v10169 = vpack.c.b16 %v10105, %v10105
  %v10170 = vpack.c.b16 %v10106, %v10106
  %v10171 = vpack.c.b16 %v10107, %v10107
  %v10172 = vpack.c.b16 %v10108, %v10108
  %v10173 = vpack.c.b16 %v10109, %v10109
  %v10174 = vpack.c.b16 %v10110, %v10110
  %v10175 = vpack.c.b16 %v10111, %v10111
  %v10176 = vpack.c.b16 %v10112, %v10112
  %v10177 = vpack.c.b16 %v10113, %v10113
  %v10178 = vpack.c.b16 %v10114, %v10114
  %v10179 = vpack.c.b16 %v10115, %v10115
  %v10180 = vpack.c.b16 %v10116, %v10116
  %v10181 = vpack.c.b16 %v10117, %v10117
  %v10182 = vpack.c.b16 %v10118, %v10118
  %v10183 = vpack.c.b16 %v10119, %v10119
  %v10184 = vpack.c.b16 %v10120, %v10120
  %v10185 = vpack.c.b16 %v10121, %v10121
  %v10186 = vpack.c.b16 %v10122, %v10122
  %v10187 = vpack.c.b16 %v10123, %v10123
  %v10188 = vpack.c.b16 %v10124, %v10124
  %v10189 = vpack.c.b16 %v10125, %v10125
  %v10190 = vpack.c.b16 %v10126, %v10126
  %v10191 = vpack.c.b16 %v10127, %v10127
  %v10192 = vpack.c.b16 %v10128, %v10128
  %v10193 = vpack.c.b16 %v10129, %v10129
  %v10194 = vpack.c.b16 %v10130, %v10130
  %v10195 = vpack.c.b16 %v10131, %v10131
  %v10196 = vpack.c.b16 %v10132, %v10132
  %v10197 = vpack.c.b16 %v10133, %v10133
  %v10198 = vpack.c.b16 %v10134, %v10134
  %v10199 = vpack.c.b16 %v10135, %v10135
  %v10200 = vpack.c.b16 %v10136, %v10136
  %v10201 = vpack.c.b16 %v10137, %v10137
  %v10202 = vpack.c.b16 %v10138, %v10138
  %v10203 = vpack.c.b16 %v10139, %v10139
  %v10204 = vpack.c.b16 %v10140, %v10140
  %v10205 = vpack.c.b16 %v10141, %v10141
  %v10206 = vpack.c.b16 %v10142, %v10142
  %v10207 = vpack.c.b16 %v10143, %v10143
  %v10208 = vpack.c.b16 %v10144, %v10144
  %v10209 = vpack.c.b16 %v10145, %v10145
  %v10210 = vpack.c.b16 %v10146, %v10146
  %v10211 = vpack.c.b16 %v10147, %v10147
  %v10212 = vpack.c.b16 %v10148, %v10148
  %v10213 = vpack.c.b16 %v10149, %v10149
  %v10214 = vpack.c.b16 %v10150, %v10150
  %v10215 = vpack.c.b16 %v10151, %v10151
  %v10216 = vpack.c.b16 %v10152, %v10152
  %v10217 = vpack.c.b16 %v10153, %v10153
  %10218 = vrot.lane.b32.xlu0 %v10154, 64
  %v10219 = vpop.permute.xlu0 %10218
  %10220 = vrot.lane.b32.xlu0 %v10155, 64
  %v10221 = vpop.permute.xlu0 %10220
  %10222 = vrot.lane.b32.xlu0 %v10156, 64
  %v10223 = vpop.permute.xlu0 %10222
  %10224 = vrot.lane.b32.xlu0 %v10157, 64
  %v10225 = vpop.permute.xlu0 %10224
  %10226 = vrot.lane.b32.xlu0 %v10158, 64
  %v10227 = vpop.permute.xlu0 %10226
  %10228 = vrot.lane.b32.xlu0 %v10159, 64
  %v10229 = vpop.permute.xlu0 %10228
  %10230 = vrot.lane.b32.xlu0 %v10160, 64
  %v10231 = vpop.permute.xlu0 %10230
  %10232 = vrot.lane.b32.xlu0 %v10161, 64
  %v10233 = vpop.permute.xlu0 %10232
  %10234 = vrot.lane.b32.xlu0 %v10162, 64
  %v10235 = vpop.permute.xlu0 %10234
  %10236 = vrot.lane.b32.xlu0 %v10163, 64
  %v10237 = vpop.permute.xlu0 %10236
  %10238 = vrot.lane.b32.xlu0 %v10164, 64
  %v10239 = vpop.permute.xlu0 %10238
  %10240 = vrot.lane.b32.xlu0 %v10165, 64
  %v10241 = vpop.permute.xlu0 %10240
  %10242 = vrot.lane.b32.xlu0 %v10166, 64
  %v10243 = vpop.permute.xlu0 %10242
  %10244 = vrot.lane.b32.xlu0 %v10167, 64
  %v10245 = vpop.permute.xlu0 %10244
  %10246 = vrot.lane.b32.xlu0 %v10168, 64
  %v10247 = vpop.permute.xlu0 %10246
  %10248 = vrot.lane.b32.xlu0 %v10169, 64
  %v10249 = vpop.permute.xlu0 %10248
  %10250 = vrot.lane.b32.xlu0 %v10170, 64
  %v10251 = vpop.permute.xlu0 %10250
  %10252 = vrot.lane.b32.xlu0 %v10171, 64
  %v10253 = vpop.permute.xlu0 %10252
  %10254 = vrot.lane.b32.xlu0 %v10172, 64
  %v10255 = vpop.permute.xlu0 %10254
  %10256 = vrot.lane.b32.xlu0 %v10173, 64
  %v10257 = vpop.permute.xlu0 %10256
  %10258 = vrot.lane.b32.xlu0 %v10174, 64
  %v10259 = vpop.permute.xlu0 %10258
  %10260 = vrot.lane.b32.xlu0 %v10175, 64
  %v10261 = vpop.permute.xlu0 %10260
  %10262 = vrot.lane.b32.xlu0 %v10176, 64
  %v10263 = vpop.permute.xlu0 %10262
  %10264 = vrot.lane.b32.xlu0 %v10177, 64
  %v10265 = vpop.permute.xlu0 %10264
  %10266 = vrot.lane.b32.xlu0 %v10178, 64
  %v10267 = vpop.permute.xlu0 %10266
  %10268 = vrot.lane.b32.xlu0 %v10179, 64
  %v10269 = vpop.permute.xlu0 %10268
  %10270 = vrot.lane.b32.xlu0 %v10180, 64
  %v10271 = vpop.permute.xlu0 %10270
  %10272 = vrot.lane.b32.xlu0 %v10181, 64
  %v10273 = vpop.permute.xlu0 %10272
  %10274 = vrot.lane.b32.xlu0 %v10182, 64
  %v10275 = vpop.permute.xlu0 %10274
  %10276 = vrot.lane.b32.xlu0 %v10183, 64
  %v10277 = vpop.permute.xlu0 %10276
  %10278 = vrot.lane.b32.xlu0 %v10184, 64
  %v10279 = vpop.permute.xlu0 %10278
  %10280 = vrot.lane.b32.xlu0 %v10185, 64
  %v10281 = vpop.permute.xlu0 %10280
  %10282 = vrot.lane.b32.xlu0 %v10186, 64
  %v10283 = vpop.permute.xlu0 %10282
  %10284 = vrot.lane.b32.xlu0 %v10187, 64
  %v10285 = vpop.permute.xlu0 %10284
  %10286 = vrot.lane.b32.xlu0 %v10188, 64
  %v10287 = vpop.permute.xlu0 %10286
  %10288 = vrot.lane.b32.xlu0 %v10189, 64
  %v10289 = vpop.permute.xlu0 %10288
  %10290 = vrot.lane.b32.xlu0 %v10190, 64
  %v10291 = vpop.permute.xlu0 %10290
  %10292 = vrot.lane.b32.xlu0 %v10191, 64
  %v10293 = vpop.permute.xlu0 %10292
  %10294 = vrot.lane.b32.xlu0 %v10192, 64
  %v10295 = vpop.permute.xlu0 %10294
  %10296 = vrot.lane.b32.xlu0 %v10193, 64
  %v10297 = vpop.permute.xlu0 %10296
  %10298 = vrot.lane.b32.xlu0 %v10194, 64
  %v10299 = vpop.permute.xlu0 %10298
  %10300 = vrot.lane.b32.xlu0 %v10195, 64
  %v10301 = vpop.permute.xlu0 %10300
  %10302 = vrot.lane.b32.xlu0 %v10196, 64
  %v10303 = vpop.permute.xlu0 %10302
  %10304 = vrot.lane.b32.xlu0 %v10197, 64
  %v10305 = vpop.permute.xlu0 %10304
  %10306 = vrot.lane.b32.xlu0 %v10198, 64
  %v10307 = vpop.permute.xlu0 %10306
  %10308 = vrot.lane.b32.xlu0 %v10199, 64
  %v10309 = vpop.permute.xlu0 %10308
  %10310 = vrot.lane.b32.xlu0 %v10200, 64
  %v10311 = vpop.permute.xlu0 %10310
  %10312 = vrot.lane.b32.xlu0 %v10201, 64
  %v10313 = vpop.permute.xlu0 %10312
  %10314 = vrot.lane.b32.xlu0 %v10202, 64
  %v10315 = vpop.permute.xlu0 %10314
  %10316 = vrot.lane.b32.xlu0 %v10203, 64
  %v10317 = vpop.permute.xlu0 %10316
  %10318 = vrot.lane.b32.xlu0 %v10204, 64
  %v10319 = vpop.permute.xlu0 %10318
  %10320 = vrot.lane.b32.xlu0 %v10205, 64
  %v10321 = vpop.permute.xlu0 %10320
  %10322 = vrot.lane.b32.xlu0 %v10206, 64
  %v10323 = vpop.permute.xlu0 %10322
  %10324 = vrot.lane.b32.xlu0 %v10207, 64
  %v10325 = vpop.permute.xlu0 %10324
  %10326 = vrot.lane.b32.xlu0 %v10208, 64
  %v10327 = vpop.permute.xlu0 %10326
  %10328 = vrot.lane.b32.xlu0 %v10209, 64
  %v10329 = vpop.permute.xlu0 %10328
  %10330 = vrot.lane.b32.xlu0 %v10210, 64
  %v10331 = vpop.permute.xlu0 %10330
  %10332 = vrot.lane.b32.xlu0 %v10211, 64
  %v10333 = vpop.permute.xlu0 %10332
  %10334 = vrot.lane.b32.xlu0 %v10212, 64
  %v10335 = vpop.permute.xlu0 %10334
  %10336 = vrot.lane.b32.xlu0 %v10213, 64
  %v10337 = vpop.permute.xlu0 %10336
  %10338 = vrot.lane.b32.xlu0 %v10214, 64
  %v10339 = vpop.permute.xlu0 %10338
  %10340 = vrot.lane.b32.xlu0 %v10215, 64
  %v10341 = vpop.permute.xlu0 %10340
  %10342 = vrot.lane.b32.xlu0 %v10216, 64
  %v10343 = vpop.permute.xlu0 %10342
  %10344 = vrot.lane.b32.xlu0 %v10217, 64
  %v10345 = vpop.permute.xlu0 %10344
  %10410 = vst.msk [vmem:[#allocation3] sm:$0xf] %vm4669, %v10219
  %10411 = vst.msk [vmem:[#allocation3 + $0x4] sm:$0xf] %vm4669, %v10221
  %10412 = vst.msk [vmem:[#allocation3 + $0x8] sm:$0xf] %vm4669, %v10223
  %10413 = vst.msk [vmem:[#allocation3 + $0xc] sm:$0xf] %vm4669, %v10225
  %10414 = vst.msk [vmem:[#allocation3 + $0x10] sm:$0xf] %vm4669, %v10227
  %10415 = vst.msk [vmem:[#allocation3 + $0x14] sm:$0xf] %vm4669, %v10229
  %10416 = vst.msk [vmem:[#allocation3 + $0x18] sm:$0xf] %vm4669, %v10231
  %10417 = vst.msk [vmem:[#allocation3 + $0x1c] sm:$0xf] %vm4669, %v10233
  %10418 = vst.msk [vmem:[#allocation3 + $0x20] sm:$0xf] %vm4669, %v10235
  %10419 = vst.msk [vmem:[#allocation3 + $0x24] sm:$0xf] %vm4669, %v10237
  %10420 = vst.msk [vmem:[#allocation3 + $0x28] sm:$0xf] %vm4669, %v10239
  %10421 = vst.msk [vmem:[#allocation3 + $0x2c] sm:$0xf] %vm4669, %v10241
  %10422 = vst.msk [vmem:[#allocation3 + $0x30] sm:$0xf] %vm4669, %v10243
  %10423 = vst.msk [vmem:[#allocation3 + $0x34] sm:$0xf] %vm4669, %v10245
  %10424 = vst.msk [vmem:[#allocation3 + $0x38] sm:$0xf] %vm4669, %v10247
  %10425 = vst.msk [vmem:[#allocation3 + $0x3c] sm:$0xf] %vm4669, %v10249
  %10426 = vst.msk [vmem:[#allocation3 + $0x40] sm:$0xf] %vm4669, %v10251
  %10427 = vst.msk [vmem:[#allocation3 + $0x44] sm:$0xf] %vm4669, %v10253
  %10428 = vst.msk [vmem:[#allocation3 + $0x48] sm:$0xf] %vm4669, %v10255
  %10429 = vst.msk [vmem:[#allocation3 + $0x4c] sm:$0xf] %vm4669, %v10257
  %10430 = vst.msk [vmem:[#allocation3 + $0x50] sm:$0xf] %vm4669, %v10259
  %10431 = vst.msk [vmem:[#allocation3 + $0x54] sm:$0xf] %vm4669, %v10261
  %10432 = vst.msk [vmem:[#allocation3 + $0x58] sm:$0xf] %vm4669, %v10263
  %10433 = vst.msk [vmem:[#allocation3 + $0x5c] sm:$0xf] %vm4669, %v10265
  %10434 = vst.msk [vmem:[#allocation3 + $0x60] sm:$0xf] %vm4669, %v10267
  %10435 = vst.msk [vmem:[#allocation3 + $0x64] sm:$0xf] %vm4669, %v10269
  %10436 = vst.msk [vmem:[#allocation3 + $0x68] sm:$0xf] %vm4669, %v10271
  %10437 = vst.msk [vmem:[#allocation3 + $0x6c] sm:$0xf] %vm4669, %v10273
  %10438 = vst.msk [vmem:[#allocation3 + $0x70] sm:$0xf] %vm4669, %v10275
  %10439 = vst.msk [vmem:[#allocation3 + $0x74] sm:$0xf] %vm4669, %v10277
  %10440 = vst.msk [vmem:[#allocation3 + $0x78] sm:$0xf] %vm4669, %v10279
  %10441 = vst.msk [vmem:[#allocation3 + $0x7c] sm:$0xf] %vm4669, %v10281
  %10442 = vst.msk [vmem:[#allocation3 + $0x80] sm:$0xf] %vm4669, %v10283
  %10443 = vst.msk [vmem:[#allocation3 + $0x84] sm:$0xf] %vm4669, %v10285
  %10444 = vst.msk [vmem:[#allocation3 + $0x88] sm:$0xf] %vm4669, %v10287
  %10445 = vst.msk [vmem:[#allocation3 + $0x8c] sm:$0xf] %vm4669, %v10289
  %10446 = vst.msk [vmem:[#allocation3 + $0x90] sm:$0xf] %vm4669, %v10291
  %10447 = vst.msk [vmem:[#allocation3 + $0x94] sm:$0xf] %vm4669, %v10293
  %10448 = vst.msk [vmem:[#allocation3 + $0x98] sm:$0xf] %vm4669, %v10295
  %10449 = vst.msk [vmem:[#allocation3 + $0x9c] sm:$0xf] %vm4669, %v10297
  %10450 = vst.msk [vmem:[#allocation3 + $0xa0] sm:$0xf] %vm4669, %v10299
  %10451 = vst.msk [vmem:[#allocation3 + $0xa4] sm:$0xf] %vm4669, %v10301
  %10452 = vst.msk [vmem:[#allocation3 + $0xa8] sm:$0xf] %vm4669, %v10303
  %10453 = vst.msk [vmem:[#allocation3 + $0xac] sm:$0xf] %vm4669, %v10305
  %10454 = vst.msk [vmem:[#allocation3 + $0xb0] sm:$0xf] %vm4669, %v10307
  %10455 = vst.msk [vmem:[#allocation3 + $0xb4] sm:$0xf] %vm4669, %v10309
  %10456 = vst.msk [vmem:[#allocation3 + $0xb8] sm:$0xf] %vm4669, %v10311
  %10457 = vst.msk [vmem:[#allocation3 + $0xbc] sm:$0xf] %vm4669, %v10313
  %10458 = vst.msk [vmem:[#allocation3 + $0xc0] sm:$0xf] %vm4669, %v10315
  %10459 = vst.msk [vmem:[#allocation3 + $0xc4] sm:$0xf] %vm4669, %v10317
  %10460 = vst.msk [vmem:[#allocation3 + $0xc8] sm:$0xf] %vm4669, %v10319
  %10461 = vst.msk [vmem:[#allocation3 + $0xcc] sm:$0xf] %vm4669, %v10321
  %10462 = vst.msk [vmem:[#allocation3 + $0xd0] sm:$0xf] %vm4669, %v10323
  %10463 = vst.msk [vmem:[#allocation3 + $0xd4] sm:$0xf] %vm4669, %v10325
  %10464 = vst.msk [vmem:[#allocation3 + $0xd8] sm:$0xf] %vm4669, %v10327
  %10465 = vst.msk [vmem:[#allocation3 + $0xdc] sm:$0xf] %vm4669, %v10329
  %10466 = vst.msk [vmem:[#allocation3 + $0xe0] sm:$0xf] %vm4669, %v10331
  %10467 = vst.msk [vmem:[#allocation3 + $0xe4] sm:$0xf] %vm4669, %v10333
  %10468 = vst.msk [vmem:[#allocation3 + $0xe8] sm:$0xf] %vm4669, %v10335
  %10469 = vst.msk [vmem:[#allocation3 + $0xec] sm:$0xf] %vm4669, %v10337
  %10470 = vst.msk [vmem:[#allocation3 + $0xf0] sm:$0xf] %vm4669, %v10339
  %10471 = vst.msk [vmem:[#allocation3 + $0xf4] sm:$0xf] %vm4669, %v10341
  %10472 = vst.msk [vmem:[#allocation3 + $0xf8] sm:$0xf] %vm4669, %v10343
  %10473 = vst.msk [vmem:[#allocation3 + $0xfc] sm:$0xf] %vm4669, %v10345
  %v10474 = vld [vmem:[#allocation3] sm:$0xf]
  %v10475 = vld [vmem:[#allocation3 + $0x4] sm:$0xf]
  %v10476 = vld [vmem:[#allocation3 + $0x8] sm:$0xf]
  %v10477 = vld [vmem:[#allocation3 + $0xc] sm:$0xf]
  %v10478 = vld [vmem:[#allocation3 + $0x10] sm:$0xf]
  %v10479 = vld [vmem:[#allocation3 + $0x14] sm:$0xf]
  %v10480 = vld [vmem:[#allocation3 + $0x18] sm:$0xf]
  %v10481 = vld [vmem:[#allocation3 + $0x1c] sm:$0xf]
  %v10482 = vld [vmem:[#allocation3 + $0x20] sm:$0xf]
  %v10483 = vld [vmem:[#allocation3 + $0x24] sm:$0xf]
  %v10484 = vld [vmem:[#allocation3 + $0x28] sm:$0xf]
  %v10485 = vld [vmem:[#allocation3 + $0x2c] sm:$0xf]
  %v10486 = vld [vmem:[#allocation3 + $0x30] sm:$0xf]
  %v10487 = vld [vmem:[#allocation3 + $0x34] sm:$0xf]
  %v10488 = vld [vmem:[#allocation3 + $0x38] sm:$0xf]
  %v10489 = vld [vmem:[#allocation3 + $0x3c] sm:$0xf]
  %v10490 = vld [vmem:[#allocation3 + $0x40] sm:$0xf]
  %v10491 = vld [vmem:[#allocation3 + $0x44] sm:$0xf]
  %v10492 = vld [vmem:[#allocation3 + $0x48] sm:$0xf]
  %v10493 = vld [vmem:[#allocation3 + $0x4c] sm:$0xf]
  %v10494 = vld [vmem:[#allocation3 + $0x50] sm:$0xf]
  %v10495 = vld [vmem:[#allocation3 + $0x54] sm:$0xf]
  %v10496 = vld [vmem:[#allocation3 + $0x58] sm:$0xf]
  %v10497 = vld [vmem:[#allocation3 + $0x5c] sm:$0xf]
  %v10498 = vld [vmem:[#allocation3 + $0x60] sm:$0xf]
  %v10499 = vld [vmem:[#allocation3 + $0x64] sm:$0xf]
  %v10500 = vld [vmem:[#allocation3 + $0x68] sm:$0xf]
  %v10501 = vld [vmem:[#allocation3 + $0x6c] sm:$0xf]
  %v10502 = vld [vmem:[#allocation3 + $0x70] sm:$0xf]
  %v10503 = vld [vmem:[#allocation3 + $0x74] sm:$0xf]
  %v10504 = vld [vmem:[#allocation3 + $0x78] sm:$0xf]
  %v10505 = vld [vmem:[#allocation3 + $0x7c] sm:$0xf]
  %v10506 = vld [vmem:[#allocation3 + $0x80] sm:$0xf]
  %v10507 = vld [vmem:[#allocation3 + $0x84] sm:$0xf]
  %v10508 = vld [vmem:[#allocation3 + $0x88] sm:$0xf]
  %v10509 = vld [vmem:[#allocation3 + $0x8c] sm:$0xf]
  %v10510 = vld [vmem:[#allocation3 + $0x90] sm:$0xf]
  %v10511 = vld [vmem:[#allocation3 + $0x94] sm:$0xf]
  %v10512 = vld [vmem:[#allocation3 + $0x98] sm:$0xf]
  %v10513 = vld [vmem:[#allocation3 + $0x9c] sm:$0xf]
  %v10514 = vld [vmem:[#allocation3 + $0xa0] sm:$0xf]
  %v10515 = vld [vmem:[#allocation3 + $0xa4] sm:$0xf]
  %v10516 = vld [vmem:[#allocation3 + $0xa8] sm:$0xf]
  %v10517 = vld [vmem:[#allocation3 + $0xac] sm:$0xf]
  %v10518 = vld [vmem:[#allocation3 + $0xb0] sm:$0xf]
  %v10519 = vld [vmem:[#allocation3 + $0xb4] sm:$0xf]
  %v10520 = vld [vmem:[#allocation3 + $0xb8] sm:$0xf]
  %v10521 = vld [vmem:[#allocation3 + $0xbc] sm:$0xf]
  %v10522 = vld [vmem:[#allocation3 + $0xc0] sm:$0xf]
  %v10523 = vld [vmem:[#allocation3 + $0xc4] sm:$0xf]
  %v10524 = vld [vmem:[#allocation3 + $0xc8] sm:$0xf]
  %v10525 = vld [vmem:[#allocation3 + $0xcc] sm:$0xf]
  %v10526 = vld [vmem:[#allocation3 + $0xd0] sm:$0xf]
  %v10527 = vld [vmem:[#allocation3 + $0xd4] sm:$0xf]
  %v10528 = vld [vmem:[#allocation3 + $0xd8] sm:$0xf]
  %v10529 = vld [vmem:[#allocation3 + $0xdc] sm:$0xf]
  %v10530 = vld [vmem:[#allocation3 + $0xe0] sm:$0xf]
  %v10531 = vld [vmem:[#allocation3 + $0xe4] sm:$0xf]
  %v10532 = vld [vmem:[#allocation3 + $0xe8] sm:$0xf]
  %v10533 = vld [vmem:[#allocation3 + $0xec] sm:$0xf]
  %v10534 = vld [vmem:[#allocation3 + $0xf0] sm:$0xf]
  %v10535 = vld [vmem:[#allocation3 + $0xf4] sm:$0xf]
  %v10536 = vld [vmem:[#allocation3 + $0xf8] sm:$0xf]
  %v10537 = vld [vmem:[#allocation3 + $0xfc] sm:$0xf]
  %v10538 = vld [vmem:[%s4] sm:$0xf]
  %v10539 = vld [vmem:[%s4 + $0x4] sm:$0xf]
  %v10540 = vld [vmem:[%s4 + $0x8] sm:$0xf]
  %v10541 = vld [vmem:[%s4 + $0xc] sm:$0xf]
  %v10542 = vld [vmem:[%s4 + $0x10] sm:$0xf]
  %v10543 = vld [vmem:[%s4 + $0x14] sm:$0xf]
  %v10544 = vld [vmem:[%s4 + $0x18] sm:$0xf]
  %v10545 = vld [vmem:[%s4 + $0x1c] sm:$0xf]
  %v10546 = vld [vmem:[%s4 + $0x20] sm:$0xf]
  %v10611 = vunpack.c.l.b16 %v10474
  %v10612 = vunpack.c.l.b16 %v10475
  %v10613 = vunpack.c.l.b16 %v10476
  %v10614 = vunpack.c.l.b16 %v10477
  %v10615 = vunpack.c.l.b16 %v10478
  %v10616 = vunpack.c.l.b16 %v10479
  %v10617 = vunpack.c.l.b16 %v10480
  %v10618 = vunpack.c.l.b16 %v10481
  %v10619 = vunpack.c.l.b16 %v10482
  %v10620 = vunpack.c.l.b16 %v10483
  %v10621 = vunpack.c.l.b16 %v10484
  %v10622 = vunpack.c.l.b16 %v10485
  %v10623 = vunpack.c.l.b16 %v10486
  %v10624 = vunpack.c.l.b16 %v10487
  %v10625 = vunpack.c.l.b16 %v10488
  %v10626 = vunpack.c.l.b16 %v10489
  %v10627 = vunpack.c.l.b16 %v10490
  %v10628 = vunpack.c.l.b16 %v10491
  %v10629 = vunpack.c.l.b16 %v10492
  %v10630 = vunpack.c.l.b16 %v10493
  %v10631 = vunpack.c.l.b16 %v10494
  %v10632 = vunpack.c.l.b16 %v10495
  %v10633 = vunpack.c.l.b16 %v10496
  %v10634 = vunpack.c.l.b16 %v10497
  %v10635 = vunpack.c.l.b16 %v10498
  %v10636 = vunpack.c.l.b16 %v10499
  %v10637 = vunpack.c.l.b16 %v10500
  %v10638 = vunpack.c.l.b16 %v10501
  %v10639 = vunpack.c.l.b16 %v10502
  %v10640 = vunpack.c.l.b16 %v10503
  %v10641 = vunpack.c.l.b16 %v10504
  %v10642 = vunpack.c.l.b16 %v10505
  %v10643 = vunpack.c.l.b16 %v10506
  %v10644 = vunpack.c.l.b16 %v10507
  %v10645 = vunpack.c.l.b16 %v10508
  %v10646 = vunpack.c.l.b16 %v10509
  %v10647 = vunpack.c.l.b16 %v10510
  %v10648 = vunpack.c.l.b16 %v10511
  %v10649 = vunpack.c.l.b16 %v10512
  %v10650 = vunpack.c.l.b16 %v10513
  %v10651 = vunpack.c.l.b16 %v10514
  %v10652 = vunpack.c.l.b16 %v10515
  %v10653 = vunpack.c.l.b16 %v10516
  %v10654 = vunpack.c.l.b16 %v10517
  %v10655 = vunpack.c.l.b16 %v10518
  %v10656 = vunpack.c.l.b16 %v10519
  %v10657 = vunpack.c.l.b16 %v10520
  %v10658 = vunpack.c.l.b16 %v10521
  %v10659 = vunpack.c.l.b16 %v10522
  %v10660 = vunpack.c.l.b16 %v10523
  %v10661 = vunpack.c.l.b16 %v10524
  %v10662 = vunpack.c.l.b16 %v10525
  %v10663 = vunpack.c.l.b16 %v10526
  %v10664 = vunpack.c.l.b16 %v10527
  %v10665 = vunpack.c.l.b16 %v10528
  %v10666 = vunpack.c.l.b16 %v10529
  %v10667 = vunpack.c.l.b16 %v10530
  %v10668 = vunpack.c.l.b16 %v10531
  %v10669 = vunpack.c.l.b16 %v10532
  %v10670 = vunpack.c.l.b16 %v10533
  %v10671 = vunpack.c.l.b16 %v10534
  %v10672 = vunpack.c.l.b16 %v10535
  %v10673 = vunpack.c.l.b16 %v10536
  %v10674 = vunpack.c.l.b16 %v10537
  %v10675 = vpack.c.b16 %v10612, %v10611
  %v10676 = vpack.c.b16 %v10614, %v10613
  %v10677 = vpack.c.b16 %v10616, %v10615
  %v10678 = vpack.c.b16 %v10618, %v10617
  %v10679 = vpack.c.b16 %v10620, %v10619
  %v10680 = vpack.c.b16 %v10622, %v10621
  %v10681 = vpack.c.b16 %v10624, %v10623
  %v10682 = vpack.c.b16 %v10626, %v10625
  %v10683 = vpack.c.b16 %v10628, %v10627
  %v10684 = vpack.c.b16 %v10630, %v10629
  %v10685 = vpack.c.b16 %v10632, %v10631
  %v10686 = vpack.c.b16 %v10634, %v10633
  %v10687 = vpack.c.b16 %v10636, %v10635
  %v10688 = vpack.c.b16 %v10638, %v10637
  %v10689 = vpack.c.b16 %v10640, %v10639
  %v10690 = vpack.c.b16 %v10642, %v10641
  %v10691 = vpack.c.b16 %v10644, %v10643
  %v10692 = vpack.c.b16 %v10646, %v10645
  %v10693 = vpack.c.b16 %v10648, %v10647
  %v10694 = vpack.c.b16 %v10650, %v10649
  %v10695 = vpack.c.b16 %v10652, %v10651
  %v10696 = vpack.c.b16 %v10654, %v10653
  %v10697 = vpack.c.b16 %v10656, %v10655
  %v10698 = vpack.c.b16 %v10658, %v10657
  %v10699 = vpack.c.b16 %v10660, %v10659
  %v10700 = vpack.c.b16 %v10662, %v10661
  %v10701 = vpack.c.b16 %v10664, %v10663
  %v10702 = vpack.c.b16 %v10666, %v10665
  %v10703 = vpack.c.b16 %v10668, %v10667
  %v10704 = vpack.c.b16 %v10670, %v10669
  %v10705 = vpack.c.b16 %v10672, %v10671
  %v10706 = vpack.c.b16 %v10674, %v10673
  %v10716 = vunpack.c.l.b16 %v10538
  %v10717 = vunpack.c.l.b16 %v10539
  %v10718 = vunpack.c.l.b16 %v10540
  %v10719 = vunpack.c.l.b16 %v10541
  %v10720 = vunpack.c.l.b16 %v10542
  %v10721 = vunpack.c.l.b16 %v10543
  %v10722 = vunpack.c.l.b16 %v10544
  %v10723 = vunpack.c.l.b16 %v10545
  %v10724 = vunpack.c.l.b16 %v10546
  %v10725 = vpack.c.b16 %v10717, %v10716
  %v10726 = vpack.c.b16 %v10719, %v10718
  %v10727 = vpack.c.b16 %v10721, %v10720
  %v10728 = vpack.c.b16 %v10723, %v10722
  %v10729 = vpack.c.b16 %v10724, %v10724
  %v10735 = vsel %vm4994, %v10675, 0
  %v10738 = vsel %vm4994, %v10676, 0
  %v10741 = vsel %vm4994, %v10677, 0
  %v10744 = vsel %vm4994, %v10678, 0
  %v10747 = vsel %vm4994, %v10679, 0
  %v10750 = vsel %vm4994, %v10680, 0
  %v10753 = vsel %vm4994, %v10681, 0
  %v10756 = vsel %vm4994, %v10682, 0
  %v10759 = vsel %vm4994, %v10683, 0
  %v10762 = vsel %vm4994, %v10684, 0
  %v10765 = vsel %vm4994, %v10685, 0
  %v10768 = vsel %vm4994, %v10686, 0
  %v10771 = vsel %vm4994, %v10687, 0
  %v10774 = vsel %vm4994, %v10688, 0
  %v10777 = vsel %vm4994, %v10689, 0
  %v10780 = vsel %vm4994, %v10690, 0
  %v10783 = vsel %vm4994, %v10691, 0
  %v10786 = vsel %vm4994, %v10692, 0
  %v10789 = vsel %vm4994, %v10693, 0
  %v10792 = vsel %vm4994, %v10694, 0
  %v10795 = vsel %vm4994, %v10695, 0
  %v10798 = vsel %vm4994, %v10696, 0
  %v10801 = vsel %vm4994, %v10697, 0
  %v10804 = vsel %vm4994, %v10698, 0
  %v10807 = vsel %vm4994, %v10699, 0
  %v10810 = vsel %vm4994, %v10700, 0
  %v10813 = vsel %vm4994, %v10701, 0
  %v10816 = vsel %vm4994, %v10702, 0
  %v10819 = vsel %vm4994, %v10703, 0
  %v10822 = vsel %vm4994, %v10704, 0
  %v10825 = vsel %vm4994, %v10705, 0
  %v10828 = vsel %vm4994, %v10706, 0
  %v10831 = vsel %vm5091, %v10729, 0
  %10833 = vmatprep.subr.bf16.mxu0 0
  %10834 = vmatpush1.bf16.msra.mxu0 0
  %10835 = vmatprep.subr.bf16.mxu0 0
  %10836 = vmatpush1.bf16.msra.mxu0 0
  %10837 = vmatprep.subr.bf16.mxu0 0
  %10838 = vmatpush1.bf16.msra.mxu0 0
  %10839 = vmatprep.subr.bf16.mxu0 0
  %10840 = vmatpush1.bf16.msra.mxu0 %v10831
  %10841 = vmatprep.subr.bf16.mxu0 0
  %10842 = vmatpush1.bf16.msra.mxu0 %v10728
  %10843 = vmatprep.subr.bf16.mxu0 0
  %10844 = vmatpush1.bf16.msra.mxu0 %v10727
  %10845 = vmatprep.subr.bf16.mxu0 0
  %10846 = vmatpush1.bf16.msra.mxu0 %v10726
  %10847 = vmatprep.subr.bf16.mxu0 0
  %10848 = vmatpush1.bf16.msra.mxu0 %v10725
  %10849 = vmatprep.subr.bf16.mxu0 0
  %10850 = vmatpush2.bf16.msra.mxu0 0
  %10851 = vmatprep.subr.bf16.mxu0 0
  %10852 = vmatpush2.bf16.msra.mxu0 0
  %10853 = vmatprep.subr.bf16.mxu0 0
  %10854 = vmatpush2.bf16.msra.mxu0 0
  %10855 = vmatprep.subr.bf16.mxu0 0
  %10856 = vmatpush2.bf16.msra.mxu0 0
  %10857 = vmatprep.subr.bf16.mxu0 0
  %10858 = vmatpush2.bf16.msra.mxu0 0
  %10859 = vmatprep.subr.bf16.mxu0 0
  %10860 = vmatpush2.bf16.msra.mxu0 0
  %10861 = vmatprep.subr.bf16.mxu0 0
  %10862 = vmatpush2.bf16.msra.mxu0 0
  %10863 = vmatprep.subr.bf16.mxu0 0
  %10864 = vmatpush2.bf16.msra.mxu0 0
  %10865 = vmatprep.mubr.bf16.mxu0 0
  %10866 = vmatmul.mubr.bf16.gmra.mxu0 %v10735
  %v10867 = vpop.f32.mrf.mxu0
  %v10868 = vadd.f32 0.0, %v10867
  %v10869 = vpop.f32.mrf.mxu0
  %v10870 = vpop.f32.mrf.mxu0
  %v10871 = vadd.f32 0.0, %v10870
  %v10872 = vpop.f32.mrf.mxu0
  %10873 = vmatprep.mubr.bf16.mxu0 0
  %10874 = vmatmul.mubr.bf16.gmra.mxu0 %v10738
  %v10875 = vpop.f32.mrf.mxu0
  %v10876 = vadd.f32 0.0, %v10875
  %v10877 = vpop.f32.mrf.mxu0
  %v10878 = vpop.f32.mrf.mxu0
  %v10879 = vadd.f32 0.0, %v10878
  %v10880 = vpop.f32.mrf.mxu0
  %10881 = vmatprep.mubr.bf16.mxu0 0
  %10882 = vmatmul.mubr.bf16.gmra.mxu0 %v10741
  %v10883 = vpop.f32.mrf.mxu0
  %v10884 = vadd.f32 0.0, %v10883
  %v10885 = vpop.f32.mrf.mxu0
  %v10886 = vpop.f32.mrf.mxu0
  %v10887 = vadd.f32 0.0, %v10886
  %v10888 = vpop.f32.mrf.mxu0
  %10889 = vmatprep.mubr.bf16.mxu0 0
  %10890 = vmatmul.mubr.bf16.gmra.mxu0 %v10744
  %v10891 = vpop.f32.mrf.mxu0
  %v10892 = vadd.f32 0.0, %v10891
  %v10893 = vpop.f32.mrf.mxu0
  %v10894 = vpop.f32.mrf.mxu0
  %v10895 = vadd.f32 0.0, %v10894
  %v10896 = vpop.f32.mrf.mxu0
  %10897 = vmatprep.mubr.bf16.mxu0 0
  %10898 = vmatmul.mubr.bf16.gmra.mxu0 %v10747
  %v10899 = vpop.f32.mrf.mxu0
  %v10900 = vadd.f32 0.0, %v10899
  %v10901 = vpop.f32.mrf.mxu0
  %v10902 = vpop.f32.mrf.mxu0
  %v10903 = vadd.f32 0.0, %v10902
  %v10904 = vpop.f32.mrf.mxu0
  %10905 = vmatprep.mubr.bf16.mxu0 0
  %10906 = vmatmul.mubr.bf16.gmra.mxu0 %v10750
  %v10907 = vpop.f32.mrf.mxu0
  %v10908 = vadd.f32 0.0, %v10907
  %v10909 = vpop.f32.mrf.mxu0
  %v10910 = vpop.f32.mrf.mxu0
  %v10911 = vadd.f32 0.0, %v10910
  %v10912 = vpop.f32.mrf.mxu0
  %10913 = vmatprep.mubr.bf16.mxu0 0
  %10914 = vmatmul.mubr.bf16.gmra.mxu0 %v10753
  %v10915 = vpop.f32.mrf.mxu0
  %v10916 = vadd.f32 0.0, %v10915
  %v10917 = vpop.f32.mrf.mxu0
  %v10918 = vpop.f32.mrf.mxu0
  %v10919 = vadd.f32 0.0, %v10918
  %v10920 = vpop.f32.mrf.mxu0
  %10921 = vmatprep.mubr.bf16.mxu0 0
  %10922 = vmatmul.mubr.bf16.gmra.mxu0 %v10756
  %v10923 = vpop.f32.mrf.mxu0
  %v10924 = vadd.f32 0.0, %v10923
  %v10925 = vpop.f32.mrf.mxu0
  %v10926 = vpop.f32.mrf.mxu0
  %v10927 = vadd.f32 0.0, %v10926
  %v10928 = vpop.f32.mrf.mxu0
  %10929 = vmatprep.mubr.bf16.mxu0 0
  %10930 = vmatmul.mubr.bf16.gmra.mxu0 %v10759
  %v10931 = vpop.f32.mrf.mxu0
  %v10932 = vadd.f32 0.0, %v10931
  %v10933 = vpop.f32.mrf.mxu0
  %v10934 = vpop.f32.mrf.mxu0
  %v10935 = vadd.f32 0.0, %v10934
  %v10936 = vpop.f32.mrf.mxu0
  %10937 = vmatprep.mubr.bf16.mxu0 0
  %10938 = vmatmul.mubr.bf16.gmra.mxu0 %v10762
  %v10939 = vpop.f32.mrf.mxu0
  %v10940 = vadd.f32 0.0, %v10939
  %v10941 = vpop.f32.mrf.mxu0
  %v10942 = vpop.f32.mrf.mxu0
  %v10943 = vadd.f32 0.0, %v10942
  %v10944 = vpop.f32.mrf.mxu0
  %10945 = vmatprep.mubr.bf16.mxu0 0
  %10946 = vmatmul.mubr.bf16.gmra.mxu0 %v10765
  %v10947 = vpop.f32.mrf.mxu0
  %v10948 = vadd.f32 0.0, %v10947
  %v10949 = vpop.f32.mrf.mxu0
  %v10950 = vpop.f32.mrf.mxu0
  %v10951 = vadd.f32 0.0, %v10950
  %v10952 = vpop.f32.mrf.mxu0
  %10953 = vmatprep.mubr.bf16.mxu0 0
  %10954 = vmatmul.mubr.bf16.gmra.mxu0 %v10768
  %v10955 = vpop.f32.mrf.mxu0
  %v10956 = vadd.f32 0.0, %v10955
  %v10957 = vpop.f32.mrf.mxu0
  %v10958 = vpop.f32.mrf.mxu0
  %v10959 = vadd.f32 0.0, %v10958
  %v10960 = vpop.f32.mrf.mxu0
  %10961 = vmatprep.mubr.bf16.mxu0 0
  %10962 = vmatmul.mubr.bf16.gmra.mxu0 %v10771
  %v10963 = vpop.f32.mrf.mxu0
  %v10964 = vadd.f32 0.0, %v10963
  %v10965 = vpop.f32.mrf.mxu0
  %v10966 = vpop.f32.mrf.mxu0
  %v10967 = vadd.f32 0.0, %v10966
  %v10968 = vpop.f32.mrf.mxu0
  %10969 = vmatprep.mubr.bf16.mxu0 0
  %10970 = vmatmul.mubr.bf16.gmra.mxu0 %v10774
  %v10971 = vpop.f32.mrf.mxu0
  %v10972 = vadd.f32 0.0, %v10971
  %v10973 = vpop.f32.mrf.mxu0
  %v10974 = vpop.f32.mrf.mxu0
  %v10975 = vadd.f32 0.0, %v10974
  %v10976 = vpop.f32.mrf.mxu0
  %10977 = vmatprep.mubr.bf16.mxu0 0
  %10978 = vmatmul.mubr.bf16.gmra.mxu0 %v10777
  %v10979 = vpop.f32.mrf.mxu0
  %v10980 = vadd.f32 0.0, %v10979
  %v10981 = vpop.f32.mrf.mxu0
  %v10982 = vpop.f32.mrf.mxu0
  %v10983 = vadd.f32 0.0, %v10982
  %v10984 = vpop.f32.mrf.mxu0
  %10985 = vmatprep.mubr.bf16.mxu0 0
  %10986 = vmatmul.mubr.bf16.gmra.mxu0 %v10780
  %v10987 = vpop.f32.mrf.mxu0
  %v10988 = vadd.f32 0.0, %v10987
  %v10989 = vpop.f32.mrf.mxu0
  %v10990 = vpop.f32.mrf.mxu0
  %v10991 = vadd.f32 0.0, %v10990
  %v10992 = vpop.f32.mrf.mxu0
  %10993 = vmatprep.mubr.bf16.mxu0 0
  %10994 = vmatmul.mubr.bf16.gmra.mxu0 %v10783
  %v10995 = vpop.f32.mrf.mxu0
  %v10996 = vadd.f32 0.0, %v10995
  %v10997 = vpop.f32.mrf.mxu0
  %v10998 = vpop.f32.mrf.mxu0
  %v10999 = vadd.f32 0.0, %v10998
  %v11000 = vpop.f32.mrf.mxu0
  %11001 = vmatprep.mubr.bf16.mxu0 0
  %11002 = vmatmul.mubr.bf16.gmra.mxu0 %v10786
  %v11003 = vpop.f32.mrf.mxu0
  %v11004 = vadd.f32 0.0, %v11003
  %v11005 = vpop.f32.mrf.mxu0
  %v11006 = vpop.f32.mrf.mxu0
  %v11007 = vadd.f32 0.0, %v11006
  %v11008 = vpop.f32.mrf.mxu0
  %11009 = vmatprep.mubr.bf16.mxu0 0
  %11010 = vmatmul.mubr.bf16.gmra.mxu0 %v10789
  %v11011 = vpop.f32.mrf.mxu0
  %v11012 = vadd.f32 0.0, %v11011
  %v11013 = vpop.f32.mrf.mxu0
  %v11014 = vpop.f32.mrf.mxu0
  %v11015 = vadd.f32 0.0, %v11014
  %v11016 = vpop.f32.mrf.mxu0
  %11017 = vmatprep.mubr.bf16.mxu0 0
  %11018 = vmatmul.mubr.bf16.gmra.mxu0 %v10792
  %v11019 = vpop.f32.mrf.mxu0
  %v11020 = vadd.f32 0.0, %v11019
  %v11021 = vpop.f32.mrf.mxu0
  %v11022 = vpop.f32.mrf.mxu0
  %v11023 = vadd.f32 0.0, %v11022
  %v11024 = vpop.f32.mrf.mxu0
  %11025 = vmatprep.mubr.bf16.mxu0 0
  %11026 = vmatmul.mubr.bf16.gmra.mxu0 %v10795
  %v11027 = vpop.f32.mrf.mxu0
  %v11028 = vadd.f32 0.0, %v11027
  %v11029 = vpop.f32.mrf.mxu0
  %v11030 = vpop.f32.mrf.mxu0
  %v11031 = vadd.f32 0.0, %v11030
  %v11032 = vpop.f32.mrf.mxu0
  %11033 = vmatprep.mubr.bf16.mxu0 0
  %11034 = vmatmul.mubr.bf16.gmra.mxu0 %v10798
  %v11035 = vpop.f32.mrf.mxu0
  %v11036 = vadd.f32 0.0, %v11035
  %v11037 = vpop.f32.mrf.mxu0
  %v11038 = vpop.f32.mrf.mxu0
  %v11039 = vadd.f32 0.0, %v11038
  %v11040 = vpop.f32.mrf.mxu0
  %11041 = vmatprep.mubr.bf16.mxu0 0
  %11042 = vmatmul.mubr.bf16.gmra.mxu0 %v10801
  %v11043 = vpop.f32.mrf.mxu0
  %v11044 = vadd.f32 0.0, %v11043
  %v11045 = vpop.f32.mrf.mxu0
  %v11046 = vpop.f32.mrf.mxu0
  %v11047 = vadd.f32 0.0, %v11046
  %v11048 = vpop.f32.mrf.mxu0
  %11049 = vmatprep.mubr.bf16.mxu0 0
  %11050 = vmatmul.mubr.bf16.gmra.mxu0 %v10804
  %v11051 = vpop.f32.mrf.mxu0
  %v11052 = vadd.f32 0.0, %v11051
  %v11053 = vpop.f32.mrf.mxu0
  %v11054 = vpop.f32.mrf.mxu0
  %v11055 = vadd.f32 0.0, %v11054
  %v11056 = vpop.f32.mrf.mxu0
  %11057 = vmatprep.mubr.bf16.mxu0 0
  %11058 = vmatmul.mubr.bf16.gmra.mxu0 %v10807
  %v11059 = vpop.f32.mrf.mxu0
  %v11060 = vadd.f32 0.0, %v11059
  %v11061 = vpop.f32.mrf.mxu0
  %v11062 = vpop.f32.mrf.mxu0
  %v11063 = vadd.f32 0.0, %v11062
  %v11064 = vpop.f32.mrf.mxu0
  %11065 = vmatprep.mubr.bf16.mxu0 0
  %11066 = vmatmul.mubr.bf16.gmra.mxu0 %v10810
  %v11067 = vpop.f32.mrf.mxu0
  %v11068 = vadd.f32 0.0, %v11067
  %v11069 = vpop.f32.mrf.mxu0
  %v11070 = vpop.f32.mrf.mxu0
  %v11071 = vadd.f32 0.0, %v11070
  %v11072 = vpop.f32.mrf.mxu0
  %11073 = vmatprep.mubr.bf16.mxu0 0
  %11074 = vmatmul.mubr.bf16.gmra.mxu0 %v10813
  %v11075 = vpop.f32.mrf.mxu0
  %v11076 = vadd.f32 0.0, %v11075
  %v11077 = vpop.f32.mrf.mxu0
  %v11078 = vpop.f32.mrf.mxu0
  %v11079 = vadd.f32 0.0, %v11078
  %v11080 = vpop.f32.mrf.mxu0
  %11081 = vmatprep.mubr.bf16.mxu0 0
  %11082 = vmatmul.mubr.bf16.gmra.mxu0 %v10816
  %v11083 = vpop.f32.mrf.mxu0
  %v11084 = vadd.f32 0.0, %v11083
  %v11085 = vpop.f32.mrf.mxu0
  %v11086 = vpop.f32.mrf.mxu0
  %v11087 = vadd.f32 0.0, %v11086
  %v11088 = vpop.f32.mrf.mxu0
  %11089 = vmatprep.mubr.bf16.mxu0 0
  %11090 = vmatmul.mubr.bf16.gmra.mxu0 %v10819
  %v11091 = vpop.f32.mrf.mxu0
  %v11092 = vadd.f32 0.0, %v11091
  %v11093 = vpop.f32.mrf.mxu0
  %v11094 = vpop.f32.mrf.mxu0
  %v11095 = vadd.f32 0.0, %v11094
  %v11096 = vpop.f32.mrf.mxu0
  %11097 = vmatprep.mubr.bf16.mxu0 0
  %11098 = vmatmul.mubr.bf16.gmra.mxu0 %v10822
  %v11099 = vpop.f32.mrf.mxu0
  %v11100 = vadd.f32 0.0, %v11099
  %v11101 = vpop.f32.mrf.mxu0
  %v11102 = vpop.f32.mrf.mxu0
  %v11103 = vadd.f32 0.0, %v11102
  %v11104 = vpop.f32.mrf.mxu0
  %11105 = vmatprep.mubr.bf16.mxu0 0
  %11106 = vmatmul.mubr.bf16.gmra.mxu0 %v10825
  %v11107 = vpop.f32.mrf.mxu0
  %v11108 = vadd.f32 0.0, %v11107
  %v11109 = vpop.f32.mrf.mxu0
  %v11110 = vpop.f32.mrf.mxu0
  %v11111 = vadd.f32 0.0, %v11110
  %v11112 = vpop.f32.mrf.mxu0
  %11113 = vmatprep.mubr.bf16.mxu0 0
  %11114 = vmatmul.mubr.bf16.gmra.mxu0 %v10828
  %v11115 = vpop.f32.mrf.mxu0
  %v11116 = vadd.f32 0.0, %v11115
  %v11117 = vpop.f32.mrf.mxu0
  %v11118 = vpop.f32.mrf.mxu0
  %v11119 = vadd.f32 0.0, %v11118
  %v11120 = vpop.f32.mrf.mxu0
  %11121 = vdwg.mxu0
  %v11122 = vsel %vm27, %v10868, 0.0
  %v11123 = vsel %vm27, %v10871, 0.0
  %v11124 = vadd.f32 %v11122, %v11123
  %v11125 = vsel %vm27, %v10876, 0.0
  %v11126 = vadd.f32 %v11124, %v11125
  %v11127 = vsel %vm27, %v10879, 0.0
  %v11128 = vadd.f32 %v11126, %v11127
  %v11129 = vsel %vm27, %v10884, 0.0
  %v11130 = vadd.f32 %v11128, %v11129
  %v11131 = vsel %vm27, %v10887, 0.0
  %v11132 = vadd.f32 %v11130, %v11131
  %v11133 = vsel %vm27, %v10892, 0.0
  %v11134 = vadd.f32 %v11132, %v11133
  %v11135 = vsel %vm27, %v10895, 0.0
  %v11136 = vadd.f32 %v11134, %v11135
  %v11137 = vsel %vm27, %v10900, 0.0
  %v11138 = vadd.f32 %v11136, %v11137
  %v11139 = vsel %vm27, %v10903, 0.0
  %v11140 = vadd.f32 %v11138, %v11139
  %v11141 = vsel %vm27, %v10908, 0.0
  %v11142 = vadd.f32 %v11140, %v11141
  %v11143 = vsel %vm27, %v10911, 0.0
  %v11144 = vadd.f32 %v11142, %v11143
  %v11145 = vsel %vm27, %v10916, 0.0
  %v11146 = vadd.f32 %v11144, %v11145
  %v11147 = vsel %vm27, %v10919, 0.0
  %v11148 = vadd.f32 %v11146, %v11147
  %v11149 = vsel %vm27, %v10924, 0.0
  %v11150 = vadd.f32 %v11148, %v11149
  %v11151 = vsel %vm27, %v10927, 0.0
  %v11152 = vadd.f32 %v11150, %v11151
  %v11153 = vsel %vm27, %v10932, 0.0
  %v11154 = vadd.f32 %v11152, %v11153
  %v11155 = vsel %vm27, %v10935, 0.0
  %v11156 = vadd.f32 %v11154, %v11155
  %v11157 = vsel %vm27, %v10940, 0.0
  %v11158 = vadd.f32 %v11156, %v11157
  %v11159 = vsel %vm27, %v10943, 0.0
  %v11160 = vadd.f32 %v11158, %v11159
  %v11161 = vsel %vm27, %v10948, 0.0
  %v11162 = vadd.f32 %v11160, %v11161
  %v11163 = vsel %vm27, %v10951, 0.0
  %v11164 = vadd.f32 %v11162, %v11163
  %v11165 = vsel %vm27, %v10956, 0.0
  %v11166 = vadd.f32 %v11164, %v11165
  %v11167 = vsel %vm27, %v10959, 0.0
  %v11168 = vadd.f32 %v11166, %v11167
  %v11169 = vsel %vm27, %v10964, 0.0
  %v11170 = vadd.f32 %v11168, %v11169
  %v11171 = vsel %vm27, %v10967, 0.0
  %v11172 = vadd.f32 %v11170, %v11171
  %v11173 = vsel %vm27, %v10972, 0.0
  %v11174 = vadd.f32 %v11172, %v11173
  %v11175 = vsel %vm27, %v10975, 0.0
  %v11176 = vadd.f32 %v11174, %v11175
  %v11177 = vsel %vm27, %v10980, 0.0
  %v11178 = vadd.f32 %v11176, %v11177
  %v11179 = vsel %vm27, %v10983, 0.0
  %v11180 = vadd.f32 %v11178, %v11179
  %v11181 = vsel %vm27, %v10988, 0.0
  %v11182 = vadd.f32 %v11180, %v11181
  %v11183 = vsel %vm27, %v10991, 0.0
  %v11184 = vadd.f32 %v11182, %v11183
  %v11185 = vsel %vm27, %v10996, 0.0
  %v11186 = vadd.f32 %v11184, %v11185
  %v11187 = vsel %vm27, %v10999, 0.0
  %v11188 = vadd.f32 %v11186, %v11187
  %v11189 = vsel %vm27, %v11004, 0.0
  %v11190 = vadd.f32 %v11188, %v11189
  %v11191 = vsel %vm27, %v11007, 0.0
  %v11192 = vadd.f32 %v11190, %v11191
  %v11193 = vsel %vm27, %v11012, 0.0
  %v11194 = vadd.f32 %v11192, %v11193
  %v11195 = vsel %vm27, %v11015, 0.0
  %v11196 = vadd.f32 %v11194, %v11195
  %v11197 = vsel %vm27, %v11020, 0.0
  %v11198 = vadd.f32 %v11196, %v11197
  %v11199 = vsel %vm27, %v11023, 0.0
  %v11200 = vadd.f32 %v11198, %v11199
  %v11201 = vsel %vm27, %v11028, 0.0
  %v11202 = vadd.f32 %v11200, %v11201
  %v11203 = vsel %vm27, %v11031, 0.0
  %v11204 = vadd.f32 %v11202, %v11203
  %v11205 = vsel %vm27, %v11036, 0.0
  %v11206 = vadd.f32 %v11204, %v11205
  %v11207 = vsel %vm27, %v11039, 0.0
  %v11208 = vadd.f32 %v11206, %v11207
  %v11209 = vsel %vm27, %v11044, 0.0
  %v11210 = vadd.f32 %v11208, %v11209
  %v11211 = vsel %vm27, %v11047, 0.0
  %v11212 = vadd.f32 %v11210, %v11211
  %v11213 = vsel %vm27, %v11052, 0.0
  %v11214 = vadd.f32 %v11212, %v11213
  %v11215 = vsel %vm27, %v11055, 0.0
  %v11216 = vadd.f32 %v11214, %v11215
  %v11217 = vsel %vm27, %v11060, 0.0
  %v11218 = vadd.f32 %v11216, %v11217
  %v11219 = vsel %vm27, %v11063, 0.0
  %v11220 = vadd.f32 %v11218, %v11219
  %v11221 = vsel %vm27, %v11068, 0.0
  %v11222 = vadd.f32 %v11220, %v11221
  %v11223 = vsel %vm27, %v11071, 0.0
  %v11224 = vadd.f32 %v11222, %v11223
  %v11225 = vsel %vm27, %v11076, 0.0
  %v11226 = vadd.f32 %v11224, %v11225
  %v11227 = vsel %vm27, %v11079, 0.0
  %v11228 = vadd.f32 %v11226, %v11227
  %v11229 = vsel %vm27, %v11084, 0.0
  %v11230 = vadd.f32 %v11228, %v11229
  %v11231 = vsel %vm27, %v11087, 0.0
  %v11232 = vadd.f32 %v11230, %v11231
  %v11233 = vsel %vm27, %v11092, 0.0
  %v11234 = vadd.f32 %v11232, %v11233
  %v11235 = vsel %vm27, %v11095, 0.0
  %v11236 = vadd.f32 %v11234, %v11235
  %v11237 = vsel %vm27, %v11100, 0.0
  %v11238 = vadd.f32 %v11236, %v11237
  %v11239 = vsel %vm27, %v11103, 0.0
  %v11240 = vadd.f32 %v11238, %v11239
  %v11241 = vsel %vm27, %v11108, 0.0
  %v11242 = vadd.f32 %v11240, %v11241
  %v11243 = vsel %vm27, %v11111, 0.0
  %v11244 = vadd.f32 %v11242, %v11243
  %v11245 = vsel %vm27, %v11116, 0.0
  %v11246 = vadd.f32 %v11244, %v11245
  %v11247 = vsel %vm27, %v11119, 0.0
  %v11248 = vadd.f32 %v11246, %v11247
  %v11249 = vrot.slane %v11248, 4
  %v11250 = vadd.f32 %v11248, %v11249
  %v11251 = vrot.slane %v11250, 2
  %v11252 = vadd.f32 %v11250, %v11251
  %v11253 = vrot.slane %v11252, 1
  %v11254 = vadd.f32 %v11252, %v11253
  %v11255 = vmul.f32 %v11254, 0.001953125
  %v11256 = vmul.f32 %v10868, %v10868
  %v11257 = vmul.f32 %v10871, %v10871
  %v11258 = vmul.f32 %v10876, %v10876
  %v11259 = vmul.f32 %v10879, %v10879
  %v11260 = vmul.f32 %v10884, %v10884
  %v11261 = vmul.f32 %v10887, %v10887
  %v11262 = vmul.f32 %v10892, %v10892
  %v11263 = vmul.f32 %v10895, %v10895
  %v11264 = vmul.f32 %v10900, %v10900
  %v11265 = vmul.f32 %v10903, %v10903
  %v11266 = vmul.f32 %v10908, %v10908
  %v11267 = vmul.f32 %v10911, %v10911
  %v11268 = vmul.f32 %v10916, %v10916
  %v11269 = vmul.f32 %v10919, %v10919
  %v11270 = vmul.f32 %v10924, %v10924
  %v11271 = vmul.f32 %v10927, %v10927
  %v11272 = vmul.f32 %v10932, %v10932
  %v11273 = vmul.f32 %v10935, %v10935
  %v11274 = vmul.f32 %v10940, %v10940
  %v11275 = vmul.f32 %v10943, %v10943
  %v11276 = vmul.f32 %v10948, %v10948
  %v11277 = vmul.f32 %v10951, %v10951
  %v11278 = vmul.f32 %v10956, %v10956
  %v11279 = vmul.f32 %v10959, %v10959
  %v11280 = vmul.f32 %v10964, %v10964
  %v11281 = vmul.f32 %v10967, %v10967
  %v11282 = vmul.f32 %v10972, %v10972
  %v11283 = vmul.f32 %v10975, %v10975
  %v11284 = vmul.f32 %v10980, %v10980
  %v11285 = vmul.f32 %v10983, %v10983
  %v11286 = vmul.f32 %v10988, %v10988
  %v11287 = vmul.f32 %v10991, %v10991
  %v11288 = vmul.f32 %v10996, %v10996
  %v11289 = vmul.f32 %v10999, %v10999
  %v11290 = vmul.f32 %v11004, %v11004
  %v11291 = vmul.f32 %v11007, %v11007
  %v11292 = vmul.f32 %v11012, %v11012
  %v11293 = vmul.f32 %v11015, %v11015
  %v11294 = vmul.f32 %v11020, %v11020
  %v11295 = vmul.f32 %v11023, %v11023
  %v11296 = vmul.f32 %v11028, %v11028
  %v11297 = vmul.f32 %v11031, %v11031
  %v11298 = vmul.f32 %v11036, %v11036
  %v11299 = vmul.f32 %v11039, %v11039
  %v11300 = vmul.f32 %v11044, %v11044
  %v11301 = vmul.f32 %v11047, %v11047
  %v11302 = vmul.f32 %v11052, %v11052
  %v11303 = vmul.f32 %v11055, %v11055
  %v11304 = vmul.f32 %v11060, %v11060
  %v11305 = vmul.f32 %v11063, %v11063
  %v11306 = vmul.f32 %v11068, %v11068
  %v11307 = vmul.f32 %v11071, %v11071
  %v11308 = vmul.f32 %v11076, %v11076
  %v11309 = vmul.f32 %v11079, %v11079
  %v11310 = vmul.f32 %v11084, %v11084
  %v11311 = vmul.f32 %v11087, %v11087
  %v11312 = vmul.f32 %v11092, %v11092
  %v11313 = vmul.f32 %v11095, %v11095
  %v11314 = vmul.f32 %v11100, %v11100
  %v11315 = vmul.f32 %v11103, %v11103
  %v11316 = vmul.f32 %v11108, %v11108
  %v11317 = vmul.f32 %v11111, %v11111
  %v11318 = vmul.f32 %v11116, %v11116
  %v11319 = vmul.f32 %v11119, %v11119
  %v11320 = vsel %vm27, %v11256, 0.0
  %v11321 = vsel %vm27, %v11257, 0.0
  %v11322 = vadd.f32 %v11320, %v11321
  %v11323 = vsel %vm27, %v11258, 0.0
  %v11324 = vadd.f32 %v11322, %v11323
  %v11325 = vsel %vm27, %v11259, 0.0
  %v11326 = vadd.f32 %v11324, %v11325
  %v11327 = vsel %vm27, %v11260, 0.0
  %v11328 = vadd.f32 %v11326, %v11327
  %v11329 = vsel %vm27, %v11261, 0.0
  %v11330 = vadd.f32 %v11328, %v11329
  %v11331 = vsel %vm27, %v11262, 0.0
  %v11332 = vadd.f32 %v11330, %v11331
  %v11333 = vsel %vm27, %v11263, 0.0
  %v11334 = vadd.f32 %v11332, %v11333
  %v11335 = vsel %vm27, %v11264, 0.0
  %v11336 = vadd.f32 %v11334, %v11335
  %v11337 = vsel %vm27, %v11265, 0.0
  %v11338 = vadd.f32 %v11336, %v11337
  %v11339 = vsel %vm27, %v11266, 0.0
  %v11340 = vadd.f32 %v11338, %v11339
  %v11341 = vsel %vm27, %v11267, 0.0
  %v11342 = vadd.f32 %v11340, %v11341
  %v11343 = vsel %vm27, %v11268, 0.0
  %v11344 = vadd.f32 %v11342, %v11343
  %v11345 = vsel %vm27, %v11269, 0.0
  %v11346 = vadd.f32 %v11344, %v11345
  %v11347 = vsel %vm27, %v11270, 0.0
  %v11348 = vadd.f32 %v11346, %v11347
  %v11349 = vsel %vm27, %v11271, 0.0
  %v11350 = vadd.f32 %v11348, %v11349
  %v11351 = vsel %vm27, %v11272, 0.0
  %v11352 = vadd.f32 %v11350, %v11351
  %v11353 = vsel %vm27, %v11273, 0.0
  %v11354 = vadd.f32 %v11352, %v11353
  %v11355 = vsel %vm27, %v11274, 0.0
  %v11356 = vadd.f32 %v11354, %v11355
  %v11357 = vsel %vm27, %v11275, 0.0
  %v11358 = vadd.f32 %v11356, %v11357
  %v11359 = vsel %vm27, %v11276, 0.0
  %v11360 = vadd.f32 %v11358, %v11359
  %v11361 = vsel %vm27, %v11277, 0.0
  %v11362 = vadd.f32 %v11360, %v11361
  %v11363 = vsel %vm27, %v11278, 0.0
  %v11364 = vadd.f32 %v11362, %v11363
  %v11365 = vsel %vm27, %v11279, 0.0
  %v11366 = vadd.f32 %v11364, %v11365
  %v11367 = vsel %vm27, %v11280, 0.0
  %v11368 = vadd.f32 %v11366, %v11367
  %v11369 = vsel %vm27, %v11281, 0.0
  %v11370 = vadd.f32 %v11368, %v11369
  %v11371 = vsel %vm27, %v11282, 0.0
  %v11372 = vadd.f32 %v11370, %v11371
  %v11373 = vsel %vm27, %v11283, 0.0
  %v11374 = vadd.f32 %v11372, %v11373
  %v11375 = vsel %vm27, %v11284, 0.0
  %v11376 = vadd.f32 %v11374, %v11375
  %v11377 = vsel %vm27, %v11285, 0.0
  %v11378 = vadd.f32 %v11376, %v11377
  %v11379 = vsel %vm27, %v11286, 0.0
  %v11380 = vadd.f32 %v11378, %v11379
  %v11381 = vsel %vm27, %v11287, 0.0
  %v11382 = vadd.f32 %v11380, %v11381
  %v11383 = vsel %vm27, %v11288, 0.0
  %v11384 = vadd.f32 %v11382, %v11383
  %v11385 = vsel %vm27, %v11289, 0.0
  %v11386 = vadd.f32 %v11384, %v11385
  %v11387 = vsel %vm27, %v11290, 0.0
  %v11388 = vadd.f32 %v11386, %v11387
  %v11389 = vsel %vm27, %v11291, 0.0
  %v11390 = vadd.f32 %v11388, %v11389
  %v11391 = vsel %vm27, %v11292, 0.0
  %v11392 = vadd.f32 %v11390, %v11391
  %v11393 = vsel %vm27, %v11293, 0.0
  %v11394 = vadd.f32 %v11392, %v11393
  %v11395 = vsel %vm27, %v11294, 0.0
  %v11396 = vadd.f32 %v11394, %v11395
  %v11397 = vsel %vm27, %v11295, 0.0
  %v11398 = vadd.f32 %v11396, %v11397
  %v11399 = vsel %vm27, %v11296, 0.0
  %v11400 = vadd.f32 %v11398, %v11399
  %v11401 = vsel %vm27, %v11297, 0.0
  %v11402 = vadd.f32 %v11400, %v11401
  %v11403 = vsel %vm27, %v11298, 0.0
  %v11404 = vadd.f32 %v11402, %v11403
  %v11405 = vsel %vm27, %v11299, 0.0
  %v11406 = vadd.f32 %v11404, %v11405
  %v11407 = vsel %vm27, %v11300, 0.0
  %v11408 = vadd.f32 %v11406, %v11407
  %v11409 = vsel %vm27, %v11301, 0.0
  %v11410 = vadd.f32 %v11408, %v11409
  %v11411 = vsel %vm27, %v11302, 0.0
  %v11412 = vadd.f32 %v11410, %v11411
  %v11413 = vsel %vm27, %v11303, 0.0
  %v11414 = vadd.f32 %v11412, %v11413
  %v11415 = vsel %vm27, %v11304, 0.0
  %v11416 = vadd.f32 %v11414, %v11415
  %v11417 = vsel %vm27, %v11305, 0.0
  %v11418 = vadd.f32 %v11416, %v11417
  %v11419 = vsel %vm27, %v11306, 0.0
  %v11420 = vadd.f32 %v11418, %v11419
  %v11421 = vsel %vm27, %v11307, 0.0
  %v11422 = vadd.f32 %v11420, %v11421
  %v11423 = vsel %vm27, %v11308, 0.0
  %v11424 = vadd.f32 %v11422, %v11423
  %v11425 = vsel %vm27, %v11309, 0.0
  %v11426 = vadd.f32 %v11424, %v11425
  %v11427 = vsel %vm27, %v11310, 0.0
  %v11428 = vadd.f32 %v11426, %v11427
  %v11429 = vsel %vm27, %v11311, 0.0
  %v11430 = vadd.f32 %v11428, %v11429
  %v11431 = vsel %vm27, %v11312, 0.0
  %v11432 = vadd.f32 %v11430, %v11431
  %v11433 = vsel %vm27, %v11313, 0.0
  %v11434 = vadd.f32 %v11432, %v11433
  %v11435 = vsel %vm27, %v11314, 0.0
  %v11436 = vadd.f32 %v11434, %v11435
  %v11437 = vsel %vm27, %v11315, 0.0
  %v11438 = vadd.f32 %v11436, %v11437
  %v11439 = vsel %vm27, %v11316, 0.0
  %v11440 = vadd.f32 %v11438, %v11439
  %v11441 = vsel %vm27, %v11317, 0.0
  %v11442 = vadd.f32 %v11440, %v11441
  %v11443 = vsel %vm27, %v11318, 0.0
  %v11444 = vadd.f32 %v11442, %v11443
  %v11445 = vsel %vm27, %v11319, 0.0
  %v11446 = vadd.f32 %v11444, %v11445
  %v11447 = vrot.slane %v11446, 4
  %v11448 = vadd.f32 %v11446, %v11447
  %v11449 = vrot.slane %v11448, 2
  %v11450 = vadd.f32 %v11448, %v11449
  %v11451 = vrot.slane %v11450, 1
  %v11452 = vadd.f32 %v11450, %v11451
  %v11453 = vmul.f32 %v11452, 0.001953125
  %v11454 = vmul.f32 %v11255, %v11255
  %v11455 = vsub.f32 %v11453, %v11454
  %v11456 = vmax.f32 %v11455, 0.0
  %v11457 = vld [vmem:[%s5] sm:$0x1]
  %v11458 = vadd.f32 %v11456, 1e-05
  %v11459 = vrsqrt.pop %v11458
  %v11460 = vmul.f32 %v11457, %v11459
  %v11461 = vld [vmem:[%s6] sm:$0x1]
  %v11462 = vmul.f32 %v11255, %v11460
  %v11463 = vsub.f32 %v11461, %v11462
  %v11465 = vlaneseq
  %v11466 = vshrl.u32 %v11465, 7
  %v11467 = vsub.s32 0, %v11466
  %v11468 = vrot.slane %v11460, %v11467
  %v11470 = vmul.f32 %v10868, %v11468
  %v11471 = vmul.f32 %v10871, %v11468
  %v11472 = vmul.f32 %v10876, %v11468
  %v11473 = vmul.f32 %v10879, %v11468
  %v11474 = vmul.f32 %v10884, %v11468
  %v11475 = vmul.f32 %v10887, %v11468
  %v11476 = vmul.f32 %v10892, %v11468
  %v11477 = vmul.f32 %v10895, %v11468
  %v11478 = vmul.f32 %v10900, %v11468
  %v11479 = vmul.f32 %v10903, %v11468
  %v11480 = vmul.f32 %v10908, %v11468
  %v11481 = vmul.f32 %v10911, %v11468
  %v11482 = vmul.f32 %v10916, %v11468
  %v11483 = vmul.f32 %v10919, %v11468
  %v11484 = vmul.f32 %v10924, %v11468
  %v11485 = vmul.f32 %v10927, %v11468
  %v11486 = vmul.f32 %v10932, %v11468
  %v11487 = vmul.f32 %v10935, %v11468
  %v11488 = vmul.f32 %v10940, %v11468
  %v11489 = vmul.f32 %v10943, %v11468
  %v11490 = vmul.f32 %v10948, %v11468
  %v11491 = vmul.f32 %v10951, %v11468
  %v11492 = vmul.f32 %v10956, %v11468
  %v11493 = vmul.f32 %v10959, %v11468
  %v11494 = vmul.f32 %v10964, %v11468
  %v11495 = vmul.f32 %v10967, %v11468
  %v11496 = vmul.f32 %v10972, %v11468
  %v11497 = vmul.f32 %v10975, %v11468
  %v11498 = vmul.f32 %v10980, %v11468
  %v11499 = vmul.f32 %v10983, %v11468
  %v11500 = vmul.f32 %v10988, %v11468
  %v11501 = vmul.f32 %v10991, %v11468
  %v11502 = vmul.f32 %v10996, %v11468
  %v11503 = vmul.f32 %v10999, %v11468
  %v11504 = vmul.f32 %v11004, %v11468
  %v11505 = vmul.f32 %v11007, %v11468
  %v11506 = vmul.f32 %v11012, %v11468
  %v11507 = vmul.f32 %v11015, %v11468
  %v11508 = vmul.f32 %v11020, %v11468
  %v11509 = vmul.f32 %v11023, %v11468
  %v11510 = vmul.f32 %v11028, %v11468
  %v11511 = vmul.f32 %v11031, %v11468
  %v11512 = vmul.f32 %v11036, %v11468
  %v11513 = vmul.f32 %v11039, %v11468
  %v11514 = vmul.f32 %v11044, %v11468
  %v11515 = vmul.f32 %v11047, %v11468
  %v11516 = vmul.f32 %v11052, %v11468
  %v11517 = vmul.f32 %v11055, %v11468
  %v11518 = vmul.f32 %v11060, %v11468
  %v11519 = vmul.f32 %v11063, %v11468
  %v11520 = vmul.f32 %v11068, %v11468
  %v11521 = vmul.f32 %v11071, %v11468
  %v11522 = vmul.f32 %v11076, %v11468
  %v11523 = vmul.f32 %v11079, %v11468
  %v11524 = vmul.f32 %v11084, %v11468
  %v11525 = vmul.f32 %v11087, %v11468
  %v11526 = vmul.f32 %v11092, %v11468
  %v11527 = vmul.f32 %v11095, %v11468
  %v11528 = vmul.f32 %v11100, %v11468
  %v11529 = vmul.f32 %v11103, %v11468
  %v11530 = vmul.f32 %v11108, %v11468
  %v11531 = vmul.f32 %v11111, %v11468
  %v11532 = vmul.f32 %v11116, %v11468
  %v11533 = vmul.f32 %v11119, %v11468
  %v11535 = vlaneseq
  %v11536 = vshrl.u32 %v11535, 7
  %v11537 = vsub.s32 0, %v11536
  %v11538 = vrot.slane %v11463, %v11537
  %v11540 = vadd.f32 %v11470, %v11538
  %v11541 = vadd.f32 %v11471, %v11538
  %v11542 = vadd.f32 %v11472, %v11538
  %v11543 = vadd.f32 %v11473, %v11538
  %v11544 = vadd.f32 %v11474, %v11538
  %v11545 = vadd.f32 %v11475, %v11538
  %v11546 = vadd.f32 %v11476, %v11538
  %v11547 = vadd.f32 %v11477, %v11538
  %v11548 = vadd.f32 %v11478, %v11538
  %v11549 = vadd.f32 %v11479, %v11538
  %v11550 = vadd.f32 %v11480, %v11538
  %v11551 = vadd.f32 %v11481, %v11538
  %v11552 = vadd.f32 %v11482, %v11538
  %v11553 = vadd.f32 %v11483, %v11538
  %v11554 = vadd.f32 %v11484, %v11538
  %v11555 = vadd.f32 %v11485, %v11538
  %v11556 = vadd.f32 %v11486, %v11538
  %v11557 = vadd.f32 %v11487, %v11538
  %v11558 = vadd.f32 %v11488, %v11538
  %v11559 = vadd.f32 %v11489, %v11538
  %v11560 = vadd.f32 %v11490, %v11538
  %v11561 = vadd.f32 %v11491, %v11538
  %v11562 = vadd.f32 %v11492, %v11538
  %v11563 = vadd.f32 %v11493, %v11538
  %v11564 = vadd.f32 %v11494, %v11538
  %v11565 = vadd.f32 %v11495, %v11538
  %v11566 = vadd.f32 %v11496, %v11538
  %v11567 = vadd.f32 %v11497, %v11538
  %v11568 = vadd.f32 %v11498, %v11538
  %v11569 = vadd.f32 %v11499, %v11538
  %v11570 = vadd.f32 %v11500, %v11538
  %v11571 = vadd.f32 %v11501, %v11538
  %v11572 = vadd.f32 %v11502, %v11538
  %v11573 = vadd.f32 %v11503, %v11538
  %v11574 = vadd.f32 %v11504, %v11538
  %v11575 = vadd.f32 %v11505, %v11538
  %v11576 = vadd.f32 %v11506, %v11538
  %v11577 = vadd.f32 %v11507, %v11538
  %v11578 = vadd.f32 %v11508, %v11538
  %v11579 = vadd.f32 %v11509, %v11538
  %v11580 = vadd.f32 %v11510, %v11538
  %v11581 = vadd.f32 %v11511, %v11538
  %v11582 = vadd.f32 %v11512, %v11538
  %v11583 = vadd.f32 %v11513, %v11538
  %v11584 = vadd.f32 %v11514, %v11538
  %v11585 = vadd.f32 %v11515, %v11538
  %v11586 = vadd.f32 %v11516, %v11538
  %v11587 = vadd.f32 %v11517, %v11538
  %v11588 = vadd.f32 %v11518, %v11538
  %v11589 = vadd.f32 %v11519, %v11538
  %v11590 = vadd.f32 %v11520, %v11538
  %v11591 = vadd.f32 %v11521, %v11538
  %v11592 = vadd.f32 %v11522, %v11538
  %v11593 = vadd.f32 %v11523, %v11538
  %v11594 = vadd.f32 %v11524, %v11538
  %v11595 = vadd.f32 %v11525, %v11538
  %v11596 = vadd.f32 %v11526, %v11538
  %v11597 = vadd.f32 %v11527, %v11538
  %v11598 = vadd.f32 %v11528, %v11538
  %v11599 = vadd.f32 %v11529, %v11538
  %v11600 = vadd.f32 %v11530, %v11538
  %v11601 = vadd.f32 %v11531, %v11538
  %v11602 = vadd.f32 %v11532, %v11538
  %v11603 = vadd.f32 %v11533, %v11538
  %v11604 = vld [vmem:[%s0] sm:$0xff]
  %v11605 = vld [vmem:[%s0 + $0x8] sm:$0xff]
  %v11606 = vld [vmem:[%s0 + $0x10] sm:$0xff]
  %v11607 = vld [vmem:[%s0 + $0x18] sm:$0xff]
  %v11608 = vld [vmem:[%s0 + $0x20] sm:$0xff]
  %v11609 = vld [vmem:[%s0 + $0x28] sm:$0xff]
  %v11610 = vld [vmem:[%s0 + $0x30] sm:$0xff]
  %v11611 = vld [vmem:[%s0 + $0x38] sm:$0xff]
  %v11612 = vld [vmem:[%s0 + $0x40] sm:$0xff]
  %v11613 = vld [vmem:[%s0 + $0x48] sm:$0xff]
  %v11614 = vld [vmem:[%s0 + $0x50] sm:$0xff]
  %v11615 = vld [vmem:[%s0 + $0x58] sm:$0xff]
  %v11616 = vld [vmem:[%s0 + $0x60] sm:$0xff]
  %v11617 = vld [vmem:[%s0 + $0x68] sm:$0xff]
  %v11618 = vld [vmem:[%s0 + $0x70] sm:$0xff]
  %v11619 = vld [vmem:[%s0 + $0x78] sm:$0xff]
  %v11620 = vld [vmem:[%s0 + $0x80] sm:$0xff]
  %v11621 = vld [vmem:[%s0 + $0x88] sm:$0xff]
  %v11622 = vld [vmem:[%s0 + $0x90] sm:$0xff]
  %v11623 = vld [vmem:[%s0 + $0x98] sm:$0xff]
  %v11624 = vld [vmem:[%s0 + $0xa0] sm:$0xff]
  %v11625 = vld [vmem:[%s0 + $0xa8] sm:$0xff]
  %v11626 = vld [vmem:[%s0 + $0xb0] sm:$0xff]
  %v11627 = vld [vmem:[%s0 + $0xb8] sm:$0xff]
  %v11628 = vld [vmem:[%s0 + $0xc0] sm:$0xff]
  %v11629 = vld [vmem:[%s0 + $0xc8] sm:$0xff]
  %v11630 = vld [vmem:[%s0 + $0xd0] sm:$0xff]
  %v11631 = vld [vmem:[%s0 + $0xd8] sm:$0xff]
  %v11632 = vld [vmem:[%s0 + $0xe0] sm:$0xff]
  %v11633 = vld [vmem:[%s0 + $0xe8] sm:$0xff]
  %v11634 = vld [vmem:[%s0 + $0xf0] sm:$0xff]
  %v11635 = vld [vmem:[%s0 + $0xf8] sm:$0xff]
  %v11636 = vld [vmem:[%s0 + $0x100] sm:$0xff]
  %v11637 = vld [vmem:[%s0 + $0x108] sm:$0xff]
  %v11638 = vld [vmem:[%s0 + $0x110] sm:$0xff]
  %v11639 = vld [vmem:[%s0 + $0x118] sm:$0xff]
  %v11640 = vld [vmem:[%s0 + $0x120] sm:$0xff]
  %v11641 = vld [vmem:[%s0 + $0x128] sm:$0xff]
  %v11642 = vld [vmem:[%s0 + $0x130] sm:$0xff]
  %v11643 = vld [vmem:[%s0 + $0x138] sm:$0xff]
  %v11644 = vld [vmem:[%s0 + $0x140] sm:$0xff]
  %v11645 = vld [vmem:[%s0 + $0x148] sm:$0xff]
  %v11646 = vld [vmem:[%s0 + $0x150] sm:$0xff]
  %v11647 = vld [vmem:[%s0 + $0x158] sm:$0xff]
  %v11648 = vld [vmem:[%s0 + $0x160] sm:$0xff]
  %v11649 = vld [vmem:[%s0 + $0x168] sm:$0xff]
  %v11650 = vld [vmem:[%s0 + $0x170] sm:$0xff]
  %v11651 = vld [vmem:[%s0 + $0x178] sm:$0xff]
  %v11652 = vld [vmem:[%s0 + $0x180] sm:$0xff]
  %v11653 = vld [vmem:[%s0 + $0x188] sm:$0xff]
  %v11654 = vld [vmem:[%s0 + $0x190] sm:$0xff]
  %v11655 = vld [vmem:[%s0 + $0x198] sm:$0xff]
  %v11656 = vld [vmem:[%s0 + $0x1a0] sm:$0xff]
  %v11657 = vld [vmem:[%s0 + $0x1a8] sm:$0xff]
  %v11658 = vld [vmem:[%s0 + $0x1b0] sm:$0xff]
  %v11659 = vld [vmem:[%s0 + $0x1b8] sm:$0xff]
  %v11660 = vld [vmem:[%s0 + $0x1c0] sm:$0xff]
  %v11661 = vld [vmem:[%s0 + $0x1c8] sm:$0xff]
  %v11662 = vld [vmem:[%s0 + $0x1d0] sm:$0xff]
  %v11663 = vld [vmem:[%s0 + $0x1d8] sm:$0xff]
  %v11664 = vld [vmem:[%s0 + $0x1e0] sm:$0xff]
  %v11665 = vld [vmem:[%s0 + $0x1e8] sm:$0xff]
  %v11666 = vld [vmem:[%s0 + $0x1f0] sm:$0xff]
  %v11667 = vld [vmem:[%s0 + $0x1f8] sm:$0xff]
  %v11668 = vadd.f32 %v11540, %v11604
  %v11669 = vadd.f32 %v11541, %v11605
  %v11670 = vadd.f32 %v11542, %v11606
  %v11671 = vadd.f32 %v11543, %v11607
  %v11672 = vadd.f32 %v11544, %v11608
  %v11673 = vadd.f32 %v11545, %v11609
  %v11674 = vadd.f32 %v11546, %v11610
  %v11675 = vadd.f32 %v11547, %v11611
  %v11676 = vadd.f32 %v11548, %v11612
  %v11677 = vadd.f32 %v11549, %v11613
  %v11678 = vadd.f32 %v11550, %v11614
  %v11679 = vadd.f32 %v11551, %v11615
  %v11680 = vadd.f32 %v11552, %v11616
  %v11681 = vadd.f32 %v11553, %v11617
  %v11682 = vadd.f32 %v11554, %v11618
  %v11683 = vadd.f32 %v11555, %v11619
  %v11684 = vadd.f32 %v11556, %v11620
  %v11685 = vadd.f32 %v11557, %v11621
  %v11686 = vadd.f32 %v11558, %v11622
  %v11687 = vadd.f32 %v11559, %v11623
  %v11688 = vadd.f32 %v11560, %v11624
  %v11689 = vadd.f32 %v11561, %v11625
  %v11690 = vadd.f32 %v11562, %v11626
  %v11691 = vadd.f32 %v11563, %v11627
  %v11692 = vadd.f32 %v11564, %v11628
  %v11693 = vadd.f32 %v11565, %v11629
  %v11694 = vadd.f32 %v11566, %v11630
  %v11695 = vadd.f32 %v11567, %v11631
  %v11696 = vadd.f32 %v11568, %v11632
  %v11697 = vadd.f32 %v11569, %v11633
  %v11698 = vadd.f32 %v11570, %v11634
  %v11699 = vadd.f32 %v11571, %v11635
  %v11700 = vadd.f32 %v11572, %v11636
  %v11701 = vadd.f32 %v11573, %v11637
  %v11702 = vadd.f32 %v11574, %v11638
  %v11703 = vadd.f32 %v11575, %v11639
  %v11704 = vadd.f32 %v11576, %v11640
  %v11705 = vadd.f32 %v11577, %v11641
  %v11706 = vadd.f32 %v11578, %v11642
  %v11707 = vadd.f32 %v11579, %v11643
  %v11708 = vadd.f32 %v11580, %v11644
  %v11709 = vadd.f32 %v11581, %v11645
  %v11710 = vadd.f32 %v11582, %v11646
  %v11711 = vadd.f32 %v11583, %v11647
  %v11712 = vadd.f32 %v11584, %v11648
  %v11713 = vadd.f32 %v11585, %v11649
  %v11714 = vadd.f32 %v11586, %v11650
  %v11715 = vadd.f32 %v11587, %v11651
  %v11716 = vadd.f32 %v11588, %v11652
  %v11717 = vadd.f32 %v11589, %v11653
  %v11718 = vadd.f32 %v11590, %v11654
  %v11719 = vadd.f32 %v11591, %v11655
  %v11720 = vadd.f32 %v11592, %v11656
  %v11721 = vadd.f32 %v11593, %v11657
  %v11722 = vadd.f32 %v11594, %v11658
  %v11723 = vadd.f32 %v11595, %v11659
  %v11724 = vadd.f32 %v11596, %v11660
  %v11725 = vadd.f32 %v11597, %v11661
  %v11726 = vadd.f32 %v11598, %v11662
  %v11727 = vadd.f32 %v11599, %v11663
  %v11728 = vadd.f32 %v11600, %v11664
  %v11729 = vadd.f32 %v11601, %v11665
  %v11730 = vadd.f32 %v11602, %v11666
  %v11731 = vadd.f32 %v11603, %v11667
  %v11732 = vmax.f32 %v11668, 0.0
  %v11733 = vmax.f32 %v11669, 0.0
  %v11734 = vmax.f32 %v11670, 0.0
  %v11735 = vmax.f32 %v11671, 0.0
  %v11736 = vmax.f32 %v11672, 0.0
  %v11737 = vmax.f32 %v11673, 0.0
  %v11738 = vmax.f32 %v11674, 0.0
  %v11739 = vmax.f32 %v11675, 0.0
  %v11740 = vmax.f32 %v11676, 0.0
  %v11741 = vmax.f32 %v11677, 0.0
  %v11742 = vmax.f32 %v11678, 0.0
  %v11743 = vmax.f32 %v11679, 0.0
  %v11744 = vmax.f32 %v11680, 0.0
  %v11745 = vmax.f32 %v11681, 0.0
  %v11746 = vmax.f32 %v11682, 0.0
  %v11747 = vmax.f32 %v11683, 0.0
  %v11748 = vmax.f32 %v11684, 0.0
  %v11749 = vmax.f32 %v11685, 0.0
  %v11750 = vmax.f32 %v11686, 0.0
  %v11751 = vmax.f32 %v11687, 0.0
  %v11752 = vmax.f32 %v11688, 0.0
  %v11753 = vmax.f32 %v11689, 0.0
  %v11754 = vmax.f32 %v11690, 0.0
  %v11755 = vmax.f32 %v11691, 0.0
  %v11756 = vmax.f32 %v11692, 0.0
  %v11757 = vmax.f32 %v11693, 0.0
  %v11758 = vmax.f32 %v11694, 0.0
  %v11759 = vmax.f32 %v11695, 0.0
  %v11760 = vmax.f32 %v11696, 0.0
  %v11761 = vmax.f32 %v11697, 0.0
  %v11762 = vmax.f32 %v11698, 0.0
  %v11763 = vmax.f32 %v11699, 0.0
  %v11764 = vmax.f32 %v11700, 0.0
  %v11765 = vmax.f32 %v11701, 0.0
  %v11766 = vmax.f32 %v11702, 0.0
  %v11767 = vmax.f32 %v11703, 0.0
  %v11768 = vmax.f32 %v11704, 0.0
  %v11769 = vmax.f32 %v11705, 0.0
  %v11770 = vmax.f32 %v11706, 0.0
  %v11771 = vmax.f32 %v11707, 0.0
  %v11772 = vmax.f32 %v11708, 0.0
  %v11773 = vmax.f32 %v11709, 0.0
  %v11774 = vmax.f32 %v11710, 0.0
  %v11775 = vmax.f32 %v11711, 0.0
  %v11776 = vmax.f32 %v11712, 0.0
  %v11777 = vmax.f32 %v11713, 0.0
  %v11778 = vmax.f32 %v11714, 0.0
  %v11779 = vmax.f32 %v11715, 0.0
  %v11780 = vmax.f32 %v11716, 0.0
  %v11781 = vmax.f32 %v11717, 0.0
  %v11782 = vmax.f32 %v11718, 0.0
  %v11783 = vmax.f32 %v11719, 0.0
  %v11784 = vmax.f32 %v11720, 0.0
  %v11785 = vmax.f32 %v11721, 0.0
  %v11786 = vmax.f32 %v11722, 0.0
  %v11787 = vmax.f32 %v11723, 0.0
  %v11788 = vmax.f32 %v11724, 0.0
  %v11789 = vmax.f32 %v11725, 0.0
  %v11790 = vmax.f32 %v11726, 0.0
  %v11791 = vmax.f32 %v11727, 0.0
  %v11792 = vmax.f32 %v11728, 0.0
  %v11793 = vmax.f32 %v11729, 0.0
  %v11794 = vmax.f32 %v11730, 0.0
  %v11795 = vmax.f32 %v11731, 0.0
  %11796 = vst.msk [vmem:[%s7] sm:$0xff] %vm27, %v11732
  %11797 = vst.msk [vmem:[%s7 + $0x8] sm:$0xff] %vm27, %v11733
  %11798 = vst.msk [vmem:[%s7 + $0x10] sm:$0xff] %vm27, %v11734
  %11799 = vst.msk [vmem:[%s7 + $0x18] sm:$0xff] %vm27, %v11735
  %11800 = vst.msk [vmem:[%s7 + $0x20] sm:$0xff] %vm27, %v11736
  %11801 = vst.msk [vmem:[%s7 + $0x28] sm:$0xff] %vm27, %v11737
  %11802 = vst.msk [vmem:[%s7 + $0x30] sm:$0xff] %vm27, %v11738
  %11803 = vst.msk [vmem:[%s7 + $0x38] sm:$0xff] %vm27, %v11739
  %11804 = vst.msk [vmem:[%s7 + $0x40] sm:$0xff] %vm27, %v11740
  %11805 = vst.msk [vmem:[%s7 + $0x48] sm:$0xff] %vm27, %v11741
  %11806 = vst.msk [vmem:[%s7 + $0x50] sm:$0xff] %vm27, %v11742
  %11807 = vst.msk [vmem:[%s7 + $0x58] sm:$0xff] %vm27, %v11743
  %11808 = vst.msk [vmem:[%s7 + $0x60] sm:$0xff] %vm27, %v11744
  %11809 = vst.msk [vmem:[%s7 + $0x68] sm:$0xff] %vm27, %v11745
  %11810 = vst.msk [vmem:[%s7 + $0x70] sm:$0xff] %vm27, %v11746
  %11811 = vst.msk [vmem:[%s7 + $0x78] sm:$0xff] %vm27, %v11747
  %11812 = vst.msk [vmem:[%s7 + $0x80] sm:$0xff] %vm27, %v11748
  %11813 = vst.msk [vmem:[%s7 + $0x88] sm:$0xff] %vm27, %v11749
  %11814 = vst.msk [vmem:[%s7 + $0x90] sm:$0xff] %vm27, %v11750
  %11815 = vst.msk [vmem:[%s7 + $0x98] sm:$0xff] %vm27, %v11751
  %11816 = vst.msk [vmem:[%s7 + $0xa0] sm:$0xff] %vm27, %v11752
  %11817 = vst.msk [vmem:[%s7 + $0xa8] sm:$0xff] %vm27, %v11753
  %11818 = vst.msk [vmem:[%s7 + $0xb0] sm:$0xff] %vm27, %v11754
  %11819 = vst.msk [vmem:[%s7 + $0xb8] sm:$0xff] %vm27, %v11755
  %11820 = vst.msk [vmem:[%s7 + $0xc0] sm:$0xff] %vm27, %v11756
  %11821 = vst.msk [vmem:[%s7 + $0xc8] sm:$0xff] %vm27, %v11757
  %11822 = vst.msk [vmem:[%s7 + $0xd0] sm:$0xff] %vm27, %v11758
  %11823 = vst.msk [vmem:[%s7 + $0xd8] sm:$0xff] %vm27, %v11759
  %11824 = vst.msk [vmem:[%s7 + $0xe0] sm:$0xff] %vm27, %v11760
  %11825 = vst.msk [vmem:[%s7 + $0xe8] sm:$0xff] %vm27, %v11761
  %11826 = vst.msk [vmem:[%s7 + $0xf0] sm:$0xff] %vm27, %v11762
  %11827 = vst.msk [vmem:[%s7 + $0xf8] sm:$0xff] %vm27, %v11763
  %11828 = vst.msk [vmem:[%s7 + $0x100] sm:$0xff] %vm27, %v11764
  %11829 = vst.msk [vmem:[%s7 + $0x108] sm:$0xff] %vm27, %v11765
  %11830 = vst.msk [vmem:[%s7 + $0x110] sm:$0xff] %vm27, %v11766
  %11831 = vst.msk [vmem:[%s7 + $0x118] sm:$0xff] %vm27, %v11767
  %11832 = vst.msk [vmem:[%s7 + $0x120] sm:$0xff] %vm27, %v11768
  %11833 = vst.msk [vmem:[%s7 + $0x128] sm:$0xff] %vm27, %v11769
  %11834 = vst.msk [vmem:[%s7 + $0x130] sm:$0xff] %vm27, %v11770
  %11835 = vst.msk [vmem:[%s7 + $0x138] sm:$0xff] %vm27, %v11771
  %11836 = vst.msk [vmem:[%s7 + $0x140] sm:$0xff] %vm27, %v11772
  %11837 = vst.msk [vmem:[%s7 + $0x148] sm:$0xff] %vm27, %v11773
  %11838 = vst.msk [vmem:[%s7 + $0x150] sm:$0xff] %vm27, %v11774
  %11839 = vst.msk [vmem:[%s7 + $0x158] sm:$0xff] %vm27, %v11775
  %11840 = vst.msk [vmem:[%s7 + $0x160] sm:$0xff] %vm27, %v11776
  %11841 = vst.msk [vmem:[%s7 + $0x168] sm:$0xff] %vm27, %v11777
  %11842 = vst.msk [vmem:[%s7 + $0x170] sm:$0xff] %vm27, %v11778
  %11843 = vst.msk [vmem:[%s7 + $0x178] sm:$0xff] %vm27, %v11779
  %11844 = vst.msk [vmem:[%s7 + $0x180] sm:$0xff] %vm27, %v11780
  %11845 = vst.msk [vmem:[%s7 + $0x188] sm:$0xff] %vm27, %v11781
  %11846 = vst.msk [vmem:[%s7 + $0x190] sm:$0xff] %vm27, %v11782
  %11847 = vst.msk [vmem:[%s7 + $0x198] sm:$0xff] %vm27, %v11783
  %11848 = vst.msk [vmem:[%s7 + $0x1a0] sm:$0xff] %vm27, %v11784
  %11849 = vst.msk [vmem:[%s7 + $0x1a8] sm:$0xff] %vm27, %v11785
  %11850 = vst.msk [vmem:[%s7 + $0x1b0] sm:$0xff] %vm27, %v11786
  %11851 = vst.msk [vmem:[%s7 + $0x1b8] sm:$0xff] %vm27, %v11787
  %11852 = vst.msk [vmem:[%s7 + $0x1c0] sm:$0xff] %vm27, %v11788
  %11853 = vst.msk [vmem:[%s7 + $0x1c8] sm:$0xff] %vm27, %v11789
  %11854 = vst.msk [vmem:[%s7 + $0x1d0] sm:$0xff] %vm27, %v11790
  %11855 = vst.msk [vmem:[%s7 + $0x1d8] sm:$0xff] %vm27, %v11791
  %11856 = vst.msk [vmem:[%s7 + $0x1e0] sm:$0xff] %vm27, %v11792
  %11857 = vst.msk [vmem:[%s7 + $0x1e8] sm:$0xff] %vm27, %v11793
  %11858 = vst.msk [vmem:[%s7 + $0x1f0] sm:$0xff] %vm27, %v11794
  %11859 = vst.msk [vmem:[%s7 + $0x1f8] sm:$0xff] %vm27, %v11795
  // Predicated region
  $region30: #{tpu_custom_call.1} parent=0 // pred_check
    _
  $region31: #{tpu_custom_call.1} parent=0 // pred_check_branch
    %11861 = sbr.rel (0) target = $region33
  $region32: #{tpu_custom_call.1} parent=0 // pred_region
    _
  $region33: #{tpu_custom_call.1} parent=0 // pred_fallthru
    _
  // Predicated region
  $region34: #{tpu_custom_call.1} parent=0 // pred_check
    _
  $region35: #{tpu_custom_call.1} parent=0 // pred_check_branch
    %11863 = sbr.rel (0) target = $region37
  $region36: #{tpu_custom_call.1} parent=0 // pred_region
    _
  $region37: #{tpu_custom_call.1} parent=0 // pred_fallthru
    _

</llo_original>
